<compile_context>
chip_gen: v5e
topology: v5e:2x2
jax: 0.10.0
libtpu: 0.0.40
codegen_flags: <defaults>
</compile_context>

<pallas_src>
import jax
import jax.numpy as jnp
from jax import lax
from jax.experimental import pallas as pl
from jax.experimental.pallas import tpu as pltpu


# ----------------------------- configuration -------------------------------
class Config:
    advance = False                 # TODO(synk): advance=True bilinear (A1/A2) path not implemented
    max_num_utterance = 3
    max_sentence_len = 20           # (L-2)//3 == 6  ->  8*6*6 == 288 (hardcoded linear in-features)
    word_embedding_size = 32
    GRU1_hidden_size = 32
    GRU2_hidden_size = 16
    total_words = 100
    v_length = 16


OC = 8                              # conv out-channels (nn.Conv2d(2, 8, 3))


# ----------------------------- BlockSpec helpers ---------------------------
def _full_spec(a):
    nd = a.ndim
    return pl.BlockSpec(a.shape, lambda b: (0,) * nd)


def _per_b_spec(shape):
    nd = len(shape)
    return pl.BlockSpec((1,) + tuple(shape[1:]), lambda b: (b,) + (0,) * (nd - 1))


def _round_up(n, m):
    return ((n + m - 1) // m) * m


# ---------------------- fused utterance+response GRU -----------------------
# Both GRUs (PyTorch nn.GRU semantics, gate order [r, z, n], weights stored
# transposed, biases stacked as (2, 3H)) run inside one pallas_call.  Inputs
# are time-major, padded to 8 batch rows, flattened to 2D (T*NP, E) so the
# input projection is one MXU matmul; the serial loop only does h @ W_hh.
def _make_dual_gru_kernel(T, NPu, NPr, Hu, Hr):
    def kernel(xu_ref, xr_ref, wihu_ref, whhu_ref, bu_ref,
               wihr_ref, whhr_ref, br_ref,
               outu_ref, hfinu_ref, outr_ref,
               gxu_ref, gxr_ref):

        def fold_bias(b_ref, H):
            # fold b_ih (all gates) + b_hh (r, z gates) into the hoisted projection;
            # only the n-gate hidden bias stays on the recurrence path.
            b_ih = b_ref[0:1, :]
            b_hh = b_ref[1:2, :]
            lane = lax.broadcasted_iota(jnp.int32, (1, 3 * H), 1)
            gx_bias = b_ih + jnp.where(lane < 2 * H, b_hh, 0.0)
            return gx_bias, b_hh[:, 2 * H:]

        gxb_u, bhn_u = fold_bias(bu_ref, Hu)
        gxb_r, bhn_r = fold_bias(br_ref, Hr)

        # hoisted input projections: one big MXU dot per sequence
        gxu_ref[...] = jnp.dot(xu_ref[...], wihu_ref[...],
                               preferred_element_type=jnp.float32) + gxb_u
        gxr_ref[...] = jnp.dot(xr_ref[...], wihr_ref[...],
                               preferred_element_type=jnp.float32) + gxb_r

        whh_u = whhu_ref[...]
        whh_r = whhr_ref[...]

        def cell(gx, h, whh, bhn, H):
            gh = jnp.dot(h, whh, preferred_element_type=jnp.float32)
            r = jax.nn.sigmoid(gx[:, :H] + gh[:, :H])
            z = jax.nn.sigmoid(gx[:, H:2 * H] + gh[:, H:2 * H])
            n = jnp.tanh(gx[:, 2 * H:] + r * (gh[:, 2 * H:] + bhn))
            return (1.0 - z) * n + z * h

        h_u = jnp.zeros((NPu, Hu), jnp.float32)
        h_r = jnp.zeros((NPr, Hr), jnp.float32)
        # Interleaved, fully-unrolled recurrence: both chains in one body (ILP),
        # static 8-aligned slices/stores, tiny carry (2 vregs) so no spill risk.
        for t in range(T):
            gx_u = gxu_ref[pl.ds(t * NPu, NPu), :]
            gx_r = gxr_ref[pl.ds(t * NPr, NPr), :]
            h_u = cell(gx_u, h_u, whh_u, bhn_u, Hu)
            h_r = cell(gx_r, h_r, whh_r, bhn_r, Hr)
            outu_ref[t] = h_u
            outr_ref[t] = h_r

        hfinu_ref[...] = h_u

    return kernel


def dual_gru_forward(xu, xr, wih_u, whh_u, b_u, wih_r, whh_r, b_r, T, NPu, NPr):
    """xu: (T*NPu, E) time-major flattened (padded); xr: (T*NPr, E).
    Returns (utt_out (T,NPu,H1), utt_hfin (NPu,H1), resp_out (T,NPr,H1))."""
    Hu = whh_u.shape[0]
    Hr = whh_r.shape[0]
    kernel = _make_dual_gru_kernel(T, NPu, NPr, Hu, Hr)
    return pl.pallas_call(
        kernel,
        out_shape=(jax.ShapeDtypeStruct((T, NPu, Hu), jnp.float32),
                   jax.ShapeDtypeStruct((NPu, Hu), jnp.float32),
                   jax.ShapeDtypeStruct((T, NPr, Hr), jnp.float32)),
        grid=(1,),
        in_specs=[_full_spec(xu), _full_spec(xr),
                  _full_spec(wih_u), _full_spec(whh_u), _full_spec(b_u),
                  _full_spec(wih_r), _full_spec(whh_r), _full_spec(b_r)],
        out_specs=(pl.BlockSpec((T, NPu, Hu), lambda i: (0, 0, 0)),
                   pl.BlockSpec((NPu, Hu), lambda i: (0, 0)),
                   pl.BlockSpec((T, NPr, Hr), lambda i: (0, 0, 0))),
        scratch_shapes=[pltpu.VMEM((T * NPu, 3 * Hu), jnp.float32),
                        pltpu.VMEM((T * NPr, 3 * Hr), jnp.float32)],
    )(xu, xr, wih_u, whh_u, b_u, wih_r, whh_r, b_r)


# ----------- fused matching-vector + final GRU/attention kernel ------------
# grid=(B,), "parallel"; each step processes ALL U utterances of one batch
# element and emits the final logits:
#   m1 = utt_emb . resp_emb^T, m2 = utt_gru . resp_gru^T  (dot_general, no
#   wrapper transposes), 3x3 conv == ONE MXU matmul against a host-built
#   block weight with the dx shifts folded in, 3x3/stride-3 max pool via wide
#   maxima + strided sublane loads, 288->V linear, then the final GRU over
#   utterances + attention + classifier fused per-b.
def _make_match_final_kernel(U, L, H1, H2, V):
    Lc = L - 2
    P = Lc // 3

    def kernel(ue_ref, ug_ref, re_ref, rg_ref, hs_ref,
               wbig_ref, bbig_ref, linw_ref, linb_ref,
               fwih_ref, fwhh_ref, fgb_ref,
               w11t_ref, w12t_ref, b1_ref, ts_ref,
               clw_ref, clb_ref,
               logp_ref, prob_ref,
               xp_ref, pool_ref):
        ue = ue_ref[0]        # (U*L, E)
        ug = ug_ref[0]        # (U*L, H1)
        re = re_ref[0]        # (L, E)
        rg = rg_ref[0]        # (L, H1)

        # cross matrices: contract last dims (A . B^T), no transposed operands
        dn = (((1,), (1,)), ((), ()))
        m1 = lax.dot_general(ue, re, dn, preferred_element_type=jnp.float32)   # (U*L, L)
        m2 = lax.dot_general(ug, rg, dn, preferred_element_type=jnp.float32)   # (U*L, L)
        mm = jnp.concatenate([m1, m2], axis=1)                                 # (U*L, 2L)

        # im2col over ROWS only (dy); the dx lane shifts live in conv_wbig.
        blocks = []
        for u in range(U):
            base = u * L
            taps = [mm[base + dy: base + dy + Lc, :] for dy in range(3)]
            blocks.append(jnp.concatenate(taps, axis=1))                       # (Lc, 6L)
        acat = jnp.concatenate(blocks, axis=0)                                 # (U*Lc, 6L)

        # whole 2-in/8-out 3x3 conv as ONE matmul (+ bias + ReLU); output lane
        # order is (r, j, o) with x = 3j + r so x-pooling is 2 wide maxima.
        conv = jnp.dot(acat, wbig_ref[...], preferred_element_type=jnp.float32)
        conv = jnp.maximum(conv + bbig_ref[...], 0.0)                          # (U*Lc, Lc*OC)

        Wp = P * OC
        xp = jnp.maximum(jnp.maximum(conv[:, :Wp], conv[:, Wp:2 * Wp]),
                         conv[:, 2 * Wp:3 * Wp])                               # (U*Lc, P*OC)

        # y-direction pool: 3 stride-3 sublane loads + 2 maxima
        xp_ref[...] = xp
        pooled = jnp.maximum(
            jnp.maximum(xp_ref[pl.ds(0, U * P, stride=3), :],
                        xp_ref[pl.ds(1, U * P, stride=3), :]),
            xp_ref[pl.ds(2, U * P, stride=3), :])                              # (U*P, P*OC)

        # flatten to (U, 288) with lane order (i, j, o) via P stride-P loads
        pool_ref[...] = pooled
        flat = jnp.concatenate(
            [pool_ref[pl.ds(i, U, stride=P), :] for i in range(P)], axis=1)    # (U, P*P*OC)

        mv = jnp.tanh(jnp.dot(flat, linw_ref[...],
                              preferred_element_type=jnp.float32) + linb_ref[...])  # (U, V)

        # ----- final GRU over utterances + attention + classifier (per-b) -----
        hsb = hs_ref[0]                                                        # (U, H1)
        b_ih2 = fgb_ref[0:1, :]
        b_hh2 = fgb_ref[1:2, :]
        # hoisted projections (whole U at once)
        gx_all = jnp.dot(mv, fwih_ref[...], preferred_element_type=jnp.float32) + b_ih2   # (U, 3H2)
        hp_all = jnp.dot(hsb, w11t_ref[...], preferred_element_type=jnp.float32) + b1_ref[...]  # (U, H2)
        fwhh = fwhh_ref[...]
        w12t = w12t_ref[...]
        ts = ts_ref[...]

        h = jnp.zeros((1, H2), jnp.float32)
        mg = []
        pa = []
        for u in range(U):
            gx = gx_all[u:u + 1, :]
            gh = jnp.dot(h, fwhh, preferred_element_type=jnp.float32) + b_hh2
            r = jax.nn.sigmoid(gx[:, :H2] + gh[:, :H2])
            z = jax.nn.sigmoid(gx[:, H2:2 * H2] + gh[:, H2:2 * H2])
            n = jnp.tanh(gx[:, 2 * H2:] + r * gh[:, 2 * H2:])
            h = (1.0 - z) * n + z * h
            mg.append(h)
            t_u = jnp.tanh(hp_all[u:u + 1, :] +
                           jnp.dot(h, w12t, preferred_element_type=jnp.float32))
            pa.append(jnp.sum(t_u * ts, axis=1, keepdims=True))                # (1, 1)

        pre = jnp.concatenate(pa, axis=1)                                      # (1, U)
        pre = pre - jnp.max(pre, axis=1, keepdims=True)
        e = jnp.exp(pre)
        alpha = e / jnp.sum(e, axis=1, keepdims=True)                          # softmax over U

        lvec = jnp.zeros((1, H2), jnp.float32)
        for u in range(U):
            lvec = lvec + alpha[:, u:u + 1] * mg[u]

        logits = jnp.dot(lvec, clw_ref[...], preferred_element_type=jnp.float32) + clb_ref[...]
        mx = jnp.max(logits, axis=1, keepdims=True)
        lse = mx + jnp.log(jnp.sum(jnp.exp(logits - mx), axis=1, keepdims=True))
        logp = logits - lse
        logp_ref[0] = logp
        prob_ref[0] = jnp.exp(logp)

    return kernel


def match_and_classify(ue, ug, re, rg, hs, p, U, L):
    B = ue.shape[0]
    H1 = ug.shape[-1]
    H2 = p["fin_whh"].shape[0]
    V = p["lin_b"].shape[1]
    Lc = L - 2
    P = Lc // 3
    kernel = _make_match_final_kernel(U, L, H1, H2, V)
    logp, prob = pl.pallas_call(
        kernel,
        out_shape=(jax.ShapeDtypeStruct((B, 1, 2), jnp.float32),
                   jax.ShapeDtypeStruct((B, 1, 2), jnp.float32)),
        grid=(B,),
        in_specs=[_per_b_spec(ue.shape), _per_b_spec(ug.shape),
                  _per_b_spec(re.shape), _per_b_spec(rg.shape), _per_b_spec(hs.shape),
                  _full_spec(p["conv_wbig"]), _full_spec(p["conv_bbig"]),
                  _full_spec(p["lin_w_perm"]), _full_spec(p["lin_b"]),
                  _full_spec(p["fin_wih"]), _full_spec(p["fin_whh"]), _full_spec(p["fin_b"]),
                  _full_spec(p["w11t"]), _full_spec(p["w12t"]),
                  _full_spec(p["b1"]), _full_spec(p["ts"]),
                  _full_spec(p["fw"]), _full_spec(p["fb"])],
        out_specs=(pl.BlockSpec((1, 1, 2), lambda b: (b, 0, 0)),
                   pl.BlockSpec((1, 1, 2), lambda b: (b, 0, 0))),
        scratch_shapes=[pltpu.VMEM((U * Lc, P * OC), jnp.float32),
                        pltpu.VMEM((U * P, P * OC), jnp.float32)],
        compiler_params=pltpu.CompilerParams(dimension_semantics=("parallel",)),
    )(ue, ug, re, rg, hs,
      p["conv_wbig"], p["conv_bbig"], p["lin_w_perm"], p["lin_b"],
      p["fin_wih"], p["fin_whh"], p["fin_b"],
      p["w11t"], p["w12t"], p["b1"], p["ts"], p["fw"], p["fb"])
    return logp.reshape(B, 2), prob.reshape(B, 2)


# ------------------------------ parameters ---------------------------------
def init_params(key, cfg):
    E, H1, H2, V, W = (cfg.word_embedding_size, cfg.GRU1_hidden_size,
                       cfg.GRU2_hidden_size, cfg.v_length, cfg.total_words)
    L = cfg.max_sentence_len
    Lc = L - 2
    P = Lc // 3
    assert Lc % 3 == 0 and OC * P * P == 288, "shapes must match nn.Linear(288, V)"

    ks = jax.random.split(key, 20)
    nrm = lambda k, shape, s=0.1: (s * jax.random.normal(k, shape)).astype(jnp.float32)

    conv_w = nrm(ks[7], (OC, 2, 3, 3), 0.3)          # (out=8, in=2, 3, 3) like nn.Conv2d
    conv_b = nrm(ks[8], (OC,), 0.1)
    lin_w = nrm(ks[9], (288, V), 0.05)               # torch flatten order: row = o*36 + i*6 + j

    p = {
        "embedding": nrm(ks[0], (W, E), 0.5),
        "utt_wih": nrm(ks[1], (E, 3 * H1)),  "utt_whh": nrm(ks[2], (H1, 3 * H1)),
        "utt_b":   nrm(ks[3], (2, 3 * H1)),
        "resp_wih": nrm(ks[4], (E, 3 * H1)), "resp_whh": nrm(ks[5], (H1, 3 * H1)),
        "resp_b":  nrm(ks[6], (2, 3 * H1)),
        "lin_b": nrm(ks[10], (1, V)),
        "fin_wih": nrm(ks[11], (V, 3 * H2)), "fin_whh": nrm(ks[12], (H2, 3 * H2)),
        "fin_b":   nrm(ks[13], (2, 3 * H2)),
        "w11t": nrm(ks[14], (H1, H2)),  "w12t": nrm(ks[15], (H2, H2)),
        "b1": nrm(ks[16], (1, H2)),     "ts": nrm(ks[17], (1, H2)),
        "fw": nrm(ks[18], (H2, 2)),     "fb": nrm(ks[19], (1, 2)),
    }

    # Block-structured conv weight with the dx (lane) shift folded in.
    # acat columns in the kernel: dy*2L + c*L + col  (row-window taps only).
    # conv output lanes:          r*(P*OC) + j*OC + o  with x_out = 3j + r.
    # wbig[dy*2L + c*L + col, lane(x_out, o)] = sum_dx conv_w[o,c,dy,dx]*(col == x_out+dx)
    w = jnp.transpose(conv_w, (1, 2, 3, 0))                                    # (c, dy, dx, o)
    col = jnp.arange(L)[:, None, None]
    xo = jnp.arange(Lc)[None, :, None]
    dxs = jnp.arange(3)[None, None, :]
    sel = (col == xo + dxs).astype(jnp.float32)                                # (L, Lc, 3)
    wfull = jnp.einsum('lxd,cydo->yclxo', sel, w)                              # (dy, c, col, x, o)
    wfull = wfull.reshape(3, 2, L, P, 3, OC).transpose(0, 1, 2, 4, 3, 5)       # (dy, c, col, r, j, o)
    p["conv_wbig"] = wfull.reshape(3 * 2 * L, Lc * OC)                         # (6L, Lc*OC)
    p["conv_bbig"] = jnp.tile(conv_b.reshape(1, OC), (1, Lc))                  # lane fastest dim = o

    # 288 -> V linear with rows permuted from the PyTorch (o, i, j) flatten
    # order to the kernel's pooled layout order (i, j, o).
    p["lin_w_perm"] = lin_w.reshape(OC, P, P, V).transpose(1, 2, 0, 3).reshape(P * P * OC, V)
    return p


# ------------------------------- forward -----------------------------------
def model_forward(params, utterance, response, cfg):
    if cfg.advance:
        # TODO(synk): advance=True bilinear (A1/A2) matching path not implemented
        raise NotImplementedError("advance=True path is not implemented")

    B, U, L = utterance.shape
    E, H1 = cfg.word_embedding_size, cfg.GRU1_hidden_size

    emb = params["embedding"]
    utt_emb = emb[utterance]                  # (B, U, L, E)  -- gather glue
    resp_emb = emb[response]                  # (B, L, E)

    # fused utterance + response GRUs: time-major, batch rows padded to 8 so
    # every per-step slice/store in the recurrence is sublane-aligned.
    Nu, Nr = B * U, B
    NPu, NPr = _round_up(Nu, 8), _round_up(Nr, 8)
    xu = jnp.pad(utt_emb.reshape(Nu, L, E), ((0, NPu - Nu), (0, 0), (0, 0)))
    xu = jnp.transpose(xu, (1, 0, 2)).reshape(L * NPu, E)
    xr = jnp.pad(resp_emb, ((0, NPr - Nr), (0, 0), (0, 0)))
    xr = jnp.transpose(xr, (1, 0, 2)).reshape(L * NPr, E)

    utt_out, utt_hfin, resp_out = dual_gru_forward(
        xu, xr, params["utt_wih"], params["utt_whh"], params["utt_b"],
        params["resp_wih"], params["resp_whh"], params["resp_b"], L, NPu, NPr)
    # utt_out: (L, NPu, H1)   utt_hfin: (NPu, H1)   resp_out: (L, NPr, H1)

    ue = utt_emb.reshape(B, U * L, E)
    ug = jnp.transpose(utt_out, (1, 0, 2))[:Nu].reshape(B, U * L, H1)
    rg = jnp.transpose(resp_out, (1, 0, 2))[:Nr]          # (B, L, H1), lane-dense
    hs = utt_hfin[:Nu].reshape(B, U, H1)                  # (B, U, H1)

    # fused matching + final GRU + attention + classifier (per-b grid step)
    y_pred, y_pred_pro = match_and_classify(ue, ug, resp_emb, rg, hs, params, U, L)
    return y_pred, y_pred_pro


# --------------------------------- main -------------------------------------
if __name__ == "__main__":
    cfg = Config()
    key = jax.random.PRNGKey(0)
    k_p, k_u, k_r = jax.random.split(key, 3)

    params = init_params(k_p, cfg)

    B = 2
    utterance = jax.random.randint(
        k_u, (B, cfg.max_num_utterance, cfg.max_sentence_len), 0, cfg.total_words)
    response = jax.random.randint(
        k_r, (B, cfg.max_sentence_len), 0, cfg.total_words)

    fwd = jax.jit(lambda p, u, r: model_forward(p, u, r, cfg))
    y_pred, y_pred_pro = fwd(params, utterance, response)
    y_pred = jax.block_until_ready(y_pred)
    y_pred_pro = jax.block_until_ready(y_pred_pro)

    assert y_pred.shape == (B, 2) and y_pred_pro.shape == (B, 2)
    assert bool(jnp.all(jnp.isfinite(y_pred))) and bool(jnp.all(jnp.isfinite(y_pred_pro)))
    assert bool(jnp.allclose(jnp.sum(y_pred_pro, axis=1), 1.0, atol=1e-4))
    print("KERNEL_OK")
</pallas_src>

<mosaic_0001>
module attributes {stable_mosaic.version = 11 : i64} {
  func.func @kernel(%arg0: i32, %arg1: memref<160x32xf32, #tpu.memory_space<vmem>>, %arg2: memref<160x32xf32, #tpu.memory_space<vmem>>, %arg3: memref<32x96xf32, #tpu.memory_space<vmem>>, %arg4: memref<32x96xf32, #tpu.memory_space<vmem>>, %arg5: memref<2x96xf32, #tpu.memory_space<vmem>>, %arg6: memref<32x96xf32, #tpu.memory_space<vmem>>, %arg7: memref<32x96xf32, #tpu.memory_space<vmem>>, %arg8: memref<2x96xf32, #tpu.memory_space<vmem>>, %arg9: memref<20x8x32xf32, #tpu.memory_space<vmem>>, %arg10: memref<8x32xf32, #tpu.memory_space<vmem>>, %arg11: memref<20x8x32xf32, #tpu.memory_space<vmem>>, %arg12: memref<160x96xf32, #tpu.memory_space<vmem>>, %arg13: memref<160x96xf32, #tpu.memory_space<vmem>>) attributes {dimension_semantics = [#tpu.dimension_semantics<arbitrary>], iteration_bounds = array<i64: 1>, scalar_prefetch = 0 : i64, scratch_operands = 2 : i64, tpu.core_type = #tpu.core_type<tc>, window_params = [{pipeline_mode = #tpu.pipeline_mode<synchronous>, transform_indices = @transform_0, window_bounds = array<i64: 160, 32>}, {pipeline_mode = #tpu.pipeline_mode<synchronous>, transform_indices = @transform_1, window_bounds = array<i64: 160, 32>}, {pipeline_mode = #tpu.pipeline_mode<synchronous>, transform_indices = @transform_2, window_bounds = array<i64: 32, 96>}, {pipeline_mode = #tpu.pipeline_mode<synchronous>, transform_indices = @transform_3, window_bounds = array<i64: 32, 96>}, {pipeline_mode = #tpu.pipeline_mode<synchronous>, transform_indices = @transform_4, window_bounds = array<i64: 2, 96>}, {pipeline_mode = #tpu.pipeline_mode<synchronous>, transform_indices = @transform_5, window_bounds = array<i64: 32, 96>}, {pipeline_mode = #tpu.pipeline_mode<synchronous>, transform_indices = @transform_6, window_bounds = array<i64: 32, 96>}, {pipeline_mode = #tpu.pipeline_mode<synchronous>, transform_indices = @transform_7, window_bounds = array<i64: 2, 96>}, {pipeline_mode = #tpu.pipeline_mode<synchronous>, transform_indices = @transform_8, window_bounds = array<i64: 20, 8, 32>}, {pipeline_mode = #tpu.pipeline_mode<synchronous>, transform_indices = @transform_9, window_bounds = array<i64: 8, 32>}, {pipeline_mode = #tpu.pipeline_mode<synchronous>, transform_indices = @transform_10, window_bounds = array<i64: 20, 8, 32>}]} {
    %c0 = arith.constant 0 : index
    %c0_0 = arith.constant 0 : index
    %0 = vector.load %arg5[%c0, %c0_0] : memref<2x96xf32, #tpu.memory_space<vmem>>, vector<1x96xf32>
    %c1 = arith.constant 1 : index
    %c0_1 = arith.constant 0 : index
    %1 = vector.load %arg5[%c1, %c0_1] : memref<2x96xf32, #tpu.memory_space<vmem>>, vector<1x96xf32>
    %2 = tpu.iota {dimensions = array<i32: 1>} : vector<1x96xi32>
    %c64_i32 = arith.constant 64 : i32
    %3 = vector.broadcast %c64_i32 : i32 to vector<1x96xi32>
    %4 = arith.cmpi slt, %2, %3 : vector<1x96xi32>
    %cst = arith.constant 0.000000e+00 : f32
    %5 = vector.broadcast %cst : f32 to vector<1x96xf32>
    %6 = arith.select %4, %1, %5 : vector<1x96xi1>, vector<1x96xf32>
    %7 = arith.addf %0, %6 : vector<1x96xf32>
    %8 = vector.extract_strided_slice %1 {offsets = [0, 64], sizes = [1, 32], strides = [1, 1]} : vector<1x96xf32> to vector<1x32xf32>
    %c0_2 = arith.constant 0 : index
    %c0_3 = arith.constant 0 : index
    %9 = vector.load %arg8[%c0_2, %c0_3] : memref<2x96xf32, #tpu.memory_space<vmem>>, vector<1x96xf32>
    %c1_4 = arith.constant 1 : index
    %c0_5 = arith.constant 0 : index
    %10 = vector.load %arg8[%c1_4, %c0_5] : memref<2x96xf32, #tpu.memory_space<vmem>>, vector<1x96xf32>
    %11 = tpu.iota {dimensions = array<i32: 1>} : vector<1x96xi32>
    %c64_i32_6 = arith.constant 64 : i32
    %12 = vector.broadcast %c64_i32_6 : i32 to vector<1x96xi32>
    %13 = arith.cmpi slt, %11, %12 : vector<1x96xi32>
    %cst_7 = arith.constant 0.000000e+00 : f32
    %14 = vector.broadcast %cst_7 : f32 to vector<1x96xf32>
    %15 = arith.select %13, %10, %14 : vector<1x96xi1>, vector<1x96xf32>
    %16 = arith.addf %9, %15 : vector<1x96xf32>
    %17 = vector.extract_strided_slice %10 {offsets = [0, 64], sizes = [1, 32], strides = [1, 1]} : vector<1x96xf32> to vector<1x32xf32>
    %c0_8 = arith.constant 0 : index
    %c0_9 = arith.constant 0 : index
    %18 = vector.load %arg1[%c0_8, %c0_9] : memref<160x32xf32, #tpu.memory_space<vmem>>, vector<160x32xf32>
    %c0_10 = arith.constant 0 : index
    %c0_11 = arith.constant 0 : index
    %19 = vector.load %arg3[%c0_10, %c0_11] : memref<32x96xf32, #tpu.memory_space<vmem>>, vector<32x96xf32>
    %cst_12 = arith.constant dense<0.000000e+00> : vector<160x96xf32>
    %20 = tpu.matmul %18, %19, %cst_12 {dimension_numbers = #tpu.dot_dimension_numbers<[1], [0], [0], [1], [0, 0, 1, 1], [], []>} : vector<160x32xf32>, vector<32x96xf32>, vector<160x96xf32> -> vector<160x96xf32>
    %21 = vector.broadcast %7 : vector<1x96xf32> to vector<160x96xf32>
    %22 = arith.addf %20, %21 : vector<160x96xf32>
    %c0_13 = arith.constant 0 : index
    %c0_14 = arith.constant 0 : index
    %23 = vector.load %arg12[%c0_13, %c0_14] : memref<160x96xf32, #tpu.memory_space<vmem>>, vector<160x96xf32>
    tpu.vector_store %arg12[%c0_13, %c0_14], %22 {strides = array<i32>} : memref<160x96xf32, #tpu.memory_space<vmem>>, vector<160x96xf32>,
    %c0_15 = arith.constant 0 : index
    %c0_16 = arith.constant 0 : index
    %24 = vector.load %arg2[%c0_15, %c0_16] : memref<160x32xf32, #tpu.memory_space<vmem>>, vector<160x32xf32>
    %c0_17 = arith.constant 0 : index
    %c0_18 = arith.constant 0 : index
    %25 = vector.load %arg6[%c0_17, %c0_18] : memref<32x96xf32, #tpu.memory_space<vmem>>, vector<32x96xf32>
    %cst_19 = arith.constant dense<0.000000e+00> : vector<160x96xf32>
    %26 = tpu.matmul %24, %25, %cst_19 {dimension_numbers = #tpu.dot_dimension_numbers<[1], [0], [0], [1], [0, 0, 1, 1], [], []>} : vector<160x32xf32>, vector<32x96xf32>, vector<160x96xf32> -> vector<160x96xf32>
    %27 = vector.broadcast %16 : vector<1x96xf32> to vector<160x96xf32>
    %28 = arith.addf %26, %27 : vector<160x96xf32>
    %c0_20 = arith.constant 0 : index
    %c0_21 = arith.constant 0 : index
    %29 = vector.load %arg13[%c0_20, %c0_21] : memref<160x96xf32, #tpu.memory_space<vmem>>, vector<160x96xf32>
    tpu.vector_store %arg13[%c0_20, %c0_21], %28 {strides = array<i32>} : memref<160x96xf32, #tpu.memory_space<vmem>>, vector<160x96xf32>,
    %c0_22 = arith.constant 0 : index
    %c0_23 = arith.constant 0 : index
    %30 = vector.load %arg4[%c0_22, %c0_23] : memref<32x96xf32, #tpu.memory_space<vmem>>, vector<32x96xf32>
    %c0_24 = arith.constant 0 : index
    %c0_25 = arith.constant 0 : index
    %31 = vector.load %arg7[%c0_24, %c0_25] : memref<32x96xf32, #tpu.memory_space<vmem>>, vector<32x96xf32>
    %cst_26 = arith.constant 0.000000e+00 : f32
    %32 = vector.broadcast %cst_26 : f32 to vector<8x32xf32>
    %cst_27 = arith.constant 0.000000e+00 : f32
    %33 = vector.broadcast %cst_27 : f32 to vector<8x32xf32>
    %c0_28 = arith.constant 0 : index
    %c0_29 = arith.constant 0 : index
    %34 = vector.load %arg12[%c0_28, %c0_29] : memref<160x96xf32, #tpu.memory_space<vmem>>, vector<8x96xf32>
    %c0_30 = arith.constant 0 : index
    %c0_31 = arith.constant 0 : index
    %35 = vector.load %arg13[%c0_30, %c0_31] : memref<160x96xf32, #tpu.memory_space<vmem>>, vector<8x96xf32>
    %cst_32 = arith.constant dense<0.000000e+00> : vector<8x96xf32>
    %36 = tpu.matmul %32, %30, %cst_32 {dimension_numbers = #tpu.dot_dimension_numbers<[1], [0], [0], [1], [0, 0, 1, 1], [], []>} : vector<8x32xf32>, vector<32x96xf32>, vector<8x96xf32> -> vector<8x96xf32>
    %37 = vector.extract_strided_slice %34 {offsets = [0, 0], sizes = [8, 32], strides = [1, 1]} : vector<8x96xf32> to vector<8x32xf32>
    %38 = vector.extract_strided_slice %36 {offsets = [0, 0], sizes = [8, 32], strides = [1, 1]} : vector<8x96xf32> to vector<8x32xf32>
    %39 = arith.addf %37, %38 : vector<8x32xf32>
    %40 = arith.negf %39 : vector<8x32xf32>
    %41 = math.exp %40 : vector<8x32xf32>
    %cst_33 = arith.constant 1.000000e+00 : f32
    %42 = vector.broadcast %cst_33 : f32 to vector<8x32xf32>
    %43 = arith.addf %42, %41 : vector<8x32xf32>
    %44 = arith.divf %42, %43 : vector<8x32xf32>
    %45 = vector.extract_strided_slice %34 {offsets = [0, 32], sizes = [8, 32], strides = [1, 1]} : vector<8x96xf32> to vector<8x32xf32>
    %46 = vector.extract_strided_slice %36 {offsets = [0, 32], sizes = [8, 32], strides = [1, 1]} : vector<8x96xf32> to vector<8x32xf32>
    %47 = arith.addf %45, %46 : vector<8x32xf32>
    %48 = arith.negf %47 : vector<8x32xf32>
    %49 = math.exp %48 : vector<8x32xf32>
    %cst_34 = arith.constant 1.000000e+00 : f32
    %50 = vector.broadcast %cst_34 : f32 to vector<8x32xf32>
    %51 = arith.addf %50, %49 : vector<8x32xf32>
    %52 = arith.divf %50, %51 : vector<8x32xf32>
    %53 = vector.extract_strided_slice %34 {offsets = [0, 64], sizes = [8, 32], strides = [1, 1]} : vector<8x96xf32> to vector<8x32xf32>
    %54 = vector.extract_strided_slice %36 {offsets = [0, 64], sizes = [8, 32], strides = [1, 1]} : vector<8x96xf32> to vector<8x32xf32>
    %55 = vector.broadcast %8 : vector<1x32xf32> to vector<8x32xf32>
    %56 = arith.addf %54, %55 : vector<8x32xf32>
    %57 = arith.mulf %44, %56 : vector<8x32xf32>
    %58 = arith.addf %53, %57 : vector<8x32xf32>
    %59 = math.tanh %58 : vector<8x32xf32>
    %cst_35 = arith.constant 1.000000e+00 : f32
    %60 = vector.broadcast %cst_35 : f32 to vector<8x32xf32>
    %61 = arith.subf %60, %52 : vector<8x32xf32>
    %62 = arith.mulf %61, %59 : vector<8x32xf32>
    %63 = arith.mulf %52, %32 : vector<8x32xf32>
    %64 = arith.addf %62, %63 : vector<8x32xf32>
    %cst_36 = arith.constant dense<0.000000e+00> : vector<8x96xf32>
    %65 = tpu.matmul %33, %31, %cst_36 {dimension_numbers = #tpu.dot_dimension_numbers<[1], [0], [0], [1], [0, 0, 1, 1], [], []>} : vector<8x32xf32>, vector<32x96xf32>, vector<8x96xf32> -> vector<8x96xf32>
    %66 = vector.extract_strided_slice %35 {offsets = [0, 0], sizes = [8, 32], strides = [1, 1]} : vector<8x96xf32> to vector<8x32xf32>
    %67 = vector.extract_strided_slice %65 {offsets = [0, 0], sizes = [8, 32], strides = [1, 1]} : vector<8x96xf32> to vector<8x32xf32>
    %68 = arith.addf %66, %67 : vector<8x32xf32>
    %69 = arith.negf %68 : vector<8x32xf32>
    %70 = math.exp %69 : vector<8x32xf32>
    %cst_37 = arith.constant 1.000000e+00 : f32
    %71 = vector.broadcast %cst_37 : f32 to vector<8x32xf32>
    %72 = arith.addf %71, %70 : vector<8x32xf32>
    %73 = arith.divf %71, %72 : vector<8x32xf32>
    %74 = vector.extract_strided_slice %35 {offsets = [0, 32], sizes = [8, 32], strides = [1, 1]} : vector<8x96xf32> to vector<8x32xf32>
    %75 = vector.extract_strided_slice %65 {offsets = [0, 32], sizes = [8, 32], strides = [1, 1]} : vector<8x96xf32> to vector<8x32xf32>
    %76 = arith.addf %74, %75 : vector<8x32xf32>
    %77 = arith.negf %76 : vector<8x32xf32>
    %78 = math.exp %77 : vector<8x32xf32>
    %cst_38 = arith.constant 1.000000e+00 : f32
    %79 = vector.broadcast %cst_38 : f32 to vector<8x32xf32>
    %80 = arith.addf %79, %78 : vector<8x32xf32>
    %81 = arith.divf %79, %80 : vector<8x32xf32>
    %82 = vector.extract_strided_slice %35 {offsets = [0, 64], sizes = [8, 32], strides = [1, 1]} : vector<8x96xf32> to vector<8x32xf32>
    %83 = vector.extract_strided_slice %65 {offsets = [0, 64], sizes = [8, 32], strides = [1, 1]} : vector<8x96xf32> to vector<8x32xf32>
    %84 = vector.broadcast %17 : vector<1x32xf32> to vector<8x32xf32>
    %85 = arith.addf %83, %84 : vector<8x32xf32>
    %86 = arith.mulf %73, %85 : vector<8x32xf32>
    %87 = arith.addf %82, %86 : vector<8x32xf32>
    %88 = math.tanh %87 : vector<8x32xf32>
    %cst_39 = arith.constant 1.000000e+00 : f32
    %89 = vector.broadcast %cst_39 : f32 to vector<8x32xf32>
    %90 = arith.subf %89, %81 : vector<8x32xf32>
    %91 = arith.mulf %90, %88 : vector<8x32xf32>
    %92 = arith.mulf %81, %33 : vector<8x32xf32>
    %93 = arith.addf %91, %92 : vector<8x32xf32>
    %c0_40 = arith.constant 0 : index
    %c0_41 = arith.constant 0 : index
    %c0_42 = arith.constant 0 : index
    %94 = vector.load %arg9[%c0_40, %c0_41, %c0_42] : memref<20x8x32xf32, #tpu.memory_space<vmem>>, vector<1x8x32xf32>
    %95 = vector.shape_cast %94 : vector<1x8x32xf32> to vector<8x32xf32>
    %96 = vector.shape_cast %64 : vector<8x32xf32> to vector<1x8x32xf32>
    tpu.vector_store %arg9[%c0_40, %c0_41, %c0_42], %96 {strides = array<i32>} : memref<20x8x32xf32, #tpu.memory_space<vmem>>, vector<1x8x32xf32>,
    %c0_43 = arith.constant 0 : index
    %c0_44 = arith.constant 0 : index
    %c0_45 = arith.constant 0 : index
    %97 = vector.load %arg11[%c0_43, %c0_44, %c0_45] : memref<20x8x32xf32, #tpu.memory_space<vmem>>, vector<1x8x32xf32>
    %98 = vector.shape_cast %97 : vector<1x8x32xf32> to vector<8x32xf32>
    %99 = vector.shape_cast %93 : vector<8x32xf32> to vector<1x8x32xf32>
    tpu.vector_store %arg11[%c0_43, %c0_44, %c0_45], %99 {strides = array<i32>} : memref<20x8x32xf32, #tpu.memory_space<vmem>>, vector<1x8x32xf32>,
    %c8 = arith.constant 8 : index
    %c0_46 = arith.constant 0 : index
    %100 = vector.load %arg12[%c8, %c0_46] : memref<160x96xf32, #tpu.memory_space<vmem>>, vector<8x96xf32>
    %c8_47 = arith.constant 8 : index
    %c0_48 = arith.constant 0 : index
    %101 = vector.load %arg13[%c8_47, %c0_48] : memref<160x96xf32, #tpu.memory_space<vmem>>, vector<8x96xf32>
    %cst_49 = arith.constant dense<0.000000e+00> : vector<8x96xf32>
    %102 = tpu.matmul %64, %30, %cst_49 {dimension_numbers = #tpu.dot_dimension_numbers<[1], [0], [0], [1], [0, 0, 1, 1], [], []>} : vector<8x32xf32>, vector<32x96xf32>, vector<8x96xf32> -> vector<8x96xf32>
    %103 = vector.extract_strided_slice %100 {offsets = [0, 0], sizes = [8, 32], strides = [1, 1]} : vector<8x96xf32> to vector<8x32xf32>
    %104 = vector.extract_strided_slice %102 {offsets = [0, 0], sizes = [8, 32], strides = [1, 1]} : vector<8x96xf32> to vector<8x32xf32>
    %105 = arith.addf %103, %104 : vector<8x32xf32>
    %106 = arith.negf %105 : vector<8x32xf32>
    %107 = math.exp %106 : vector<8x32xf32>
    %cst_50 = arith.constant 1.000000e+00 : f32
    %108 = vector.broadcast %cst_50 : f32 to vector<8x32xf32>
    %109 = arith.addf %108, %107 : vector<8x32xf32>
    %110 = arith.divf %108, %109 : vector<8x32xf32>
    %111 = vector.extract_strided_slice %100 {offsets = [0, 32], sizes = [8, 32], strides = [1, 1]} : vector<8x96xf32> to vector<8x32xf32>
    %112 = vector.extract_strided_slice %102 {offsets = [0, 32], sizes = [8, 32], strides = [1, 1]} : vector<8x96xf32> to vector<8x32xf32>
    %113 = arith.addf %111, %112 : vector<8x32xf32>
    %114 = arith.negf %113 : vector<8x32xf32>
    %115 = math.exp %114 : vector<8x32xf32>
    %cst_51 = arith.constant 1.000000e+00 : f32
    %116 = vector.broadcast %cst_51 : f32 to vector<8x32xf32>
    %117 = arith.addf %116, %115 : vector<8x32xf32>
    %118 = arith.divf %116, %117 : vector<8x32xf32>
    %119 = vector.extract_strided_slice %100 {offsets = [0, 64], sizes = [8, 32], strides = [1, 1]} : vector<8x96xf32> to vector<8x32xf32>
    %120 = vector.extract_strided_slice %102 {offsets = [0, 64], sizes = [8, 32], strides = [1, 1]} : vector<8x96xf32> to vector<8x32xf32>
    %121 = vector.broadcast %8 : vector<1x32xf32> to vector<8x32xf32>
    %122 = arith.addf %120, %121 : vector<8x32xf32>
    %123 = arith.mulf %110, %122 : vector<8x32xf32>
    %124 = arith.addf %119, %123 : vector<8x32xf32>
    %125 = math.tanh %124 : vector<8x32xf32>
    %cst_52 = arith.constant 1.000000e+00 : f32
    %126 = vector.broadcast %cst_52 : f32 to vector<8x32xf32>
    %127 = arith.subf %126, %118 : vector<8x32xf32>
    %128 = arith.mulf %127, %125 : vector<8x32xf32>
    %129 = arith.mulf %118, %64 : vector<8x32xf32>
    %130 = arith.addf %128, %129 : vector<8x32xf32>
    %cst_53 = arith.constant dense<0.000000e+00> : vector<8x96xf32>
    %131 = tpu.matmul %93, %31, %cst_53 {dimension_numbers = #tpu.dot_dimension_numbers<[1], [0], [0], [1], [0, 0, 1, 1], [], []>} : vector<8x32xf32>, vector<32x96xf32>, vector<8x96xf32> -> vector<8x96xf32>
    %132 = vector.extract_strided_slice %101 {offsets = [0, 0], sizes = [8, 32], strides = [1, 1]} : vector<8x96xf32> to vector<8x32xf32>
    %133 = vector.extract_strided_slice %131 {offsets = [0, 0], sizes = [8, 32], strides = [1, 1]} : vector<8x96xf32> to vector<8x32xf32>
    %134 = arith.addf %132, %133 : vector<8x32xf32>
    %135 = arith.negf %134 : vector<8x32xf32>
    %136 = math.exp %135 : vector<8x32xf32>
    %cst_54 = arith.constant 1.000000e+00 : f32
    %137 = vector.broadcast %cst_54 : f32 to vector<8x32xf32>
    %138 = arith.addf %137, %136 : vector<8x32xf32>
    %139 = arith.divf %137, %138 : vector<8x32xf32>
    %140 = vector.extract_strided_slice %101 {offsets = [0, 32], sizes = [8, 32], strides = [1, 1]} : vector<8x96xf32> to vector<8x32xf32>
    %141 = vector.extract_strided_slice %131 {offsets = [0, 32], sizes = [8, 32], strides = [1, 1]} : vector<8x96xf32> to vector<8x32xf32>
    %142 = arith.addf %140, %141 : vector<8x32xf32>
    %143 = arith.negf %142 : vector<8x32xf32>
    %144 = math.exp %143 : vector<8x32xf32>
    %cst_55 = arith.constant 1.000000e+00 : f32
    %145 = vector.broadcast %cst_55 : f32 to vector<8x32xf32>
    %146 = arith.addf %145, %144 : vector<8x32xf32>
    %147 = arith.divf %145, %146 : vector<8x32xf32>
    %148 = vector.extract_strided_slice %101 {offsets = [0, 64], sizes = [8, 32], strides = [1, 1]} : vector<8x96xf32> to vector<8x32xf32>
    %149 = vector.extract_strided_slice %131 {offsets = [0, 64], sizes = [8, 32], strides = [1, 1]} : vector<8x96xf32> to vector<8x32xf32>
    %150 = vector.broadcast %17 : vector<1x32xf32> to vector<8x32xf32>
    %151 = arith.addf %149, %150 : vector<8x32xf32>
    %152 = arith.mulf %139, %151 : vector<8x32xf32>
    %153 = arith.addf %148, %152 : vector<8x32xf32>
    %154 = math.tanh %153 : vector<8x32xf32>
    %cst_56 = arith.constant 1.000000e+00 : f32
    %155 = vector.broadcast %cst_56 : f32 to vector<8x32xf32>
    %156 = arith.subf %155, %147 : vector<8x32xf32>
    %157 = arith.mulf %156, %154 : vector<8x32xf32>
    %158 = arith.mulf %147, %93 : vector<8x32xf32>
    %159 = arith.addf %157, %158 : vector<8x32xf32>
    %c1_57 = arith.constant 1 : index
    %c0_58 = arith.constant 0 : index
    %c0_59 = arith.constant 0 : index
    %160 = vector.load %arg9[%c1_57, %c0_58, %c0_59] : memref<20x8x32xf32, #tpu.memory_space<vmem>>, vector<1x8x32xf32>
    %161 = vector.shape_cast %160 : vector<1x8x32xf32> to vector<8x32xf32>
    %162 = vector.shape_cast %130 : vector<8x32xf32> to vector<1x8x32xf32>
    tpu.vector_store %arg9[%c1_57, %c0_58, %c0_59], %162 {strides = array<i32>} : memref<20x8x32xf32, #tpu.memory_space<vmem>>, vector<1x8x32xf32>,
    %c1_60 = arith.constant 1 : index
    %c0_61 = arith.constant 0 : index
    %c0_62 = arith.constant 0 : index
    %163 = vector.load %arg11[%c1_60, %c0_61, %c0_62] : memref<20x8x32xf32, #tpu.memory_space<vmem>>, vector<1x8x32xf32>
    %164 = vector.shape_cast %163 : vector<1x8x32xf32> to vector<8x32xf32>
    %165 = vector.shape_cast %159 : vector<8x32xf32> to vector<1x8x32xf32>
    tpu.vector_store %arg11[%c1_60, %c0_61, %c0_62], %165 {strides = array<i32>} : memref<20x8x32xf32, #tpu.memory_space<vmem>>, vector<1x8x32xf32>,
    %c16 = arith.constant 16 : index
    %c0_63 = arith.constant 0 : index
    %166 = vector.load %arg12[%c16, %c0_63] : memref<160x96xf32, #tpu.memory_space<vmem>>, vector<8x96xf32>
    %c16_64 = arith.constant 16 : index
    %c0_65 = arith.constant 0 : index
    %167 = vector.load %arg13[%c16_64, %c0_65] : memref<160x96xf32, #tpu.memory_space<vmem>>, vector<8x96xf32>
    %cst_66 = arith.constant dense<0.000000e+00> : vector<8x96xf32>
    %168 = tpu.matmul %130, %30, %cst_66 {dimension_numbers = #tpu.dot_dimension_numbers<[1], [0], [0], [1], [0, 0, 1, 1], [], []>} : vector<8x32xf32>, vector<32x96xf32>, vector<8x96xf32> -> vector<8x96xf32>
    %169 = vector.extract_strided_slice %166 {offsets = [0, 0], sizes = [8, 32], strides = [1, 1]} : vector<8x96xf32> to vector<8x32xf32>
    %170 = vector.extract_strided_slice %168 {offsets = [0, 0], sizes = [8, 32], strides = [1, 1]} : vector<8x96xf32> to vector<8x32xf32>
    %171 = arith.addf %169, %170 : vector<8x32xf32>
    %172 = arith.negf %171 : vector<8x32xf32>
    %173 = math.exp %172 : vector<8x32xf32>
    %cst_67 = arith.constant 1.000000e+00 : f32
    %174 = vector.broadcast %cst_67 : f32 to vector<8x32xf32>
    %175 = arith.addf %174, %173 : vector<8x32xf32>
    %176 = arith.divf %174, %175 : vector<8x32xf32>
    %177 = vector.extract_strided_slice %166 {offsets = [0, 32], sizes = [8, 32], strides = [1, 1]} : vector<8x96xf32> to vector<8x32xf32>
    %178 = vector.extract_strided_slice %168 {offsets = [0, 32], sizes = [8, 32], strides = [1, 1]} : vector<8x96xf32> to vector<8x32xf32>
    %179 = arith.addf %177, %178 : vector<8x32xf32>
    %180 = arith.negf %179 : vector<8x32xf32>
    %181 = math.exp %180 : vector<8x32xf32>
    %cst_68 = arith.constant 1.000000e+00 : f32
    %182 = vector.broadcast %cst_68 : f32 to vector<8x32xf32>
    %183 = arith.addf %182, %181 : vector<8x32xf32>
    %184 = arith.divf %182, %183 : vector<8x32xf32>
    %185 = vector.extract_strided_slice %166 {offsets = [0, 64], sizes = [8, 32], strides = [1, 1]} : vector<8x96xf32> to vector<8x32xf32>
    %186 = vector.extract_strided_slice %168 {offsets = [0, 64], sizes = [8, 32], strides = [1, 1]} : vector<8x96xf32> to vector<8x32xf32>
    %187 = vector.broadcast %8 : vector<1x32xf32> to vector<8x32xf32>
    %188 = arith.addf %186, %187 : vector<8x32xf32>
    %189 = arith.mulf %176, %188 : vector<8x32xf32>
    %190 = arith.addf %185, %189 : vector<8x32xf32>
    %191 = math.tanh %190 : vector<8x32xf32>
    %cst_69 = arith.constant 1.000000e+00 : f32
    %192 = vector.broadcast %cst_69 : f32 to vector<8x32xf32>
    %193 = arith.subf %192, %184 : vector<8x32xf32>
    %194 = arith.mulf %193, %191 : vector<8x32xf32>
    %195 = arith.mulf %184, %130 : vector<8x32xf32>
    %196 = arith.addf %194, %195 : vector<8x32xf32>
    %cst_70 = arith.constant dense<0.000000e+00> : vector<8x96xf32>
    %197 = tpu.matmul %159, %31, %cst_70 {dimension_numbers = #tpu.dot_dimension_numbers<[1], [0], [0], [1], [0, 0, 1, 1], [], []>} : vector<8x32xf32>, vector<32x96xf32>, vector<8x96xf32> -> vector<8x96xf32>
    %198 = vector.extract_strided_slice %167 {offsets = [0, 0], sizes = [8, 32], strides = [1, 1]} : vector<8x96xf32> to vector<8x32xf32>
    %199 = vector.extract_strided_slice %197 {offsets = [0, 0], sizes = [8, 32], strides = [1, 1]} : vector<8x96xf32> to vector<8x32xf32>
    %200 = arith.addf %198, %199 : vector<8x32xf32>
    %201 = arith.negf %200 : vector<8x32xf32>
    %202 = math.exp %201 : vector<8x32xf32>
    %cst_71 = arith.constant 1.000000e+00 : f32
    %203 = vector.broadcast %cst_71 : f32 to vector<8x32xf32>
    %204 = arith.addf %203, %202 : vector<8x32xf32>
    %205 = arith.divf %203, %204 : vector<8x32xf32>
    %206 = vector.extract_strided_slice %167 {offsets = [0, 32], sizes = [8, 32], strides = [1, 1]} : vector<8x96xf32> to vector<8x32xf32>
    %207 = vector.extract_strided_slice %197 {offsets = [0, 32], sizes = [8, 32], strides = [1, 1]} : vector<8x96xf32> to vector<8x32xf32>
    %208 = arith.addf %206, %207 : vector<8x32xf32>
    %209 = arith.negf %208 : vector<8x32xf32>
    %210 = math.exp %209 : vector<8x32xf32>
    %cst_72 = arith.constant 1.000000e+00 : f32
    %211 = vector.broadcast %cst_72 : f32 to vector<8x32xf32>
    %212 = arith.addf %211, %210 : vector<8x32xf32>
    %213 = arith.divf %211, %212 : vector<8x32xf32>
    %214 = vector.extract_strided_slice %167 {offsets = [0, 64], sizes = [8, 32], strides = [1, 1]} : vector<8x96xf32> to vector<8x32xf32>
    %215 = vector.extract_strided_slice %197 {offsets = [0, 64], sizes = [8, 32], strides = [1, 1]} : vector<8x96xf32> to vector<8x32xf32>
    %216 = vector.broadcast %17 : vector<1x32xf32> to vector<8x32xf32>
    %217 = arith.addf %215, %216 : vector<8x32xf32>
    %218 = arith.mulf %205, %217 : vector<8x32xf32>
    %219 = arith.addf %214, %218 : vector<8x32xf32>
    %220 = math.tanh %219 : vector<8x32xf32>
    %cst_73 = arith.constant 1.000000e+00 : f32
    %221 = vector.broadcast %cst_73 : f32 to vector<8x32xf32>
    %222 = arith.subf %221, %213 : vector<8x32xf32>
    %223 = arith.mulf %222, %220 : vector<8x32xf32>
    %224 = arith.mulf %213, %159 : vector<8x32xf32>
    %225 = arith.addf %223, %224 : vector<8x32xf32>
    %c2 = arith.constant 2 : index
    %c0_74 = arith.constant 0 : index
    %c0_75 = arith.constant 0 : index
    %226 = vector.load %arg9[%c2, %c0_74, %c0_75] : memref<20x8x32xf32, #tpu.memory_space<vmem>>, vector<1x8x32xf32>
    %227 = vector.shape_cast %226 : vector<1x8x32xf32> to vector<8x32xf32>
    %228 = vector.shape_cast %196 : vector<8x32xf32> to vector<1x8x32xf32>
    tpu.vector_store %arg9[%c2, %c0_74, %c0_75], %228 {strides = array<i32>} : memref<20x8x32xf32, #tpu.memory_space<vmem>>, vector<1x8x32xf32>,
    %c2_76 = arith.constant 2 : index
    %c0_77 = arith.constant 0 : index
    %c0_78 = arith.constant 0 : index
    %229 = vector.load %arg11[%c2_76, %c0_77, %c0_78] : memref<20x8x32xf32, #tpu.memory_space<vmem>>, vector<1x8x32xf32>
    %230 = vector.shape_cast %229 : vector<1x8x32xf32> to vector<8x32xf32>
    %231 = vector.shape_cast %225 : vector<8x32xf32> to vector<1x8x32xf32>
    tpu.vector_store %arg11[%c2_76, %c0_77, %c0_78], %231 {strides = array<i32>} : memref<20x8x32xf32, #tpu.memory_space<vmem>>, vector<1x8x32xf32>,
    %c24 = arith.constant 24 : index
    %c0_79 = arith.constant 0 : index
    %232 = vector.load %arg12[%c24, %c0_79] : memref<160x96xf32, #tpu.memory_space<vmem>>, vector<8x96xf32>
    %c24_80 = arith.constant 24 : index
    %c0_81 = arith.constant 0 : index
    %233 = vector.load %arg13[%c24_80, %c0_81] : memref<160x96xf32, #tpu.memory_space<vmem>>, vector<8x96xf32>
    %cst_82 = arith.constant dense<0.000000e+00> : vector<8x96xf32>
    %234 = tpu.matmul %196, %30, %cst_82 {dimension_numbers = #tpu.dot_dimension_numbers<[1], [0], [0], [1], [0, 0, 1, 1], [], []>} : vector<8x32xf32>, vector<32x96xf32>, vector<8x96xf32> -> vector<8x96xf32>
    %235 = vector.extract_strided_slice %232 {offsets = [0, 0], sizes = [8, 32], strides = [1, 1]} : vector<8x96xf32> to vector<8x32xf32>
    %236 = vector.extract_strided_slice %234 {offsets = [0, 0], sizes = [8, 32], strides = [1, 1]} : vector<8x96xf32> to vector<8x32xf32>
    %237 = arith.addf %235, %236 : vector<8x32xf32>
    %238 = arith.negf %237 : vector<8x32xf32>
    %239 = math.exp %238 : vector<8x32xf32>
    %cst_83 = arith.constant 1.000000e+00 : f32
    %240 = vector.broadcast %cst_83 : f32 to vector<8x32xf32>
    %241 = arith.addf %240, %239 : vector<8x32xf32>
    %242 = arith.divf %240, %241 : vector<8x32xf32>
    %243 = vector.extract_strided_slice %232 {offsets = [0, 32], sizes = [8, 32], strides = [1, 1]} : vector<8x96xf32> to vector<8x32xf32>
    %244 = vector.extract_strided_slice %234 {offsets = [0, 32], sizes = [8, 32], strides = [1, 1]} : vector<8x96xf32> to vector<8x32xf32>
    %245 = arith.addf %243, %244 : vector<8x32xf32>
    %246 = arith.negf %245 : vector<8x32xf32>
    %247 = math.exp %246 : vector<8x32xf32>
    %cst_84 = arith.constant 1.000000e+00 : f32
    %248 = vector.broadcast %cst_84 : f32 to vector<8x32xf32>
    %249 = arith.addf %248, %247 : vector<8x32xf32>
    %250 = arith.divf %248, %249 : vector<8x32xf32>
    %251 = vector.extract_strided_slice %232 {offsets = [0, 64], sizes = [8, 32], strides = [1, 1]} : vector<8x96xf32> to vector<8x32xf32>
    %252 = vector.extract_strided_slice %234 {offsets = [0, 64], sizes = [8, 32], strides = [1, 1]} : vector<8x96xf32> to vector<8x32xf32>
    %253 = vector.broadcast %8 : vector<1x32xf32> to vector<8x32xf32>
    %254 = arith.addf %252, %253 : vector<8x32xf32>
    %255 = arith.mulf %242, %254 : vector<8x32xf32>
    %256 = arith.addf %251, %255 : vector<8x32xf32>
    %257 = math.tanh %256 : vector<8x32xf32>
    %cst_85 = arith.constant 1.000000e+00 : f32
    %258 = vector.broadcast %cst_85 : f32 to vector<8x32xf32>
    %259 = arith.subf %258, %250 : vector<8x32xf32>
    %260 = arith.mulf %259, %257 : vector<8x32xf32>
    %261 = arith.mulf %250, %196 : vector<8x32xf32>
    %262 = arith.addf %260, %261 : vector<8x32xf32>
    %cst_86 = arith.constant dense<0.000000e+00> : vector<8x96xf32>
    %263 = tpu.matmul %225, %31, %cst_86 {dimension_numbers = #tpu.dot_dimension_numbers<[1], [0], [0], [1], [0, 0, 1, 1], [], []>} : vector<8x32xf32>, vector<32x96xf32>, vector<8x96xf32> -> vector<8x96xf32>
    %264 = vector.extract_strided_slice %233 {offsets = [0, 0], sizes = [8, 32], strides = [1, 1]} : vector<8x96xf32> to vector<8x32xf32>
    %265 = vector.extract_strided_slice %263 {offsets = [0, 0], sizes = [8, 32], strides = [1, 1]} : vector<8x96xf32> to vector<8x32xf32>
    %266 = arith.addf %264, %265 : vector<8x32xf32>
    %267 = arith.negf %266 : vector<8x32xf32>
    %268 = math.exp %267 : vector<8x32xf32>
    %cst_87 = arith.constant 1.000000e+00 : f32
    %269 = vector.broadcast %cst_87 : f32 to vector<8x32xf32>
    %270 = arith.addf %269, %268 : vector<8x32xf32>
    %271 = arith.divf %269, %270 : vector<8x32xf32>
    %272 = vector.extract_strided_slice %233 {offsets = [0, 32], sizes = [8, 32], strides = [1, 1]} : vector<8x96xf32> to vector<8x32xf32>
    %273 = vector.extract_strided_slice %263 {offsets = [0, 32], sizes = [8, 32], strides = [1, 1]} : vector<8x96xf32> to vector<8x32xf32>
    %274 = arith.addf %272, %273 : vector<8x32xf32>
    %275 = arith.negf %274 : vector<8x32xf32>
    %276 = math.exp %275 : vector<8x32xf32>
    %cst_88 = arith.constant 1.000000e+00 : f32
    %277 = vector.broadcast %cst_88 : f32 to vector<8x32xf32>
    %278 = arith.addf %277, %276 : vector<8x32xf32>
    %279 = arith.divf %277, %278 : vector<8x32xf32>
    %280 = vector.extract_strided_slice %233 {offsets = [0, 64], sizes = [8, 32], strides = [1, 1]} : vector<8x96xf32> to vector<8x32xf32>
    %281 = vector.extract_strided_slice %263 {offsets = [0, 64], sizes = [8, 32], strides = [1, 1]} : vector<8x96xf32> to vector<8x32xf32>
    %282 = vector.broadcast %17 : vector<1x32xf32> to vector<8x32xf32>
    %283 = arith.addf %281, %282 : vector<8x32xf32>
    %284 = arith.mulf %271, %283 : vector<8x32xf32>
    %285 = arith.addf %280, %284 : vector<8x32xf32>
    %286 = math.tanh %285 : vector<8x32xf32>
    %cst_89 = arith.constant 1.000000e+00 : f32
    %287 = vector.broadcast %cst_89 : f32 to vector<8x32xf32>
    %288 = arith.subf %287, %279 : vector<8x32xf32>
    %289 = arith.mulf %288, %286 : vector<8x32xf32>
    %290 = arith.mulf %279, %225 : vector<8x32xf32>
    %291 = arith.addf %289, %290 : vector<8x32xf32>
    %c3 = arith.constant 3 : index
    %c0_90 = arith.constant 0 : index
    %c0_91 = arith.constant 0 : index
    %292 = vector.load %arg9[%c3, %c0_90, %c0_91] : memref<20x8x32xf32, #tpu.memory_space<vmem>>, vector<1x8x32xf32>
    %293 = vector.shape_cast %292 : vector<1x8x32xf32> to vector<8x32xf32>
    %294 = vector.shape_cast %262 : vector<8x32xf32> to vector<1x8x32xf32>
    tpu.vector_store %arg9[%c3, %c0_90, %c0_91], %294 {strides = array<i32>} : memref<20x8x32xf32, #tpu.memory_space<vmem>>, vector<1x8x32xf32>,
    %c3_92 = arith.constant 3 : index
    %c0_93 = arith.constant 0 : index
    %c0_94 = arith.constant 0 : index
    %295 = vector.load %arg11[%c3_92, %c0_93, %c0_94] : memref<20x8x32xf32, #tpu.memory_space<vmem>>, vector<1x8x32xf32>
    %296 = vector.shape_cast %295 : vector<1x8x32xf32> to vector<8x32xf32>
    %297 = vector.shape_cast %291 : vector<8x32xf32> to vector<1x8x32xf32>
    tpu.vector_store %arg11[%c3_92, %c0_93, %c0_94], %297 {strides = array<i32>} : memref<20x8x32xf32, #tpu.memory_space<vmem>>, vector<1x8x32xf32>,
    %c32 = arith.constant 32 : index
    %c0_95 = arith.constant 0 : index
    %298 = vector.load %arg12[%c32, %c0_95] : memref<160x96xf32, #tpu.memory_space<vmem>>, vector<8x96xf32>
    %c32_96 = arith.constant 32 : index
    %c0_97 = arith.constant 0 : index
    %299 = vector.load %arg13[%c32_96, %c0_97] : memref<160x96xf32, #tpu.memory_space<vmem>>, vector<8x96xf32>
    %cst_98 = arith.constant dense<0.000000e+00> : vector<8x96xf32>
    %300 = tpu.matmul %262, %30, %cst_98 {dimension_numbers = #tpu.dot_dimension_numbers<[1], [0], [0], [1], [0, 0, 1, 1], [], []>} : vector<8x32xf32>, vector<32x96xf32>, vector<8x96xf32> -> vector<8x96xf32>
    %301 = vector.extract_strided_slice %298 {offsets = [0, 0], sizes = [8, 32], strides = [1, 1]} : vector<8x96xf32> to vector<8x32xf32>
    %302 = vector.extract_strided_slice %300 {offsets = [0, 0], sizes = [8, 32], strides = [1, 1]} : vector<8x96xf32> to vector<8x32xf32>
    %303 = arith.addf %301, %302 : vector<8x32xf32>
    %304 = arith.negf %303 : vector<8x32xf32>
    %305 = math.exp %304 : vector<8x32xf32>
    %cst_99 = arith.constant 1.000000e+00 : f32
    %306 = vector.broadcast %cst_99 : f32 to vector<8x32xf32>
    %307 = arith.addf %306, %305 : vector<8x32xf32>
    %308 = arith.divf %306, %307 : vector<8x32xf32>
    %309 = vector.extract_strided_slice %298 {offsets = [0, 32], sizes = [8, 32], strides = [1, 1]} : vector<8x96xf32> to vector<8x32xf32>
    %310 = vector.extract_strided_slice %300 {offsets = [0, 32], sizes = [8, 32], strides = [1, 1]} : vector<8x96xf32> to vector<8x32xf32>
    %311 = arith.addf %309, %310 : vector<8x32xf32>
    %312 = arith.negf %311 : vector<8x32xf32>
    %313 = math.exp %312 : vector<8x32xf32>
    %cst_100 = arith.constant 1.000000e+00 : f32
    %314 = vector.broadcast %cst_100 : f32 to vector<8x32xf32>
    %315 = arith.addf %314, %313 : vector<8x32xf32>
    %316 = arith.divf %314, %315 : vector<8x32xf32>
    %317 = vector.extract_strided_slice %298 {offsets = [0, 64], sizes = [8, 32], strides = [1, 1]} : vector<8x96xf32> to vector<8x32xf32>
    %318 = vector.extract_strided_slice %300 {offsets = [0, 64], sizes = [8, 32], strides = [1, 1]} : vector<8x96xf32> to vector<8x32xf32>
    %319 = vector.broadcast %8 : vector<1x32xf32> to vector<8x32xf32>
    %320 = arith.addf %318, %319 : vector<8x32xf32>
    %321 = arith.mulf %308, %320 : vector<8x32xf32>
    %322 = arith.addf %317, %321 : vector<8x32xf32>
    %323 = math.tanh %322 : vector<8x32xf32>
    %cst_101 = arith.constant 1.000000e+00 : f32
    %324 = vector.broadcast %cst_101 : f32 to vector<8x32xf32>
    %325 = arith.subf %324, %316 : vector<8x32xf32>
    %326 = arith.mulf %325, %323 : vector<8x32xf32>
    %327 = arith.mulf %316, %262 : vector<8x32xf32>
    %328 = arith.addf %326, %327 : vector<8x32xf32>
    %cst_102 = arith.constant dense<0.000000e+00> : vector<8x96xf32>
    %329 = tpu.matmul %291, %31, %cst_102 {dimension_numbers = #tpu.dot_dimension_numbers<[1], [0], [0], [1], [0, 0, 1, 1], [], []>} : vector<8x32xf32>, vector<32x96xf32>, vector<8x96xf32> -> vector<8x96xf32>
    %330 = vector.extract_strided_slice %299 {offsets = [0, 0], sizes = [8, 32], strides = [1, 1]} : vector<8x96xf32> to vector<8x32xf32>
    %331 = vector.extract_strided_slice %329 {offsets = [0, 0], sizes = [8, 32], strides = [1, 1]} : vector<8x96xf32> to vector<8x32xf32>
    %332 = arith.addf %330, %331 : vector<8x32xf32>
    %333 = arith.negf %332 : vector<8x32xf32>
    %334 = math.exp %333 : vector<8x32xf32>
    %cst_103 = arith.constant 1.000000e+00 : f32
    %335 = vector.broadcast %cst_103 : f32 to vector<8x32xf32>
    %336 = arith.addf %335, %334 : vector<8x32xf32>
    %337 = arith.divf %335, %336 : vector<8x32xf32>
    %338 = vector.extract_strided_slice %299 {offsets = [0, 32], sizes = [8, 32], strides = [1, 1]} : vector<8x96xf32> to vector<8x32xf32>
    %339 = vector.extract_strided_slice %329 {offsets = [0, 32], sizes = [8, 32], strides = [1, 1]} : vector<8x96xf32> to vector<8x32xf32>
    %340 = arith.addf %338, %339 : vector<8x32xf32>
    %341 = arith.negf %340 : vector<8x32xf32>
    %342 = math.exp %341 : vector<8x32xf32>
    %cst_104 = arith.constant 1.000000e+00 : f32
    %343 = vector.broadcast %cst_104 : f32 to vector<8x32xf32>
    %344 = arith.addf %343, %342 : vector<8x32xf32>
    %345 = arith.divf %343, %344 : vector<8x32xf32>
    %346 = vector.extract_strided_slice %299 {offsets = [0, 64], sizes = [8, 32], strides = [1, 1]} : vector<8x96xf32> to vector<8x32xf32>
    %347 = vector.extract_strided_slice %329 {offsets = [0, 64], sizes = [8, 32], strides = [1, 1]} : vector<8x96xf32> to vector<8x32xf32>
    %348 = vector.broadcast %17 : vector<1x32xf32> to vector<8x32xf32>
    %349 = arith.addf %347, %348 : vector<8x32xf32>
    %350 = arith.mulf %337, %349 : vector<8x32xf32>
    %351 = arith.addf %346, %350 : vector<8x32xf32>
    %352 = math.tanh %351 : vector<8x32xf32>
    %cst_105 = arith.constant 1.000000e+00 : f32
    %353 = vector.broadcast %cst_105 : f32 to vector<8x32xf32>
    %354 = arith.subf %353, %345 : vector<8x32xf32>
    %355 = arith.mulf %354, %352 : vector<8x32xf32>
    %356 = arith.mulf %345, %291 : vector<8x32xf32>
    %357 = arith.addf %355, %356 : vector<8x32xf32>
    %c4 = arith.constant 4 : index
    %c0_106 = arith.constant 0 : index
    %c0_107 = arith.constant 0 : index
    %358 = vector.load %arg9[%c4, %c0_106, %c0_107] : memref<20x8x32xf32, #tpu.memory_space<vmem>>, vector<1x8x32xf32>
    %359 = vector.shape_cast %358 : vector<1x8x32xf32> to vector<8x32xf32>
    %360 = vector.shape_cast %328 : vector<8x32xf32> to vector<1x8x32xf32>
    tpu.vector_store %arg9[%c4, %c0_106, %c0_107], %360 {strides = array<i32>} : memref<20x8x32xf32, #tpu.memory_space<vmem>>, vector<1x8x32xf32>,
    %c4_108 = arith.constant 4 : index
    %c0_109 = arith.constant 0 : index
    %c0_110 = arith.constant 0 : index
    %361 = vector.load %arg11[%c4_108, %c0_109, %c0_110] : memref<20x8x32xf32, #tpu.memory_space<vmem>>, vector<1x8x32xf32>
    %362 = vector.shape_cast %361 : vector<1x8x32xf32> to vector<8x32xf32>
    %363 = vector.shape_cast %357 : vector<8x32xf32> to vector<1x8x32xf32>
    tpu.vector_store %arg11[%c4_108, %c0_109, %c0_110], %363 {strides = array<i32>} : memref<20x8x32xf32, #tpu.memory_space<vmem>>, vector<1x8x32xf32>,
    %c40 = arith.constant 40 : index
    %c0_111 = arith.constant 0 : index
    %364 = vector.load %arg12[%c40, %c0_111] : memref<160x96xf32, #tpu.memory_space<vmem>>, vector<8x96xf32>
    %c40_112 = arith.constant 40 : index
    %c0_113 = arith.constant 0 : index
    %365 = vector.load %arg13[%c40_112, %c0_113] : memref<160x96xf32, #tpu.memory_space<vmem>>, vector<8x96xf32>
    %cst_114 = arith.constant dense<0.000000e+00> : vector<8x96xf32>
    %366 = tpu.matmul %328, %30, %cst_114 {dimension_numbers = #tpu.dot_dimension_numbers<[1], [0], [0], [1], [0, 0, 1, 1], [], []>} : vector<8x32xf32>, vector<32x96xf32>, vector<8x96xf32> -> vector<8x96xf32>
    %367 = vector.extract_strided_slice %364 {offsets = [0, 0], sizes = [8, 32], strides = [1, 1]} : vector<8x96xf32> to vector<8x32xf32>
    %368 = vector.extract_strided_slice %366 {offsets = [0, 0], sizes = [8, 32], strides = [1, 1]} : vector<8x96xf32> to vector<8x32xf32>
    %369 = arith.addf %367, %368 : vector<8x32xf32>
    %370 = arith.negf %369 : vector<8x32xf32>
    %371 = math.exp %370 : vector<8x32xf32>
    %cst_115 = arith.constant 1.000000e+00 : f32
    %372 = vector.broadcast %cst_115 : f32 to vector<8x32xf32>
    %373 = arith.addf %372, %371 : vector<8x32xf32>
    %374 = arith.divf %372, %373 : vector<8x32xf32>
    %375 = vector.extract_strided_slice %364 {offsets = [0, 32], sizes = [8, 32], strides = [1, 1]} : vector<8x96xf32> to vector<8x32xf32>
    %376 = vector.extract_strided_slice %366 {offsets = [0, 32], sizes = [8, 32], strides = [1, 1]} : vector<8x96xf32> to vector<8x32xf32>
    %377 = arith.addf %375, %376 : vector<8x32xf32>
    %378 = arith.negf %377 : vector<8x32xf32>
    %379 = math.exp %378 : vector<8x32xf32>
    %cst_116 = arith.constant 1.000000e+00 : f32
    %380 = vector.broadcast %cst_116 : f32 to vector<8x32xf32>
    %381 = arith.addf %380, %379 : vector<8x32xf32>
    %382 = arith.divf %380, %381 : vector<8x32xf32>
    %383 = vector.extract_strided_slice %364 {offsets = [0, 64], sizes = [8, 32], strides = [1, 1]} : vector<8x96xf32> to vector<8x32xf32>
    %384 = vector.extract_strided_slice %366 {offsets = [0, 64], sizes = [8, 32], strides = [1, 1]} : vector<8x96xf32> to vector<8x32xf32>
    %385 = vector.broadcast %8 : vector<1x32xf32> to vector<8x32xf32>
    %386 = arith.addf %384, %385 : vector<8x32xf32>
    %387 = arith.mulf %374, %386 : vector<8x32xf32>
    %388 = arith.addf %383, %387 : vector<8x32xf32>
    %389 = math.tanh %388 : vector<8x32xf32>
    %cst_117 = arith.constant 1.000000e+00 : f32
    %390 = vector.broadcast %cst_117 : f32 to vector<8x32xf32>
    %391 = arith.subf %390, %382 : vector<8x32xf32>
    %392 = arith.mulf %391, %389 : vector<8x32xf32>
    %393 = arith.mulf %382, %328 : vector<8x32xf32>
    %394 = arith.addf %392, %393 : vector<8x32xf32>
    %cst_118 = arith.constant dense<0.000000e+00> : vector<8x96xf32>
    %395 = tpu.matmul %357, %31, %cst_118 {dimension_numbers = #tpu.dot_dimension_numbers<[1], [0], [0], [1], [0, 0, 1, 1], [], []>} : vector<8x32xf32>, vector<32x96xf32>, vector<8x96xf32> -> vector<8x96xf32>
    %396 = vector.extract_strided_slice %365 {offsets = [0, 0], sizes = [8, 32], strides = [1, 1]} : vector<8x96xf32> to vector<8x32xf32>
    %397 = vector.extract_strided_slice %395 {offsets = [0, 0], sizes = [8, 32], strides = [1, 1]} : vector<8x96xf32> to vector<8x32xf32>
    %398 = arith.addf %396, %397 : vector<8x32xf32>
    %399 = arith.negf %398 : vector<8x32xf32>
    %400 = math.exp %399 : vector<8x32xf32>
    %cst_119 = arith.constant 1.000000e+00 : f32
    %401 = vector.broadcast %cst_119 : f32 to vector<8x32xf32>
    %402 = arith.addf %401, %400 : vector<8x32xf32>
    %403 = arith.divf %401, %402 : vector<8x32xf32>
    %404 = vector.extract_strided_slice %365 {offsets = [0, 32], sizes = [8, 32], strides = [1, 1]} : vector<8x96xf32> to vector<8x32xf32>
    %405 = vector.extract_strided_slice %395 {offsets = [0, 32], sizes = [8, 32], strides = [1, 1]} : vector<8x96xf32> to vector<8x32xf32>
    %406 = arith.addf %404, %405 : vector<8x32xf32>
    %407 = arith.negf %406 : vector<8x32xf32>
    %408 = math.exp %407 : vector<8x32xf32>
    %cst_120 = arith.constant 1.000000e+00 : f32
    %409 = vector.broadcast %cst_120 : f32 to vector<8x32xf32>
    %410 = arith.addf %409, %408 : vector<8x32xf32>
    %411 = arith.divf %409, %410 : vector<8x32xf32>
    %412 = vector.extract_strided_slice %365 {offsets = [0, 64], sizes = [8, 32], strides = [1, 1]} : vector<8x96xf32> to vector<8x32xf32>
    %413 = vector.extract_strided_slice %395 {offsets = [0, 64], sizes = [8, 32], strides = [1, 1]} : vector<8x96xf32> to vector<8x32xf32>
    %414 = vector.broadcast %17 : vector<1x32xf32> to vector<8x32xf32>
    %415 = arith.addf %413, %414 : vector<8x32xf32>
    %416 = arith.mulf %403, %415 : vector<8x32xf32>
    %417 = arith.addf %412, %416 : vector<8x32xf32>
    %418 = math.tanh %417 : vector<8x32xf32>
    %cst_121 = arith.constant 1.000000e+00 : f32
    %419 = vector.broadcast %cst_121 : f32 to vector<8x32xf32>
    %420 = arith.subf %419, %411 : vector<8x32xf32>
    %421 = arith.mulf %420, %418 : vector<8x32xf32>
    %422 = arith.mulf %411, %357 : vector<8x32xf32>
    %423 = arith.addf %421, %422 : vector<8x32xf32>
    %c5 = arith.constant 5 : index
    %c0_122 = arith.constant 0 : index
    %c0_123 = arith.constant 0 : index
    %424 = vector.load %arg9[%c5, %c0_122, %c0_123] : memref<20x8x32xf32, #tpu.memory_space<vmem>>, vector<1x8x32xf32>
    %425 = vector.shape_cast %424 : vector<1x8x32xf32> to vector<8x32xf32>
    %426 = vector.shape_cast %394 : vector<8x32xf32> to vector<1x8x32xf32>
    tpu.vector_store %arg9[%c5, %c0_122, %c0_123], %426 {strides = array<i32>} : memref<20x8x32xf32, #tpu.memory_space<vmem>>, vector<1x8x32xf32>,
    %c5_124 = arith.constant 5 : index
    %c0_125 = arith.constant 0 : index
    %c0_126 = arith.constant 0 : index
    %427 = vector.load %arg11[%c5_124, %c0_125, %c0_126] : memref<20x8x32xf32, #tpu.memory_space<vmem>>, vector<1x8x32xf32>
    %428 = vector.shape_cast %427 : vector<1x8x32xf32> to vector<8x32xf32>
    %429 = vector.shape_cast %423 : vector<8x32xf32> to vector<1x8x32xf32>
    tpu.vector_store %arg11[%c5_124, %c0_125, %c0_126], %429 {strides = array<i32>} : memref<20x8x32xf32, #tpu.memory_space<vmem>>, vector<1x8x32xf32>,
    %c48 = arith.constant 48 : index
    %c0_127 = arith.constant 0 : index
    %430 = vector.load %arg12[%c48, %c0_127] : memref<160x96xf32, #tpu.memory_space<vmem>>, vector<8x96xf32>
    %c48_128 = arith.constant 48 : index
    %c0_129 = arith.constant 0 : index
    %431 = vector.load %arg13[%c48_128, %c0_129] : memref<160x96xf32, #tpu.memory_space<vmem>>, vector<8x96xf32>
    %cst_130 = arith.constant dense<0.000000e+00> : vector<8x96xf32>
    %432 = tpu.matmul %394, %30, %cst_130 {dimension_numbers = #tpu.dot_dimension_numbers<[1], [0], [0], [1], [0, 0, 1, 1], [], []>} : vector<8x32xf32>, vector<32x96xf32>, vector<8x96xf32> -> vector<8x96xf32>
    %433 = vector.extract_strided_slice %430 {offsets = [0, 0], sizes = [8, 32], strides = [1, 1]} : vector<8x96xf32> to vector<8x32xf32>
    %434 = vector.extract_strided_slice %432 {offsets = [0, 0], sizes = [8, 32], strides = [1, 1]} : vector<8x96xf32> to vector<8x32xf32>
    %435 = arith.addf %433, %434 : vector<8x32xf32>
    %436 = arith.negf %435 : vector<8x32xf32>
    %437 = math.exp %436 : vector<8x32xf32>
    %cst_131 = arith.constant 1.000000e+00 : f32
    %438 = vector.broadcast %cst_131 : f32 to vector<8x32xf32>
    %439 = arith.addf %438, %437 : vector<8x32xf32>
    %440 = arith.divf %438, %439 : vector<8x32xf32>
    %441 = vector.extract_strided_slice %430 {offsets = [0, 32], sizes = [8, 32], strides = [1, 1]} : vector<8x96xf32> to vector<8x32xf32>
    %442 = vector.extract_strided_slice %432 {offsets = [0, 32], sizes = [8, 32], strides = [1, 1]} : vector<8x96xf32> to vector<8x32xf32>
    %443 = arith.addf %441, %442 : vector<8x32xf32>
    %444 = arith.negf %443 : vector<8x32xf32>
    %445 = math.exp %444 : vector<8x32xf32>
    %cst_132 = arith.constant 1.000000e+00 : f32
    %446 = vector.broadcast %cst_132 : f32 to vector<8x32xf32>
    %447 = arith.addf %446, %445 : vector<8x32xf32>
    %448 = arith.divf %446, %447 : vector<8x32xf32>
    %449 = vector.extract_strided_slice %430 {offsets = [0, 64], sizes = [8, 32], strides = [1, 1]} : vector<8x96xf32> to vector<8x32xf32>
    %450 = vector.extract_strided_slice %432 {offsets = [0, 64], sizes = [8, 32], strides = [1, 1]} : vector<8x96xf32> to vector<8x32xf32>
    %451 = vector.broadcast %8 : vector<1x32xf32> to vector<8x32xf32>
    %452 = arith.addf %450, %451 : vector<8x32xf32>
    %453 = arith.mulf %440, %452 : vector<8x32xf32>
    %454 = arith.addf %449, %453 : vector<8x32xf32>
    %455 = math.tanh %454 : vector<8x32xf32>
    %cst_133 = arith.constant 1.000000e+00 : f32
    %456 = vector.broadcast %cst_133 : f32 to vector<8x32xf32>
    %457 = arith.subf %456, %448 : vector<8x32xf32>
    %458 = arith.mulf %457, %455 : vector<8x32xf32>
    %459 = arith.mulf %448, %394 : vector<8x32xf32>
    %460 = arith.addf %458, %459 : vector<8x32xf32>
    %cst_134 = arith.constant dense<0.000000e+00> : vector<8x96xf32>
    %461 = tpu.matmul %423, %31, %cst_134 {dimension_numbers = #tpu.dot_dimension_numbers<[1], [0], [0], [1], [0, 0, 1, 1], [], []>} : vector<8x32xf32>, vector<32x96xf32>, vector<8x96xf32> -> vector<8x96xf32>
    %462 = vector.extract_strided_slice %431 {offsets = [0, 0], sizes = [8, 32], strides = [1, 1]} : vector<8x96xf32> to vector<8x32xf32>
    %463 = vector.extract_strided_slice %461 {offsets = [0, 0], sizes = [8, 32], strides = [1, 1]} : vector<8x96xf32> to vector<8x32xf32>
    %464 = arith.addf %462, %463 : vector<8x32xf32>
    %465 = arith.negf %464 : vector<8x32xf32>
    %466 = math.exp %465 : vector<8x32xf32>
    %cst_135 = arith.constant 1.000000e+00 : f32
    %467 = vector.broadcast %cst_135 : f32 to vector<8x32xf32>
    %468 = arith.addf %467, %466 : vector<8x32xf32>
    %469 = arith.divf %467, %468 : vector<8x32xf32>
    %470 = vector.extract_strided_slice %431 {offsets = [0, 32], sizes = [8, 32], strides = [1, 1]} : vector<8x96xf32> to vector<8x32xf32>
    %471 = vector.extract_strided_slice %461 {offsets = [0, 32], sizes = [8, 32], strides = [1, 1]} : vector<8x96xf32> to vector<8x32xf32>
    %472 = arith.addf %470, %471 : vector<8x32xf32>
    %473 = arith.negf %472 : vector<8x32xf32>
    %474 = math.exp %473 : vector<8x32xf32>
    %cst_136 = arith.constant 1.000000e+00 : f32
    %475 = vector.broadcast %cst_136 : f32 to vector<8x32xf32>
    %476 = arith.addf %475, %474 : vector<8x32xf32>
    %477 = arith.divf %475, %476 : vector<8x32xf32>
    %478 = vector.extract_strided_slice %431 {offsets = [0, 64], sizes = [8, 32], strides = [1, 1]} : vector<8x96xf32> to vector<8x32xf32>
    %479 = vector.extract_strided_slice %461 {offsets = [0, 64], sizes = [8, 32], strides = [1, 1]} : vector<8x96xf32> to vector<8x32xf32>
    %480 = vector.broadcast %17 : vector<1x32xf32> to vector<8x32xf32>
    %481 = arith.addf %479, %480 : vector<8x32xf32>
    %482 = arith.mulf %469, %481 : vector<8x32xf32>
    %483 = arith.addf %478, %482 : vector<8x32xf32>
    %484 = math.tanh %483 : vector<8x32xf32>
    %cst_137 = arith.constant 1.000000e+00 : f32
    %485 = vector.broadcast %cst_137 : f32 to vector<8x32xf32>
    %486 = arith.subf %485, %477 : vector<8x32xf32>
    %487 = arith.mulf %486, %484 : vector<8x32xf32>
    %488 = arith.mulf %477, %423 : vector<8x32xf32>
    %489 = arith.addf %487, %488 : vector<8x32xf32>
    %c6 = arith.constant 6 : index
    %c0_138 = arith.constant 0 : index
    %c0_139 = arith.constant 0 : index
    %490 = vector.load %arg9[%c6, %c0_138, %c0_139] : memref<20x8x32xf32, #tpu.memory_space<vmem>>, vector<1x8x32xf32>
    %491 = vector.shape_cast %490 : vector<1x8x32xf32> to vector<8x32xf32>
    %492 = vector.shape_cast %460 : vector<8x32xf32> to vector<1x8x32xf32>
    tpu.vector_store %arg9[%c6, %c0_138, %c0_139], %492 {strides = array<i32>} : memref<20x8x32xf32, #tpu.memory_space<vmem>>, vector<1x8x32xf32>,
    %c6_140 = arith.constant 6 : index
    %c0_141 = arith.constant 0 : index
    %c0_142 = arith.constant 0 : index
    %493 = vector.load %arg11[%c6_140, %c0_141, %c0_142] : memref<20x8x32xf32, #tpu.memory_space<vmem>>, vector<1x8x32xf32>
    %494 = vector.shape_cast %493 : vector<1x8x32xf32> to vector<8x32xf32>
    %495 = vector.shape_cast %489 : vector<8x32xf32> to vector<1x8x32xf32>
    tpu.vector_store %arg11[%c6_140, %c0_141, %c0_142], %495 {strides = array<i32>} : memref<20x8x32xf32, #tpu.memory_space<vmem>>, vector<1x8x32xf32>,
    %c56 = arith.constant 56 : index
    %c0_143 = arith.constant 0 : index
    %496 = vector.load %arg12[%c56, %c0_143] : memref<160x96xf32, #tpu.memory_space<vmem>>, vector<8x96xf32>
    %c56_144 = arith.constant 56 : index
    %c0_145 = arith.constant 0 : index
    %497 = vector.load %arg13[%c56_144, %c0_145] : memref<160x96xf32, #tpu.memory_space<vmem>>, vector<8x96xf32>
    %cst_146 = arith.constant dense<0.000000e+00> : vector<8x96xf32>
    %498 = tpu.matmul %460, %30, %cst_146 {dimension_numbers = #tpu.dot_dimension_numbers<[1], [0], [0], [1], [0, 0, 1, 1], [], []>} : vector<8x32xf32>, vector<32x96xf32>, vector<8x96xf32> -> vector<8x96xf32>
    %499 = vector.extract_strided_slice %496 {offsets = [0, 0], sizes = [8, 32], strides = [1, 1]} : vector<8x96xf32> to vector<8x32xf32>
    %500 = vector.extract_strided_slice %498 {offsets = [0, 0], sizes = [8, 32], strides = [1, 1]} : vector<8x96xf32> to vector<8x32xf32>
    %501 = arith.addf %499, %500 : vector<8x32xf32>
    %502 = arith.negf %501 : vector<8x32xf32>
    %503 = math.exp %502 : vector<8x32xf32>
    %cst_147 = arith.constant 1.000000e+00 : f32
    %504 = vector.broadcast %cst_147 : f32 to vector<8x32xf32>
    %505 = arith.addf %504, %503 : vector<8x32xf32>
    %506 = arith.divf %504, %505 : vector<8x32xf32>
    %507 = vector.extract_strided_slice %496 {offsets = [0, 32], sizes = [8, 32], strides = [1, 1]} : vector<8x96xf32> to vector<8x32xf32>
    %508 = vector.extract_strided_slice %498 {offsets = [0, 32], sizes = [8, 32], strides = [1, 1]} : vector<8x96xf32> to vector<8x32xf32>
    %509 = arith.addf %507, %508 : vector<8x32xf32>
    %510 = arith.negf %509 : vector<8x32xf32>
    %511 = math.exp %510 : vector<8x32xf32>
    %cst_148 = arith.constant 1.000000e+00 : f32
    %512 = vector.broadcast %cst_148 : f32 to vector<8x32xf32>
    %513 = arith.addf %512, %511 : vector<8x32xf32>
    %514 = arith.divf %512, %513 : vector<8x32xf32>
    %515 = vector.extract_strided_slice %496 {offsets = [0, 64], sizes = [8, 32], strides = [1, 1]} : vector<8x96xf32> to vector<8x32xf32>
    %516 = vector.extract_strided_slice %498 {offsets = [0, 64], sizes = [8, 32], strides = [1, 1]} : vector<8x96xf32> to vector<8x32xf32>
    %517 = vector.broadcast %8 : vector<1x32xf32> to vector<8x32xf32>
    %518 = arith.addf %516, %517 : vector<8x32xf32>
    %519 = arith.mulf %506, %518 : vector<8x32xf32>
    %520 = arith.addf %515, %519 : vector<8x32xf32>
    %521 = math.tanh %520 : vector<8x32xf32>
    %cst_149 = arith.constant 1.000000e+00 : f32
    %522 = vector.broadcast %cst_149 : f32 to vector<8x32xf32>
    %523 = arith.subf %522, %514 : vector<8x32xf32>
    %524 = arith.mulf %523, %521 : vector<8x32xf32>
    %525 = arith.mulf %514, %460 : vector<8x32xf32>
    %526 = arith.addf %524, %525 : vector<8x32xf32>
    %cst_150 = arith.constant dense<0.000000e+00> : vector<8x96xf32>
    %527 = tpu.matmul %489, %31, %cst_150 {dimension_numbers = #tpu.dot_dimension_numbers<[1], [0], [0], [1], [0, 0, 1, 1], [], []>} : vector<8x32xf32>, vector<32x96xf32>, vector<8x96xf32> -> vector<8x96xf32>
    %528 = vector.extract_strided_slice %497 {offsets = [0, 0], sizes = [8, 32], strides = [1, 1]} : vector<8x96xf32> to vector<8x32xf32>
    %529 = vector.extract_strided_slice %527 {offsets = [0, 0], sizes = [8, 32], strides = [1, 1]} : vector<8x96xf32> to vector<8x32xf32>
    %530 = arith.addf %528, %529 : vector<8x32xf32>
    %531 = arith.negf %530 : vector<8x32xf32>
    %532 = math.exp %531 : vector<8x32xf32>
    %cst_151 = arith.constant 1.000000e+00 : f32
    %533 = vector.broadcast %cst_151 : f32 to vector<8x32xf32>
    %534 = arith.addf %533, %532 : vector<8x32xf32>
    %535 = arith.divf %533, %534 : vector<8x32xf32>
    %536 = vector.extract_strided_slice %497 {offsets = [0, 32], sizes = [8, 32], strides = [1, 1]} : vector<8x96xf32> to vector<8x32xf32>
    %537 = vector.extract_strided_slice %527 {offsets = [0, 32], sizes = [8, 32], strides = [1, 1]} : vector<8x96xf32> to vector<8x32xf32>
    %538 = arith.addf %536, %537 : vector<8x32xf32>
    %539 = arith.negf %538 : vector<8x32xf32>
    %540 = math.exp %539 : vector<8x32xf32>
    %cst_152 = arith.constant 1.000000e+00 : f32
    %541 = vector.broadcast %cst_152 : f32 to vector<8x32xf32>
    %542 = arith.addf %541, %540 : vector<8x32xf32>
    %543 = arith.divf %541, %542 : vector<8x32xf32>
    %544 = vector.extract_strided_slice %497 {offsets = [0, 64], sizes = [8, 32], strides = [1, 1]} : vector<8x96xf32> to vector<8x32xf32>
    %545 = vector.extract_strided_slice %527 {offsets = [0, 64], sizes = [8, 32], strides = [1, 1]} : vector<8x96xf32> to vector<8x32xf32>
    %546 = vector.broadcast %17 : vector<1x32xf32> to vector<8x32xf32>
    %547 = arith.addf %545, %546 : vector<8x32xf32>
    %548 = arith.mulf %535, %547 : vector<8x32xf32>
    %549 = arith.addf %544, %548 : vector<8x32xf32>
    %550 = math.tanh %549 : vector<8x32xf32>
    %cst_153 = arith.constant 1.000000e+00 : f32
    %551 = vector.broadcast %cst_153 : f32 to vector<8x32xf32>
    %552 = arith.subf %551, %543 : vector<8x32xf32>
    %553 = arith.mulf %552, %550 : vector<8x32xf32>
    %554 = arith.mulf %543, %489 : vector<8x32xf32>
    %555 = arith.addf %553, %554 : vector<8x32xf32>
    %c7 = arith.constant 7 : index
    %c0_154 = arith.constant 0 : index
    %c0_155 = arith.constant 0 : index
    %556 = vector.load %arg9[%c7, %c0_154, %c0_155] : memref<20x8x32xf32, #tpu.memory_space<vmem>>, vector<1x8x32xf32>
    %557 = vector.shape_cast %556 : vector<1x8x32xf32> to vector<8x32xf32>
    %558 = vector.shape_cast %526 : vector<8x32xf32> to vector<1x8x32xf32>
    tpu.vector_store %arg9[%c7, %c0_154, %c0_155], %558 {strides = array<i32>} : memref<20x8x32xf32, #tpu.memory_space<vmem>>, vector<1x8x32xf32>,
    %c7_156 = arith.constant 7 : index
    %c0_157 = arith.constant 0 : index
    %c0_158 = arith.constant 0 : index
    %559 = vector.load %arg11[%c7_156, %c0_157, %c0_158] : memref<20x8x32xf32, #tpu.memory_space<vmem>>, vector<1x8x32xf32>
    %560 = vector.shape_cast %559 : vector<1x8x32xf32> to vector<8x32xf32>
    %561 = vector.shape_cast %555 : vector<8x32xf32> to vector<1x8x32xf32>
    tpu.vector_store %arg11[%c7_156, %c0_157, %c0_158], %561 {strides = array<i32>} : memref<20x8x32xf32, #tpu.memory_space<vmem>>, vector<1x8x32xf32>,
    %c64 = arith.constant 64 : index
    %c0_159 = arith.constant 0 : index
    %562 = vector.load %arg12[%c64, %c0_159] : memref<160x96xf32, #tpu.memory_space<vmem>>, vector<8x96xf32>
    %c64_160 = arith.constant 64 : index
    %c0_161 = arith.constant 0 : index
    %563 = vector.load %arg13[%c64_160, %c0_161] : memref<160x96xf32, #tpu.memory_space<vmem>>, vector<8x96xf32>
    %cst_162 = arith.constant dense<0.000000e+00> : vector<8x96xf32>
    %564 = tpu.matmul %526, %30, %cst_162 {dimension_numbers = #tpu.dot_dimension_numbers<[1], [0], [0], [1], [0, 0, 1, 1], [], []>} : vector<8x32xf32>, vector<32x96xf32>, vector<8x96xf32> -> vector<8x96xf32>
    %565 = vector.extract_strided_slice %562 {offsets = [0, 0], sizes = [8, 32], strides = [1, 1]} : vector<8x96xf32> to vector<8x32xf32>
    %566 = vector.extract_strided_slice %564 {offsets = [0, 0], sizes = [8, 32], strides = [1, 1]} : vector<8x96xf32> to vector<8x32xf32>
    %567 = arith.addf %565, %566 : vector<8x32xf32>
    %568 = arith.negf %567 : vector<8x32xf32>
    %569 = math.exp %568 : vector<8x32xf32>
    %cst_163 = arith.constant 1.000000e+00 : f32
    %570 = vector.broadcast %cst_163 : f32 to vector<8x32xf32>
    %571 = arith.addf %570, %569 : vector<8x32xf32>
    %572 = arith.divf %570, %571 : vector<8x32xf32>
    %573 = vector.extract_strided_slice %562 {offsets = [0, 32], sizes = [8, 32], strides = [1, 1]} : vector<8x96xf32> to vector<8x32xf32>
    %574 = vector.extract_strided_slice %564 {offsets = [0, 32], sizes = [8, 32], strides = [1, 1]} : vector<8x96xf32> to vector<8x32xf32>
    %575 = arith.addf %573, %574 : vector<8x32xf32>
    %576 = arith.negf %575 : vector<8x32xf32>
    %577 = math.exp %576 : vector<8x32xf32>
    %cst_164 = arith.constant 1.000000e+00 : f32
    %578 = vector.broadcast %cst_164 : f32 to vector<8x32xf32>
    %579 = arith.addf %578, %577 : vector<8x32xf32>
    %580 = arith.divf %578, %579 : vector<8x32xf32>
    %581 = vector.extract_strided_slice %562 {offsets = [0, 64], sizes = [8, 32], strides = [1, 1]} : vector<8x96xf32> to vector<8x32xf32>
    %582 = vector.extract_strided_slice %564 {offsets = [0, 64], sizes = [8, 32], strides = [1, 1]} : vector<8x96xf32> to vector<8x32xf32>
    %583 = vector.broadcast %8 : vector<1x32xf32> to vector<8x32xf32>
    %584 = arith.addf %582, %583 : vector<8x32xf32>
    %585 = arith.mulf %572, %584 : vector<8x32xf32>
    %586 = arith.addf %581, %585 : vector<8x32xf32>
    %587 = math.tanh %586 : vector<8x32xf32>
    %cst_165 = arith.constant 1.000000e+00 : f32
    %588 = vector.broadcast %cst_165 : f32 to vector<8x32xf32>
    %589 = arith.subf %588, %580 : vector<8x32xf32>
    %590 = arith.mulf %589, %587 : vector<8x32xf32>
    %591 = arith.mulf %580, %526 : vector<8x32xf32>
    %592 = arith.addf %590, %591 : vector<8x32xf32>
    %cst_166 = arith.constant dense<0.000000e+00> : vector<8x96xf32>
    %593 = tpu.matmul %555, %31, %cst_166 {dimension_numbers = #tpu.dot_dimension_numbers<[1], [0], [0], [1], [0, 0, 1, 1], [], []>} : vector<8x32xf32>, vector<32x96xf32>, vector<8x96xf32> -> vector<8x96xf32>
    %594 = vector.extract_strided_slice %563 {offsets = [0, 0], sizes = [8, 32], strides = [1, 1]} : vector<8x96xf32> to vector<8x32xf32>
    %595 = vector.extract_strided_slice %593 {offsets = [0, 0], sizes = [8, 32], strides = [1, 1]} : vector<8x96xf32> to vector<8x32xf32>
    %596 = arith.addf %594, %595 : vector<8x32xf32>
    %597 = arith.negf %596 : vector<8x32xf32>
    %598 = math.exp %597 : vector<8x32xf32>
    %cst_167 = arith.constant 1.000000e+00 : f32
    %599 = vector.broadcast %cst_167 : f32 to vector<8x32xf32>
    %600 = arith.addf %599, %598 : vector<8x32xf32>
    %601 = arith.divf %599, %600 : vector<8x32xf32>
    %602 = vector.extract_strided_slice %563 {offsets = [0, 32], sizes = [8, 32], strides = [1, 1]} : vector<8x96xf32> to vector<8x32xf32>
    %603 = vector.extract_strided_slice %593 {offsets = [0, 32], sizes = [8, 32], strides = [1, 1]} : vector<8x96xf32> to vector<8x32xf32>
    %604 = arith.addf %602, %603 : vector<8x32xf32>
    %605 = arith.negf %604 : vector<8x32xf32>
    %606 = math.exp %605 : vector<8x32xf32>
    %cst_168 = arith.constant 1.000000e+00 : f32
    %607 = vector.broadcast %cst_168 : f32 to vector<8x32xf32>
    %608 = arith.addf %607, %606 : vector<8x32xf32>
    %609 = arith.divf %607, %608 : vector<8x32xf32>
    %610 = vector.extract_strided_slice %563 {offsets = [0, 64], sizes = [8, 32], strides = [1, 1]} : vector<8x96xf32> to vector<8x32xf32>
    %611 = vector.extract_strided_slice %593 {offsets = [0, 64], sizes = [8, 32], strides = [1, 1]} : vector<8x96xf32> to vector<8x32xf32>
    %612 = vector.broadcast %17 : vector<1x32xf32> to vector<8x32xf32>
    %613 = arith.addf %611, %612 : vector<8x32xf32>
    %614 = arith.mulf %601, %613 : vector<8x32xf32>
    %615 = arith.addf %610, %614 : vector<8x32xf32>
    %616 = math.tanh %615 : vector<8x32xf32>
    %cst_169 = arith.constant 1.000000e+00 : f32
    %617 = vector.broadcast %cst_169 : f32 to vector<8x32xf32>
    %618 = arith.subf %617, %609 : vector<8x32xf32>
    %619 = arith.mulf %618, %616 : vector<8x32xf32>
    %620 = arith.mulf %609, %555 : vector<8x32xf32>
    %621 = arith.addf %619, %620 : vector<8x32xf32>
    %c8_170 = arith.constant 8 : index
    %c0_171 = arith.constant 0 : index
    %c0_172 = arith.constant 0 : index
    %622 = vector.load %arg9[%c8_170, %c0_171, %c0_172] : memref<20x8x32xf32, #tpu.memory_space<vmem>>, vector<1x8x32xf32>
    %623 = vector.shape_cast %622 : vector<1x8x32xf32> to vector<8x32xf32>
    %624 = vector.shape_cast %592 : vector<8x32xf32> to vector<1x8x32xf32>
    tpu.vector_store %arg9[%c8_170, %c0_171, %c0_172], %624 {strides = array<i32>} : memref<20x8x32xf32, #tpu.memory_space<vmem>>, vector<1x8x32xf32>,
    %c8_173 = arith.constant 8 : index
    %c0_174 = arith.constant 0 : index
    %c0_175 = arith.constant 0 : index
    %625 = vector.load %arg11[%c8_173, %c0_174, %c0_175] : memref<20x8x32xf32, #tpu.memory_space<vmem>>, vector<1x8x32xf32>
    %626 = vector.shape_cast %625 : vector<1x8x32xf32> to vector<8x32xf32>
    %627 = vector.shape_cast %621 : vector<8x32xf32> to vector<1x8x32xf32>
    tpu.vector_store %arg11[%c8_173, %c0_174, %c0_175], %627 {strides = array<i32>} : memref<20x8x32xf32, #tpu.memory_space<vmem>>, vector<1x8x32xf32>,
    %c72 = arith.constant 72 : index
    %c0_176 = arith.constant 0 : index
    %628 = vector.load %arg12[%c72, %c0_176] : memref<160x96xf32, #tpu.memory_space<vmem>>, vector<8x96xf32>
    %c72_177 = arith.constant 72 : index
    %c0_178 = arith.constant 0 : index
    %629 = vector.load %arg13[%c72_177, %c0_178] : memref<160x96xf32, #tpu.memory_space<vmem>>, vector<8x96xf32>
    %cst_179 = arith.constant dense<0.000000e+00> : vector<8x96xf32>
    %630 = tpu.matmul %592, %30, %cst_179 {dimension_numbers = #tpu.dot_dimension_numbers<[1], [0], [0], [1], [0, 0, 1, 1], [], []>} : vector<8x32xf32>, vector<32x96xf32>, vector<8x96xf32> -> vector<8x96xf32>
    %631 = vector.extract_strided_slice %628 {offsets = [0, 0], sizes = [8, 32], strides = [1, 1]} : vector<8x96xf32> to vector<8x32xf32>
    %632 = vector.extract_strided_slice %630 {offsets = [0, 0], sizes = [8, 32], strides = [1, 1]} : vector<8x96xf32> to vector<8x32xf32>
    %633 = arith.addf %631, %632 : vector<8x32xf32>
    %634 = arith.negf %633 : vector<8x32xf32>
    %635 = math.exp %634 : vector<8x32xf32>
    %cst_180 = arith.constant 1.000000e+00 : f32
    %636 = vector.broadcast %cst_180 : f32 to vector<8x32xf32>
    %637 = arith.addf %636, %635 : vector<8x32xf32>
    %638 = arith.divf %636, %637 : vector<8x32xf32>
    %639 = vector.extract_strided_slice %628 {offsets = [0, 32], sizes = [8, 32], strides = [1, 1]} : vector<8x96xf32> to vector<8x32xf32>
    %640 = vector.extract_strided_slice %630 {offsets = [0, 32], sizes = [8, 32], strides = [1, 1]} : vector<8x96xf32> to vector<8x32xf32>
    %641 = arith.addf %639, %640 : vector<8x32xf32>
    %642 = arith.negf %641 : vector<8x32xf32>
    %643 = math.exp %642 : vector<8x32xf32>
    %cst_181 = arith.constant 1.000000e+00 : f32
    %644 = vector.broadcast %cst_181 : f32 to vector<8x32xf32>
    %645 = arith.addf %644, %643 : vector<8x32xf32>
    %646 = arith.divf %644, %645 : vector<8x32xf32>
    %647 = vector.extract_strided_slice %628 {offsets = [0, 64], sizes = [8, 32], strides = [1, 1]} : vector<8x96xf32> to vector<8x32xf32>
    %648 = vector.extract_strided_slice %630 {offsets = [0, 64], sizes = [8, 32], strides = [1, 1]} : vector<8x96xf32> to vector<8x32xf32>
    %649 = vector.broadcast %8 : vector<1x32xf32> to vector<8x32xf32>
    %650 = arith.addf %648, %649 : vector<8x32xf32>
    %651 = arith.mulf %638, %650 : vector<8x32xf32>
    %652 = arith.addf %647, %651 : vector<8x32xf32>
    %653 = math.tanh %652 : vector<8x32xf32>
    %cst_182 = arith.constant 1.000000e+00 : f32
    %654 = vector.broadcast %cst_182 : f32 to vector<8x32xf32>
    %655 = arith.subf %654, %646 : vector<8x32xf32>
    %656 = arith.mulf %655, %653 : vector<8x32xf32>
    %657 = arith.mulf %646, %592 : vector<8x32xf32>
    %658 = arith.addf %656, %657 : vector<8x32xf32>
    %cst_183 = arith.constant dense<0.000000e+00> : vector<8x96xf32>
    %659 = tpu.matmul %621, %31, %cst_183 {dimension_numbers = #tpu.dot_dimension_numbers<[1], [0], [0], [1], [0, 0, 1, 1], [], []>} : vector<8x32xf32>, vector<32x96xf32>, vector<8x96xf32> -> vector<8x96xf32>
    %660 = vector.extract_strided_slice %629 {offsets = [0, 0], sizes = [8, 32], strides = [1, 1]} : vector<8x96xf32> to vector<8x32xf32>
    %661 = vector.extract_strided_slice %659 {offsets = [0, 0], sizes = [8, 32], strides = [1, 1]} : vector<8x96xf32> to vector<8x32xf32>
    %662 = arith.addf %660, %661 : vector<8x32xf32>
    %663 = arith.negf %662 : vector<8x32xf32>
    %664 = math.exp %663 : vector<8x32xf32>
    %cst_184 = arith.constant 1.000000e+00 : f32
    %665 = vector.broadcast %cst_184 : f32 to vector<8x32xf32>
    %666 = arith.addf %665, %664 : vector<8x32xf32>
    %667 = arith.divf %665, %666 : vector<8x32xf32>
    %668 = vector.extract_strided_slice %629 {offsets = [0, 32], sizes = [8, 32], strides = [1, 1]} : vector<8x96xf32> to vector<8x32xf32>
    %669 = vector.extract_strided_slice %659 {offsets = [0, 32], sizes = [8, 32], strides = [1, 1]} : vector<8x96xf32> to vector<8x32xf32>
    %670 = arith.addf %668, %669 : vector<8x32xf32>
    %671 = arith.negf %670 : vector<8x32xf32>
    %672 = math.exp %671 : vector<8x32xf32>
    %cst_185 = arith.constant 1.000000e+00 : f32
    %673 = vector.broadcast %cst_185 : f32 to vector<8x32xf32>
    %674 = arith.addf %673, %672 : vector<8x32xf32>
    %675 = arith.divf %673, %674 : vector<8x32xf32>
    %676 = vector.extract_strided_slice %629 {offsets = [0, 64], sizes = [8, 32], strides = [1, 1]} : vector<8x96xf32> to vector<8x32xf32>
    %677 = vector.extract_strided_slice %659 {offsets = [0, 64], sizes = [8, 32], strides = [1, 1]} : vector<8x96xf32> to vector<8x32xf32>
    %678 = vector.broadcast %17 : vector<1x32xf32> to vector<8x32xf32>
    %679 = arith.addf %677, %678 : vector<8x32xf32>
    %680 = arith.mulf %667, %679 : vector<8x32xf32>
    %681 = arith.addf %676, %680 : vector<8x32xf32>
    %682 = math.tanh %681 : vector<8x32xf32>
    %cst_186 = arith.constant 1.000000e+00 : f32
    %683 = vector.broadcast %cst_186 : f32 to vector<8x32xf32>
    %684 = arith.subf %683, %675 : vector<8x32xf32>
    %685 = arith.mulf %684, %682 : vector<8x32xf32>
    %686 = arith.mulf %675, %621 : vector<8x32xf32>
    %687 = arith.addf %685, %686 : vector<8x32xf32>
    %c9 = arith.constant 9 : index
    %c0_187 = arith.constant 0 : index
    %c0_188 = arith.constant 0 : index
    %688 = vector.load %arg9[%c9, %c0_187, %c0_188] : memref<20x8x32xf32, #tpu.memory_space<vmem>>, vector<1x8x32xf32>
    %689 = vector.shape_cast %688 : vector<1x8x32xf32> to vector<8x32xf32>
    %690 = vector.shape_cast %658 : vector<8x32xf32> to vector<1x8x32xf32>
    tpu.vector_store %arg9[%c9, %c0_187, %c0_188], %690 {strides = array<i32>} : memref<20x8x32xf32, #tpu.memory_space<vmem>>, vector<1x8x32xf32>,
    %c9_189 = arith.constant 9 : index
    %c0_190 = arith.constant 0 : index
    %c0_191 = arith.constant 0 : index
    %691 = vector.load %arg11[%c9_189, %c0_190, %c0_191] : memref<20x8x32xf32, #tpu.memory_space<vmem>>, vector<1x8x32xf32>
    %692 = vector.shape_cast %691 : vector<1x8x32xf32> to vector<8x32xf32>
    %693 = vector.shape_cast %687 : vector<8x32xf32> to vector<1x8x32xf32>
    tpu.vector_store %arg11[%c9_189, %c0_190, %c0_191], %693 {strides = array<i32>} : memref<20x8x32xf32, #tpu.memory_space<vmem>>, vector<1x8x32xf32>,
    %c80 = arith.constant 80 : index
    %c0_192 = arith.constant 0 : index
    %694 = vector.load %arg12[%c80, %c0_192] : memref<160x96xf32, #tpu.memory_space<vmem>>, vector<8x96xf32>
    %c80_193 = arith.constant 80 : index
    %c0_194 = arith.constant 0 : index
    %695 = vector.load %arg13[%c80_193, %c0_194] : memref<160x96xf32, #tpu.memory_space<vmem>>, vector<8x96xf32>
    %cst_195 = arith.constant dense<0.000000e+00> : vector<8x96xf32>
    %696 = tpu.matmul %658, %30, %cst_195 {dimension_numbers = #tpu.dot_dimension_numbers<[1], [0], [0], [1], [0, 0, 1, 1], [], []>} : vector<8x32xf32>, vector<32x96xf32>, vector<8x96xf32> -> vector<8x96xf32>
    %697 = vector.extract_strided_slice %694 {offsets = [0, 0], sizes = [8, 32], strides = [1, 1]} : vector<8x96xf32> to vector<8x32xf32>
    %698 = vector.extract_strided_slice %696 {offsets = [0, 0], sizes = [8, 32], strides = [1, 1]} : vector<8x96xf32> to vector<8x32xf32>
    %699 = arith.addf %697, %698 : vector<8x32xf32>
    %700 = arith.negf %699 : vector<8x32xf32>
    %701 = math.exp %700 : vector<8x32xf32>
    %cst_196 = arith.constant 1.000000e+00 : f32
    %702 = vector.broadcast %cst_196 : f32 to vector<8x32xf32>
    %703 = arith.addf %702, %701 : vector<8x32xf32>
    %704 = arith.divf %702, %703 : vector<8x32xf32>
    %705 = vector.extract_strided_slice %694 {offsets = [0, 32], sizes = [8, 32], strides = [1, 1]} : vector<8x96xf32> to vector<8x32xf32>
    %706 = vector.extract_strided_slice %696 {offsets = [0, 32], sizes = [8, 32], strides = [1, 1]} : vector<8x96xf32> to vector<8x32xf32>
    %707 = arith.addf %705, %706 : vector<8x32xf32>
    %708 = arith.negf %707 : vector<8x32xf32>
    %709 = math.exp %708 : vector<8x32xf32>
    %cst_197 = arith.constant 1.000000e+00 : f32
    %710 = vector.broadcast %cst_197 : f32 to vector<8x32xf32>
    %711 = arith.addf %710, %709 : vector<8x32xf32>
    %712 = arith.divf %710, %711 : vector<8x32xf32>
    %713 = vector.extract_strided_slice %694 {offsets = [0, 64], sizes = [8, 32], strides = [1, 1]} : vector<8x96xf32> to vector<8x32xf32>
    %714 = vector.extract_strided_slice %696 {offsets = [0, 64], sizes = [8, 32], strides = [1, 1]} : vector<8x96xf32> to vector<8x32xf32>
    %715 = vector.broadcast %8 : vector<1x32xf32> to vector<8x32xf32>
    %716 = arith.addf %714, %715 : vector<8x32xf32>
    %717 = arith.mulf %704, %716 : vector<8x32xf32>
    %718 = arith.addf %713, %717 : vector<8x32xf32>
    %719 = math.tanh %718 : vector<8x32xf32>
    %cst_198 = arith.constant 1.000000e+00 : f32
    %720 = vector.broadcast %cst_198 : f32 to vector<8x32xf32>
    %721 = arith.subf %720, %712 : vector<8x32xf32>
    %722 = arith.mulf %721, %719 : vector<8x32xf32>
    %723 = arith.mulf %712, %658 : vector<8x32xf32>
    %724 = arith.addf %722, %723 : vector<8x32xf32>
    %cst_199 = arith.constant dense<0.000000e+00> : vector<8x96xf32>
    %725 = tpu.matmul %687, %31, %cst_199 {dimension_numbers = #tpu.dot_dimension_numbers<[1], [0], [0], [1], [0, 0, 1, 1], [], []>} : vector<8x32xf32>, vector<32x96xf32>, vector<8x96xf32> -> vector<8x96xf32>
    %726 = vector.extract_strided_slice %695 {offsets = [0, 0], sizes = [8, 32], strides = [1, 1]} : vector<8x96xf32> to vector<8x32xf32>
    %727 = vector.extract_strided_slice %725 {offsets = [0, 0], sizes = [8, 32], strides = [1, 1]} : vector<8x96xf32> to vector<8x32xf32>
    %728 = arith.addf %726, %727 : vector<8x32xf32>
    %729 = arith.negf %728 : vector<8x32xf32>
    %730 = math.exp %729 : vector<8x32xf32>
    %cst_200 = arith.constant 1.000000e+00 : f32
    %731 = vector.broadcast %cst_200 : f32 to vector<8x32xf32>
    %732 = arith.addf %731, %730 : vector<8x32xf32>
    %733 = arith.divf %731, %732 : vector<8x32xf32>
    %734 = vector.extract_strided_slice %695 {offsets = [0, 32], sizes = [8, 32], strides = [1, 1]} : vector<8x96xf32> to vector<8x32xf32>
    %735 = vector.extract_strided_slice %725 {offsets = [0, 32], sizes = [8, 32], strides = [1, 1]} : vector<8x96xf32> to vector<8x32xf32>
    %736 = arith.addf %734, %735 : vector<8x32xf32>
    %737 = arith.negf %736 : vector<8x32xf32>
    %738 = math.exp %737 : vector<8x32xf32>
    %cst_201 = arith.constant 1.000000e+00 : f32
    %739 = vector.broadcast %cst_201 : f32 to vector<8x32xf32>
    %740 = arith.addf %739, %738 : vector<8x32xf32>
    %741 = arith.divf %739, %740 : vector<8x32xf32>
    %742 = vector.extract_strided_slice %695 {offsets = [0, 64], sizes = [8, 32], strides = [1, 1]} : vector<8x96xf32> to vector<8x32xf32>
    %743 = vector.extract_strided_slice %725 {offsets = [0, 64], sizes = [8, 32], strides = [1, 1]} : vector<8x96xf32> to vector<8x32xf32>
    %744 = vector.broadcast %17 : vector<1x32xf32> to vector<8x32xf32>
    %745 = arith.addf %743, %744 : vector<8x32xf32>
    %746 = arith.mulf %733, %745 : vector<8x32xf32>
    %747 = arith.addf %742, %746 : vector<8x32xf32>
    %748 = math.tanh %747 : vector<8x32xf32>
    %cst_202 = arith.constant 1.000000e+00 : f32
    %749 = vector.broadcast %cst_202 : f32 to vector<8x32xf32>
    %750 = arith.subf %749, %741 : vector<8x32xf32>
    %751 = arith.mulf %750, %748 : vector<8x32xf32>
    %752 = arith.mulf %741, %687 : vector<8x32xf32>
    %753 = arith.addf %751, %752 : vector<8x32xf32>
    %c10 = arith.constant 10 : index
    %c0_203 = arith.constant 0 : index
    %c0_204 = arith.constant 0 : index
    %754 = vector.load %arg9[%c10, %c0_203, %c0_204] : memref<20x8x32xf32, #tpu.memory_space<vmem>>, vector<1x8x32xf32>
    %755 = vector.shape_cast %754 : vector<1x8x32xf32> to vector<8x32xf32>
    %756 = vector.shape_cast %724 : vector<8x32xf32> to vector<1x8x32xf32>
    tpu.vector_store %arg9[%c10, %c0_203, %c0_204], %756 {strides = array<i32>} : memref<20x8x32xf32, #tpu.memory_space<vmem>>, vector<1x8x32xf32>,
    %c10_205 = arith.constant 10 : index
    %c0_206 = arith.constant 0 : index
    %c0_207 = arith.constant 0 : index
    %757 = vector.load %arg11[%c10_205, %c0_206, %c0_207] : memref<20x8x32xf32, #tpu.memory_space<vmem>>, vector<1x8x32xf32>
    %758 = vector.shape_cast %757 : vector<1x8x32xf32> to vector<8x32xf32>
    %759 = vector.shape_cast %753 : vector<8x32xf32> to vector<1x8x32xf32>
    tpu.vector_store %arg11[%c10_205, %c0_206, %c0_207], %759 {strides = array<i32>} : memref<20x8x32xf32, #tpu.memory_space<vmem>>, vector<1x8x32xf32>,
    %c88 = arith.constant 88 : index
    %c0_208 = arith.constant 0 : index
    %760 = vector.load %arg12[%c88, %c0_208] : memref<160x96xf32, #tpu.memory_space<vmem>>, vector<8x96xf32>
    %c88_209 = arith.constant 88 : index
    %c0_210 = arith.constant 0 : index
    %761 = vector.load %arg13[%c88_209, %c0_210] : memref<160x96xf32, #tpu.memory_space<vmem>>, vector<8x96xf32>
    %cst_211 = arith.constant dense<0.000000e+00> : vector<8x96xf32>
    %762 = tpu.matmul %724, %30, %cst_211 {dimension_numbers = #tpu.dot_dimension_numbers<[1], [0], [0], [1], [0, 0, 1, 1], [], []>} : vector<8x32xf32>, vector<32x96xf32>, vector<8x96xf32> -> vector<8x96xf32>
    %763 = vector.extract_strided_slice %760 {offsets = [0, 0], sizes = [8, 32], strides = [1, 1]} : vector<8x96xf32> to vector<8x32xf32>
    %764 = vector.extract_strided_slice %762 {offsets = [0, 0], sizes = [8, 32], strides = [1, 1]} : vector<8x96xf32> to vector<8x32xf32>
    %765 = arith.addf %763, %764 : vector<8x32xf32>
    %766 = arith.negf %765 : vector<8x32xf32>
    %767 = math.exp %766 : vector<8x32xf32>
    %cst_212 = arith.constant 1.000000e+00 : f32
    %768 = vector.broadcast %cst_212 : f32 to vector<8x32xf32>
    %769 = arith.addf %768, %767 : vector<8x32xf32>
    %770 = arith.divf %768, %769 : vector<8x32xf32>
    %771 = vector.extract_strided_slice %760 {offsets = [0, 32], sizes = [8, 32], strides = [1, 1]} : vector<8x96xf32> to vector<8x32xf32>
    %772 = vector.extract_strided_slice %762 {offsets = [0, 32], sizes = [8, 32], strides = [1, 1]} : vector<8x96xf32> to vector<8x32xf32>
    %773 = arith.addf %771, %772 : vector<8x32xf32>
    %774 = arith.negf %773 : vector<8x32xf32>
    %775 = math.exp %774 : vector<8x32xf32>
    %cst_213 = arith.constant 1.000000e+00 : f32
    %776 = vector.broadcast %cst_213 : f32 to vector<8x32xf32>
    %777 = arith.addf %776, %775 : vector<8x32xf32>
    %778 = arith.divf %776, %777 : vector<8x32xf32>
    %779 = vector.extract_strided_slice %760 {offsets = [0, 64], sizes = [8, 32], strides = [1, 1]} : vector<8x96xf32> to vector<8x32xf32>
    %780 = vector.extract_strided_slice %762 {offsets = [0, 64], sizes = [8, 32], strides = [1, 1]} : vector<8x96xf32> to vector<8x32xf32>
    %781 = vector.broadcast %8 : vector<1x32xf32> to vector<8x32xf32>
    %782 = arith.addf %780, %781 : vector<8x32xf32>
    %783 = arith.mulf %770, %782 : vector<8x32xf32>
    %784 = arith.addf %779, %783 : vector<8x32xf32>
    %785 = math.tanh %784 : vector<8x32xf32>
    %cst_214 = arith.constant 1.000000e+00 : f32
    %786 = vector.broadcast %cst_214 : f32 to vector<8x32xf32>
    %787 = arith.subf %786, %778 : vector<8x32xf32>
    %788 = arith.mulf %787, %785 : vector<8x32xf32>
    %789 = arith.mulf %778, %724 : vector<8x32xf32>
    %790 = arith.addf %788, %789 : vector<8x32xf32>
    %cst_215 = arith.constant dense<0.000000e+00> : vector<8x96xf32>
    %791 = tpu.matmul %753, %31, %cst_215 {dimension_numbers = #tpu.dot_dimension_numbers<[1], [0], [0], [1], [0, 0, 1, 1], [], []>} : vector<8x32xf32>, vector<32x96xf32>, vector<8x96xf32> -> vector<8x96xf32>
    %792 = vector.extract_strided_slice %761 {offsets = [0, 0], sizes = [8, 32], strides = [1, 1]} : vector<8x96xf32> to vector<8x32xf32>
    %793 = vector.extract_strided_slice %791 {offsets = [0, 0], sizes = [8, 32], strides = [1, 1]} : vector<8x96xf32> to vector<8x32xf32>
    %794 = arith.addf %792, %793 : vector<8x32xf32>
    %795 = arith.negf %794 : vector<8x32xf32>
    %796 = math.exp %795 : vector<8x32xf32>
    %cst_216 = arith.constant 1.000000e+00 : f32
    %797 = vector.broadcast %cst_216 : f32 to vector<8x32xf32>
    %798 = arith.addf %797, %796 : vector<8x32xf32>
    %799 = arith.divf %797, %798 : vector<8x32xf32>
    %800 = vector.extract_strided_slice %761 {offsets = [0, 32], sizes = [8, 32], strides = [1, 1]} : vector<8x96xf32> to vector<8x32xf32>
    %801 = vector.extract_strided_slice %791 {offsets = [0, 32], sizes = [8, 32], strides = [1, 1]} : vector<8x96xf32> to vector<8x32xf32>
    %802 = arith.addf %800, %801 : vector<8x32xf32>
    %803 = arith.negf %802 : vector<8x32xf32>
    %804 = math.exp %803 : vector<8x32xf32>
    %cst_217 = arith.constant 1.000000e+00 : f32
    %805 = vector.broadcast %cst_217 : f32 to vector<8x32xf32>
    %806 = arith.addf %805, %804 : vector<8x32xf32>
    %807 = arith.divf %805, %806 : vector<8x32xf32>
    %808 = vector.extract_strided_slice %761 {offsets = [0, 64], sizes = [8, 32], strides = [1, 1]} : vector<8x96xf32> to vector<8x32xf32>
    %809 = vector.extract_strided_slice %791 {offsets = [0, 64], sizes = [8, 32], strides = [1, 1]} : vector<8x96xf32> to vector<8x32xf32>
    %810 = vector.broadcast %17 : vector<1x32xf32> to vector<8x32xf32>
    %811 = arith.addf %809, %810 : vector<8x32xf32>
    %812 = arith.mulf %799, %811 : vector<8x32xf32>
    %813 = arith.addf %808, %812 : vector<8x32xf32>
    %814 = math.tanh %813 : vector<8x32xf32>
    %cst_218 = arith.constant 1.000000e+00 : f32
    %815 = vector.broadcast %cst_218 : f32 to vector<8x32xf32>
    %816 = arith.subf %815, %807 : vector<8x32xf32>
    %817 = arith.mulf %816, %814 : vector<8x32xf32>
    %818 = arith.mulf %807, %753 : vector<8x32xf32>
    %819 = arith.addf %817, %818 : vector<8x32xf32>
    %c11 = arith.constant 11 : index
    %c0_219 = arith.constant 0 : index
    %c0_220 = arith.constant 0 : index
    %820 = vector.load %arg9[%c11, %c0_219, %c0_220] : memref<20x8x32xf32, #tpu.memory_space<vmem>>, vector<1x8x32xf32>
    %821 = vector.shape_cast %820 : vector<1x8x32xf32> to vector<8x32xf32>
    %822 = vector.shape_cast %790 : vector<8x32xf32> to vector<1x8x32xf32>
    tpu.vector_store %arg9[%c11, %c0_219, %c0_220], %822 {strides = array<i32>} : memref<20x8x32xf32, #tpu.memory_space<vmem>>, vector<1x8x32xf32>,
    %c11_221 = arith.constant 11 : index
    %c0_222 = arith.constant 0 : index
    %c0_223 = arith.constant 0 : index
    %823 = vector.load %arg11[%c11_221, %c0_222, %c0_223] : memref<20x8x32xf32, #tpu.memory_space<vmem>>, vector<1x8x32xf32>
    %824 = vector.shape_cast %823 : vector<1x8x32xf32> to vector<8x32xf32>
    %825 = vector.shape_cast %819 : vector<8x32xf32> to vector<1x8x32xf32>
    tpu.vector_store %arg11[%c11_221, %c0_222, %c0_223], %825 {strides = array<i32>} : memref<20x8x32xf32, #tpu.memory_space<vmem>>, vector<1x8x32xf32>,
    %c96 = arith.constant 96 : index
    %c0_224 = arith.constant 0 : index
    %826 = vector.load %arg12[%c96, %c0_224] : memref<160x96xf32, #tpu.memory_space<vmem>>, vector<8x96xf32>
    %c96_225 = arith.constant 96 : index
    %c0_226 = arith.constant 0 : index
    %827 = vector.load %arg13[%c96_225, %c0_226] : memref<160x96xf32, #tpu.memory_space<vmem>>, vector<8x96xf32>
    %cst_227 = arith.constant dense<0.000000e+00> : vector<8x96xf32>
    %828 = tpu.matmul %790, %30, %cst_227 {dimension_numbers = #tpu.dot_dimension_numbers<[1], [0], [0], [1], [0, 0, 1, 1], [], []>} : vector<8x32xf32>, vector<32x96xf32>, vector<8x96xf32> -> vector<8x96xf32>
    %829 = vector.extract_strided_slice %826 {offsets = [0, 0], sizes = [8, 32], strides = [1, 1]} : vector<8x96xf32> to vector<8x32xf32>
    %830 = vector.extract_strided_slice %828 {offsets = [0, 0], sizes = [8, 32], strides = [1, 1]} : vector<8x96xf32> to vector<8x32xf32>
    %831 = arith.addf %829, %830 : vector<8x32xf32>
    %832 = arith.negf %831 : vector<8x32xf32>
    %833 = math.exp %832 : vector<8x32xf32>
    %cst_228 = arith.constant 1.000000e+00 : f32
    %834 = vector.broadcast %cst_228 : f32 to vector<8x32xf32>
    %835 = arith.addf %834, %833 : vector<8x32xf32>
    %836 = arith.divf %834, %835 : vector<8x32xf32>
    %837 = vector.extract_strided_slice %826 {offsets = [0, 32], sizes = [8, 32], strides = [1, 1]} : vector<8x96xf32> to vector<8x32xf32>
    %838 = vector.extract_strided_slice %828 {offsets = [0, 32], sizes = [8, 32], strides = [1, 1]} : vector<8x96xf32> to vector<8x32xf32>
    %839 = arith.addf %837, %838 : vector<8x32xf32>
    %840 = arith.negf %839 : vector<8x32xf32>
    %841 = math.exp %840 : vector<8x32xf32>
    %cst_229 = arith.constant 1.000000e+00 : f32
    %842 = vector.broadcast %cst_229 : f32 to vector<8x32xf32>
    %843 = arith.addf %842, %841 : vector<8x32xf32>
    %844 = arith.divf %842, %843 : vector<8x32xf32>
    %845 = vector.extract_strided_slice %826 {offsets = [0, 64], sizes = [8, 32], strides = [1, 1]} : vector<8x96xf32> to vector<8x32xf32>
    %846 = vector.extract_strided_slice %828 {offsets = [0, 64], sizes = [8, 32], strides = [1, 1]} : vector<8x96xf32> to vector<8x32xf32>
    %847 = vector.broadcast %8 : vector<1x32xf32> to vector<8x32xf32>
    %848 = arith.addf %846, %847 : vector<8x32xf32>
    %849 = arith.mulf %836, %848 : vector<8x32xf32>
    %850 = arith.addf %845, %849 : vector<8x32xf32>
    %851 = math.tanh %850 : vector<8x32xf32>
    %cst_230 = arith.constant 1.000000e+00 : f32
    %852 = vector.broadcast %cst_230 : f32 to vector<8x32xf32>
    %853 = arith.subf %852, %844 : vector<8x32xf32>
    %854 = arith.mulf %853, %851 : vector<8x32xf32>
    %855 = arith.mulf %844, %790 : vector<8x32xf32>
    %856 = arith.addf %854, %855 : vector<8x32xf32>
    %cst_231 = arith.constant dense<0.000000e+00> : vector<8x96xf32>
    %857 = tpu.matmul %819, %31, %cst_231 {dimension_numbers = #tpu.dot_dimension_numbers<[1], [0], [0], [1], [0, 0, 1, 1], [], []>} : vector<8x32xf32>, vector<32x96xf32>, vector<8x96xf32> -> vector<8x96xf32>
    %858 = vector.extract_strided_slice %827 {offsets = [0, 0], sizes = [8, 32], strides = [1, 1]} : vector<8x96xf32> to vector<8x32xf32>
    %859 = vector.extract_strided_slice %857 {offsets = [0, 0], sizes = [8, 32], strides = [1, 1]} : vector<8x96xf32> to vector<8x32xf32>
    %860 = arith.addf %858, %859 : vector<8x32xf32>
    %861 = arith.negf %860 : vector<8x32xf32>
    %862 = math.exp %861 : vector<8x32xf32>
    %cst_232 = arith.constant 1.000000e+00 : f32
    %863 = vector.broadcast %cst_232 : f32 to vector<8x32xf32>
    %864 = arith.addf %863, %862 : vector<8x32xf32>
    %865 = arith.divf %863, %864 : vector<8x32xf32>
    %866 = vector.extract_strided_slice %827 {offsets = [0, 32], sizes = [8, 32], strides = [1, 1]} : vector<8x96xf32> to vector<8x32xf32>
    %867 = vector.extract_strided_slice %857 {offsets = [0, 32], sizes = [8, 32], strides = [1, 1]} : vector<8x96xf32> to vector<8x32xf32>
    %868 = arith.addf %866, %867 : vector<8x32xf32>
    %869 = arith.negf %868 : vector<8x32xf32>
    %870 = math.exp %869 : vector<8x32xf32>
    %cst_233 = arith.constant 1.000000e+00 : f32
    %871 = vector.broadcast %cst_233 : f32 to vector<8x32xf32>
    %872 = arith.addf %871, %870 : vector<8x32xf32>
    %873 = arith.divf %871, %872 : vector<8x32xf32>
    %874 = vector.extract_strided_slice %827 {offsets = [0, 64], sizes = [8, 32], strides = [1, 1]} : vector<8x96xf32> to vector<8x32xf32>
    %875 = vector.extract_strided_slice %857 {offsets = [0, 64], sizes = [8, 32], strides = [1, 1]} : vector<8x96xf32> to vector<8x32xf32>
    %876 = vector.broadcast %17 : vector<1x32xf32> to vector<8x32xf32>
    %877 = arith.addf %875, %876 : vector<8x32xf32>
    %878 = arith.mulf %865, %877 : vector<8x32xf32>
    %879 = arith.addf %874, %878 : vector<8x32xf32>
    %880 = math.tanh %879 : vector<8x32xf32>
    %cst_234 = arith.constant 1.000000e+00 : f32
    %881 = vector.broadcast %cst_234 : f32 to vector<8x32xf32>
    %882 = arith.subf %881, %873 : vector<8x32xf32>
    %883 = arith.mulf %882, %880 : vector<8x32xf32>
    %884 = arith.mulf %873, %819 : vector<8x32xf32>
    %885 = arith.addf %883, %884 : vector<8x32xf32>
    %c12 = arith.constant 12 : index
    %c0_235 = arith.constant 0 : index
    %c0_236 = arith.constant 0 : index
    %886 = vector.load %arg9[%c12, %c0_235, %c0_236] : memref<20x8x32xf32, #tpu.memory_space<vmem>>, vector<1x8x32xf32>
    %887 = vector.shape_cast %886 : vector<1x8x32xf32> to vector<8x32xf32>
    %888 = vector.shape_cast %856 : vector<8x32xf32> to vector<1x8x32xf32>
    tpu.vector_store %arg9[%c12, %c0_235, %c0_236], %888 {strides = array<i32>} : memref<20x8x32xf32, #tpu.memory_space<vmem>>, vector<1x8x32xf32>,
    %c12_237 = arith.constant 12 : index
    %c0_238 = arith.constant 0 : index
    %c0_239 = arith.constant 0 : index
    %889 = vector.load %arg11[%c12_237, %c0_238, %c0_239] : memref<20x8x32xf32, #tpu.memory_space<vmem>>, vector<1x8x32xf32>
    %890 = vector.shape_cast %889 : vector<1x8x32xf32> to vector<8x32xf32>
    %891 = vector.shape_cast %885 : vector<8x32xf32> to vector<1x8x32xf32>
    tpu.vector_store %arg11[%c12_237, %c0_238, %c0_239], %891 {strides = array<i32>} : memref<20x8x32xf32, #tpu.memory_space<vmem>>, vector<1x8x32xf32>,
    %c104 = arith.constant 104 : index
    %c0_240 = arith.constant 0 : index
    %892 = vector.load %arg12[%c104, %c0_240] : memref<160x96xf32, #tpu.memory_space<vmem>>, vector<8x96xf32>
    %c104_241 = arith.constant 104 : index
    %c0_242 = arith.constant 0 : index
    %893 = vector.load %arg13[%c104_241, %c0_242] : memref<160x96xf32, #tpu.memory_space<vmem>>, vector<8x96xf32>
    %cst_243 = arith.constant dense<0.000000e+00> : vector<8x96xf32>
    %894 = tpu.matmul %856, %30, %cst_243 {dimension_numbers = #tpu.dot_dimension_numbers<[1], [0], [0], [1], [0, 0, 1, 1], [], []>} : vector<8x32xf32>, vector<32x96xf32>, vector<8x96xf32> -> vector<8x96xf32>
    %895 = vector.extract_strided_slice %892 {offsets = [0, 0], sizes = [8, 32], strides = [1, 1]} : vector<8x96xf32> to vector<8x32xf32>
    %896 = vector.extract_strided_slice %894 {offsets = [0, 0], sizes = [8, 32], strides = [1, 1]} : vector<8x96xf32> to vector<8x32xf32>
    %897 = arith.addf %895, %896 : vector<8x32xf32>
    %898 = arith.negf %897 : vector<8x32xf32>
    %899 = math.exp %898 : vector<8x32xf32>
    %cst_244 = arith.constant 1.000000e+00 : f32
    %900 = vector.broadcast %cst_244 : f32 to vector<8x32xf32>
    %901 = arith.addf %900, %899 : vector<8x32xf32>
    %902 = arith.divf %900, %901 : vector<8x32xf32>
    %903 = vector.extract_strided_slice %892 {offsets = [0, 32], sizes = [8, 32], strides = [1, 1]} : vector<8x96xf32> to vector<8x32xf32>
    %904 = vector.extract_strided_slice %894 {offsets = [0, 32], sizes = [8, 32], strides = [1, 1]} : vector<8x96xf32> to vector<8x32xf32>
    %905 = arith.addf %903, %904 : vector<8x32xf32>
    %906 = arith.negf %905 : vector<8x32xf32>
    %907 = math.exp %906 : vector<8x32xf32>
    %cst_245 = arith.constant 1.000000e+00 : f32
    %908 = vector.broadcast %cst_245 : f32 to vector<8x32xf32>
    %909 = arith.addf %908, %907 : vector<8x32xf32>
    %910 = arith.divf %908, %909 : vector<8x32xf32>
    %911 = vector.extract_strided_slice %892 {offsets = [0, 64], sizes = [8, 32], strides = [1, 1]} : vector<8x96xf32> to vector<8x32xf32>
    %912 = vector.extract_strided_slice %894 {offsets = [0, 64], sizes = [8, 32], strides = [1, 1]} : vector<8x96xf32> to vector<8x32xf32>
    %913 = vector.broadcast %8 : vector<1x32xf32> to vector<8x32xf32>
    %914 = arith.addf %912, %913 : vector<8x32xf32>
    %915 = arith.mulf %902, %914 : vector<8x32xf32>
    %916 = arith.addf %911, %915 : vector<8x32xf32>
    %917 = math.tanh %916 : vector<8x32xf32>
    %cst_246 = arith.constant 1.000000e+00 : f32
    %918 = vector.broadcast %cst_246 : f32 to vector<8x32xf32>
    %919 = arith.subf %918, %910 : vector<8x32xf32>
    %920 = arith.mulf %919, %917 : vector<8x32xf32>
    %921 = arith.mulf %910, %856 : vector<8x32xf32>
    %922 = arith.addf %920, %921 : vector<8x32xf32>
    %cst_247 = arith.constant dense<0.000000e+00> : vector<8x96xf32>
    %923 = tpu.matmul %885, %31, %cst_247 {dimension_numbers = #tpu.dot_dimension_numbers<[1], [0], [0], [1], [0, 0, 1, 1], [], []>} : vector<8x32xf32>, vector<32x96xf32>, vector<8x96xf32> -> vector<8x96xf32>
    %924 = vector.extract_strided_slice %893 {offsets = [0, 0], sizes = [8, 32], strides = [1, 1]} : vector<8x96xf32> to vector<8x32xf32>
    %925 = vector.extract_strided_slice %923 {offsets = [0, 0], sizes = [8, 32], strides = [1, 1]} : vector<8x96xf32> to vector<8x32xf32>
    %926 = arith.addf %924, %925 : vector<8x32xf32>
    %927 = arith.negf %926 : vector<8x32xf32>
    %928 = math.exp %927 : vector<8x32xf32>
    %cst_248 = arith.constant 1.000000e+00 : f32
    %929 = vector.broadcast %cst_248 : f32 to vector<8x32xf32>
    %930 = arith.addf %929, %928 : vector<8x32xf32>
    %931 = arith.divf %929, %930 : vector<8x32xf32>
    %932 = vector.extract_strided_slice %893 {offsets = [0, 32], sizes = [8, 32], strides = [1, 1]} : vector<8x96xf32> to vector<8x32xf32>
    %933 = vector.extract_strided_slice %923 {offsets = [0, 32], sizes = [8, 32], strides = [1, 1]} : vector<8x96xf32> to vector<8x32xf32>
    %934 = arith.addf %932, %933 : vector<8x32xf32>
    %935 = arith.negf %934 : vector<8x32xf32>
    %936 = math.exp %935 : vector<8x32xf32>
    %cst_249 = arith.constant 1.000000e+00 : f32
    %937 = vector.broadcast %cst_249 : f32 to vector<8x32xf32>
    %938 = arith.addf %937, %936 : vector<8x32xf32>
    %939 = arith.divf %937, %938 : vector<8x32xf32>
    %940 = vector.extract_strided_slice %893 {offsets = [0, 64], sizes = [8, 32], strides = [1, 1]} : vector<8x96xf32> to vector<8x32xf32>
    %941 = vector.extract_strided_slice %923 {offsets = [0, 64], sizes = [8, 32], strides = [1, 1]} : vector<8x96xf32> to vector<8x32xf32>
    %942 = vector.broadcast %17 : vector<1x32xf32> to vector<8x32xf32>
    %943 = arith.addf %941, %942 : vector<8x32xf32>
    %944 = arith.mulf %931, %943 : vector<8x32xf32>
    %945 = arith.addf %940, %944 : vector<8x32xf32>
    %946 = math.tanh %945 : vector<8x32xf32>
    %cst_250 = arith.constant 1.000000e+00 : f32
    %947 = vector.broadcast %cst_250 : f32 to vector<8x32xf32>
    %948 = arith.subf %947, %939 : vector<8x32xf32>
    %949 = arith.mulf %948, %946 : vector<8x32xf32>
    %950 = arith.mulf %939, %885 : vector<8x32xf32>
    %951 = arith.addf %949, %950 : vector<8x32xf32>
    %c13 = arith.constant 13 : index
    %c0_251 = arith.constant 0 : index
    %c0_252 = arith.constant 0 : index
    %952 = vector.load %arg9[%c13, %c0_251, %c0_252] : memref<20x8x32xf32, #tpu.memory_space<vmem>>, vector<1x8x32xf32>
    %953 = vector.shape_cast %952 : vector<1x8x32xf32> to vector<8x32xf32>
    %954 = vector.shape_cast %922 : vector<8x32xf32> to vector<1x8x32xf32>
    tpu.vector_store %arg9[%c13, %c0_251, %c0_252], %954 {strides = array<i32>} : memref<20x8x32xf32, #tpu.memory_space<vmem>>, vector<1x8x32xf32>,
    %c13_253 = arith.constant 13 : index
    %c0_254 = arith.constant 0 : index
    %c0_255 = arith.constant 0 : index
    %955 = vector.load %arg11[%c13_253, %c0_254, %c0_255] : memref<20x8x32xf32, #tpu.memory_space<vmem>>, vector<1x8x32xf32>
    %956 = vector.shape_cast %955 : vector<1x8x32xf32> to vector<8x32xf32>
    %957 = vector.shape_cast %951 : vector<8x32xf32> to vector<1x8x32xf32>
    tpu.vector_store %arg11[%c13_253, %c0_254, %c0_255], %957 {strides = array<i32>} : memref<20x8x32xf32, #tpu.memory_space<vmem>>, vector<1x8x32xf32>,
    %c112 = arith.constant 112 : index
    %c0_256 = arith.constant 0 : index
    %958 = vector.load %arg12[%c112, %c0_256] : memref<160x96xf32, #tpu.memory_space<vmem>>, vector<8x96xf32>
    %c112_257 = arith.constant 112 : index
    %c0_258 = arith.constant 0 : index
    %959 = vector.load %arg13[%c112_257, %c0_258] : memref<160x96xf32, #tpu.memory_space<vmem>>, vector<8x96xf32>
    %cst_259 = arith.constant dense<0.000000e+00> : vector<8x96xf32>
    %960 = tpu.matmul %922, %30, %cst_259 {dimension_numbers = #tpu.dot_dimension_numbers<[1], [0], [0], [1], [0, 0, 1, 1], [], []>} : vector<8x32xf32>, vector<32x96xf32>, vector<8x96xf32> -> vector<8x96xf32>
    %961 = vector.extract_strided_slice %958 {offsets = [0, 0], sizes = [8, 32], strides = [1, 1]} : vector<8x96xf32> to vector<8x32xf32>
    %962 = vector.extract_strided_slice %960 {offsets = [0, 0], sizes = [8, 32], strides = [1, 1]} : vector<8x96xf32> to vector<8x32xf32>
    %963 = arith.addf %961, %962 : vector<8x32xf32>
    %964 = arith.negf %963 : vector<8x32xf32>
    %965 = math.exp %964 : vector<8x32xf32>
    %cst_260 = arith.constant 1.000000e+00 : f32
    %966 = vector.broadcast %cst_260 : f32 to vector<8x32xf32>
    %967 = arith.addf %966, %965 : vector<8x32xf32>
    %968 = arith.divf %966, %967 : vector<8x32xf32>
    %969 = vector.extract_strided_slice %958 {offsets = [0, 32], sizes = [8, 32], strides = [1, 1]} : vector<8x96xf32> to vector<8x32xf32>
    %970 = vector.extract_strided_slice %960 {offsets = [0, 32], sizes = [8, 32], strides = [1, 1]} : vector<8x96xf32> to vector<8x32xf32>
    %971 = arith.addf %969, %970 : vector<8x32xf32>
    %972 = arith.negf %971 : vector<8x32xf32>
    %973 = math.exp %972 : vector<8x32xf32>
    %cst_261 = arith.constant 1.000000e+00 : f32
    %974 = vector.broadcast %cst_261 : f32 to vector<8x32xf32>
    %975 = arith.addf %974, %973 : vector<8x32xf32>
    %976 = arith.divf %974, %975 : vector<8x32xf32>
    %977 = vector.extract_strided_slice %958 {offsets = [0, 64], sizes = [8, 32], strides = [1, 1]} : vector<8x96xf32> to vector<8x32xf32>
    %978 = vector.extract_strided_slice %960 {offsets = [0, 64], sizes = [8, 32], strides = [1, 1]} : vector<8x96xf32> to vector<8x32xf32>
    %979 = vector.broadcast %8 : vector<1x32xf32> to vector<8x32xf32>
    %980 = arith.addf %978, %979 : vector<8x32xf32>
    %981 = arith.mulf %968, %980 : vector<8x32xf32>
    %982 = arith.addf %977, %981 : vector<8x32xf32>
    %983 = math.tanh %982 : vector<8x32xf32>
    %cst_262 = arith.constant 1.000000e+00 : f32
    %984 = vector.broadcast %cst_262 : f32 to vector<8x32xf32>
    %985 = arith.subf %984, %976 : vector<8x32xf32>
    %986 = arith.mulf %985, %983 : vector<8x32xf32>
    %987 = arith.mulf %976, %922 : vector<8x32xf32>
    %988 = arith.addf %986, %987 : vector<8x32xf32>
    %cst_263 = arith.constant dense<0.000000e+00> : vector<8x96xf32>
    %989 = tpu.matmul %951, %31, %cst_263 {dimension_numbers = #tpu.dot_dimension_numbers<[1], [0], [0], [1], [0, 0, 1, 1], [], []>} : vector<8x32xf32>, vector<32x96xf32>, vector<8x96xf32> -> vector<8x96xf32>
    %990 = vector.extract_strided_slice %959 {offsets = [0, 0], sizes = [8, 32], strides = [1, 1]} : vector<8x96xf32> to vector<8x32xf32>
    %991 = vector.extract_strided_slice %989 {offsets = [0, 0], sizes = [8, 32], strides = [1, 1]} : vector<8x96xf32> to vector<8x32xf32>
    %992 = arith.addf %990, %991 : vector<8x32xf32>
    %993 = arith.negf %992 : vector<8x32xf32>
    %994 = math.exp %993 : vector<8x32xf32>
    %cst_264 = arith.constant 1.000000e+00 : f32
    %995 = vector.broadcast %cst_264 : f32 to vector<8x32xf32>
    %996 = arith.addf %995, %994 : vector<8x32xf32>
    %997 = arith.divf %995, %996 : vector<8x32xf32>
    %998 = vector.extract_strided_slice %959 {offsets = [0, 32], sizes = [8, 32], strides = [1, 1]} : vector<8x96xf32> to vector<8x32xf32>
    %999 = vector.extract_strided_slice %989 {offsets = [0, 32], sizes = [8, 32], strides = [1, 1]} : vector<8x96xf32> to vector<8x32xf32>
    %1000 = arith.addf %998, %999 : vector<8x32xf32>
    %1001 = arith.negf %1000 : vector<8x32xf32>
    %1002 = math.exp %1001 : vector<8x32xf32>
    %cst_265 = arith.constant 1.000000e+00 : f32
    %1003 = vector.broadcast %cst_265 : f32 to vector<8x32xf32>
    %1004 = arith.addf %1003, %1002 : vector<8x32xf32>
    %1005 = arith.divf %1003, %1004 : vector<8x32xf32>
    %1006 = vector.extract_strided_slice %959 {offsets = [0, 64], sizes = [8, 32], strides = [1, 1]} : vector<8x96xf32> to vector<8x32xf32>
    %1007 = vector.extract_strided_slice %989 {offsets = [0, 64], sizes = [8, 32], strides = [1, 1]} : vector<8x96xf32> to vector<8x32xf32>
    %1008 = vector.broadcast %17 : vector<1x32xf32> to vector<8x32xf32>
    %1009 = arith.addf %1007, %1008 : vector<8x32xf32>
    %1010 = arith.mulf %997, %1009 : vector<8x32xf32>
    %1011 = arith.addf %1006, %1010 : vector<8x32xf32>
    %1012 = math.tanh %1011 : vector<8x32xf32>
    %cst_266 = arith.constant 1.000000e+00 : f32
    %1013 = vector.broadcast %cst_266 : f32 to vector<8x32xf32>
    %1014 = arith.subf %1013, %1005 : vector<8x32xf32>
    %1015 = arith.mulf %1014, %1012 : vector<8x32xf32>
    %1016 = arith.mulf %1005, %951 : vector<8x32xf32>
    %1017 = arith.addf %1015, %1016 : vector<8x32xf32>
    %c14 = arith.constant 14 : index
    %c0_267 = arith.constant 0 : index
    %c0_268 = arith.constant 0 : index
    %1018 = vector.load %arg9[%c14, %c0_267, %c0_268] : memref<20x8x32xf32, #tpu.memory_space<vmem>>, vector<1x8x32xf32>
    %1019 = vector.shape_cast %1018 : vector<1x8x32xf32> to vector<8x32xf32>
    %1020 = vector.shape_cast %988 : vector<8x32xf32> to vector<1x8x32xf32>
    tpu.vector_store %arg9[%c14, %c0_267, %c0_268], %1020 {strides = array<i32>} : memref<20x8x32xf32, #tpu.memory_space<vmem>>, vector<1x8x32xf32>,
    %c14_269 = arith.constant 14 : index
    %c0_270 = arith.constant 0 : index
    %c0_271 = arith.constant 0 : index
    %1021 = vector.load %arg11[%c14_269, %c0_270, %c0_271] : memref<20x8x32xf32, #tpu.memory_space<vmem>>, vector<1x8x32xf32>
    %1022 = vector.shape_cast %1021 : vector<1x8x32xf32> to vector<8x32xf32>
    %1023 = vector.shape_cast %1017 : vector<8x32xf32> to vector<1x8x32xf32>
    tpu.vector_store %arg11[%c14_269, %c0_270, %c0_271], %1023 {strides = array<i32>} : memref<20x8x32xf32, #tpu.memory_space<vmem>>, vector<1x8x32xf32>,
    %c120 = arith.constant 120 : index
    %c0_272 = arith.constant 0 : index
    %1024 = vector.load %arg12[%c120, %c0_272] : memref<160x96xf32, #tpu.memory_space<vmem>>, vector<8x96xf32>
    %c120_273 = arith.constant 120 : index
    %c0_274 = arith.constant 0 : index
    %1025 = vector.load %arg13[%c120_273, %c0_274] : memref<160x96xf32, #tpu.memory_space<vmem>>, vector<8x96xf32>
    %cst_275 = arith.constant dense<0.000000e+00> : vector<8x96xf32>
    %1026 = tpu.matmul %988, %30, %cst_275 {dimension_numbers = #tpu.dot_dimension_numbers<[1], [0], [0], [1], [0, 0, 1, 1], [], []>} : vector<8x32xf32>, vector<32x96xf32>, vector<8x96xf32> -> vector<8x96xf32>
    %1027 = vector.extract_strided_slice %1024 {offsets = [0, 0], sizes = [8, 32], strides = [1, 1]} : vector<8x96xf32> to vector<8x32xf32>
    %1028 = vector.extract_strided_slice %1026 {offsets = [0, 0], sizes = [8, 32], strides = [1, 1]} : vector<8x96xf32> to vector<8x32xf32>
    %1029 = arith.addf %1027, %1028 : vector<8x32xf32>
    %1030 = arith.negf %1029 : vector<8x32xf32>
    %1031 = math.exp %1030 : vector<8x32xf32>
    %cst_276 = arith.constant 1.000000e+00 : f32
    %1032 = vector.broadcast %cst_276 : f32 to vector<8x32xf32>
    %1033 = arith.addf %1032, %1031 : vector<8x32xf32>
    %1034 = arith.divf %1032, %1033 : vector<8x32xf32>
    %1035 = vector.extract_strided_slice %1024 {offsets = [0, 32], sizes = [8, 32], strides = [1, 1]} : vector<8x96xf32> to vector<8x32xf32>
    %1036 = vector.extract_strided_slice %1026 {offsets = [0, 32], sizes = [8, 32], strides = [1, 1]} : vector<8x96xf32> to vector<8x32xf32>
    %1037 = arith.addf %1035, %1036 : vector<8x32xf32>
    %1038 = arith.negf %1037 : vector<8x32xf32>
    %1039 = math.exp %1038 : vector<8x32xf32>
    %cst_277 = arith.constant 1.000000e+00 : f32
    %1040 = vector.broadcast %cst_277 : f32 to vector<8x32xf32>
    %1041 = arith.addf %1040, %1039 : vector<8x32xf32>
    %1042 = arith.divf %1040, %1041 : vector<8x32xf32>
    %1043 = vector.extract_strided_slice %1024 {offsets = [0, 64], sizes = [8, 32], strides = [1, 1]} : vector<8x96xf32> to vector<8x32xf32>
    %1044 = vector.extract_strided_slice %1026 {offsets = [0, 64], sizes = [8, 32], strides = [1, 1]} : vector<8x96xf32> to vector<8x32xf32>
    %1045 = vector.broadcast %8 : vector<1x32xf32> to vector<8x32xf32>
    %1046 = arith.addf %1044, %1045 : vector<8x32xf32>
    %1047 = arith.mulf %1034, %1046 : vector<8x32xf32>
    %1048 = arith.addf %1043, %1047 : vector<8x32xf32>
    %1049 = math.tanh %1048 : vector<8x32xf32>
    %cst_278 = arith.constant 1.000000e+00 : f32
    %1050 = vector.broadcast %cst_278 : f32 to vector<8x32xf32>
    %1051 = arith.subf %1050, %1042 : vector<8x32xf32>
    %1052 = arith.mulf %1051, %1049 : vector<8x32xf32>
    %1053 = arith.mulf %1042, %988 : vector<8x32xf32>
    %1054 = arith.addf %1052, %1053 : vector<8x32xf32>
    %cst_279 = arith.constant dense<0.000000e+00> : vector<8x96xf32>
    %1055 = tpu.matmul %1017, %31, %cst_279 {dimension_numbers = #tpu.dot_dimension_numbers<[1], [0], [0], [1], [0, 0, 1, 1], [], []>} : vector<8x32xf32>, vector<32x96xf32>, vector<8x96xf32> -> vector<8x96xf32>
    %1056 = vector.extract_strided_slice %1025 {offsets = [0, 0], sizes = [8, 32], strides = [1, 1]} : vector<8x96xf32> to vector<8x32xf32>
    %1057 = vector.extract_strided_slice %1055 {offsets = [0, 0], sizes = [8, 32], strides = [1, 1]} : vector<8x96xf32> to vector<8x32xf32>
    %1058 = arith.addf %1056, %1057 : vector<8x32xf32>
    %1059 = arith.negf %1058 : vector<8x32xf32>
    %1060 = math.exp %1059 : vector<8x32xf32>
    %cst_280 = arith.constant 1.000000e+00 : f32
    %1061 = vector.broadcast %cst_280 : f32 to vector<8x32xf32>
    %1062 = arith.addf %1061, %1060 : vector<8x32xf32>
    %1063 = arith.divf %1061, %1062 : vector<8x32xf32>
    %1064 = vector.extract_strided_slice %1025 {offsets = [0, 32], sizes = [8, 32], strides = [1, 1]} : vector<8x96xf32> to vector<8x32xf32>
    %1065 = vector.extract_strided_slice %1055 {offsets = [0, 32], sizes = [8, 32], strides = [1, 1]} : vector<8x96xf32> to vector<8x32xf32>
    %1066 = arith.addf %1064, %1065 : vector<8x32xf32>
    %1067 = arith.negf %1066 : vector<8x32xf32>
    %1068 = math.exp %1067 : vector<8x32xf32>
    %cst_281 = arith.constant 1.000000e+00 : f32
    %1069 = vector.broadcast %cst_281 : f32 to vector<8x32xf32>
    %1070 = arith.addf %1069, %1068 : vector<8x32xf32>
    %1071 = arith.divf %1069, %1070 : vector<8x32xf32>
    %1072 = vector.extract_strided_slice %1025 {offsets = [0, 64], sizes = [8, 32], strides = [1, 1]} : vector<8x96xf32> to vector<8x32xf32>
    %1073 = vector.extract_strided_slice %1055 {offsets = [0, 64], sizes = [8, 32], strides = [1, 1]} : vector<8x96xf32> to vector<8x32xf32>
    %1074 = vector.broadcast %17 : vector<1x32xf32> to vector<8x32xf32>
    %1075 = arith.addf %1073, %1074 : vector<8x32xf32>
    %1076 = arith.mulf %1063, %1075 : vector<8x32xf32>
    %1077 = arith.addf %1072, %1076 : vector<8x32xf32>
    %1078 = math.tanh %1077 : vector<8x32xf32>
    %cst_282 = arith.constant 1.000000e+00 : f32
    %1079 = vector.broadcast %cst_282 : f32 to vector<8x32xf32>
    %1080 = arith.subf %1079, %1071 : vector<8x32xf32>
    %1081 = arith.mulf %1080, %1078 : vector<8x32xf32>
    %1082 = arith.mulf %1071, %1017 : vector<8x32xf32>
    %1083 = arith.addf %1081, %1082 : vector<8x32xf32>
    %c15 = arith.constant 15 : index
    %c0_283 = arith.constant 0 : index
    %c0_284 = arith.constant 0 : index
    %1084 = vector.load %arg9[%c15, %c0_283, %c0_284] : memref<20x8x32xf32, #tpu.memory_space<vmem>>, vector<1x8x32xf32>
    %1085 = vector.shape_cast %1084 : vector<1x8x32xf32> to vector<8x32xf32>
    %1086 = vector.shape_cast %1054 : vector<8x32xf32> to vector<1x8x32xf32>
    tpu.vector_store %arg9[%c15, %c0_283, %c0_284], %1086 {strides = array<i32>} : memref<20x8x32xf32, #tpu.memory_space<vmem>>, vector<1x8x32xf32>,
    %c15_285 = arith.constant 15 : index
    %c0_286 = arith.constant 0 : index
    %c0_287 = arith.constant 0 : index
    %1087 = vector.load %arg11[%c15_285, %c0_286, %c0_287] : memref<20x8x32xf32, #tpu.memory_space<vmem>>, vector<1x8x32xf32>
    %1088 = vector.shape_cast %1087 : vector<1x8x32xf32> to vector<8x32xf32>
    %1089 = vector.shape_cast %1083 : vector<8x32xf32> to vector<1x8x32xf32>
    tpu.vector_store %arg11[%c15_285, %c0_286, %c0_287], %1089 {strides = array<i32>} : memref<20x8x32xf32, #tpu.memory_space<vmem>>, vector<1x8x32xf32>,
    %c128 = arith.constant 128 : index
    %c0_288 = arith.constant 0 : index
    %1090 = vector.load %arg12[%c128, %c0_288] : memref<160x96xf32, #tpu.memory_space<vmem>>, vector<8x96xf32>
    %c128_289 = arith.constant 128 : index
    %c0_290 = arith.constant 0 : index
    %1091 = vector.load %arg13[%c128_289, %c0_290] : memref<160x96xf32, #tpu.memory_space<vmem>>, vector<8x96xf32>
    %cst_291 = arith.constant dense<0.000000e+00> : vector<8x96xf32>
    %1092 = tpu.matmul %1054, %30, %cst_291 {dimension_numbers = #tpu.dot_dimension_numbers<[1], [0], [0], [1], [0, 0, 1, 1], [], []>} : vector<8x32xf32>, vector<32x96xf32>, vector<8x96xf32> -> vector<8x96xf32>
    %1093 = vector.extract_strided_slice %1090 {offsets = [0, 0], sizes = [8, 32], strides = [1, 1]} : vector<8x96xf32> to vector<8x32xf32>
    %1094 = vector.extract_strided_slice %1092 {offsets = [0, 0], sizes = [8, 32], strides = [1, 1]} : vector<8x96xf32> to vector<8x32xf32>
    %1095 = arith.addf %1093, %1094 : vector<8x32xf32>
    %1096 = arith.negf %1095 : vector<8x32xf32>
    %1097 = math.exp %1096 : vector<8x32xf32>
    %cst_292 = arith.constant 1.000000e+00 : f32
    %1098 = vector.broadcast %cst_292 : f32 to vector<8x32xf32>
    %1099 = arith.addf %1098, %1097 : vector<8x32xf32>
    %1100 = arith.divf %1098, %1099 : vector<8x32xf32>
    %1101 = vector.extract_strided_slice %1090 {offsets = [0, 32], sizes = [8, 32], strides = [1, 1]} : vector<8x96xf32> to vector<8x32xf32>
    %1102 = vector.extract_strided_slice %1092 {offsets = [0, 32], sizes = [8, 32], strides = [1, 1]} : vector<8x96xf32> to vector<8x32xf32>
    %1103 = arith.addf %1101, %1102 : vector<8x32xf32>
    %1104 = arith.negf %1103 : vector<8x32xf32>
    %1105 = math.exp %1104 : vector<8x32xf32>
    %cst_293 = arith.constant 1.000000e+00 : f32
    %1106 = vector.broadcast %cst_293 : f32 to vector<8x32xf32>
    %1107 = arith.addf %1106, %1105 : vector<8x32xf32>
    %1108 = arith.divf %1106, %1107 : vector<8x32xf32>
    %1109 = vector.extract_strided_slice %1090 {offsets = [0, 64], sizes = [8, 32], strides = [1, 1]} : vector<8x96xf32> to vector<8x32xf32>
    %1110 = vector.extract_strided_slice %1092 {offsets = [0, 64], sizes = [8, 32], strides = [1, 1]} : vector<8x96xf32> to vector<8x32xf32>
    %1111 = vector.broadcast %8 : vector<1x32xf32> to vector<8x32xf32>
    %1112 = arith.addf %1110, %1111 : vector<8x32xf32>
    %1113 = arith.mulf %1100, %1112 : vector<8x32xf32>
    %1114 = arith.addf %1109, %1113 : vector<8x32xf32>
    %1115 = math.tanh %1114 : vector<8x32xf32>
    %cst_294 = arith.constant 1.000000e+00 : f32
    %1116 = vector.broadcast %cst_294 : f32 to vector<8x32xf32>
    %1117 = arith.subf %1116, %1108 : vector<8x32xf32>
    %1118 = arith.mulf %1117, %1115 : vector<8x32xf32>
    %1119 = arith.mulf %1108, %1054 : vector<8x32xf32>
    %1120 = arith.addf %1118, %1119 : vector<8x32xf32>
    %cst_295 = arith.constant dense<0.000000e+00> : vector<8x96xf32>
    %1121 = tpu.matmul %1083, %31, %cst_295 {dimension_numbers = #tpu.dot_dimension_numbers<[1], [0], [0], [1], [0, 0, 1, 1], [], []>} : vector<8x32xf32>, vector<32x96xf32>, vector<8x96xf32> -> vector<8x96xf32>
    %1122 = vector.extract_strided_slice %1091 {offsets = [0, 0], sizes = [8, 32], strides = [1, 1]} : vector<8x96xf32> to vector<8x32xf32>
    %1123 = vector.extract_strided_slice %1121 {offsets = [0, 0], sizes = [8, 32], strides = [1, 1]} : vector<8x96xf32> to vector<8x32xf32>
    %1124 = arith.addf %1122, %1123 : vector<8x32xf32>
    %1125 = arith.negf %1124 : vector<8x32xf32>
    %1126 = math.exp %1125 : vector<8x32xf32>
    %cst_296 = arith.constant 1.000000e+00 : f32
    %1127 = vector.broadcast %cst_296 : f32 to vector<8x32xf32>
    %1128 = arith.addf %1127, %1126 : vector<8x32xf32>
    %1129 = arith.divf %1127, %1128 : vector<8x32xf32>
    %1130 = vector.extract_strided_slice %1091 {offsets = [0, 32], sizes = [8, 32], strides = [1, 1]} : vector<8x96xf32> to vector<8x32xf32>
    %1131 = vector.extract_strided_slice %1121 {offsets = [0, 32], sizes = [8, 32], strides = [1, 1]} : vector<8x96xf32> to vector<8x32xf32>
    %1132 = arith.addf %1130, %1131 : vector<8x32xf32>
    %1133 = arith.negf %1132 : vector<8x32xf32>
    %1134 = math.exp %1133 : vector<8x32xf32>
    %cst_297 = arith.constant 1.000000e+00 : f32
    %1135 = vector.broadcast %cst_297 : f32 to vector<8x32xf32>
    %1136 = arith.addf %1135, %1134 : vector<8x32xf32>
    %1137 = arith.divf %1135, %1136 : vector<8x32xf32>
    %1138 = vector.extract_strided_slice %1091 {offsets = [0, 64], sizes = [8, 32], strides = [1, 1]} : vector<8x96xf32> to vector<8x32xf32>
    %1139 = vector.extract_strided_slice %1121 {offsets = [0, 64], sizes = [8, 32], strides = [1, 1]} : vector<8x96xf32> to vector<8x32xf32>
    %1140 = vector.broadcast %17 : vector<1x32xf32> to vector<8x32xf32>
    %1141 = arith.addf %1139, %1140 : vector<8x32xf32>
    %1142 = arith.mulf %1129, %1141 : vector<8x32xf32>
    %1143 = arith.addf %1138, %1142 : vector<8x32xf32>
    %1144 = math.tanh %1143 : vector<8x32xf32>
    %cst_298 = arith.constant 1.000000e+00 : f32
    %1145 = vector.broadcast %cst_298 : f32 to vector<8x32xf32>
    %1146 = arith.subf %1145, %1137 : vector<8x32xf32>
    %1147 = arith.mulf %1146, %1144 : vector<8x32xf32>
    %1148 = arith.mulf %1137, %1083 : vector<8x32xf32>
    %1149 = arith.addf %1147, %1148 : vector<8x32xf32>
    %c16_299 = arith.constant 16 : index
    %c0_300 = arith.constant 0 : index
    %c0_301 = arith.constant 0 : index
    %1150 = vector.load %arg9[%c16_299, %c0_300, %c0_301] : memref<20x8x32xf32, #tpu.memory_space<vmem>>, vector<1x8x32xf32>
    %1151 = vector.shape_cast %1150 : vector<1x8x32xf32> to vector<8x32xf32>
    %1152 = vector.shape_cast %1120 : vector<8x32xf32> to vector<1x8x32xf32>
    tpu.vector_store %arg9[%c16_299, %c0_300, %c0_301], %1152 {strides = array<i32>} : memref<20x8x32xf32, #tpu.memory_space<vmem>>, vector<1x8x32xf32>,
    %c16_302 = arith.constant 16 : index
    %c0_303 = arith.constant 0 : index
    %c0_304 = arith.constant 0 : index
    %1153 = vector.load %arg11[%c16_302, %c0_303, %c0_304] : memref<20x8x32xf32, #tpu.memory_space<vmem>>, vector<1x8x32xf32>
    %1154 = vector.shape_cast %1153 : vector<1x8x32xf32> to vector<8x32xf32>
    %1155 = vector.shape_cast %1149 : vector<8x32xf32> to vector<1x8x32xf32>
    tpu.vector_store %arg11[%c16_302, %c0_303, %c0_304], %1155 {strides = array<i32>} : memref<20x8x32xf32, #tpu.memory_space<vmem>>, vector<1x8x32xf32>,
    %c136 = arith.constant 136 : index
    %c0_305 = arith.constant 0 : index
    %1156 = vector.load %arg12[%c136, %c0_305] : memref<160x96xf32, #tpu.memory_space<vmem>>, vector<8x96xf32>
    %c136_306 = arith.constant 136 : index
    %c0_307 = arith.constant 0 : index
    %1157 = vector.load %arg13[%c136_306, %c0_307] : memref<160x96xf32, #tpu.memory_space<vmem>>, vector<8x96xf32>
    %cst_308 = arith.constant dense<0.000000e+00> : vector<8x96xf32>
    %1158 = tpu.matmul %1120, %30, %cst_308 {dimension_numbers = #tpu.dot_dimension_numbers<[1], [0], [0], [1], [0, 0, 1, 1], [], []>} : vector<8x32xf32>, vector<32x96xf32>, vector<8x96xf32> -> vector<8x96xf32>
    %1159 = vector.extract_strided_slice %1156 {offsets = [0, 0], sizes = [8, 32], strides = [1, 1]} : vector<8x96xf32> to vector<8x32xf32>
    %1160 = vector.extract_strided_slice %1158 {offsets = [0, 0], sizes = [8, 32], strides = [1, 1]} : vector<8x96xf32> to vector<8x32xf32>
    %1161 = arith.addf %1159, %1160 : vector<8x32xf32>
    %1162 = arith.negf %1161 : vector<8x32xf32>
    %1163 = math.exp %1162 : vector<8x32xf32>
    %cst_309 = arith.constant 1.000000e+00 : f32
    %1164 = vector.broadcast %cst_309 : f32 to vector<8x32xf32>
    %1165 = arith.addf %1164, %1163 : vector<8x32xf32>
    %1166 = arith.divf %1164, %1165 : vector<8x32xf32>
    %1167 = vector.extract_strided_slice %1156 {offsets = [0, 32], sizes = [8, 32], strides = [1, 1]} : vector<8x96xf32> to vector<8x32xf32>
    %1168 = vector.extract_strided_slice %1158 {offsets = [0, 32], sizes = [8, 32], strides = [1, 1]} : vector<8x96xf32> to vector<8x32xf32>
    %1169 = arith.addf %1167, %1168 : vector<8x32xf32>
    %1170 = arith.negf %1169 : vector<8x32xf32>
    %1171 = math.exp %1170 : vector<8x32xf32>
    %cst_310 = arith.constant 1.000000e+00 : f32
    %1172 = vector.broadcast %cst_310 : f32 to vector<8x32xf32>
    %1173 = arith.addf %1172, %1171 : vector<8x32xf32>
    %1174 = arith.divf %1172, %1173 : vector<8x32xf32>
    %1175 = vector.extract_strided_slice %1156 {offsets = [0, 64], sizes = [8, 32], strides = [1, 1]} : vector<8x96xf32> to vector<8x32xf32>
    %1176 = vector.extract_strided_slice %1158 {offsets = [0, 64], sizes = [8, 32], strides = [1, 1]} : vector<8x96xf32> to vector<8x32xf32>
    %1177 = vector.broadcast %8 : vector<1x32xf32> to vector<8x32xf32>
    %1178 = arith.addf %1176, %1177 : vector<8x32xf32>
    %1179 = arith.mulf %1166, %1178 : vector<8x32xf32>
    %1180 = arith.addf %1175, %1179 : vector<8x32xf32>
    %1181 = math.tanh %1180 : vector<8x32xf32>
    %cst_311 = arith.constant 1.000000e+00 : f32
    %1182 = vector.broadcast %cst_311 : f32 to vector<8x32xf32>
    %1183 = arith.subf %1182, %1174 : vector<8x32xf32>
    %1184 = arith.mulf %1183, %1181 : vector<8x32xf32>
    %1185 = arith.mulf %1174, %1120 : vector<8x32xf32>
    %1186 = arith.addf %1184, %1185 : vector<8x32xf32>
    %cst_312 = arith.constant dense<0.000000e+00> : vector<8x96xf32>
    %1187 = tpu.matmul %1149, %31, %cst_312 {dimension_numbers = #tpu.dot_dimension_numbers<[1], [0], [0], [1], [0, 0, 1, 1], [], []>} : vector<8x32xf32>, vector<32x96xf32>, vector<8x96xf32> -> vector<8x96xf32>
    %1188 = vector.extract_strided_slice %1157 {offsets = [0, 0], sizes = [8, 32], strides = [1, 1]} : vector<8x96xf32> to vector<8x32xf32>
    %1189 = vector.extract_strided_slice %1187 {offsets = [0, 0], sizes = [8, 32], strides = [1, 1]} : vector<8x96xf32> to vector<8x32xf32>
    %1190 = arith.addf %1188, %1189 : vector<8x32xf32>
    %1191 = arith.negf %1190 : vector<8x32xf32>
    %1192 = math.exp %1191 : vector<8x32xf32>
    %cst_313 = arith.constant 1.000000e+00 : f32
    %1193 = vector.broadcast %cst_313 : f32 to vector<8x32xf32>
    %1194 = arith.addf %1193, %1192 : vector<8x32xf32>
    %1195 = arith.divf %1193, %1194 : vector<8x32xf32>
    %1196 = vector.extract_strided_slice %1157 {offsets = [0, 32], sizes = [8, 32], strides = [1, 1]} : vector<8x96xf32> to vector<8x32xf32>
    %1197 = vector.extract_strided_slice %1187 {offsets = [0, 32], sizes = [8, 32], strides = [1, 1]} : vector<8x96xf32> to vector<8x32xf32>
    %1198 = arith.addf %1196, %1197 : vector<8x32xf32>
    %1199 = arith.negf %1198 : vector<8x32xf32>
    %1200 = math.exp %1199 : vector<8x32xf32>
    %cst_314 = arith.constant 1.000000e+00 : f32
    %1201 = vector.broadcast %cst_314 : f32 to vector<8x32xf32>
    %1202 = arith.addf %1201, %1200 : vector<8x32xf32>
    %1203 = arith.divf %1201, %1202 : vector<8x32xf32>
    %1204 = vector.extract_strided_slice %1157 {offsets = [0, 64], sizes = [8, 32], strides = [1, 1]} : vector<8x96xf32> to vector<8x32xf32>
    %1205 = vector.extract_strided_slice %1187 {offsets = [0, 64], sizes = [8, 32], strides = [1, 1]} : vector<8x96xf32> to vector<8x32xf32>
    %1206 = vector.broadcast %17 : vector<1x32xf32> to vector<8x32xf32>
    %1207 = arith.addf %1205, %1206 : vector<8x32xf32>
    %1208 = arith.mulf %1195, %1207 : vector<8x32xf32>
    %1209 = arith.addf %1204, %1208 : vector<8x32xf32>
    %1210 = math.tanh %1209 : vector<8x32xf32>
    %cst_315 = arith.constant 1.000000e+00 : f32
    %1211 = vector.broadcast %cst_315 : f32 to vector<8x32xf32>
    %1212 = arith.subf %1211, %1203 : vector<8x32xf32>
    %1213 = arith.mulf %1212, %1210 : vector<8x32xf32>
    %1214 = arith.mulf %1203, %1149 : vector<8x32xf32>
    %1215 = arith.addf %1213, %1214 : vector<8x32xf32>
    %c17 = arith.constant 17 : index
    %c0_316 = arith.constant 0 : index
    %c0_317 = arith.constant 0 : index
    %1216 = vector.load %arg9[%c17, %c0_316, %c0_317] : memref<20x8x32xf32, #tpu.memory_space<vmem>>, vector<1x8x32xf32>
    %1217 = vector.shape_cast %1216 : vector<1x8x32xf32> to vector<8x32xf32>
    %1218 = vector.shape_cast %1186 : vector<8x32xf32> to vector<1x8x32xf32>
    tpu.vector_store %arg9[%c17, %c0_316, %c0_317], %1218 {strides = array<i32>} : memref<20x8x32xf32, #tpu.memory_space<vmem>>, vector<1x8x32xf32>,
    %c17_318 = arith.constant 17 : index
    %c0_319 = arith.constant 0 : index
    %c0_320 = arith.constant 0 : index
    %1219 = vector.load %arg11[%c17_318, %c0_319, %c0_320] : memref<20x8x32xf32, #tpu.memory_space<vmem>>, vector<1x8x32xf32>
    %1220 = vector.shape_cast %1219 : vector<1x8x32xf32> to vector<8x32xf32>
    %1221 = vector.shape_cast %1215 : vector<8x32xf32> to vector<1x8x32xf32>
    tpu.vector_store %arg11[%c17_318, %c0_319, %c0_320], %1221 {strides = array<i32>} : memref<20x8x32xf32, #tpu.memory_space<vmem>>, vector<1x8x32xf32>,
    %c144 = arith.constant 144 : index
    %c0_321 = arith.constant 0 : index
    %1222 = vector.load %arg12[%c144, %c0_321] : memref<160x96xf32, #tpu.memory_space<vmem>>, vector<8x96xf32>
    %c144_322 = arith.constant 144 : index
    %c0_323 = arith.constant 0 : index
    %1223 = vector.load %arg13[%c144_322, %c0_323] : memref<160x96xf32, #tpu.memory_space<vmem>>, vector<8x96xf32>
    %cst_324 = arith.constant dense<0.000000e+00> : vector<8x96xf32>
    %1224 = tpu.matmul %1186, %30, %cst_324 {dimension_numbers = #tpu.dot_dimension_numbers<[1], [0], [0], [1], [0, 0, 1, 1], [], []>} : vector<8x32xf32>, vector<32x96xf32>, vector<8x96xf32> -> vector<8x96xf32>
    %1225 = vector.extract_strided_slice %1222 {offsets = [0, 0], sizes = [8, 32], strides = [1, 1]} : vector<8x96xf32> to vector<8x32xf32>
    %1226 = vector.extract_strided_slice %1224 {offsets = [0, 0], sizes = [8, 32], strides = [1, 1]} : vector<8x96xf32> to vector<8x32xf32>
    %1227 = arith.addf %1225, %1226 : vector<8x32xf32>
    %1228 = arith.negf %1227 : vector<8x32xf32>
    %1229 = math.exp %1228 : vector<8x32xf32>
    %cst_325 = arith.constant 1.000000e+00 : f32
    %1230 = vector.broadcast %cst_325 : f32 to vector<8x32xf32>
    %1231 = arith.addf %1230, %1229 : vector<8x32xf32>
    %1232 = arith.divf %1230, %1231 : vector<8x32xf32>
    %1233 = vector.extract_strided_slice %1222 {offsets = [0, 32], sizes = [8, 32], strides = [1, 1]} : vector<8x96xf32> to vector<8x32xf32>
    %1234 = vector.extract_strided_slice %1224 {offsets = [0, 32], sizes = [8, 32], strides = [1, 1]} : vector<8x96xf32> to vector<8x32xf32>
    %1235 = arith.addf %1233, %1234 : vector<8x32xf32>
    %1236 = arith.negf %1235 : vector<8x32xf32>
    %1237 = math.exp %1236 : vector<8x32xf32>
    %cst_326 = arith.constant 1.000000e+00 : f32
    %1238 = vector.broadcast %cst_326 : f32 to vector<8x32xf32>
    %1239 = arith.addf %1238, %1237 : vector<8x32xf32>
    %1240 = arith.divf %1238, %1239 : vector<8x32xf32>
    %1241 = vector.extract_strided_slice %1222 {offsets = [0, 64], sizes = [8, 32], strides = [1, 1]} : vector<8x96xf32> to vector<8x32xf32>
    %1242 = vector.extract_strided_slice %1224 {offsets = [0, 64], sizes = [8, 32], strides = [1, 1]} : vector<8x96xf32> to vector<8x32xf32>
    %1243 = vector.broadcast %8 : vector<1x32xf32> to vector<8x32xf32>
    %1244 = arith.addf %1242, %1243 : vector<8x32xf32>
    %1245 = arith.mulf %1232, %1244 : vector<8x32xf32>
    %1246 = arith.addf %1241, %1245 : vector<8x32xf32>
    %1247 = math.tanh %1246 : vector<8x32xf32>
    %cst_327 = arith.constant 1.000000e+00 : f32
    %1248 = vector.broadcast %cst_327 : f32 to vector<8x32xf32>
    %1249 = arith.subf %1248, %1240 : vector<8x32xf32>
    %1250 = arith.mulf %1249, %1247 : vector<8x32xf32>
    %1251 = arith.mulf %1240, %1186 : vector<8x32xf32>
    %1252 = arith.addf %1250, %1251 : vector<8x32xf32>
    %cst_328 = arith.constant dense<0.000000e+00> : vector<8x96xf32>
    %1253 = tpu.matmul %1215, %31, %cst_328 {dimension_numbers = #tpu.dot_dimension_numbers<[1], [0], [0], [1], [0, 0, 1, 1], [], []>} : vector<8x32xf32>, vector<32x96xf32>, vector<8x96xf32> -> vector<8x96xf32>
    %1254 = vector.extract_strided_slice %1223 {offsets = [0, 0], sizes = [8, 32], strides = [1, 1]} : vector<8x96xf32> to vector<8x32xf32>
    %1255 = vector.extract_strided_slice %1253 {offsets = [0, 0], sizes = [8, 32], strides = [1, 1]} : vector<8x96xf32> to vector<8x32xf32>
    %1256 = arith.addf %1254, %1255 : vector<8x32xf32>
    %1257 = arith.negf %1256 : vector<8x32xf32>
    %1258 = math.exp %1257 : vector<8x32xf32>
    %cst_329 = arith.constant 1.000000e+00 : f32
    %1259 = vector.broadcast %cst_329 : f32 to vector<8x32xf32>
    %1260 = arith.addf %1259, %1258 : vector<8x32xf32>
    %1261 = arith.divf %1259, %1260 : vector<8x32xf32>
    %1262 = vector.extract_strided_slice %1223 {offsets = [0, 32], sizes = [8, 32], strides = [1, 1]} : vector<8x96xf32> to vector<8x32xf32>
    %1263 = vector.extract_strided_slice %1253 {offsets = [0, 32], sizes = [8, 32], strides = [1, 1]} : vector<8x96xf32> to vector<8x32xf32>
    %1264 = arith.addf %1262, %1263 : vector<8x32xf32>
    %1265 = arith.negf %1264 : vector<8x32xf32>
    %1266 = math.exp %1265 : vector<8x32xf32>
    %cst_330 = arith.constant 1.000000e+00 : f32
    %1267 = vector.broadcast %cst_330 : f32 to vector<8x32xf32>
    %1268 = arith.addf %1267, %1266 : vector<8x32xf32>
    %1269 = arith.divf %1267, %1268 : vector<8x32xf32>
    %1270 = vector.extract_strided_slice %1223 {offsets = [0, 64], sizes = [8, 32], strides = [1, 1]} : vector<8x96xf32> to vector<8x32xf32>
    %1271 = vector.extract_strided_slice %1253 {offsets = [0, 64], sizes = [8, 32], strides = [1, 1]} : vector<8x96xf32> to vector<8x32xf32>
    %1272 = vector.broadcast %17 : vector<1x32xf32> to vector<8x32xf32>
    %1273 = arith.addf %1271, %1272 : vector<8x32xf32>
    %1274 = arith.mulf %1261, %1273 : vector<8x32xf32>
    %1275 = arith.addf %1270, %1274 : vector<8x32xf32>
    %1276 = math.tanh %1275 : vector<8x32xf32>
    %cst_331 = arith.constant 1.000000e+00 : f32
    %1277 = vector.broadcast %cst_331 : f32 to vector<8x32xf32>
    %1278 = arith.subf %1277, %1269 : vector<8x32xf32>
    %1279 = arith.mulf %1278, %1276 : vector<8x32xf32>
    %1280 = arith.mulf %1269, %1215 : vector<8x32xf32>
    %1281 = arith.addf %1279, %1280 : vector<8x32xf32>
    %c18 = arith.constant 18 : index
    %c0_332 = arith.constant 0 : index
    %c0_333 = arith.constant 0 : index
    %1282 = vector.load %arg9[%c18, %c0_332, %c0_333] : memref<20x8x32xf32, #tpu.memory_space<vmem>>, vector<1x8x32xf32>
    %1283 = vector.shape_cast %1282 : vector<1x8x32xf32> to vector<8x32xf32>
    %1284 = vector.shape_cast %1252 : vector<8x32xf32> to vector<1x8x32xf32>
    tpu.vector_store %arg9[%c18, %c0_332, %c0_333], %1284 {strides = array<i32>} : memref<20x8x32xf32, #tpu.memory_space<vmem>>, vector<1x8x32xf32>,
    %c18_334 = arith.constant 18 : index
    %c0_335 = arith.constant 0 : index
    %c0_336 = arith.constant 0 : index
    %1285 = vector.load %arg11[%c18_334, %c0_335, %c0_336] : memref<20x8x32xf32, #tpu.memory_space<vmem>>, vector<1x8x32xf32>
    %1286 = vector.shape_cast %1285 : vector<1x8x32xf32> to vector<8x32xf32>
    %1287 = vector.shape_cast %1281 : vector<8x32xf32> to vector<1x8x32xf32>
    tpu.vector_store %arg11[%c18_334, %c0_335, %c0_336], %1287 {strides = array<i32>} : memref<20x8x32xf32, #tpu.memory_space<vmem>>, vector<1x8x32xf32>,
    %c152 = arith.constant 152 : index
    %c0_337 = arith.constant 0 : index
    %1288 = vector.load %arg12[%c152, %c0_337] : memref<160x96xf32, #tpu.memory_space<vmem>>, vector<8x96xf32>
    %c152_338 = arith.constant 152 : index
    %c0_339 = arith.constant 0 : index
    %1289 = vector.load %arg13[%c152_338, %c0_339] : memref<160x96xf32, #tpu.memory_space<vmem>>, vector<8x96xf32>
    %cst_340 = arith.constant dense<0.000000e+00> : vector<8x96xf32>
    %1290 = tpu.matmul %1252, %30, %cst_340 {dimension_numbers = #tpu.dot_dimension_numbers<[1], [0], [0], [1], [0, 0, 1, 1], [], []>} : vector<8x32xf32>, vector<32x96xf32>, vector<8x96xf32> -> vector<8x96xf32>
    %1291 = vector.extract_strided_slice %1288 {offsets = [0, 0], sizes = [8, 32], strides = [1, 1]} : vector<8x96xf32> to vector<8x32xf32>
    %1292 = vector.extract_strided_slice %1290 {offsets = [0, 0], sizes = [8, 32], strides = [1, 1]} : vector<8x96xf32> to vector<8x32xf32>
    %1293 = arith.addf %1291, %1292 : vector<8x32xf32>
    %1294 = arith.negf %1293 : vector<8x32xf32>
    %1295 = math.exp %1294 : vector<8x32xf32>
    %cst_341 = arith.constant 1.000000e+00 : f32
    %1296 = vector.broadcast %cst_341 : f32 to vector<8x32xf32>
    %1297 = arith.addf %1296, %1295 : vector<8x32xf32>
    %1298 = arith.divf %1296, %1297 : vector<8x32xf32>
    %1299 = vector.extract_strided_slice %1288 {offsets = [0, 32], sizes = [8, 32], strides = [1, 1]} : vector<8x96xf32> to vector<8x32xf32>
    %1300 = vector.extract_strided_slice %1290 {offsets = [0, 32], sizes = [8, 32], strides = [1, 1]} : vector<8x96xf32> to vector<8x32xf32>
    %1301 = arith.addf %1299, %1300 : vector<8x32xf32>
    %1302 = arith.negf %1301 : vector<8x32xf32>
    %1303 = math.exp %1302 : vector<8x32xf32>
    %cst_342 = arith.constant 1.000000e+00 : f32
    %1304 = vector.broadcast %cst_342 : f32 to vector<8x32xf32>
    %1305 = arith.addf %1304, %1303 : vector<8x32xf32>
    %1306 = arith.divf %1304, %1305 : vector<8x32xf32>
    %1307 = vector.extract_strided_slice %1288 {offsets = [0, 64], sizes = [8, 32], strides = [1, 1]} : vector<8x96xf32> to vector<8x32xf32>
    %1308 = vector.extract_strided_slice %1290 {offsets = [0, 64], sizes = [8, 32], strides = [1, 1]} : vector<8x96xf32> to vector<8x32xf32>
    %1309 = vector.broadcast %8 : vector<1x32xf32> to vector<8x32xf32>
    %1310 = arith.addf %1308, %1309 : vector<8x32xf32>
    %1311 = arith.mulf %1298, %1310 : vector<8x32xf32>
    %1312 = arith.addf %1307, %1311 : vector<8x32xf32>
    %1313 = math.tanh %1312 : vector<8x32xf32>
    %cst_343 = arith.constant 1.000000e+00 : f32
    %1314 = vector.broadcast %cst_343 : f32 to vector<8x32xf32>
    %1315 = arith.subf %1314, %1306 : vector<8x32xf32>
    %1316 = arith.mulf %1315, %1313 : vector<8x32xf32>
    %1317 = arith.mulf %1306, %1252 : vector<8x32xf32>
    %1318 = arith.addf %1316, %1317 : vector<8x32xf32>
    %cst_344 = arith.constant dense<0.000000e+00> : vector<8x96xf32>
    %1319 = tpu.matmul %1281, %31, %cst_344 {dimension_numbers = #tpu.dot_dimension_numbers<[1], [0], [0], [1], [0, 0, 1, 1], [], []>} : vector<8x32xf32>, vector<32x96xf32>, vector<8x96xf32> -> vector<8x96xf32>
    %1320 = vector.extract_strided_slice %1289 {offsets = [0, 0], sizes = [8, 32], strides = [1, 1]} : vector<8x96xf32> to vector<8x32xf32>
    %1321 = vector.extract_strided_slice %1319 {offsets = [0, 0], sizes = [8, 32], strides = [1, 1]} : vector<8x96xf32> to vector<8x32xf32>
    %1322 = arith.addf %1320, %1321 : vector<8x32xf32>
    %1323 = arith.negf %1322 : vector<8x32xf32>
    %1324 = math.exp %1323 : vector<8x32xf32>
    %cst_345 = arith.constant 1.000000e+00 : f32
    %1325 = vector.broadcast %cst_345 : f32 to vector<8x32xf32>
    %1326 = arith.addf %1325, %1324 : vector<8x32xf32>
    %1327 = arith.divf %1325, %1326 : vector<8x32xf32>
    %1328 = vector.extract_strided_slice %1289 {offsets = [0, 32], sizes = [8, 32], strides = [1, 1]} : vector<8x96xf32> to vector<8x32xf32>
    %1329 = vector.extract_strided_slice %1319 {offsets = [0, 32], sizes = [8, 32], strides = [1, 1]} : vector<8x96xf32> to vector<8x32xf32>
    %1330 = arith.addf %1328, %1329 : vector<8x32xf32>
    %1331 = arith.negf %1330 : vector<8x32xf32>
    %1332 = math.exp %1331 : vector<8x32xf32>
    %cst_346 = arith.constant 1.000000e+00 : f32
    %1333 = vector.broadcast %cst_346 : f32 to vector<8x32xf32>
    %1334 = arith.addf %1333, %1332 : vector<8x32xf32>
    %1335 = arith.divf %1333, %1334 : vector<8x32xf32>
    %1336 = vector.extract_strided_slice %1289 {offsets = [0, 64], sizes = [8, 32], strides = [1, 1]} : vector<8x96xf32> to vector<8x32xf32>
    %1337 = vector.extract_strided_slice %1319 {offsets = [0, 64], sizes = [8, 32], strides = [1, 1]} : vector<8x96xf32> to vector<8x32xf32>
    %1338 = vector.broadcast %17 : vector<1x32xf32> to vector<8x32xf32>
    %1339 = arith.addf %1337, %1338 : vector<8x32xf32>
    %1340 = arith.mulf %1327, %1339 : vector<8x32xf32>
    %1341 = arith.addf %1336, %1340 : vector<8x32xf32>
    %1342 = math.tanh %1341 : vector<8x32xf32>
    %cst_347 = arith.constant 1.000000e+00 : f32
    %1343 = vector.broadcast %cst_347 : f32 to vector<8x32xf32>
    %1344 = arith.subf %1343, %1335 : vector<8x32xf32>
    %1345 = arith.mulf %1344, %1342 : vector<8x32xf32>
    %1346 = arith.mulf %1335, %1281 : vector<8x32xf32>
    %1347 = arith.addf %1345, %1346 : vector<8x32xf32>
    %c19 = arith.constant 19 : index
    %c0_348 = arith.constant 0 : index
    %c0_349 = arith.constant 0 : index
    %1348 = vector.load %arg9[%c19, %c0_348, %c0_349] : memref<20x8x32xf32, #tpu.memory_space<vmem>>, vector<1x8x32xf32>
    %1349 = vector.shape_cast %1348 : vector<1x8x32xf32> to vector<8x32xf32>
    %1350 = vector.shape_cast %1318 : vector<8x32xf32> to vector<1x8x32xf32>
    tpu.vector_store %arg9[%c19, %c0_348, %c0_349], %1350 {strides = array<i32>} : memref<20x8x32xf32, #tpu.memory_space<vmem>>, vector<1x8x32xf32>,
    %c19_350 = arith.constant 19 : index
    %c0_351 = arith.constant 0 : index
    %c0_352 = arith.constant 0 : index
    %1351 = vector.load %arg11[%c19_350, %c0_351, %c0_352] : memref<20x8x32xf32, #tpu.memory_space<vmem>>, vector<1x8x32xf32>
    %1352 = vector.shape_cast %1351 : vector<1x8x32xf32> to vector<8x32xf32>
    %1353 = vector.shape_cast %1347 : vector<8x32xf32> to vector<1x8x32xf32>
    tpu.vector_store %arg11[%c19_350, %c0_351, %c0_352], %1353 {strides = array<i32>} : memref<20x8x32xf32, #tpu.memory_space<vmem>>, vector<1x8x32xf32>,
    %c0_353 = arith.constant 0 : index
    %c0_354 = arith.constant 0 : index
    %1354 = vector.load %arg10[%c0_353, %c0_354] : memref<8x32xf32, #tpu.memory_space<vmem>>, vector<8x32xf32>
    tpu.vector_store %arg10[%c0_353, %c0_354], %1318 {strides = array<i32>} : memref<8x32xf32, #tpu.memory_space<vmem>>, vector<8x32xf32>,
    return
  }
  func.func @transform_0(%arg0: i32) -> (i32, i32) {
    %c0_i32 = arith.constant 0 : i32
    %c0_i32_0 = arith.constant 0 : i32
    %c0_i32_1 = arith.constant 0 : i32
    return %c0_i32, %c0_i32_0 : i32, i32
  }
  func.func @transform_1(%arg0: i32) -> (i32, i32) {
    %c0_i32 = arith.constant 0 : i32
    %c0_i32_0 = arith.constant 0 : i32
    %c0_i32_1 = arith.constant 0 : i32
    return %c0_i32, %c0_i32_0 : i32, i32
  }
  func.func @transform_2(%arg0: i32) -> (i32, i32) {
    %c0_i32 = arith.constant 0 : i32
    %c0_i32_0 = arith.constant 0 : i32
    %c0_i32_1 = arith.constant 0 : i32
    return %c0_i32, %c0_i32_0 : i32, i32
  }
  func.func @transform_3(%arg0: i32) -> (i32, i32) {
    %c0_i32 = arith.constant 0 : i32
    %c0_i32_0 = arith.constant 0 : i32
    %c0_i32_1 = arith.constant 0 : i32
    return %c0_i32, %c0_i32_0 : i32, i32
  }
  func.func @transform_4(%arg0: i32) -> (i32, i32) {
    %c0_i32 = arith.constant 0 : i32
    %c0_i32_0 = arith.constant 0 : i32
    %c0_i32_1 = arith.constant 0 : i32
    return %c0_i32, %c0_i32_0 : i32, i32
  }
  func.func @transform_5(%arg0: i32) -> (i32, i32) {
    %c0_i32 = arith.constant 0 : i32
    %c0_i32_0 = arith.constant 0 : i32
    %c0_i32_1 = arith.constant 0 : i32
    return %c0_i32, %c0_i32_0 : i32, i32
  }
  func.func @transform_6(%arg0: i32) -> (i32, i32) {
    %c0_i32 = arith.constant 0 : i32
    %c0_i32_0 = arith.constant 0 : i32
    %c0_i32_1 = arith.constant 0 : i32
    return %c0_i32, %c0_i32_0 : i32, i32
  }
  func.func @transform_7(%arg0: i32) -> (i32, i32) {
    %c0_i32 = arith.constant 0 : i32
    %c0_i32_0 = arith.constant 0 : i32
    %c0_i32_1 = arith.constant 0 : i32
    return %c0_i32, %c0_i32_0 : i32, i32
  }
  func.func @transform_8(%arg0: i32) -> (i32, i32, i32) {
    %c0_i32 = arith.constant 0 : i32
    %c0_i32_0 = arith.constant 0 : i32
    %c0_i32_1 = arith.constant 0 : i32
    %c0_i32_2 = arith.constant 0 : i32
    return %c0_i32, %c0_i32_0, %c0_i32_1 : i32, i32, i32
  }
  func.func @transform_9(%arg0: i32) -> (i32, i32) {
    %c0_i32 = arith.constant 0 : i32
    %c0_i32_0 = arith.constant 0 : i32
    %c0_i32_1 = arith.constant 0 : i32
    return %c0_i32, %c0_i32_0 : i32, i32
  }
  func.func @transform_10(%arg0: i32) -> (i32, i32, i32) {
    %c0_i32 = arith.constant 0 : i32
    %c0_i32_0 = arith.constant 0 : i32
    %c0_i32_1 = arith.constant 0 : i32
    %c0_i32_2 = arith.constant 0 : i32
    return %c0_i32, %c0_i32_0, %c0_i32_1 : i32, i32, i32
  }
}

module attributes {stable_mosaic.version = 11 : i64} {
  func.func @kernel(%arg0: i32, %arg1: memref<1x60x32xf32, #tpu.memory_space<vmem>>, %arg2: memref<1x60x32xf32, #tpu.memory_space<vmem>>, %arg3: memref<1x20x32xf32, #tpu.memory_space<vmem>>, %arg4: memref<1x20x32xf32, #tpu.memory_space<vmem>>, %arg5: memref<1x3x32xf32, #tpu.memory_space<vmem>>, %arg6: memref<120x144xf32, #tpu.memory_space<vmem>>, %arg7: memref<1x144xf32, #tpu.memory_space<vmem>>, %arg8: memref<288x16xf32, #tpu.memory_space<vmem>>, %arg9: memref<1x16xf32, #tpu.memory_space<vmem>>, %arg10: memref<16x48xf32, #tpu.memory_space<vmem>>, %arg11: memref<16x48xf32, #tpu.memory_space<vmem>>, %arg12: memref<2x48xf32, #tpu.memory_space<vmem>>, %arg13: memref<32x16xf32, #tpu.memory_space<vmem>>, %arg14: memref<16x16xf32, #tpu.memory_space<vmem>>, %arg15: memref<1x16xf32, #tpu.memory_space<vmem>>, %arg16: memref<1x16xf32, #tpu.memory_space<vmem>>, %arg17: memref<16x2xf32, #tpu.memory_space<vmem>>, %arg18: memref<1x2xf32, #tpu.memory_space<vmem>>, %arg19: memref<1x1x2xf32, #tpu.memory_space<vmem>>, %arg20: memref<1x1x2xf32, #tpu.memory_space<vmem>>, %arg21: memref<54x48xf32, #tpu.memory_space<vmem>>, %arg22: memref<18x48xf32, #tpu.memory_space<vmem>>) attributes {dimension_semantics = [#tpu.dimension_semantics<parallel>], iteration_bounds = array<i64: 2>, scalar_prefetch = 0 : i64, scratch_operands = 2 : i64, tpu.core_type = #tpu.core_type<tc>, window_params = [{transform_indices = @transform_0, window_bounds = array<i64: 1, 60, 32>}, {transform_indices = @transform_1, window_bounds = array<i64: 1, 60, 32>}, {transform_indices = @transform_2, window_bounds = array<i64: 1, 20, 32>}, {transform_indices = @transform_3, window_bounds = array<i64: 1, 20, 32>}, {transform_indices = @transform_4, window_bounds = array<i64: 1, 3, 32>}, {pipeline_mode = #tpu.pipeline_mode<synchronous>, transform_indices = @transform_5, window_bounds = array<i64: 120, 144>}, {pipeline_mode = #tpu.pipeline_mode<synchronous>, transform_indices = @transform_6, window_bounds = array<i64: 1, 144>}, {pipeline_mode = #tpu.pipeline_mode<synchronous>, transform_indices = @transform_7, window_bounds = array<i64: 288, 16>}, {pipeline_mode = #tpu.pipeline_mode<synchronous>, transform_indices = @transform_8, window_bounds = array<i64: 1, 16>}, {pipeline_mode = #tpu.pipeline_mode<synchronous>, transform_indices = @transform_9, window_bounds = array<i64: 16, 48>}, {pipeline_mode = #tpu.pipeline_mode<synchronous>, transform_indices = @transform_10, window_bounds = array<i64: 16, 48>}, {pipeline_mode = #tpu.pipeline_mode<synchronous>, transform_indices = @transform_11, window_bounds = array<i64: 2, 48>}, {pipeline_mode = #tpu.pipeline_mode<synchronous>, transform_indices = @transform_12, window_bounds = array<i64: 32, 16>}, {pipeline_mode = #tpu.pipeline_mode<synchronous>, transform_indices = @transform_13, window_bounds = array<i64: 16, 16>}, {pipeline_mode = #tpu.pipeline_mode<synchronous>, transform_indices = @transform_14, window_bounds = array<i64: 1, 16>}, {pipeline_mode = #tpu.pipeline_mode<synchronous>, transform_indices = @transform_15, window_bounds = array<i64: 1, 16>}, {pipeline_mode = #tpu.pipeline_mode<synchronous>, transform_indices = @transform_16, window_bounds = array<i64: 16, 2>}, {pipeline_mode = #tpu.pipeline_mode<synchronous>, transform_indices = @transform_17, window_bounds = array<i64: 1, 2>}, {transform_indices = @transform_18, window_bounds = array<i64: 1, 1, 2>}, {transform_indices = @transform_19, window_bounds = array<i64: 1, 1, 2>}]} {
    %c0 = arith.constant 0 : index
    %c0_0 = arith.constant 0 : index
    %c0_1 = arith.constant 0 : index
    %0 = vector.load %arg1[%c0, %c0_0, %c0_1] : memref<1x60x32xf32, #tpu.memory_space<vmem>>, vector<1x60x32xf32>
    %1 = vector.shape_cast %0 : vector<1x60x32xf32> to vector<60x32xf32>
    %c0_2 = arith.constant 0 : index
    %c0_3 = arith.constant 0 : index
    %c0_4 = arith.constant 0 : index
    %2 = vector.load %arg2[%c0_2, %c0_3, %c0_4] : memref<1x60x32xf32, #tpu.memory_space<vmem>>, vector<1x60x32xf32>
    %3 = vector.shape_cast %2 : vector<1x60x32xf32> to vector<60x32xf32>
    %c0_5 = arith.constant 0 : index
    %c0_6 = arith.constant 0 : index
    %c0_7 = arith.constant 0 : index
    %4 = vector.load %arg3[%c0_5, %c0_6, %c0_7] : memref<1x20x32xf32, #tpu.memory_space<vmem>>, vector<1x20x32xf32>
    %5 = vector.shape_cast %4 : vector<1x20x32xf32> to vector<20x32xf32>
    %c0_8 = arith.constant 0 : index
    %c0_9 = arith.constant 0 : index
    %c0_10 = arith.constant 0 : index
    %6 = vector.load %arg4[%c0_8, %c0_9, %c0_10] : memref<1x20x32xf32, #tpu.memory_space<vmem>>, vector<1x20x32xf32>
    %7 = vector.shape_cast %6 : vector<1x20x32xf32> to vector<20x32xf32>
    %cst = arith.constant dense<0.000000e+00> : vector<60x20xf32>
    %8 = tpu.matmul %1, %5, %cst {dimension_numbers = #tpu.dot_dimension_numbers<[1], [1], [0], [0], [0, 0, 1, 0], [], []>} : vector<60x32xf32>, vector<20x32xf32>, vector<60x20xf32> -> vector<60x20xf32>
    %cst_11 = arith.constant dense<0.000000e+00> : vector<60x20xf32>
    %9 = tpu.matmul %3, %7, %cst_11 {dimension_numbers = #tpu.dot_dimension_numbers<[1], [1], [0], [0], [0, 0, 1, 0], [], []>} : vector<60x32xf32>, vector<20x32xf32>, vector<60x20xf32> -> vector<60x20xf32>
    %10 = tpu.concatenate %8, %9 in 1 : vector<60x20xf32>, vector<60x20xf32> -> vector<60x40xf32>
    %11 = vector.extract_strided_slice %10 {offsets = [0, 0], sizes = [18, 40], strides = [1, 1]} : vector<60x40xf32> to vector<18x40xf32>
    %12 = vector.extract_strided_slice %10 {offsets = [1, 0], sizes = [18, 40], strides = [1, 1]} : vector<60x40xf32> to vector<18x40xf32>
    %13 = vector.extract_strided_slice %10 {offsets = [2, 0], sizes = [18, 40], strides = [1, 1]} : vector<60x40xf32> to vector<18x40xf32>
    %14 = tpu.concatenate %11, %12, %13 in 1 : vector<18x40xf32>, vector<18x40xf32>, vector<18x40xf32> -> vector<18x120xf32>
    %15 = vector.extract_strided_slice %10 {offsets = [20, 0], sizes = [18, 40], strides = [1, 1]} : vector<60x40xf32> to vector<18x40xf32>
    %16 = vector.extract_strided_slice %10 {offsets = [21, 0], sizes = [18, 40], strides = [1, 1]} : vector<60x40xf32> to vector<18x40xf32>
    %17 = vector.extract_strided_slice %10 {offsets = [22, 0], sizes = [18, 40], strides = [1, 1]} : vector<60x40xf32> to vector<18x40xf32>
    %18 = tpu.concatenate %15, %16, %17 in 1 : vector<18x40xf32>, vector<18x40xf32>, vector<18x40xf32> -> vector<18x120xf32>
    %19 = vector.extract_strided_slice %10 {offsets = [40, 0], sizes = [18, 40], strides = [1, 1]} : vector<60x40xf32> to vector<18x40xf32>
    %20 = vector.extract_strided_slice %10 {offsets = [41, 0], sizes = [18, 40], strides = [1, 1]} : vector<60x40xf32> to vector<18x40xf32>
    %21 = vector.extract_strided_slice %10 {offsets = [42, 0], sizes = [18, 40], strides = [1, 1]} : vector<60x40xf32> to vector<18x40xf32>
    %22 = tpu.concatenate %19, %20, %21 in 1 : vector<18x40xf32>, vector<18x40xf32>, vector<18x40xf32> -> vector<18x120xf32>
    %23 = tpu.concatenate %14, %18, %22 in 0 : vector<18x120xf32>, vector<18x120xf32>, vector<18x120xf32> -> vector<54x120xf32>
    %c0_12 = arith.constant 0 : index
    %c0_13 = arith.constant 0 : index
    %24 = vector.load %arg6[%c0_12, %c0_13] : memref<120x144xf32, #tpu.memory_space<vmem>>, vector<120x144xf32>
    %cst_14 = arith.constant dense<0.000000e+00> : vector<54x144xf32>
    %25 = tpu.matmul %23, %24, %cst_14 {dimension_numbers = #tpu.dot_dimension_numbers<[1], [0], [0], [1], [0, 0, 1, 1], [], []>} : vector<54x120xf32>, vector<120x144xf32>, vector<54x144xf32> -> vector<54x144xf32>
    %c0_15 = arith.constant 0 : index
    %c0_16 = arith.constant 0 : index
    %26 = vector.load %arg7[%c0_15, %c0_16] : memref<1x144xf32, #tpu.memory_space<vmem>>, vector<1x144xf32>
    %27 = vector.broadcast %26 : vector<1x144xf32> to vector<54x144xf32>
    %28 = arith.addf %25, %27 : vector<54x144xf32>
    %cst_17 = arith.constant 0.000000e+00 : f32
    %29 = vector.broadcast %cst_17 : f32 to vector<54x144xf32>
    %30 = arith.maximumf %28, %29 : vector<54x144xf32>
    %31 = vector.extract_strided_slice %30 {offsets = [0, 0], sizes = [54, 48], strides = [1, 1]} : vector<54x144xf32> to vector<54x48xf32>
    %32 = vector.extract_strided_slice %30 {offsets = [0, 48], sizes = [54, 48], strides = [1, 1]} : vector<54x144xf32> to vector<54x48xf32>
    %33 = arith.maximumf %31, %32 : vector<54x48xf32>
    %34 = vector.extract_strided_slice %30 {offsets = [0, 96], sizes = [54, 48], strides = [1, 1]} : vector<54x144xf32> to vector<54x48xf32>
    %35 = arith.maximumf %33, %34 : vector<54x48xf32>
    %c0_18 = arith.constant 0 : index
    %c0_19 = arith.constant 0 : index
    %36 = vector.load %arg21[%c0_18, %c0_19] : memref<54x48xf32, #tpu.memory_space<vmem>>, vector<54x48xf32>
    tpu.vector_store %arg21[%c0_18, %c0_19], %35 {strides = array<i32>} : memref<54x48xf32, #tpu.memory_space<vmem>>, vector<54x48xf32>,
    %c0_20 = arith.constant 0 : index
    %c0_21 = arith.constant 0 : index
    %37 = tpu.strided_load %arg21[%c0_20, %c0_21] {strides = array<i32: 3, 1>} : memref<54x48xf32, #tpu.memory_space<vmem>>, vector<18x48xf32>
    %c1 = arith.constant 1 : index
    %c0_22 = arith.constant 0 : index
    %38 = tpu.strided_load %arg21[%c1, %c0_22] {strides = array<i32: 3, 1>} : memref<54x48xf32, #tpu.memory_space<vmem>>, vector<18x48xf32>
    %39 = arith.maximumf %37, %38 : vector<18x48xf32>
    %c2 = arith.constant 2 : index
    %c0_23 = arith.constant 0 : index
    %40 = tpu.strided_load %arg21[%c2, %c0_23] {strides = array<i32: 3, 1>} : memref<54x48xf32, #tpu.memory_space<vmem>>, vector<18x48xf32>
    %41 = arith.maximumf %39, %40 : vector<18x48xf32>
    %c0_24 = arith.constant 0 : index
    %c0_25 = arith.constant 0 : index
    %42 = vector.load %arg22[%c0_24, %c0_25] : memref<18x48xf32, #tpu.memory_space<vmem>>, vector<18x48xf32>
    tpu.vector_store %arg22[%c0_24, %c0_25], %41 {strides = array<i32>} : memref<18x48xf32, #tpu.memory_space<vmem>>, vector<18x48xf32>,
    %c0_26 = arith.constant 0 : index
    %c0_27 = arith.constant 0 : index
    %43 = tpu.strided_load %arg22[%c0_26, %c0_27] {strides = array<i32: 6, 1>} : memref<18x48xf32, #tpu.memory_space<vmem>>, vector<3x48xf32>
    %c1_28 = arith.constant 1 : index
    %c0_29 = arith.constant 0 : index
    %44 = tpu.strided_load %arg22[%c1_28, %c0_29] {strides = array<i32: 6, 1>} : memref<18x48xf32, #tpu.memory_space<vmem>>, vector<3x48xf32>
    %c2_30 = arith.constant 2 : index
    %c0_31 = arith.constant 0 : index
    %45 = tpu.strided_load %arg22[%c2_30, %c0_31] {strides = array<i32: 6, 1>} : memref<18x48xf32, #tpu.memory_space<vmem>>, vector<3x48xf32>
    %c3 = arith.constant 3 : index
    %c0_32 = arith.constant 0 : index
    %46 = tpu.strided_load %arg22[%c3, %c0_32] {strides = array<i32: 6, 1>} : memref<18x48xf32, #tpu.memory_space<vmem>>, vector<3x48xf32>
    %c4 = arith.constant 4 : index
    %c0_33 = arith.constant 0 : index
    %47 = tpu.strided_load %arg22[%c4, %c0_33] {strides = array<i32: 6, 1>} : memref<18x48xf32, #tpu.memory_space<vmem>>, vector<3x48xf32>
    %c5 = arith.constant 5 : index
    %c0_34 = arith.constant 0 : index
    %48 = tpu.strided_load %arg22[%c5, %c0_34] {strides = array<i32: 6, 1>} : memref<18x48xf32, #tpu.memory_space<vmem>>, vector<3x48xf32>
    %49 = tpu.concatenate %43, %44, %45, %46, %47, %48 in 1 : vector<3x48xf32>, vector<3x48xf32>, vector<3x48xf32>, vector<3x48xf32>, vector<3x48xf32>, vector<3x48xf32> -> vector<3x288xf32>
    %c0_35 = arith.constant 0 : index
    %c0_36 = arith.constant 0 : index
    %50 = vector.load %arg8[%c0_35, %c0_36] : memref<288x16xf32, #tpu.memory_space<vmem>>, vector<288x16xf32>
    %cst_37 = arith.constant dense<0.000000e+00> : vector<3x16xf32>
    %51 = tpu.matmul %49, %50, %cst_37 {dimension_numbers = #tpu.dot_dimension_numbers<[1], [0], [0], [1], [0, 0, 1, 1], [], []>} : vector<3x288xf32>, vector<288x16xf32>, vector<3x16xf32> -> vector<3x16xf32>
    %c0_38 = arith.constant 0 : index
    %c0_39 = arith.constant 0 : index
    %52 = vector.load %arg9[%c0_38, %c0_39] : memref<1x16xf32, #tpu.memory_space<vmem>>, vector<1x16xf32>
    %53 = vector.broadcast %52 : vector<1x16xf32> to vector<3x16xf32>
    %54 = arith.addf %51, %53 : vector<3x16xf32>
    %55 = math.tanh %54 : vector<3x16xf32>
    %c0_40 = arith.constant 0 : index
    %c0_41 = arith.constant 0 : index
    %c0_42 = arith.constant 0 : index
    %56 = vector.load %arg5[%c0_40, %c0_41, %c0_42] : memref<1x3x32xf32, #tpu.memory_space<vmem>>, vector<1x3x32xf32>
    %57 = vector.shape_cast %56 : vector<1x3x32xf32> to vector<3x32xf32>
    %c0_43 = arith.constant 0 : index
    %c0_44 = arith.constant 0 : index
    %58 = vector.load %arg12[%c0_43, %c0_44] : memref<2x48xf32, #tpu.memory_space<vmem>>, vector<1x48xf32>
    %c1_45 = arith.constant 1 : index
    %c0_46 = arith.constant 0 : index
    %59 = vector.load %arg12[%c1_45, %c0_46] : memref<2x48xf32, #tpu.memory_space<vmem>>, vector<1x48xf32>
    %c0_47 = arith.constant 0 : index
    %c0_48 = arith.constant 0 : index
    %60 = vector.load %arg10[%c0_47, %c0_48] : memref<16x48xf32, #tpu.memory_space<vmem>>, vector<16x48xf32>
    %cst_49 = arith.constant dense<0.000000e+00> : vector<3x48xf32>
    %61 = tpu.matmul %55, %60, %cst_49 {dimension_numbers = #tpu.dot_dimension_numbers<[1], [0], [0], [1], [0, 0, 1, 1], [], []>} : vector<3x16xf32>, vector<16x48xf32>, vector<3x48xf32> -> vector<3x48xf32>
    %62 = vector.broadcast %58 : vector<1x48xf32> to vector<3x48xf32>
    %63 = arith.addf %61, %62 : vector<3x48xf32>
    %c0_50 = arith.constant 0 : index
    %c0_51 = arith.constant 0 : index
    %64 = vector.load %arg13[%c0_50, %c0_51] : memref<32x16xf32, #tpu.memory_space<vmem>>, vector<32x16xf32>
    %cst_52 = arith.constant dense<0.000000e+00> : vector<3x16xf32>
    %65 = tpu.matmul %57, %64, %cst_52 {dimension_numbers = #tpu.dot_dimension_numbers<[1], [0], [0], [1], [0, 0, 1, 1], [], []>} : vector<3x32xf32>, vector<32x16xf32>, vector<3x16xf32> -> vector<3x16xf32>
    %c0_53 = arith.constant 0 : index
    %c0_54 = arith.constant 0 : index
    %66 = vector.load %arg15[%c0_53, %c0_54] : memref<1x16xf32, #tpu.memory_space<vmem>>, vector<1x16xf32>
    %67 = vector.broadcast %66 : vector<1x16xf32> to vector<3x16xf32>
    %68 = arith.addf %65, %67 : vector<3x16xf32>
    %c0_55 = arith.constant 0 : index
    %c0_56 = arith.constant 0 : index
    %69 = vector.load %arg11[%c0_55, %c0_56] : memref<16x48xf32, #tpu.memory_space<vmem>>, vector<16x48xf32>
    %c0_57 = arith.constant 0 : index
    %c0_58 = arith.constant 0 : index
    %70 = vector.load %arg14[%c0_57, %c0_58] : memref<16x16xf32, #tpu.memory_space<vmem>>, vector<16x16xf32>
    %c0_59 = arith.constant 0 : index
    %c0_60 = arith.constant 0 : index
    %71 = vector.load %arg16[%c0_59, %c0_60] : memref<1x16xf32, #tpu.memory_space<vmem>>, vector<1x16xf32>
    %cst_61 = arith.constant 0.000000e+00 : f32
    %72 = vector.broadcast %cst_61 : f32 to vector<1x16xf32>
    %73 = vector.extract_strided_slice %63 {offsets = [0, 0], sizes = [1, 48], strides = [1, 1]} : vector<3x48xf32> to vector<1x48xf32>
    %cst_62 = arith.constant dense<0.000000e+00> : vector<1x48xf32>
    %74 = tpu.matmul %72, %69, %cst_62 {dimension_numbers = #tpu.dot_dimension_numbers<[1], [0], [0], [1], [0, 0, 1, 1], [], []>} : vector<1x16xf32>, vector<16x48xf32>, vector<1x48xf32> -> vector<1x48xf32>
    %75 = arith.addf %74, %59 : vector<1x48xf32>
    %76 = vector.extract_strided_slice %73 {offsets = [0, 0], sizes = [1, 16], strides = [1, 1]} : vector<1x48xf32> to vector<1x16xf32>
    %77 = vector.extract_strided_slice %75 {offsets = [0, 0], sizes = [1, 16], strides = [1, 1]} : vector<1x48xf32> to vector<1x16xf32>
    %78 = arith.addf %76, %77 : vector<1x16xf32>
    %79 = arith.negf %78 : vector<1x16xf32>
    %80 = math.exp %79 : vector<1x16xf32>
    %cst_63 = arith.constant 1.000000e+00 : f32
    %81 = vector.broadcast %cst_63 : f32 to vector<1x16xf32>
    %82 = arith.addf %81, %80 : vector<1x16xf32>
    %83 = arith.divf %81, %82 : vector<1x16xf32>
    %84 = vector.extract_strided_slice %73 {offsets = [0, 16], sizes = [1, 16], strides = [1, 1]} : vector<1x48xf32> to vector<1x16xf32>
    %85 = vector.extract_strided_slice %75 {offsets = [0, 16], sizes = [1, 16], strides = [1, 1]} : vector<1x48xf32> to vector<1x16xf32>
    %86 = arith.addf %84, %85 : vector<1x16xf32>
    %87 = arith.negf %86 : vector<1x16xf32>
    %88 = math.exp %87 : vector<1x16xf32>
    %cst_64 = arith.constant 1.000000e+00 : f32
    %89 = vector.broadcast %cst_64 : f32 to vector<1x16xf32>
    %90 = arith.addf %89, %88 : vector<1x16xf32>
    %91 = arith.divf %89, %90 : vector<1x16xf32>
    %92 = vector.extract_strided_slice %73 {offsets = [0, 32], sizes = [1, 16], strides = [1, 1]} : vector<1x48xf32> to vector<1x16xf32>
    %93 = vector.extract_strided_slice %75 {offsets = [0, 32], sizes = [1, 16], strides = [1, 1]} : vector<1x48xf32> to vector<1x16xf32>
    %94 = arith.mulf %83, %93 : vector<1x16xf32>
    %95 = arith.addf %92, %94 : vector<1x16xf32>
    %96 = math.tanh %95 : vector<1x16xf32>
    %cst_65 = arith.constant 1.000000e+00 : f32
    %97 = vector.broadcast %cst_65 : f32 to vector<1x16xf32>
    %98 = arith.subf %97, %91 : vector<1x16xf32>
    %99 = arith.mulf %98, %96 : vector<1x16xf32>
    %100 = arith.mulf %91, %72 : vector<1x16xf32>
    %101 = arith.addf %99, %100 : vector<1x16xf32>
    %102 = vector.extract_strided_slice %68 {offsets = [0, 0], sizes = [1, 16], strides = [1, 1]} : vector<3x16xf32> to vector<1x16xf32>
    %cst_66 = arith.constant dense<0.000000e+00> : vector<1x16xf32>
    %103 = tpu.matmul %101, %70, %cst_66 {dimension_numbers = #tpu.dot_dimension_numbers<[1], [0], [0], [1], [0, 0, 1, 1], [], []>} : vector<1x16xf32>, vector<16x16xf32>, vector<1x16xf32> -> vector<1x16xf32>
    %104 = arith.addf %102, %103 : vector<1x16xf32>
    %105 = math.tanh %104 : vector<1x16xf32>
    %106 = arith.mulf %105, %71 : vector<1x16xf32>
    %cst_67 = arith.constant dense<0.000000e+00> : vector<1xf32>
    %107 = vector.multi_reduction <add>, %106, %cst_67 [1] : vector<1x16xf32> to vector<1xf32>
    %108 = vector.shape_cast %107 : vector<1xf32> to vector<1x1xf32>
    %109 = vector.extract_strided_slice %63 {offsets = [1, 0], sizes = [1, 48], strides = [1, 1]} : vector<3x48xf32> to vector<1x48xf32>
    %cst_68 = arith.constant dense<0.000000e+00> : vector<1x48xf32>
    %110 = tpu.matmul %101, %69, %cst_68 {dimension_numbers = #tpu.dot_dimension_numbers<[1], [0], [0], [1], [0, 0, 1, 1], [], []>} : vector<1x16xf32>, vector<16x48xf32>, vector<1x48xf32> -> vector<1x48xf32>
    %111 = arith.addf %110, %59 : vector<1x48xf32>
    %112 = vector.extract_strided_slice %109 {offsets = [0, 0], sizes = [1, 16], strides = [1, 1]} : vector<1x48xf32> to vector<1x16xf32>
    %113 = vector.extract_strided_slice %111 {offsets = [0, 0], sizes = [1, 16], strides = [1, 1]} : vector<1x48xf32> to vector<1x16xf32>
    %114 = arith.addf %112, %113 : vector<1x16xf32>
    %115 = arith.negf %114 : vector<1x16xf32>
    %116 = math.exp %115 : vector<1x16xf32>
    %cst_69 = arith.constant 1.000000e+00 : f32
    %117 = vector.broadcast %cst_69 : f32 to vector<1x16xf32>
    %118 = arith.addf %117, %116 : vector<1x16xf32>
    %119 = arith.divf %117, %118 : vector<1x16xf32>
    %120 = vector.extract_strided_slice %109 {offsets = [0, 16], sizes = [1, 16], strides = [1, 1]} : vector<1x48xf32> to vector<1x16xf32>
    %121 = vector.extract_strided_slice %111 {offsets = [0, 16], sizes = [1, 16], strides = [1, 1]} : vector<1x48xf32> to vector<1x16xf32>
    %122 = arith.addf %120, %121 : vector<1x16xf32>
    %123 = arith.negf %122 : vector<1x16xf32>
    %124 = math.exp %123 : vector<1x16xf32>
    %cst_70 = arith.constant 1.000000e+00 : f32
    %125 = vector.broadcast %cst_70 : f32 to vector<1x16xf32>
    %126 = arith.addf %125, %124 : vector<1x16xf32>
    %127 = arith.divf %125, %126 : vector<1x16xf32>
    %128 = vector.extract_strided_slice %109 {offsets = [0, 32], sizes = [1, 16], strides = [1, 1]} : vector<1x48xf32> to vector<1x16xf32>
    %129 = vector.extract_strided_slice %111 {offsets = [0, 32], sizes = [1, 16], strides = [1, 1]} : vector<1x48xf32> to vector<1x16xf32>
    %130 = arith.mulf %119, %129 : vector<1x16xf32>
    %131 = arith.addf %128, %130 : vector<1x16xf32>
    %132 = math.tanh %131 : vector<1x16xf32>
    %cst_71 = arith.constant 1.000000e+00 : f32
    %133 = vector.broadcast %cst_71 : f32 to vector<1x16xf32>
    %134 = arith.subf %133, %127 : vector<1x16xf32>
    %135 = arith.mulf %134, %132 : vector<1x16xf32>
    %136 = arith.mulf %127, %101 : vector<1x16xf32>
    %137 = arith.addf %135, %136 : vector<1x16xf32>
    %138 = vector.extract_strided_slice %68 {offsets = [1, 0], sizes = [1, 16], strides = [1, 1]} : vector<3x16xf32> to vector<1x16xf32>
    %cst_72 = arith.constant dense<0.000000e+00> : vector<1x16xf32>
    %139 = tpu.matmul %137, %70, %cst_72 {dimension_numbers = #tpu.dot_dimension_numbers<[1], [0], [0], [1], [0, 0, 1, 1], [], []>} : vector<1x16xf32>, vector<16x16xf32>, vector<1x16xf32> -> vector<1x16xf32>
    %140 = arith.addf %138, %139 : vector<1x16xf32>
    %141 = math.tanh %140 : vector<1x16xf32>
    %142 = arith.mulf %141, %71 : vector<1x16xf32>
    %cst_73 = arith.constant dense<0.000000e+00> : vector<1xf32>
    %143 = vector.multi_reduction <add>, %142, %cst_73 [1] : vector<1x16xf32> to vector<1xf32>
    %144 = vector.shape_cast %143 : vector<1xf32> to vector<1x1xf32>
    %145 = vector.extract_strided_slice %63 {offsets = [2, 0], sizes = [1, 48], strides = [1, 1]} : vector<3x48xf32> to vector<1x48xf32>
    %cst_74 = arith.constant dense<0.000000e+00> : vector<1x48xf32>
    %146 = tpu.matmul %137, %69, %cst_74 {dimension_numbers = #tpu.dot_dimension_numbers<[1], [0], [0], [1], [0, 0, 1, 1], [], []>} : vector<1x16xf32>, vector<16x48xf32>, vector<1x48xf32> -> vector<1x48xf32>
    %147 = arith.addf %146, %59 : vector<1x48xf32>
    %148 = vector.extract_strided_slice %145 {offsets = [0, 0], sizes = [1, 16], strides = [1, 1]} : vector<1x48xf32> to vector<1x16xf32>
    %149 = vector.extract_strided_slice %147 {offsets = [0, 0], sizes = [1, 16], strides = [1, 1]} : vector<1x48xf32> to vector<1x16xf32>
    %150 = arith.addf %148, %149 : vector<1x16xf32>
    %151 = arith.negf %150 : vector<1x16xf32>
    %152 = math.exp %151 : vector<1x16xf32>
    %cst_75 = arith.constant 1.000000e+00 : f32
    %153 = vector.broadcast %cst_75 : f32 to vector<1x16xf32>
    %154 = arith.addf %153, %152 : vector<1x16xf32>
    %155 = arith.divf %153, %154 : vector<1x16xf32>
    %156 = vector.extract_strided_slice %145 {offsets = [0, 16], sizes = [1, 16], strides = [1, 1]} : vector<1x48xf32> to vector<1x16xf32>
    %157 = vector.extract_strided_slice %147 {offsets = [0, 16], sizes = [1, 16], strides = [1, 1]} : vector<1x48xf32> to vector<1x16xf32>
    %158 = arith.addf %156, %157 : vector<1x16xf32>
    %159 = arith.negf %158 : vector<1x16xf32>
    %160 = math.exp %159 : vector<1x16xf32>
    %cst_76 = arith.constant 1.000000e+00 : f32
    %161 = vector.broadcast %cst_76 : f32 to vector<1x16xf32>
    %162 = arith.addf %161, %160 : vector<1x16xf32>
    %163 = arith.divf %161, %162 : vector<1x16xf32>
    %164 = vector.extract_strided_slice %145 {offsets = [0, 32], sizes = [1, 16], strides = [1, 1]} : vector<1x48xf32> to vector<1x16xf32>
    %165 = vector.extract_strided_slice %147 {offsets = [0, 32], sizes = [1, 16], strides = [1, 1]} : vector<1x48xf32> to vector<1x16xf32>
    %166 = arith.mulf %155, %165 : vector<1x16xf32>
    %167 = arith.addf %164, %166 : vector<1x16xf32>
    %168 = math.tanh %167 : vector<1x16xf32>
    %cst_77 = arith.constant 1.000000e+00 : f32
    %169 = vector.broadcast %cst_77 : f32 to vector<1x16xf32>
    %170 = arith.subf %169, %163 : vector<1x16xf32>
    %171 = arith.mulf %170, %168 : vector<1x16xf32>
    %172 = arith.mulf %163, %137 : vector<1x16xf32>
    %173 = arith.addf %171, %172 : vector<1x16xf32>
    %174 = vector.extract_strided_slice %68 {offsets = [2, 0], sizes = [1, 16], strides = [1, 1]} : vector<3x16xf32> to vector<1x16xf32>
    %cst_78 = arith.constant dense<0.000000e+00> : vector<1x16xf32>
    %175 = tpu.matmul %173, %70, %cst_78 {dimension_numbers = #tpu.dot_dimension_numbers<[1], [0], [0], [1], [0, 0, 1, 1], [], []>} : vector<1x16xf32>, vector<16x16xf32>, vector<1x16xf32> -> vector<1x16xf32>
    %176 = arith.addf %174, %175 : vector<1x16xf32>
    %177 = math.tanh %176 : vector<1x16xf32>
    %178 = arith.mulf %177, %71 : vector<1x16xf32>
    %cst_79 = arith.constant dense<0.000000e+00> : vector<1xf32>
    %179 = vector.multi_reduction <add>, %178, %cst_79 [1] : vector<1x16xf32> to vector<1xf32>
    %180 = vector.shape_cast %179 : vector<1xf32> to vector<1x1xf32>
    %181 = tpu.concatenate %108, %144, %180 in 1 : vector<1x1xf32>, vector<1x1xf32>, vector<1x1xf32> -> vector<1x3xf32>
    %cst_80 = arith.constant dense<0xFF800000> : vector<1xf32>
    %182 = vector.multi_reduction <maximumf>, %181, %cst_80 [1] : vector<1x3xf32> to vector<1xf32>
    %183 = vector.shape_cast %182 : vector<1xf32> to vector<1x1xf32>
    %184 = vector.broadcast %183 : vector<1x1xf32> to vector<1x3xf32>
    %185 = arith.subf %181, %184 : vector<1x3xf32>
    %186 = math.exp %185 : vector<1x3xf32>
    %cst_81 = arith.constant dense<0.000000e+00> : vector<1xf32>
    %187 = vector.multi_reduction <add>, %186, %cst_81 [1] : vector<1x3xf32> to vector<1xf32>
    %188 = vector.shape_cast %187 : vector<1xf32> to vector<1x1xf32>
    %189 = vector.broadcast %188 : vector<1x1xf32> to vector<1x3xf32>
    %190 = arith.divf %186, %189 : vector<1x3xf32>
    %cst_82 = arith.constant 0.000000e+00 : f32
    %191 = vector.broadcast %cst_82 : f32 to vector<1x16xf32>
    %192 = vector.extract_strided_slice %190 {offsets = [0, 0], sizes = [1, 1], strides = [1, 1]} : vector<1x3xf32> to vector<1x1xf32>
    %193 = vector.broadcast %192 : vector<1x1xf32> to vector<1x16xf32>
    %194 = arith.mulf %193, %101 : vector<1x16xf32>
    %195 = arith.addf %191, %194 : vector<1x16xf32>
    %196 = vector.extract_strided_slice %190 {offsets = [0, 1], sizes = [1, 1], strides = [1, 1]} : vector<1x3xf32> to vector<1x1xf32>
    %197 = vector.broadcast %196 : vector<1x1xf32> to vector<1x16xf32>
    %198 = arith.mulf %197, %137 : vector<1x16xf32>
    %199 = arith.addf %195, %198 : vector<1x16xf32>
    %200 = vector.extract_strided_slice %190 {offsets = [0, 2], sizes = [1, 1], strides = [1, 1]} : vector<1x3xf32> to vector<1x1xf32>
    %201 = vector.broadcast %200 : vector<1x1xf32> to vector<1x16xf32>
    %202 = arith.mulf %201, %173 : vector<1x16xf32>
    %203 = arith.addf %199, %202 : vector<1x16xf32>
    %c0_83 = arith.constant 0 : index
    %c0_84 = arith.constant 0 : index
    %204 = vector.load %arg17[%c0_83, %c0_84] : memref<16x2xf32, #tpu.memory_space<vmem>>, vector<16x2xf32>
    %cst_85 = arith.constant dense<0.000000e+00> : vector<1x2xf32>
    %205 = tpu.matmul %203, %204, %cst_85 {dimension_numbers = #tpu.dot_dimension_numbers<[1], [0], [0], [1], [0, 0, 1, 1], [], []>} : vector<1x16xf32>, vector<16x2xf32>, vector<1x2xf32> -> vector<1x2xf32>
    %c0_86 = arith.constant 0 : index
    %c0_87 = arith.constant 0 : index
    %206 = vector.load %arg18[%c0_86, %c0_87] : memref<1x2xf32, #tpu.memory_space<vmem>>, vector<1x2xf32>
    %207 = arith.addf %205, %206 : vector<1x2xf32>
    %cst_88 = arith.constant dense<0xFF800000> : vector<1xf32>
    %208 = vector.multi_reduction <maximumf>, %207, %cst_88 [1] : vector<1x2xf32> to vector<1xf32>
    %209 = vector.shape_cast %208 : vector<1xf32> to vector<1x1xf32>
    %210 = vector.broadcast %209 : vector<1x1xf32> to vector<1x2xf32>
    %211 = arith.subf %207, %210 : vector<1x2xf32>
    %212 = math.exp %211 : vector<1x2xf32>
    %cst_89 = arith.constant dense<0.000000e+00> : vector<1xf32>
    %213 = vector.multi_reduction <add>, %212, %cst_89 [1] : vector<1x2xf32> to vector<1xf32>
    %214 = vector.shape_cast %213 : vector<1xf32> to vector<1x1xf32>
    %215 = math.log %214 : vector<1x1xf32>
    %216 = arith.addf %209, %215 : vector<1x1xf32>
    %217 = vector.broadcast %216 : vector<1x1xf32> to vector<1x2xf32>
    %218 = arith.subf %207, %217 : vector<1x2xf32>
    %c0_90 = arith.constant 0 : index
    %c0_91 = arith.constant 0 : index
    %c0_92 = arith.constant 0 : index
    %219 = vector.load %arg19[%c0_90, %c0_91, %c0_92] : memref<1x1x2xf32, #tpu.memory_space<vmem>>, vector<1x1x2xf32>
    %220 = vector.shape_cast %219 : vector<1x1x2xf32> to vector<1x2xf32>
    %221 = vector.shape_cast %218 : vector<1x2xf32> to vector<1x1x2xf32>
    tpu.vector_store %arg19[%c0_90, %c0_91, %c0_92], %221 {strides = array<i32>} : memref<1x1x2xf32, #tpu.memory_space<vmem>>, vector<1x1x2xf32>,
    %222 = math.exp %218 : vector<1x2xf32>
    %c0_93 = arith.constant 0 : index
    %c0_94 = arith.constant 0 : index
    %c0_95 = arith.constant 0 : index
    %223 = vector.load %arg20[%c0_93, %c0_94, %c0_95] : memref<1x1x2xf32, #tpu.memory_space<vmem>>, vector<1x1x2xf32>
    %224 = vector.shape_cast %223 : vector<1x1x2xf32> to vector<1x2xf32>
    %225 = vector.shape_cast %222 : vector<1x2xf32> to vector<1x1x2xf32>
    tpu.vector_store %arg20[%c0_93, %c0_94, %c0_95], %225 {strides = array<i32>} : memref<1x1x2xf32, #tpu.memory_space<vmem>>, vector<1x1x2xf32>,
    return
  }
  func.func @transform_0(%arg0: i32) -> (i32, i32, i32) {
    %c0_i32 = arith.constant 0 : i32
    %c0_i32_0 = arith.constant 0 : i32
    %c0_i32_1 = arith.constant 0 : i32
    return %arg0, %c0_i32, %c0_i32_0 : i32, i32, i32
  }
  func.func @transform_1(%arg0: i32) -> (i32, i32, i32) {
    %c0_i32 = arith.constant 0 : i32
    %c0_i32_0 = arith.constant 0 : i32
    %c0_i32_1 = arith.constant 0 : i32
    return %arg0, %c0_i32, %c0_i32_0 : i32, i32, i32
  }
  func.func @transform_2(%arg0: i32) -> (i32, i32, i32) {
    %c0_i32 = arith.constant 0 : i32
    %c0_i32_0 = arith.constant 0 : i32
    %c0_i32_1 = arith.constant 0 : i32
    return %arg0, %c0_i32, %c0_i32_0 : i32, i32, i32
  }
  func.func @transform_3(%arg0: i32) -> (i32, i32, i32) {
    %c0_i32 = arith.constant 0 : i32
    %c0_i32_0 = arith.constant 0 : i32
    %c0_i32_1 = arith.constant 0 : i32
    return %arg0, %c0_i32, %c0_i32_0 : i32, i32, i32
  }
  func.func @transform_4(%arg0: i32) -> (i32, i32, i32) {
    %c0_i32 = arith.constant 0 : i32
    %c0_i32_0 = arith.constant 0 : i32
    %c0_i32_1 = arith.constant 0 : i32
    return %arg0, %c0_i32, %c0_i32_0 : i32, i32, i32
  }
  func.func @transform_5(%arg0: i32) -> (i32, i32) {
    %c0_i32 = arith.constant 0 : i32
    %c0_i32_0 = arith.constant 0 : i32
    %c0_i32_1 = arith.constant 0 : i32
    return %c0_i32, %c0_i32_0 : i32, i32
  }
  func.func @transform_6(%arg0: i32) -> (i32, i32) {
    %c0_i32 = arith.constant 0 : i32
    %c0_i32_0 = arith.constant 0 : i32
    %c0_i32_1 = arith.constant 0 : i32
    return %c0_i32, %c0_i32_0 : i32, i32
  }
  func.func @transform_7(%arg0: i32) -> (i32, i32) {
    %c0_i32 = arith.constant 0 : i32
    %c0_i32_0 = arith.constant 0 : i32
    %c0_i32_1 = arith.constant 0 : i32
    return %c0_i32, %c0_i32_0 : i32, i32
  }
  func.func @transform_8(%arg0: i32) -> (i32, i32) {
    %c0_i32 = arith.constant 0 : i32
    %c0_i32_0 = arith.constant 0 : i32
    %c0_i32_1 = arith.constant 0 : i32
    return %c0_i32, %c0_i32_0 : i32, i32
  }
  func.func @transform_9(%arg0: i32) -> (i32, i32) {
    %c0_i32 = arith.constant 0 : i32
    %c0_i32_0 = arith.constant 0 : i32
    %c0_i32_1 = arith.constant 0 : i32
    return %c0_i32, %c0_i32_0 : i32, i32
  }
  func.func @transform_10(%arg0: i32) -> (i32, i32) {
    %c0_i32 = arith.constant 0 : i32
    %c0_i32_0 = arith.constant 0 : i32
    %c0_i32_1 = arith.constant 0 : i32
    return %c0_i32, %c0_i32_0 : i32, i32
  }
  func.func @transform_11(%arg0: i32) -> (i32, i32) {
    %c0_i32 = arith.constant 0 : i32
    %c0_i32_0 = arith.constant 0 : i32
    %c0_i32_1 = arith.constant 0 : i32
    return %c0_i32, %c0_i32_0 : i32, i32
  }
  func.func @transform_12(%arg0: i32) -> (i32, i32) {
    %c0_i32 = arith.constant 0 : i32
    %c0_i32_0 = arith.constant 0 : i32
    %c0_i32_1 = arith.constant 0 : i32
    return %c0_i32, %c0_i32_0 : i32, i32
  }
  func.func @transform_13(%arg0: i32) -> (i32, i32) {
    %c0_i32 = arith.constant 0 : i32
    %c0_i32_0 = arith.constant 0 : i32
    %c0_i32_1 = arith.constant 0 : i32
    return %c0_i32, %c0_i32_0 : i32, i32
  }
  func.func @transform_14(%arg0: i32) -> (i32, i32) {
    %c0_i32 = arith.constant 0 : i32
    %c0_i32_0 = arith.constant 0 : i32
    %c0_i32_1 = arith.constant 0 : i32
    return %c0_i32, %c0_i32_0 : i32, i32
  }
  func.func @transform_15(%arg0: i32) -> (i32, i32) {
    %c0_i32 = arith.constant 0 : i32
    %c0_i32_0 = arith.constant 0 : i32
    %c0_i32_1 = arith.constant 0 : i32
    return %c0_i32, %c0_i32_0 : i32, i32
  }
  func.func @transform_16(%arg0: i32) -> (i32, i32) {
    %c0_i32 = arith.constant 0 : i32
    %c0_i32_0 = arith.constant 0 : i32
    %c0_i32_1 = arith.constant 0 : i32
    return %c0_i32, %c0_i32_0 : i32, i32
  }
  func.func @transform_17(%arg0: i32) -> (i32, i32) {
    %c0_i32 = arith.constant 0 : i32
    %c0_i32_0 = arith.constant 0 : i32
    %c0_i32_1 = arith.constant 0 : i32
    return %c0_i32, %c0_i32_0 : i32, i32
  }
  func.func @transform_18(%arg0: i32) -> (i32, i32, i32) {
    %c0_i32 = arith.constant 0 : i32
    %c0_i32_0 = arith.constant 0 : i32
    %c0_i32_1 = arith.constant 0 : i32
    return %arg0, %c0_i32, %c0_i32_0 : i32, i32, i32
  }
  func.func @transform_19(%arg0: i32) -> (i32, i32, i32) {
    %c0_i32 = arith.constant 0 : i32
    %c0_i32_0 = arith.constant 0 : i32
    %c0_i32_1 = arith.constant 0 : i32
    return %arg0, %c0_i32, %c0_i32_0 : i32, i32, i32
  }
}

</mosaic_0001>

<llo_original>
// kernel: _lambda_.3
$region0: #{_lambda_.3}
  #allocation0 [shape = 'u32[]', space=smem, size = 0x4, offset = 0x4, fixed_abs, tag = 'smem constant byte address 0x4 - core index']
  #allocation1 [shape = 'u32[72,128]{1,0:T(1,128)}', space=vmem, size = 0x9000, scoped, tag = 'internal scratch']
  #allocation2 [shape = 'f32[54,48]{1,0:T(8,128)}', space=vmem, size = 0x7000, scoped, tag = 'scratch operand']
  #allocation3 [shape = 'f32[18,48]{1,0:T(8,128)}', space=vmem, size = 0x3000, scoped, tag = 'scratch operand']
  %s0 = inlined_call_operand.vmem [shape: f32[2,60,32], index: 0, kind: input, shape index: {}]
  %s1 = inlined_call_operand.vmem [shape: f32[2,60,32], index: 1, kind: input, shape index: {}]
  %s2 = inlined_call_operand.vmem [shape: f32[2,20,32], index: 2, kind: input, shape index: {}]
  %s3 = inlined_call_operand.vmem [shape: f32[2,20,32], index: 3, kind: input, shape index: {}]
  %s4 = inlined_call_operand.vmem [shape: f32[2,3,32], index: 4, kind: input, shape index: {}]
  %s5 = inlined_call_operand.vmem [shape: f32[120,144], index: 5, kind: input, shape index: {}]
  %s6 = inlined_call_operand.vmem [shape: f32[1,144], index: 6, kind: input, shape index: {}]
  %s7 = inlined_call_operand.vmem [shape: f32[288,16], index: 7, kind: input, shape index: {}]
  %s8 = inlined_call_operand.vmem [shape: f32[1,16], index: 8, kind: input, shape index: {}]
  %s9 = inlined_call_operand.vmem [shape: f32[16,48], index: 9, kind: input, shape index: {}]
  %s10 = inlined_call_operand.vmem [shape: f32[16,48], index: 10, kind: input, shape index: {}]
  %s11 = inlined_call_operand.vmem [shape: f32[2,48], index: 11, kind: input, shape index: {}]
  %s12 = inlined_call_operand.vmem [shape: f32[32,16], index: 12, kind: input, shape index: {}]
  %s13 = inlined_call_operand.vmem [shape: f32[16,16], index: 13, kind: input, shape index: {}]
  %s14 = inlined_call_operand.vmem [shape: f32[1,16], index: 14, kind: input, shape index: {}]
  %s15 = inlined_call_operand.vmem [shape: f32[1,16], index: 15, kind: input, shape index: {}]
  %s16 = inlined_call_operand.vmem [shape: f32[16,2], index: 16, kind: input, shape index: {}]
  %s17 = inlined_call_operand.vmem [shape: f32[1,2], index: 17, kind: input, shape index: {}]
  %s18 = inlined_call_operand.hbm [shape: f32[2,1,2], index: 18, kind: output, shape index: {0}]
  %s19 = inlined_call_operand.hbm [shape: f32[2,1,2], index: 19, kind: output, shape index: {1}]
  %20 = xla_tuple %s18, %s19
  %s21 = sld [smem:[#allocation0]]
  $region113: #{_lambda_.3} parent=0
    _
  %s23 = ssub.s32 1, %s21
  %s24 = scalar_select 0, %s23, %s21
  $region1: #{_lambda_.3} parent=0
    #allocation4 [shape = 'u8[1024]{0}', space=vmem, size = 0x400, scoped, tag = 'output window, operand 0']
    #allocation5 [shape = 's32[2]{0}', space=sflag, size = 0x8, scoped, tag = 'scoped memory for _lambda_.3']
    #allocation6 [shape = 'u8[1024]{0}', space=vmem, size = 0x400, scoped, tag = 'output window, operand 1']
    #allocation7 [shape = 's32[2]{0}', space=sflag, size = 0x8, scoped, tag = 'scoped memory for _lambda_.3']
    %25 = vsyncpa [#allocation5], 0
    %s26 = scalar_lea.sflag [#allocation5], 1
    %27 = vsyncpa %s26, 0
    %28 = vsyncpa [#allocation7], 0
    %s29 = scalar_lea.sflag [#allocation7], 1
    %30 = vsyncpa %s29, 0
    loop: start=0, step=1, limit=4
    $region2: #{_lambda_.3} parent=1 // loop_pre_header
      _
    $region3: #{_lambda_.3} parent=1 // loop_header
      %s32 = sphi 0, %s36
      %p33 = scmp.ge.s32.totalorder %s32, 4
      %s42 = sphi 0, %s44
      %s45 = sphi 0, %s42
      %s46 = sphi 0, %s45
      %s62 = sphi 0, %s46
      %s68 = sphi 0, %s70
      %s71 = sphi 0, %s68
      %s72 = sphi 0, %s71
      %s88 = sphi 0, %s72
      %s94 = sphi 0, %s96
      %s97 = sphi 0, %s94
      %s98 = sphi 0, %s97
      %s114 = sphi 0, %s98
      %s120 = sphi 0, %s122
      %s123 = sphi 0, %s120
      %s124 = sphi 0, %s123
      %s140 = sphi 0, %s124
      %s146 = sphi 0, %s148
      %s149 = sphi 0, %s146
      %s150 = sphi 0, %s149
      %s166 = sphi 0, %s150
      %s170 = sphi 0, %s170
      %s172 = sphi 0, %s170
      %s173 = sphi 0, %s172
      %s187 = sphi 0, %s173
      %s191 = sphi 0, %s191
      %s193 = sphi 0, %s191
      %s194 = sphi 0, %s193
      %s208 = sphi 0, %s194
      %s212 = sphi 0, %s212
      %s214 = sphi 0, %s212
      %s215 = sphi 0, %s214
      %s229 = sphi 0, %s215
      %s233 = sphi 0, %s233
      %s235 = sphi 0, %s233
      %s236 = sphi 0, %s235
      %s250 = sphi 0, %s236
      %s254 = sphi 0, %s254
      %s256 = sphi 0, %s254
      %s257 = sphi 0, %s256
      %s271 = sphi 0, %s257
      %s275 = sphi 0, %s275
      %s277 = sphi 0, %s275
      %s278 = sphi 0, %s277
      %s292 = sphi 0, %s278
      %s296 = sphi 0, %s296
      %s298 = sphi 0, %s296
      %s299 = sphi 0, %s298
      %s313 = sphi 0, %s299
      %s317 = sphi 0, %s317
      %s319 = sphi 0, %s317
      %s320 = sphi 0, %s319
      %s334 = sphi 0, %s320
      %s338 = sphi 0, %s338
      %s340 = sphi 0, %s338
      %s341 = sphi 0, %s340
      %s355 = sphi 0, %s341
      %s359 = sphi 0, %s359
      %s361 = sphi 0, %s359
      %s362 = sphi 0, %s361
      %s376 = sphi 0, %s362
      %s380 = sphi 0, %s380
      %s382 = sphi 0, %s380
      %s383 = sphi 0, %s382
      %s397 = sphi 0, %s383
      %s401 = sphi 0, %s401
      %s403 = sphi 0, %s401
      %s404 = sphi 0, %s403
      %s418 = sphi 0, %s404
      %s422 = sphi 0, %s422
      %s424 = sphi 0, %s422
      %s425 = sphi 0, %s424
      %s439 = sphi 0, %s425
      %s445 = sphi 0, %s447
      %s448 = sphi 0, %s445
      %s449 = sphi 0, %s448
      %s465 = sphi 0, %s449
      %s471 = sphi 0, %s473
      %s474 = sphi 0, %s471
      %s475 = sphi 0, %s474
      %s491 = sphi 0, %s475
    $region4: #{_lambda_.3} parent=1 // loop_header_branch
      %35 = sbr.rel (%p33) target = $region8
    $region5: #{_lambda_.3} parent=1 // loop_body
      %s37 = ssub.s32 %s32, 1
      %s38 = ssub.s32 %s32, 2
      %s39 = sadd.s32 %s32, 1
      %s40 = ssub.s32 %s32, %s39
      %p41 = scmp.eq.s32.totalorder %s40, 0
      %s43 = sadd.s32 %s42, 1
      %s44 = scalar_select %p41, %s42, %s43
      %p47 = pneg %p41
      %p48 = scmp.eq.s32.totalorder %s32, 1
      %p49 = por %p47, %p48
      %p50 = scmp.ne.s32.totalorder %s42, %s45
      %p51 = scmp.eq.s32.totalorder %s32, 0
      %p52 = por %p50, %p51
      %p53 = scmp.ne.s32.totalorder %s42, %s45
      %p54 = scmp.eq.s32.totalorder %s37, 1
      %p55 = por %p53, %p54
      %p56 = scmp.ne.s32.totalorder %s45, %s46
      %p57 = scmp.eq.s32.totalorder %s37, 0
      %p58 = por %p56, %p57
      %p59 = scmp.ne.s32.totalorder %s45, %s46
      %p60 = scmp.eq.s32.totalorder %s38, 1
      %p61 = por %p59, %p60
      %p63 = scmp.ne.s32.totalorder %s46, %s62
      %p64 = scmp.eq.s32.totalorder %s38, 0
      %p65 = por %p63, %p64
      %s66 = ssub.s32 %s32, %s39
      %p67 = scmp.eq.s32.totalorder %s66, 0
      %s69 = sadd.s32 %s68, 1
      %s70 = scalar_select %p67, %s68, %s69
      %p73 = pneg %p67
      %p74 = scmp.eq.s32.totalorder %s32, 1
      %p75 = por %p73, %p74
      %p76 = scmp.ne.s32.totalorder %s68, %s71
      %p77 = scmp.eq.s32.totalorder %s32, 0
      %p78 = por %p76, %p77
      %p79 = scmp.ne.s32.totalorder %s68, %s71
      %p80 = scmp.eq.s32.totalorder %s37, 1
      %p81 = por %p79, %p80
      %p82 = scmp.ne.s32.totalorder %s71, %s72
      %p83 = scmp.eq.s32.totalorder %s37, 0
      %p84 = por %p82, %p83
      %p85 = scmp.ne.s32.totalorder %s71, %s72
      %p86 = scmp.eq.s32.totalorder %s38, 1
      %p87 = por %p85, %p86
      %p89 = scmp.ne.s32.totalorder %s72, %s88
      %p90 = scmp.eq.s32.totalorder %s38, 0
      %p91 = por %p89, %p90
      %s92 = ssub.s32 %s32, %s39
      %p93 = scmp.eq.s32.totalorder %s92, 0
      %s95 = sadd.s32 %s94, 1
      %s96 = scalar_select %p93, %s94, %s95
      %p99 = pneg %p93
      %p100 = scmp.eq.s32.totalorder %s32, 1
      %p101 = por %p99, %p100
      %p102 = scmp.ne.s32.totalorder %s94, %s97
      %p103 = scmp.eq.s32.totalorder %s32, 0
      %p104 = por %p102, %p103
      %p105 = scmp.ne.s32.totalorder %s94, %s97
      %p106 = scmp.eq.s32.totalorder %s37, 1
      %p107 = por %p105, %p106
      %p108 = scmp.ne.s32.totalorder %s97, %s98
      %p109 = scmp.eq.s32.totalorder %s37, 0
      %p110 = por %p108, %p109
      %p111 = scmp.ne.s32.totalorder %s97, %s98
      %p112 = scmp.eq.s32.totalorder %s38, 1
      %p113 = por %p111, %p112
      %p115 = scmp.ne.s32.totalorder %s98, %s114
      %p116 = scmp.eq.s32.totalorder %s38, 0
      %p117 = por %p115, %p116
      %s118 = ssub.s32 %s32, %s39
      %p119 = scmp.eq.s32.totalorder %s118, 0
      %s121 = sadd.s32 %s120, 1
      %s122 = scalar_select %p119, %s120, %s121
      %p125 = pneg %p119
      %p126 = scmp.eq.s32.totalorder %s32, 1
      %p127 = por %p125, %p126
      %p128 = scmp.ne.s32.totalorder %s120, %s123
      %p129 = scmp.eq.s32.totalorder %s32, 0
      %p130 = por %p128, %p129
      %p131 = scmp.ne.s32.totalorder %s120, %s123
      %p132 = scmp.eq.s32.totalorder %s37, 1
      %p133 = por %p131, %p132
      %p134 = scmp.ne.s32.totalorder %s123, %s124
      %p135 = scmp.eq.s32.totalorder %s37, 0
      %p136 = por %p134, %p135
      %p137 = scmp.ne.s32.totalorder %s123, %s124
      %p138 = scmp.eq.s32.totalorder %s38, 1
      %p139 = por %p137, %p138
      %p141 = scmp.ne.s32.totalorder %s124, %s140
      %p142 = scmp.eq.s32.totalorder %s38, 0
      %p143 = por %p141, %p142
      %s144 = ssub.s32 %s32, %s39
      %p145 = scmp.eq.s32.totalorder %s144, 0
      %s147 = sadd.s32 %s146, 1
      %s148 = scalar_select %p145, %s146, %s147
      %p151 = pneg %p145
      %p152 = scmp.eq.s32.totalorder %s32, 1
      %p153 = por %p151, %p152
      %p154 = scmp.ne.s32.totalorder %s146, %s149
      %p155 = scmp.eq.s32.totalorder %s32, 0
      %p156 = por %p154, %p155
      %p157 = scmp.ne.s32.totalorder %s146, %s149
      %p158 = scmp.eq.s32.totalorder %s37, 1
      %p159 = por %p157, %p158
      %p160 = scmp.ne.s32.totalorder %s149, %s150
      %p161 = scmp.eq.s32.totalorder %s37, 0
      %p162 = por %p160, %p161
      %p163 = scmp.ne.s32.totalorder %s149, %s150
      %p164 = scmp.eq.s32.totalorder %s38, 1
      %p165 = por %p163, %p164
      %p167 = scmp.ne.s32.totalorder %s150, %s166
      %p168 = scmp.eq.s32.totalorder %s38, 0
      %p169 = por %p167, %p168
      %s171 = sadd.s32 %s170, 1
      %p174 = scmp.eq.s32.totalorder %s32, 1
      %p175 = scmp.ne.s32.totalorder %s170, %s172
      %p176 = scmp.eq.s32.totalorder %s32, 0
      %p177 = por %p175, %p176
      %p178 = scmp.ne.s32.totalorder %s170, %s172
      %p179 = scmp.eq.s32.totalorder %s37, 1
      %p180 = por %p178, %p179
      %p181 = scmp.ne.s32.totalorder %s172, %s173
      %p182 = scmp.eq.s32.totalorder %s37, 0
      %p183 = por %p181, %p182
      %p184 = scmp.ne.s32.totalorder %s172, %s173
      %p185 = scmp.eq.s32.totalorder %s38, 1
      %p186 = por %p184, %p185
      %p188 = scmp.ne.s32.totalorder %s173, %s187
      %p189 = scmp.eq.s32.totalorder %s38, 0
      %p190 = por %p188, %p189
      %s192 = sadd.s32 %s191, 1
      %p195 = scmp.eq.s32.totalorder %s32, 1
      %p196 = scmp.ne.s32.totalorder %s191, %s193
      %p197 = scmp.eq.s32.totalorder %s32, 0
      %p198 = por %p196, %p197
      %p199 = scmp.ne.s32.totalorder %s191, %s193
      %p200 = scmp.eq.s32.totalorder %s37, 1
      %p201 = por %p199, %p200
      %p202 = scmp.ne.s32.totalorder %s193, %s194
      %p203 = scmp.eq.s32.totalorder %s37, 0
      %p204 = por %p202, %p203
      %p205 = scmp.ne.s32.totalorder %s193, %s194
      %p206 = scmp.eq.s32.totalorder %s38, 1
      %p207 = por %p205, %p206
      %p209 = scmp.ne.s32.totalorder %s194, %s208
      %p210 = scmp.eq.s32.totalorder %s38, 0
      %p211 = por %p209, %p210
      %s213 = sadd.s32 %s212, 1
      %p216 = scmp.eq.s32.totalorder %s32, 1
      %p217 = scmp.ne.s32.totalorder %s212, %s214
      %p218 = scmp.eq.s32.totalorder %s32, 0
      %p219 = por %p217, %p218
      %p220 = scmp.ne.s32.totalorder %s212, %s214
      %p221 = scmp.eq.s32.totalorder %s37, 1
      %p222 = por %p220, %p221
      %p223 = scmp.ne.s32.totalorder %s214, %s215
      %p224 = scmp.eq.s32.totalorder %s37, 0
      %p225 = por %p223, %p224
      %p226 = scmp.ne.s32.totalorder %s214, %s215
      %p227 = scmp.eq.s32.totalorder %s38, 1
      %p228 = por %p226, %p227
      %p230 = scmp.ne.s32.totalorder %s215, %s229
      %p231 = scmp.eq.s32.totalorder %s38, 0
      %p232 = por %p230, %p231
      %s234 = sadd.s32 %s233, 1
      %p237 = scmp.eq.s32.totalorder %s32, 1
      %p238 = scmp.ne.s32.totalorder %s233, %s235
      %p239 = scmp.eq.s32.totalorder %s32, 0
      %p240 = por %p238, %p239
      %p241 = scmp.ne.s32.totalorder %s233, %s235
      %p242 = scmp.eq.s32.totalorder %s37, 1
      %p243 = por %p241, %p242
      %p244 = scmp.ne.s32.totalorder %s235, %s236
      %p245 = scmp.eq.s32.totalorder %s37, 0
      %p246 = por %p244, %p245
      %p247 = scmp.ne.s32.totalorder %s235, %s236
      %p248 = scmp.eq.s32.totalorder %s38, 1
      %p249 = por %p247, %p248
      %p251 = scmp.ne.s32.totalorder %s236, %s250
      %p252 = scmp.eq.s32.totalorder %s38, 0
      %p253 = por %p251, %p252
      %s255 = sadd.s32 %s254, 1
      %p258 = scmp.eq.s32.totalorder %s32, 1
      %p259 = scmp.ne.s32.totalorder %s254, %s256
      %p260 = scmp.eq.s32.totalorder %s32, 0
      %p261 = por %p259, %p260
      %p262 = scmp.ne.s32.totalorder %s254, %s256
      %p263 = scmp.eq.s32.totalorder %s37, 1
      %p264 = por %p262, %p263
      %p265 = scmp.ne.s32.totalorder %s256, %s257
      %p266 = scmp.eq.s32.totalorder %s37, 0
      %p267 = por %p265, %p266
      %p268 = scmp.ne.s32.totalorder %s256, %s257
      %p269 = scmp.eq.s32.totalorder %s38, 1
      %p270 = por %p268, %p269
      %p272 = scmp.ne.s32.totalorder %s257, %s271
      %p273 = scmp.eq.s32.totalorder %s38, 0
      %p274 = por %p272, %p273
      %s276 = sadd.s32 %s275, 1
      %p279 = scmp.eq.s32.totalorder %s32, 1
      %p280 = scmp.ne.s32.totalorder %s275, %s277
      %p281 = scmp.eq.s32.totalorder %s32, 0
      %p282 = por %p280, %p281
      %p283 = scmp.ne.s32.totalorder %s275, %s277
      %p284 = scmp.eq.s32.totalorder %s37, 1
      %p285 = por %p283, %p284
      %p286 = scmp.ne.s32.totalorder %s277, %s278
      %p287 = scmp.eq.s32.totalorder %s37, 0
      %p288 = por %p286, %p287
      %p289 = scmp.ne.s32.totalorder %s277, %s278
      %p290 = scmp.eq.s32.totalorder %s38, 1
      %p291 = por %p289, %p290
      %p293 = scmp.ne.s32.totalorder %s278, %s292
      %p294 = scmp.eq.s32.totalorder %s38, 0
      %p295 = por %p293, %p294
      %s297 = sadd.s32 %s296, 1
      %p300 = scmp.eq.s32.totalorder %s32, 1
      %p301 = scmp.ne.s32.totalorder %s296, %s298
      %p302 = scmp.eq.s32.totalorder %s32, 0
      %p303 = por %p301, %p302
      %p304 = scmp.ne.s32.totalorder %s296, %s298
      %p305 = scmp.eq.s32.totalorder %s37, 1
      %p306 = por %p304, %p305
      %p307 = scmp.ne.s32.totalorder %s298, %s299
      %p308 = scmp.eq.s32.totalorder %s37, 0
      %p309 = por %p307, %p308
      %p310 = scmp.ne.s32.totalorder %s298, %s299
      %p311 = scmp.eq.s32.totalorder %s38, 1
      %p312 = por %p310, %p311
      %p314 = scmp.ne.s32.totalorder %s299, %s313
      %p315 = scmp.eq.s32.totalorder %s38, 0
      %p316 = por %p314, %p315
      %s318 = sadd.s32 %s317, 1
      %p321 = scmp.eq.s32.totalorder %s32, 1
      %p322 = scmp.ne.s32.totalorder %s317, %s319
      %p323 = scmp.eq.s32.totalorder %s32, 0
      %p324 = por %p322, %p323
      %p325 = scmp.ne.s32.totalorder %s317, %s319
      %p326 = scmp.eq.s32.totalorder %s37, 1
      %p327 = por %p325, %p326
      %p328 = scmp.ne.s32.totalorder %s319, %s320
      %p329 = scmp.eq.s32.totalorder %s37, 0
      %p330 = por %p328, %p329
      %p331 = scmp.ne.s32.totalorder %s319, %s320
      %p332 = scmp.eq.s32.totalorder %s38, 1
      %p333 = por %p331, %p332
      %p335 = scmp.ne.s32.totalorder %s320, %s334
      %p336 = scmp.eq.s32.totalorder %s38, 0
      %p337 = por %p335, %p336
      %s339 = sadd.s32 %s338, 1
      %p342 = scmp.eq.s32.totalorder %s32, 1
      %p343 = scmp.ne.s32.totalorder %s338, %s340
      %p344 = scmp.eq.s32.totalorder %s32, 0
      %p345 = por %p343, %p344
      %p346 = scmp.ne.s32.totalorder %s338, %s340
      %p347 = scmp.eq.s32.totalorder %s37, 1
      %p348 = por %p346, %p347
      %p349 = scmp.ne.s32.totalorder %s340, %s341
      %p350 = scmp.eq.s32.totalorder %s37, 0
      %p351 = por %p349, %p350
      %p352 = scmp.ne.s32.totalorder %s340, %s341
      %p353 = scmp.eq.s32.totalorder %s38, 1
      %p354 = por %p352, %p353
      %p356 = scmp.ne.s32.totalorder %s341, %s355
      %p357 = scmp.eq.s32.totalorder %s38, 0
      %p358 = por %p356, %p357
      %s360 = sadd.s32 %s359, 1
      %p363 = scmp.eq.s32.totalorder %s32, 1
      %p364 = scmp.ne.s32.totalorder %s359, %s361
      %p365 = scmp.eq.s32.totalorder %s32, 0
      %p366 = por %p364, %p365
      %p367 = scmp.ne.s32.totalorder %s359, %s361
      %p368 = scmp.eq.s32.totalorder %s37, 1
      %p369 = por %p367, %p368
      %p370 = scmp.ne.s32.totalorder %s361, %s362
      %p371 = scmp.eq.s32.totalorder %s37, 0
      %p372 = por %p370, %p371
      %p373 = scmp.ne.s32.totalorder %s361, %s362
      %p374 = scmp.eq.s32.totalorder %s38, 1
      %p375 = por %p373, %p374
      %p377 = scmp.ne.s32.totalorder %s362, %s376
      %p378 = scmp.eq.s32.totalorder %s38, 0
      %p379 = por %p377, %p378
      %s381 = sadd.s32 %s380, 1
      %p384 = scmp.eq.s32.totalorder %s32, 1
      %p385 = scmp.ne.s32.totalorder %s380, %s382
      %p386 = scmp.eq.s32.totalorder %s32, 0
      %p387 = por %p385, %p386
      %p388 = scmp.ne.s32.totalorder %s380, %s382
      %p389 = scmp.eq.s32.totalorder %s37, 1
      %p390 = por %p388, %p389
      %p391 = scmp.ne.s32.totalorder %s382, %s383
      %p392 = scmp.eq.s32.totalorder %s37, 0
      %p393 = por %p391, %p392
      %p394 = scmp.ne.s32.totalorder %s382, %s383
      %p395 = scmp.eq.s32.totalorder %s38, 1
      %p396 = por %p394, %p395
      %p398 = scmp.ne.s32.totalorder %s383, %s397
      %p399 = scmp.eq.s32.totalorder %s38, 0
      %p400 = por %p398, %p399
      %s402 = sadd.s32 %s401, 1
      %p405 = scmp.eq.s32.totalorder %s32, 1
      %p406 = scmp.ne.s32.totalorder %s401, %s403
      %p407 = scmp.eq.s32.totalorder %s32, 0
      %p408 = por %p406, %p407
      %p409 = scmp.ne.s32.totalorder %s401, %s403
      %p410 = scmp.eq.s32.totalorder %s37, 1
      %p411 = por %p409, %p410
      %p412 = scmp.ne.s32.totalorder %s403, %s404
      %p413 = scmp.eq.s32.totalorder %s37, 0
      %p414 = por %p412, %p413
      %p415 = scmp.ne.s32.totalorder %s403, %s404
      %p416 = scmp.eq.s32.totalorder %s38, 1
      %p417 = por %p415, %p416
      %p419 = scmp.ne.s32.totalorder %s404, %s418
      %p420 = scmp.eq.s32.totalorder %s38, 0
      %p421 = por %p419, %p420
      %s423 = sadd.s32 %s422, 1
      %p426 = scmp.eq.s32.totalorder %s32, 1
      %p427 = scmp.ne.s32.totalorder %s422, %s424
      %p428 = scmp.eq.s32.totalorder %s32, 0
      %p429 = por %p427, %p428
      %p430 = scmp.ne.s32.totalorder %s422, %s424
      %p431 = scmp.eq.s32.totalorder %s37, 1
      %p432 = por %p430, %p431
      %p433 = scmp.ne.s32.totalorder %s424, %s425
      %p434 = scmp.eq.s32.totalorder %s37, 0
      %p435 = por %p433, %p434
      %p436 = scmp.ne.s32.totalorder %s424, %s425
      %p437 = scmp.eq.s32.totalorder %s38, 1
      %p438 = por %p436, %p437
      %p440 = scmp.ne.s32.totalorder %s425, %s439
      %p441 = scmp.eq.s32.totalorder %s38, 0
      %p442 = por %p440, %p441
      %s443 = ssub.s32 %s32, %s39
      %p444 = scmp.eq.s32.totalorder %s443, 0
      %s446 = sadd.s32 %s445, 1
      %s447 = scalar_select %p444, %s445, %s446
      %p450 = pneg %p444
      %p451 = scmp.eq.s32.totalorder %s32, 1
      %p452 = por %p450, %p451
      %p453 = scmp.ne.s32.totalorder %s445, %s448
      %p454 = scmp.eq.s32.totalorder %s32, 0
      %p455 = por %p453, %p454
      %p456 = scmp.ne.s32.totalorder %s445, %s448
      %p457 = scmp.eq.s32.totalorder %s37, 1
      %p458 = por %p456, %p457
      %p459 = scmp.ne.s32.totalorder %s448, %s449
      %p460 = scmp.eq.s32.totalorder %s37, 0
      %p461 = por %p459, %p460
      %p462 = scmp.ne.s32.totalorder %s448, %s449
      %p463 = scmp.eq.s32.totalorder %s38, 1
      %p464 = por %p462, %p463
      %p466 = scmp.ne.s32.totalorder %s449, %s465
      %p467 = scmp.eq.s32.totalorder %s38, 0
      %p468 = por %p466, %p467
      %s469 = ssub.s32 %s32, %s39
      %p470 = scmp.eq.s32.totalorder %s469, 0
      %s472 = sadd.s32 %s471, 1
      %s473 = scalar_select %p470, %s471, %s472
      %p476 = pneg %p470
      %p477 = scmp.eq.s32.totalorder %s32, 1
      %p478 = por %p476, %p477
      %p479 = scmp.ne.s32.totalorder %s471, %s474
      %p480 = scmp.eq.s32.totalorder %s32, 0
      %p481 = por %p479, %p480
      %p482 = scmp.ne.s32.totalorder %s471, %s474
      %p483 = scmp.eq.s32.totalorder %s37, 1
      %p484 = por %p482, %p483
      %p485 = scmp.ne.s32.totalorder %s474, %s475
      %p486 = scmp.eq.s32.totalorder %s37, 0
      %p487 = por %p485, %p486
      %p488 = scmp.ne.s32.totalorder %s474, %s475
      %p489 = scmp.eq.s32.totalorder %s38, 1
      %p490 = por %p488, %p489
      %p492 = scmp.ne.s32.totalorder %s475, %s491
      %p493 = scmp.eq.s32.totalorder %s38, 0
      %p494 = por %p492, %p493
      %p495 = scmp.le.s32.totalorder 1, %s32
      %p496 = scmp.lt.s32.totalorder %s32, 3
      %p497 = pnand %p495, %p496
      %p498 = pneg %p497
      // Predicated region
      $region9: #{_lambda_.3} parent=5 // pred_check
        _
      $region10: #{_lambda_.3} parent=5 // pred_check_branch
        %500 = sbr.rel (%p497) target = $region12
      $region11: #{_lambda_.3} parent=5 // pred_region
        %s501 = ssub.s32 %s32, 1
        // Predicated region
        $region13: #{_lambda_.3} parent=11 // pred_check
          %p502 = pneg %p183
        $region14: #{_lambda_.3} parent=11 // pred_check_branch
          %504 = sbr.rel (%p502) target = $region16
        $region15: #{_lambda_.3} parent=11 // pred_region
          _
        $region16: #{_lambda_.3} parent=11 // pred_fallthru
          _
        // Predicated region
        $region17: #{_lambda_.3} parent=11 // pred_check
          %p505 = pneg %p204
        $region18: #{_lambda_.3} parent=11 // pred_check_branch
          %507 = sbr.rel (%p505) target = $region20
        $region19: #{_lambda_.3} parent=11 // pred_region
          _
        $region20: #{_lambda_.3} parent=11 // pred_fallthru
          _
        // Predicated region
        $region21: #{_lambda_.3} parent=11 // pred_check
          %p508 = pneg %p225
        $region22: #{_lambda_.3} parent=11 // pred_check_branch
          %510 = sbr.rel (%p508) target = $region24
        $region23: #{_lambda_.3} parent=11 // pred_region
          _
        $region24: #{_lambda_.3} parent=11 // pred_fallthru
          _
        // Predicated region
        $region25: #{_lambda_.3} parent=11 // pred_check
          %p511 = pneg %p246
        $region26: #{_lambda_.3} parent=11 // pred_check_branch
          %513 = sbr.rel (%p511) target = $region28
        $region27: #{_lambda_.3} parent=11 // pred_region
          _
        $region28: #{_lambda_.3} parent=11 // pred_fallthru
          _
        // Predicated region
        $region29: #{_lambda_.3} parent=11 // pred_check
          %p514 = pneg %p267
        $region30: #{_lambda_.3} parent=11 // pred_check_branch
          %516 = sbr.rel (%p514) target = $region32
        $region31: #{_lambda_.3} parent=11 // pred_region
          _
        $region32: #{_lambda_.3} parent=11 // pred_fallthru
          _
        // Predicated region
        $region33: #{_lambda_.3} parent=11 // pred_check
          %p517 = pneg %p288
        $region34: #{_lambda_.3} parent=11 // pred_check_branch
          %519 = sbr.rel (%p517) target = $region36
        $region35: #{_lambda_.3} parent=11 // pred_region
          _
        $region36: #{_lambda_.3} parent=11 // pred_fallthru
          _
        // Predicated region
        $region37: #{_lambda_.3} parent=11 // pred_check
          %p520 = pneg %p309
        $region38: #{_lambda_.3} parent=11 // pred_check_branch
          %522 = sbr.rel (%p520) target = $region40
        $region39: #{_lambda_.3} parent=11 // pred_region
          _
        $region40: #{_lambda_.3} parent=11 // pred_fallthru
          _
        // Predicated region
        $region41: #{_lambda_.3} parent=11 // pred_check
          %p523 = pneg %p330
        $region42: #{_lambda_.3} parent=11 // pred_check_branch
          %525 = sbr.rel (%p523) target = $region44
        $region43: #{_lambda_.3} parent=11 // pred_region
          _
        $region44: #{_lambda_.3} parent=11 // pred_fallthru
          _
        // Predicated region
        $region45: #{_lambda_.3} parent=11 // pred_check
          %p526 = pneg %p351
        $region46: #{_lambda_.3} parent=11 // pred_check_branch
          %528 = sbr.rel (%p526) target = $region48
        $region47: #{_lambda_.3} parent=11 // pred_region
          _
        $region48: #{_lambda_.3} parent=11 // pred_fallthru
          _
        // Predicated region
        $region49: #{_lambda_.3} parent=11 // pred_check
          %p529 = pneg %p372
        $region50: #{_lambda_.3} parent=11 // pred_check_branch
          %531 = sbr.rel (%p529) target = $region52
        $region51: #{_lambda_.3} parent=11 // pred_region
          _
        $region52: #{_lambda_.3} parent=11 // pred_fallthru
          _
        // Predicated region
        $region53: #{_lambda_.3} parent=11 // pred_check
          %p532 = pneg %p393
        $region54: #{_lambda_.3} parent=11 // pred_check_branch
          %534 = sbr.rel (%p532) target = $region56
        $region55: #{_lambda_.3} parent=11 // pred_region
          _
        $region56: #{_lambda_.3} parent=11 // pred_fallthru
          _
        // Predicated region
        $region57: #{_lambda_.3} parent=11 // pred_check
          %p535 = pneg %p414
        $region58: #{_lambda_.3} parent=11 // pred_check_branch
          %537 = sbr.rel (%p535) target = $region60
        $region59: #{_lambda_.3} parent=11 // pred_region
          _
        $region60: #{_lambda_.3} parent=11 // pred_fallthru
          _
        // Predicated region
        $region61: #{_lambda_.3} parent=11 // pred_check
          %p538 = pneg %p435
        $region62: #{_lambda_.3} parent=11 // pred_check_branch
          %540 = sbr.rel (%p538) target = $region64
        $region63: #{_lambda_.3} parent=11 // pred_region
          _
        $region64: #{_lambda_.3} parent=11 // pred_fallthru
          _
      $region12: #{_lambda_.3} parent=5 // pred_fallthru
        _
      %p541 = scmp.lt.s32.totalorder %s32, 2
      // Predicated region
      $region65: #{_lambda_.3} parent=5 // pred_check
        %p542 = pneg %p541
      $region66: #{_lambda_.3} parent=5 // pred_check_branch
        %544 = sbr.rel (%p542) target = $region68
      $region67: #{_lambda_.3} parent=5 // pred_region
        // Predicated region
        $region69: #{_lambda_.3} parent=67 // pred_check
          %p545 = pneg %p52
        $region70: #{_lambda_.3} parent=67 // pred_check_branch
          %547 = sbr.rel (%p545) target = $region72
        $region71: #{_lambda_.3} parent=67 // pred_region
          %p548 = scmp.lt.s32.totalorder %s32, 1
          %s549 = scalar_select %p548, %s32, 1
          %s550 = smul.addr %s549, 8
          %s551 = smul.addr %s550, 8
          %s552 = scalar_lea.vmem %s0, %s551
        $region72: #{_lambda_.3} parent=67 // pred_fallthru
          _
        // Predicated region
        $region73: #{_lambda_.3} parent=67 // pred_check
          %p553 = pneg %p78
        $region74: #{_lambda_.3} parent=67 // pred_check_branch
          %555 = sbr.rel (%p553) target = $region76
        $region75: #{_lambda_.3} parent=67 // pred_region
          %p556 = scmp.lt.s32.totalorder %s32, 1
          %s557 = scalar_select %p556, %s32, 1
          %s558 = smul.addr %s557, 8
          %s559 = smul.addr %s558, 8
          %s560 = scalar_lea.vmem %s1, %s559
        $region76: #{_lambda_.3} parent=67 // pred_fallthru
          _
        // Predicated region
        $region77: #{_lambda_.3} parent=67 // pred_check
          %p561 = pneg %p104
        $region78: #{_lambda_.3} parent=67 // pred_check_branch
          %563 = sbr.rel (%p561) target = $region80
        $region79: #{_lambda_.3} parent=67 // pred_region
          %p564 = scmp.lt.s32.totalorder %s32, 1
          %s565 = scalar_select %p564, %s32, 1
          %s566 = smul.addr %s565, 3
          %s567 = smul.addr %s566, 8
          %s568 = scalar_lea.vmem %s2, %s567
        $region80: #{_lambda_.3} parent=67 // pred_fallthru
          _
        // Predicated region
        $region81: #{_lambda_.3} parent=67 // pred_check
          %p569 = pneg %p130
        $region82: #{_lambda_.3} parent=67 // pred_check_branch
          %571 = sbr.rel (%p569) target = $region84
        $region83: #{_lambda_.3} parent=67 // pred_region
          %p572 = scmp.lt.s32.totalorder %s32, 1
          %s573 = scalar_select %p572, %s32, 1
          %s574 = smul.addr %s573, 3
          %s575 = smul.addr %s574, 8
          %s576 = scalar_lea.vmem %s3, %s575
        $region84: #{_lambda_.3} parent=67 // pred_fallthru
          _
        // Predicated region
        $region85: #{_lambda_.3} parent=67 // pred_check
          %p577 = pneg %p156
        $region86: #{_lambda_.3} parent=67 // pred_check_branch
          %579 = sbr.rel (%p577) target = $region88
        $region87: #{_lambda_.3} parent=67 // pred_region
          %p580 = scmp.lt.s32.totalorder %s32, 1
          %s581 = scalar_select %p580, %s32, 1
          %s582 = smul.addr %s581, 4
          %s583 = scalar_lea.vmem %s4, %s582
        $region88: #{_lambda_.3} parent=67 // pred_fallthru
          _
      $region68: #{_lambda_.3} parent=5 // pred_fallthru
        _
      %p584 = scmp.le.s32.totalorder 1, %s32
      %p585 = scmp.lt.s32.totalorder %s32, 3
      %p586 = pnand %p584, %p585
      %p587 = pneg %p586
      // Predicated region
      $region89: #{_lambda_.3} parent=5 // pred_check
        _
      $region90: #{_lambda_.3} parent=5 // pred_check_branch
        %589 = sbr.rel (%p586) target = $region92
      $region91: #{_lambda_.3} parent=5 // pred_region
        %s590 = ssub.s32 %s32, 1
        %p591 = scmp.lt.s32.totalorder %s37, 1
        %s592 = scalar_select %p591, %s37, 1
        %s593 = smul.addr %s592, 8
        %s594 = smul.addr %s593, 8
        %s595 = scalar_lea.vmem %s0, %s594
        %p596 = pneg %p58
        %p597 = pneg %p55
        %p598 = scmp.lt.s32.totalorder %s37, 1
        %s599 = scalar_select %p598, %s37, 1
        %s600 = smul.addr %s599, 8
        %s601 = smul.addr %s600, 8
        %s602 = scalar_lea.vmem %s1, %s601
        %p603 = pneg %p84
        %p604 = pneg %p81
        %p605 = scmp.lt.s32.totalorder %s37, 1
        %s606 = scalar_select %p605, %s37, 1
        %s607 = smul.addr %s606, 3
        %s608 = smul.addr %s607, 8
        %s609 = scalar_lea.vmem %s2, %s608
        %p610 = pneg %p110
        %p611 = pneg %p107
        %p612 = scmp.lt.s32.totalorder %s37, 1
        %s613 = scalar_select %p612, %s37, 1
        %s614 = smul.addr %s613, 3
        %s615 = smul.addr %s614, 8
        %s616 = scalar_lea.vmem %s3, %s615
        %p617 = pneg %p136
        %p618 = pneg %p133
        %p619 = scmp.lt.s32.totalorder %s37, 1
        %s620 = scalar_select %p619, %s37, 1
        %s621 = smul.addr %s620, 4
        %s622 = scalar_lea.vmem %s4, %s621
        %p623 = pneg %p162
        %p624 = pneg %p159
        %p625 = pneg %p183
        %p626 = pneg %p180
        %p627 = pneg %p204
        %p628 = pneg %p201
        %p629 = pneg %p225
        %p630 = pneg %p222
        %p631 = pneg %p246
        %p632 = pneg %p243
        %p633 = pneg %p267
        %p634 = pneg %p264
        %p635 = pneg %p288
        %p636 = pneg %p285
        %p637 = pneg %p309
        %p638 = pneg %p306
        %p639 = pneg %p330
        %p640 = pneg %p327
        %p641 = pneg %p351
        %p642 = pneg %p348
        %p643 = pneg %p372
        %p644 = pneg %p369
        %p645 = pneg %p393
        %p646 = pneg %p390
        %p647 = pneg %p414
        %p648 = pneg %p411
        %p649 = pneg %p435
        %p650 = pneg %p432
        %p651 = pneg %p461
        %p652 = pneg %p458
        %s653 = sand.u32 %s448, 1
        %s654 = scalar_lea.sflag [#allocation5], %s653
        %s655 = sand.u32 %s448, 1
        %s656 = scalar_lea.vmem [#allocation4], %s655
        %p657 = pneg %p487
        %p658 = pneg %p484
        %s659 = sand.u32 %s474, 1
        %s660 = scalar_lea.sflag [#allocation7], %s659
        %s661 = sand.u32 %s474, 1
        %s662 = scalar_lea.vmem [#allocation6], %s661
        %p663 = scmp.lt.s32.totalorder %s37, 1
        %s664 = scalar_select %p663, %s37, 1
        %s665 = smul.addr %s664, 8
        %s666 = smul.addr %s665, 8
        %s667 = scalar_lea.vmem %s0, %s666
        %p668 = scmp.lt.s32.totalorder %s37, 1
        %s669 = scalar_select %p668, %s37, 1
        %s670 = smul.addr %s669, 8
        %s671 = smul.addr %s670, 8
        %s672 = scalar_lea.vmem %s1, %s671
        %p673 = scmp.lt.s32.totalorder %s37, 1
        %s674 = scalar_select %p673, %s37, 1
        %s675 = smul.addr %s674, 3
        %s676 = smul.addr %s675, 8
        %s677 = scalar_lea.vmem %s2, %s676
        %p678 = scmp.lt.s32.totalorder %s37, 1
        %s679 = scalar_select %p678, %s37, 1
        %s680 = smul.addr %s679, 3
        %s681 = smul.addr %s680, 8
        %s682 = scalar_lea.vmem %s3, %s681
        %p683 = scmp.lt.s32.totalorder %s37, 1
        %s684 = scalar_select %p683, %s37, 1
        %s685 = smul.addr %s684, 4
        %s686 = scalar_lea.vmem %s4, %s685
        %v687 = vld [vmem:[%s667] sm:$0xff]
        %v688 = vld [vmem:[%s667 + $0x8] sm:$0xff]
        %v689 = vld [vmem:[%s667 + $0x10] sm:$0xff]
        %v690 = vld [vmem:[%s667 + $0x18] sm:$0xff]
        %v691 = vld [vmem:[%s667 + $0x20] sm:$0xff]
        %v692 = vld [vmem:[%s667 + $0x28] sm:$0xff]
        %v693 = vld [vmem:[%s667 + $0x30] sm:$0xff]
        %v694 = vld [vmem:[%s667 + $0x38] sm:$0xf]
        %v695 = vld [vmem:[%s672] sm:$0xff]
        %v696 = vld [vmem:[%s672 + $0x8] sm:$0xff]
        %v697 = vld [vmem:[%s672 + $0x10] sm:$0xff]
        %v698 = vld [vmem:[%s672 + $0x18] sm:$0xff]
        %v699 = vld [vmem:[%s672 + $0x20] sm:$0xff]
        %v700 = vld [vmem:[%s672 + $0x28] sm:$0xff]
        %v701 = vld [vmem:[%s672 + $0x30] sm:$0xff]
        %v702 = vld [vmem:[%s672 + $0x38] sm:$0xf]
        %v703 = vld [vmem:[%s677] sm:$0xff]
        %v704 = vld [vmem:[%s677 + $0x8] sm:$0xff]
        %v705 = vld [vmem:[%s677 + $0x10] sm:$0xf]
        %v706 = vld [vmem:[%s682] sm:$0xff]
        %v707 = vld [vmem:[%s682 + $0x8] sm:$0xff]
        %v708 = vld [vmem:[%s682 + $0x10] sm:$0xf]
        %vm709 = vcmask 261120
        %v711 = vsel %vm709, %v687, 0
        %v714 = vsel %vm709, %v688, 0
        %v717 = vsel %vm709, %v689, 0
        %v720 = vsel %vm709, %v690, 0
        %v723 = vsel %vm709, %v691, 0
        %v726 = vsel %vm709, %v692, 0
        %v729 = vsel %vm709, %v693, 0
        %v732 = vsel %vm709, %v694, 0
        %v735 = vsel %vm709, %v703, 0
        %v738 = vsel %vm709, %v704, 0
        %v741 = vsel %vm709, %v705, 0
        %743 = vmatpush.xpose.msra.mxu0 0.0
        %744 = vmatpush.xpose.msra.mxu0 0.0
        %745 = vmatpush.xpose.msra.mxu0 0.0
        %746 = vmatpush.xpose.msra.mxu0 0.0
        %747 = vmatpush.xpose.msra.mxu0 0.0
        %748 = vmatpush.xpose.msra.mxu0 0.0
        %749 = vmatpush.xpose.msra.mxu0 0.0
        %750 = vmatpush.xpose.msra.mxu0 0.0
        %751 = vmatpush.xpose.msra.mxu0 0.0
        %752 = vmatpush.xpose.msra.mxu0 0.0
        %753 = vmatpush.xpose.msra.mxu0 0.0
        %754 = vmatpush.xpose.msra.mxu0 0.0
        %755 = vmatpush.xpose.msra.mxu0 0.0
        %756 = vmatpush.xpose.msra.mxu0 %v741
        %757 = vmatpush.xpose.msra.mxu0 %v738
        %758 = vmatpush.xpose.msra.mxu0 %v735
        %759 = vmatmul.f32.gmra.mxu0 %v711
        %v760 = vpop.f32.mrf.mxu0
        %v761 = vadd.f32 0.0, %v760
        %762 = vmatmul.f32.gmra.mxu0 %v714
        %v763 = vpop.f32.mrf.mxu0
        %v764 = vadd.f32 0.0, %v763
        %765 = vmatmul.f32.gmra.mxu0 %v717
        %v766 = vpop.f32.mrf.mxu0
        %v767 = vadd.f32 0.0, %v766
        %768 = vmatmul.f32.gmra.mxu0 %v720
        %v769 = vpop.f32.mrf.mxu0
        %v770 = vadd.f32 0.0, %v769
        %771 = vmatmul.f32.gmra.mxu0 %v723
        %v772 = vpop.f32.mrf.mxu0
        %v773 = vadd.f32 0.0, %v772
        %774 = vmatmul.f32.gmra.mxu0 %v726
        %v775 = vpop.f32.mrf.mxu0
        %v776 = vadd.f32 0.0, %v775
        %777 = vmatmul.f32.gmra.mxu0 %v729
        %v778 = vpop.f32.mrf.mxu0
        %v779 = vadd.f32 0.0, %v778
        %780 = vmatmul.f32.gmra.mxu0 %v732
        %v781 = vpop.f32.mrf.mxu0
        %v782 = vadd.f32 0.0, %v781
        %783 = vdwg.mxu0
        %v785 = vsel %vm709, %v695, 0
        %v788 = vsel %vm709, %v696, 0
        %v791 = vsel %vm709, %v697, 0
        %v794 = vsel %vm709, %v698, 0
        %v797 = vsel %vm709, %v699, 0
        %v800 = vsel %vm709, %v700, 0
        %v803 = vsel %vm709, %v701, 0
        %v806 = vsel %vm709, %v702, 0
        %v809 = vsel %vm709, %v706, 0
        %v812 = vsel %vm709, %v707, 0
        %v815 = vsel %vm709, %v708, 0
        %817 = vmatpush.xpose.msra.mxu0 0.0
        %818 = vmatpush.xpose.msra.mxu0 0.0
        %819 = vmatpush.xpose.msra.mxu0 0.0
        %820 = vmatpush.xpose.msra.mxu0 0.0
        %821 = vmatpush.xpose.msra.mxu0 0.0
        %822 = vmatpush.xpose.msra.mxu0 0.0
        %823 = vmatpush.xpose.msra.mxu0 0.0
        %824 = vmatpush.xpose.msra.mxu0 0.0
        %825 = vmatpush.xpose.msra.mxu0 0.0
        %826 = vmatpush.xpose.msra.mxu0 0.0
        %827 = vmatpush.xpose.msra.mxu0 0.0
        %828 = vmatpush.xpose.msra.mxu0 0.0
        %829 = vmatpush.xpose.msra.mxu0 0.0
        %830 = vmatpush.xpose.msra.mxu0 %v815
        %831 = vmatpush.xpose.msra.mxu0 %v812
        %832 = vmatpush.xpose.msra.mxu0 %v809
        %833 = vmatmul.f32.gmra.mxu0 %v785
        %v834 = vpop.f32.mrf.mxu0
        %v835 = vadd.f32 0.0, %v834
        %836 = vmatmul.f32.gmra.mxu0 %v788
        %v837 = vpop.f32.mrf.mxu0
        %v838 = vadd.f32 0.0, %v837
        %839 = vmatmul.f32.gmra.mxu0 %v791
        %v840 = vpop.f32.mrf.mxu0
        %v841 = vadd.f32 0.0, %v840
        %842 = vmatmul.f32.gmra.mxu0 %v794
        %v843 = vpop.f32.mrf.mxu0
        %v844 = vadd.f32 0.0, %v843
        %845 = vmatmul.f32.gmra.mxu0 %v797
        %v846 = vpop.f32.mrf.mxu0
        %v847 = vadd.f32 0.0, %v846
        %848 = vmatmul.f32.gmra.mxu0 %v800
        %v849 = vpop.f32.mrf.mxu0
        %v850 = vadd.f32 0.0, %v849
        %851 = vmatmul.f32.gmra.mxu0 %v803
        %v852 = vpop.f32.mrf.mxu0
        %v853 = vadd.f32 0.0, %v852
        %854 = vmatmul.f32.gmra.mxu0 %v806
        %v855 = vpop.f32.mrf.mxu0
        %v856 = vadd.f32 0.0, %v855
        %857 = vdwg.mxu0
        %866 = vrot.lane.b32.xlu0 %v835, 20
        %v867 = vpop.permute.xlu0 %866
        %868 = vrot.lane.b32.xlu0 %v838, 20
        %v869 = vpop.permute.xlu0 %868
        %870 = vrot.lane.b32.xlu0 %v841, 20
        %v871 = vpop.permute.xlu0 %870
        %872 = vrot.lane.b32.xlu0 %v844, 20
        %v873 = vpop.permute.xlu0 %872
        %874 = vrot.lane.b32.xlu0 %v847, 20
        %v875 = vpop.permute.xlu0 %874
        %876 = vrot.lane.b32.xlu0 %v850, 20
        %v877 = vpop.permute.xlu0 %876
        %878 = vrot.lane.b32.xlu0 %v853, 20
        %v879 = vpop.permute.xlu0 %878
        %880 = vrot.lane.b32.xlu0 %v856, 20
        %v881 = vpop.permute.xlu0 %880
        %vm890 = vcmask 162816
        %v891 = vsel %vm890, %v761, %v867
        %v892 = vsel %vm890, %v764, %v869
        %v893 = vsel %vm890, %v767, %v871
        %v894 = vsel %vm890, %v770, %v873
        %v895 = vsel %vm890, %v773, %v875
        %v896 = vsel %vm890, %v776, %v877
        %v897 = vsel %vm890, %v779, %v879
        %v898 = vsel %vm890, %v782, %v881
        %vm902 = vcmask 1046528
        %v903 = vrot.slane %v891, 1
        %v904 = vrot.slane %v892, 1
        %v905 = vsel %vm902, %v903, %v904
        %v906 = vrot.slane %v893, 1
        %v907 = vsel %vm902, %v904, %v906
        %908 = vrot.lane.b32.xlu0 %v905, 40
        %v909 = vpop.permute.xlu0 %908
        %910 = vrot.lane.b32.xlu0 %v907, 40
        %v911 = vpop.permute.xlu0 %910
        %912 = vrot.lane.b32.xlu0 %v906, 40
        %v913 = vpop.permute.xlu0 %912
        %vm917 = vcmask 1045504
        %v918 = vrot.slane %v891, 2
        %v919 = vrot.slane %v892, 2
        %v920 = vsel %vm917, %v918, %v919
        %v921 = vrot.slane %v893, 2
        %v922 = vsel %vm917, %v919, %v921
        %923 = vrot.lane.b32.xlu0 %v920, 80
        %v924 = vpop.permute.xlu0 %923
        %925 = vrot.lane.b32.xlu0 %v922, 80
        %v926 = vpop.permute.xlu0 %925
        %927 = vrot.lane.b32.xlu0 %v921, 80
        %v928 = vpop.permute.xlu0 %927
        %vm932 = vcmask 326656
        %v933 = vsel %vm932, %v891, %v909
        %v934 = vsel %vm932, %v892, %v911
        %v935 = vsel %vm932, %v893, %v913
        %vm936 = vcmask 654336
        %v937 = vsel %vm936, %v933, %v924
        %v938 = vsel %vm936, %v934, %v926
        %v939 = vsel %vm936, %v935, %v928
        %v942 = vrot.slane %v894, 1
        %v943 = vsel %vm902, %v906, %v942
        %v944 = vrot.slane %v895, 1
        %v945 = vsel %vm902, %v942, %v944
        %946 = vrot.lane.b32.xlu0 %v943, 40
        %v947 = vpop.permute.xlu0 %946
        %948 = vrot.lane.b32.xlu0 %v945, 40
        %v949 = vpop.permute.xlu0 %948
        %950 = vrot.lane.b32.xlu0 %v944, 40
        %v951 = vpop.permute.xlu0 %950
        %v955 = vrot.slane %v894, 2
        %v956 = vsel %vm917, %v921, %v955
        %v957 = vrot.slane %v895, 2
        %v958 = vsel %vm917, %v955, %v957
        %959 = vrot.lane.b32.xlu0 %v956, 80
        %v960 = vpop.permute.xlu0 %959
        %961 = vrot.lane.b32.xlu0 %v958, 80
        %v962 = vpop.permute.xlu0 %961
        %963 = vrot.lane.b32.xlu0 %v957, 80
        %v964 = vpop.permute.xlu0 %963
        %v968 = vsel %vm932, %v893, %v947
        %v969 = vsel %vm932, %v894, %v949
        %v970 = vsel %vm932, %v895, %v951
        %v971 = vsel %vm936, %v968, %v960
        %v972 = vsel %vm936, %v969, %v962
        %v973 = vsel %vm936, %v970, %v964
        %v977 = vrot.slane %v896, 1
        %v978 = vrot.slane %v897, 1
        %v979 = vsel %vm902, %v977, %v978
        %v980 = vrot.slane %v898, 1
        %v981 = vsel %vm902, %v978, %v980
        %982 = vrot.lane.b32.xlu0 %v979, 40
        %v983 = vpop.permute.xlu0 %982
        %984 = vrot.lane.b32.xlu0 %v981, 40
        %v985 = vpop.permute.xlu0 %984
        %986 = vrot.lane.b32.xlu0 %v980, 40
        %v987 = vpop.permute.xlu0 %986
        %v991 = vrot.slane %v896, 2
        %v992 = vrot.slane %v897, 2
        %v993 = vsel %vm917, %v991, %v992
        %v994 = vrot.slane %v898, 2
        %v995 = vsel %vm917, %v992, %v994
        %996 = vrot.lane.b32.xlu0 %v993, 80
        %v997 = vpop.permute.xlu0 %996
        %998 = vrot.lane.b32.xlu0 %v995, 80
        %v999 = vpop.permute.xlu0 %998
        %1000 = vrot.lane.b32.xlu0 %v994, 80
        %v1001 = vpop.permute.xlu0 %1000
        %v1005 = vsel %vm932, %v896, %v983
        %v1006 = vsel %vm932, %v897, %v985
        %v1007 = vsel %vm932, %v898, %v987
        %v1008 = vsel %vm936, %v1005, %v997
        %v1009 = vsel %vm936, %v1006, %v999
        %v1010 = vsel %vm936, %v1007, %v1001
        %v1014 = vrot.slane %v971, 2
        %v1015 = vrot.slane %v972, 2
        %v1016 = vsel %vm917, %v1014, %v1015
        %v1017 = vrot.slane %v973, 2
        %v1018 = vsel %vm917, %v1015, %v1017
        %vm1024 = vcmask 1043456
        %v1025 = vrot.slane %v1008, 4
        %v1026 = vrot.slane %v1009, 4
        %v1027 = vsel %vm1024, %v1025, %v1026
        %v1028 = vrot.slane %v1010, 4
        %v1029 = vsel %vm1024, %v1026, %v1028
        %vm1031 = vcmask 1041408
        %v1032 = vsel %vm1031, %v939, %v1016
        %v1033 = vsel %vm1024, %v1017, %v1025
        %v1034 = vld [vmem:[%s5] sm:$0xff]
        %v1035 = vld [vmem:[%s5 + $0x8] sm:$0xff]
        %v1036 = vld [vmem:[%s5 + $0x10] sm:$0xff]
        %v1037 = vld [vmem:[%s5 + $0x18] sm:$0xff]
        %v1038 = vld [vmem:[%s5 + $0x20] sm:$0xff]
        %v1039 = vld [vmem:[%s5 + $0x28] sm:$0xff]
        %v1040 = vld [vmem:[%s5 + $0x30] sm:$0xff]
        %v1041 = vld [vmem:[%s5 + $0x38] sm:$0xff]
        %v1042 = vld [vmem:[%s5 + $0x40] sm:$0xff]
        %v1043 = vld [vmem:[%s5 + $0x48] sm:$0xff]
        %v1044 = vld [vmem:[%s5 + $0x50] sm:$0xff]
        %v1045 = vld [vmem:[%s5 + $0x58] sm:$0xff]
        %v1046 = vld [vmem:[%s5 + $0x60] sm:$0xff]
        %v1047 = vld [vmem:[%s5 + $0x68] sm:$0xff]
        %v1048 = vld [vmem:[%s5 + $0x70] sm:$0xff]
        %v1049 = vld [vmem:[%s5 + $0x78] sm:$0xff]
        %v1050 = vld [vmem:[%s5 + $0x80] sm:$0xff]
        %v1051 = vld [vmem:[%s5 + $0x88] sm:$0xff]
        %v1052 = vld [vmem:[%s5 + $0x90] sm:$0xff]
        %v1053 = vld [vmem:[%s5 + $0x98] sm:$0xff]
        %v1054 = vld [vmem:[%s5 + $0xa0] sm:$0xff]
        %v1055 = vld [vmem:[%s5 + $0xa8] sm:$0xff]
        %v1056 = vld [vmem:[%s5 + $0xb0] sm:$0xff]
        %v1057 = vld [vmem:[%s5 + $0xb8] sm:$0xff]
        %v1058 = vld [vmem:[%s5 + $0xc0] sm:$0xff]
        %v1059 = vld [vmem:[%s5 + $0xc8] sm:$0xff]
        %v1060 = vld [vmem:[%s5 + $0xd0] sm:$0xff]
        %v1061 = vld [vmem:[%s5 + $0xd8] sm:$0xff]
        %v1062 = vld [vmem:[%s5 + $0xe0] sm:$0xff]
        %v1063 = vld [vmem:[%s5 + $0xe8] sm:$0xff]
        %v1064 = vld [vmem:[%s6] sm:$0x3]
        %v1066 = vperm.slane %v1064, 0
        %v1067 = vperm.slane %v1064, 1
        %vm1070 = vcmask 982016
        %v1072 = vsel %vm1070, %v937, 0
        %v1075 = vsel %vm1070, %v938, 0
        %v1078 = vsel %vm1070, %v1032, 0
        %v1080 = vsel %vm1070, %v1018, 0
        %v1083 = vsel %vm1070, %v1033, 0
        %v1085 = vsel %vm1070, %v1027, 0
        %v1087 = vsel %vm1070, %v1029, 0
        %1089 = vmatpush.msra.mxu0 0.0
        %1090 = vmatpush.msra.mxu0 %v1062
        %1091 = vmatpush.msra.mxu0 %v1060
        %1092 = vmatpush.msra.mxu0 %v1058
        %1093 = vmatpush.msra.mxu0 %v1056
        %1094 = vmatpush.msra.mxu0 %v1054
        %1095 = vmatpush.msra.mxu0 %v1052
        %1096 = vmatpush.msra.mxu0 %v1050
        %1097 = vmatpush.msra.mxu0 %v1048
        %1098 = vmatpush.msra.mxu0 %v1046
        %1099 = vmatpush.msra.mxu0 %v1044
        %1100 = vmatpush.msra.mxu0 %v1042
        %1101 = vmatpush.msra.mxu0 %v1040
        %1102 = vmatpush.msra.mxu0 %v1038
        %1103 = vmatpush.msra.mxu0 %v1036
        %1104 = vmatpush.msra.mxu0 %v1034
        %1105 = vmatmul.f32.gmra.mxu0 %v1072
        %v1106 = vpop.f32.mrf.mxu0
        %v1107 = vadd.f32 %v1066, %v1106
        %1108 = vmatmul.f32.gmra.mxu0 %v1075
        %v1109 = vpop.f32.mrf.mxu0
        %v1110 = vadd.f32 %v1066, %v1109
        %1111 = vmatmul.f32.gmra.mxu0 %v1078
        %v1112 = vpop.f32.mrf.mxu0
        %v1113 = vadd.f32 %v1066, %v1112
        %1114 = vmatmul.f32.gmra.mxu0 %v1080
        %v1115 = vpop.f32.mrf.mxu0
        %v1116 = vadd.f32 %v1066, %v1115
        %1117 = vmatmul.f32.gmra.mxu0 %v1083
        %v1118 = vpop.f32.mrf.mxu0
        %v1119 = vadd.f32 %v1066, %v1118
        %1120 = vmatmul.f32.gmra.mxu0 %v1085
        %v1121 = vpop.f32.mrf.mxu0
        %v1122 = vadd.f32 %v1066, %v1121
        %1123 = vmatmul.f32.gmra.mxu0 %v1087
        %v1124 = vpop.f32.mrf.mxu0
        %v1125 = vadd.f32 %v1066, %v1124
        %1126 = vdwg.mxu0
        %1127 = vmatpush.msra.mxu0 0.0
        %1128 = vmatpush.msra.mxu0 %v1063
        %1129 = vmatpush.msra.mxu0 %v1061
        %1130 = vmatpush.msra.mxu0 %v1059
        %1131 = vmatpush.msra.mxu0 %v1057
        %1132 = vmatpush.msra.mxu0 %v1055
        %1133 = vmatpush.msra.mxu0 %v1053
        %1134 = vmatpush.msra.mxu0 %v1051
        %1135 = vmatpush.msra.mxu0 %v1049
        %1136 = vmatpush.msra.mxu0 %v1047
        %1137 = vmatpush.msra.mxu0 %v1045
        %1138 = vmatpush.msra.mxu0 %v1043
        %1139 = vmatpush.msra.mxu0 %v1041
        %1140 = vmatpush.msra.mxu0 %v1039
        %1141 = vmatpush.msra.mxu0 %v1037
        %1142 = vmatpush.msra.mxu0 %v1035
        %1143 = vmatmul.f32.gmra.mxu0 %v1072
        %v1144 = vpop.f32.mrf.mxu0
        %v1145 = vadd.f32 %v1067, %v1144
        %1146 = vmatmul.f32.gmra.mxu0 %v1075
        %v1147 = vpop.f32.mrf.mxu0
        %v1148 = vadd.f32 %v1067, %v1147
        %1149 = vmatmul.f32.gmra.mxu0 %v1078
        %v1150 = vpop.f32.mrf.mxu0
        %v1151 = vadd.f32 %v1067, %v1150
        %1152 = vmatmul.f32.gmra.mxu0 %v1080
        %v1153 = vpop.f32.mrf.mxu0
        %v1154 = vadd.f32 %v1067, %v1153
        %1155 = vmatmul.f32.gmra.mxu0 %v1083
        %v1156 = vpop.f32.mrf.mxu0
        %v1157 = vadd.f32 %v1067, %v1156
        %1158 = vmatmul.f32.gmra.mxu0 %v1085
        %v1159 = vpop.f32.mrf.mxu0
        %v1160 = vadd.f32 %v1067, %v1159
        %1161 = vmatmul.f32.gmra.mxu0 %v1087
        %v1162 = vpop.f32.mrf.mxu0
        %v1163 = vadd.f32 %v1067, %v1162
        %1164 = vdwg.mxu0
        %v1165 = vmax.f32 %v1107, 0.0
        %v1166 = vmax.f32 %v1145, 0.0
        %v1167 = vmax.f32 %v1110, 0.0
        %v1168 = vmax.f32 %v1148, 0.0
        %v1169 = vmax.f32 %v1113, 0.0
        %v1170 = vmax.f32 %v1151, 0.0
        %v1171 = vmax.f32 %v1116, 0.0
        %v1172 = vmax.f32 %v1154, 0.0
        %v1173 = vmax.f32 %v1119, 0.0
        %v1174 = vmax.f32 %v1157, 0.0
        %v1175 = vmax.f32 %v1122, 0.0
        %v1176 = vmax.f32 %v1160, 0.0
        %v1177 = vmax.f32 %v1125, 0.0
        %v1178 = vmax.f32 %v1163, 0.0
        %1186 = vrot.lane.b32.xlu0 %v1165, 80
        %v1187 = vpop.permute.xlu0 %1186
        %1188 = vrot.lane.b32.xlu0 %v1167, 80
        %v1189 = vpop.permute.xlu0 %1188
        %1190 = vrot.lane.b32.xlu0 %v1169, 80
        %v1191 = vpop.permute.xlu0 %1190
        %1192 = vrot.lane.b32.xlu0 %v1171, 80
        %v1193 = vpop.permute.xlu0 %1192
        %1194 = vrot.lane.b32.xlu0 %v1173, 80
        %v1195 = vpop.permute.xlu0 %1194
        %1196 = vrot.lane.b32.xlu0 %v1175, 80
        %v1197 = vpop.permute.xlu0 %1196
        %1198 = vrot.lane.b32.xlu0 %v1177, 80
        %v1199 = vpop.permute.xlu0 %1198
        %v1207 = vmax.f32 %v1165, %v1187
        %v1208 = vmax.f32 %v1167, %v1189
        %v1209 = vmax.f32 %v1169, %v1191
        %v1210 = vmax.f32 %v1171, %v1193
        %v1211 = vmax.f32 %v1173, %v1195
        %v1212 = vmax.f32 %v1175, %v1197
        %v1213 = vmax.f32 %v1177, %v1199
        %1221 = vrot.lane.b32.xlu0 %v1165, 32
        %v1222 = vpop.permute.xlu0 %1221
        %1223 = vrot.lane.b32.xlu0 %v1166, 32
        %v1224 = vpop.permute.xlu0 %1223
        %1225 = vrot.lane.b32.xlu0 %v1167, 32
        %v1226 = vpop.permute.xlu0 %1225
        %1227 = vrot.lane.b32.xlu0 %v1168, 32
        %v1228 = vpop.permute.xlu0 %1227
        %1229 = vrot.lane.b32.xlu0 %v1169, 32
        %v1230 = vpop.permute.xlu0 %1229
        %1231 = vrot.lane.b32.xlu0 %v1170, 32
        %v1232 = vpop.permute.xlu0 %1231
        %1233 = vrot.lane.b32.xlu0 %v1171, 32
        %v1234 = vpop.permute.xlu0 %1233
        %1235 = vrot.lane.b32.xlu0 %v1172, 32
        %v1236 = vpop.permute.xlu0 %1235
        %1237 = vrot.lane.b32.xlu0 %v1173, 32
        %v1238 = vpop.permute.xlu0 %1237
        %1239 = vrot.lane.b32.xlu0 %v1174, 32
        %v1240 = vpop.permute.xlu0 %1239
        %1241 = vrot.lane.b32.xlu0 %v1175, 32
        %v1242 = vpop.permute.xlu0 %1241
        %1243 = vrot.lane.b32.xlu0 %v1176, 32
        %v1244 = vpop.permute.xlu0 %1243
        %1245 = vrot.lane.b32.xlu0 %v1177, 32
        %v1246 = vpop.permute.xlu0 %1245
        %1247 = vrot.lane.b32.xlu0 %v1178, 32
        %v1248 = vpop.permute.xlu0 %1247
        %v1249 = vsel %vm709, %v1222, %v1224
        %v1250 = vsel %vm709, %v1226, %v1228
        %v1251 = vsel %vm709, %v1230, %v1232
        %v1252 = vsel %vm709, %v1234, %v1236
        %v1253 = vsel %vm709, %v1238, %v1240
        %v1254 = vsel %vm709, %v1242, %v1244
        %v1255 = vsel %vm709, %v1246, %v1248
        %v1263 = vmax.f32 %v1207, %v1249
        %v1264 = vmax.f32 %v1208, %v1250
        %v1265 = vmax.f32 %v1209, %v1251
        %v1266 = vmax.f32 %v1210, %v1252
        %v1267 = vmax.f32 %v1211, %v1253
        %v1268 = vmax.f32 %v1212, %v1254
        %v1269 = vmax.f32 %v1213, %v1255
        %vm1270 = vcmask 392192
        %1271 = vst.msk [vmem:[#allocation2] sm:$0xff] %vm1270, %v1263
        %1272 = vst.msk [vmem:[#allocation2 + $0x8] sm:$0xff] %vm1270, %v1264
        %1273 = vst.msk [vmem:[#allocation2 + $0x10] sm:$0xff] %vm1270, %v1265
        %1274 = vst.msk [vmem:[#allocation2 + $0x18] sm:$0xff] %vm1270, %v1266
        %1275 = vst.msk [vmem:[#allocation2 + $0x20] sm:$0xff] %vm1270, %v1267
        %1276 = vst.msk [vmem:[#allocation2 + $0x28] sm:$0xff] %vm1270, %v1268
        %vm1277 = vcmask 390144
        %1278 = vst.msk [vmem:[#allocation2 + $0x30] sm:$0x3f] %vm1277, %v1269
        %v1279 = vld [vmem:[#allocation2] ss:$3 sm:$0xff]
        %s1280 = scalar_lea.vmem [#allocation2], 24
        %v1281 = vld [vmem:[%s1280] ss:$3 sm:$0xff]
        %s1282 = scalar_lea.vmem [#allocation2], 48
        %v1283 = vld [vmem:[%s1282] ss:$3 sm:$0x3]
        %s1284 = scalar_lea.vmem [#allocation2], 1
        %v1285 = vld [vmem:[%s1284] ss:$3 sm:$0xff]
        %s1286 = scalar_lea.vmem [#allocation2], 25
        %v1287 = vld [vmem:[%s1286] ss:$3 sm:$0xff]
        %s1288 = scalar_lea.vmem [#allocation2], 49
        %v1289 = vld [vmem:[%s1288] ss:$3 sm:$0x3]
        %v1290 = vmax.f32 %v1279, %v1285
        %v1291 = vmax.f32 %v1281, %v1287
        %v1292 = vmax.f32 %v1283, %v1289
        %s1293 = scalar_lea.vmem [#allocation2], 2
        %v1294 = vld [vmem:[%s1293] ss:$3 sm:$0xff]
        %s1295 = scalar_lea.vmem [#allocation2], 26
        %v1296 = vld [vmem:[%s1295] ss:$3 sm:$0xff]
        %s1297 = scalar_lea.vmem [#allocation2], 50
        %v1298 = vld [vmem:[%s1297] ss:$3 sm:$0x3]
        %v1299 = vmax.f32 %v1290, %v1294
        %v1300 = vmax.f32 %v1291, %v1296
        %v1301 = vmax.f32 %v1292, %v1298
        %1302 = vst.msk [vmem:[#allocation3] sm:$0xff] %vm1270, %v1299
        %1303 = vst.msk [vmem:[#allocation3 + $0x8] sm:$0xff] %vm1270, %v1300
        %vm1304 = vcmask 386048
        %1305 = vst.msk [vmem:[#allocation3 + $0x10] sm:$0x3] %vm1304, %v1301
        %v1306 = vld [vmem:[#allocation3] ss:$6 sm:$0x7]
        %s1307 = scalar_lea.vmem [#allocation3], 1
        %v1308 = vld [vmem:[%s1307] ss:$6 sm:$0x7]
        %s1309 = scalar_lea.vmem [#allocation3], 2
        %v1310 = vld [vmem:[%s1309] ss:$6 sm:$0x7]
        %s1311 = scalar_lea.vmem [#allocation3], 3
        %v1312 = vld [vmem:[%s1311] ss:$6 sm:$0x7]
        %s1313 = scalar_lea.vmem [#allocation3], 4
        %v1314 = vld [vmem:[%s1313] ss:$6 sm:$0x7]
        %s1315 = scalar_lea.vmem [#allocation3], 5
        %v1316 = vld [vmem:[%s1315] ss:$6 sm:$0x7]
        %1318 = vrot.lane.b32.xlu0 %v1308, 48
        %v1319 = vpop.permute.xlu0 %1318
        %1322 = vrot.lane.b32.xlu0 %v1310, 96
        %v1323 = vpop.permute.xlu0 %1322
        %1326 = vrot.lane.b32.xlu0 %v1312, 16
        %v1327 = vpop.permute.xlu0 %1326
        %1330 = vrot.lane.b32.xlu0 %v1314, 64
        %v1331 = vpop.permute.xlu0 %1330
        %1334 = vrot.lane.b32.xlu0 %v1316, 112
        %v1335 = vpop.permute.xlu0 %1334
        %v1337 = vsel %vm1270, %v1306, %v1319
        %vm1338 = vcmask 785408
        %v1339 = vsel %vm1338, %v1337, %v1323
        %vm1340 = vcmask 130048
        %v1341 = vsel %vm1340, %v1323, %v1327
        %vm1342 = vcmask 523264
        %v1343 = vsel %vm1342, %v1341, %v1331
        %vm1344 = vcmask 916480
        %v1345 = vsel %vm1344, %v1343, %v1335
        %v1346 = vld [vmem:[%s7] sm:$0xff]
        %v1347 = vld [vmem:[%s7 + $0x8] sm:$0xff]
        %v1348 = vld [vmem:[%s7 + $0x10] sm:$0xff]
        %v1349 = vld [vmem:[%s7 + $0x18] sm:$0xff]
        %v1350 = vld [vmem:[%s7 + $0x20] sm:$0xff]
        %v1351 = vld [vmem:[%s7 + $0x28] sm:$0xff]
        %v1352 = vld [vmem:[%s7 + $0x30] sm:$0xff]
        %v1353 = vld [vmem:[%s7 + $0x38] sm:$0xff]
        %v1354 = vld [vmem:[%s7 + $0x40] sm:$0xff]
        %v1355 = vld [vmem:[%s7 + $0x48] sm:$0xff]
        %v1356 = vld [vmem:[%s7 + $0x50] sm:$0xff]
        %v1357 = vld [vmem:[%s7 + $0x58] sm:$0xff]
        %v1358 = vld [vmem:[%s7 + $0x60] sm:$0xff]
        %v1359 = vld [vmem:[%s7 + $0x68] sm:$0xff]
        %v1360 = vld [vmem:[%s7 + $0x70] sm:$0xff]
        %v1361 = vld [vmem:[%s7 + $0x78] sm:$0xff]
        %v1362 = vld [vmem:[%s7 + $0x80] sm:$0xff]
        %v1363 = vld [vmem:[%s7 + $0x88] sm:$0xff]
        %v1364 = vld [vmem:[%s7 + $0x90] sm:$0xff]
        %v1365 = vld [vmem:[%s7 + $0x98] sm:$0xff]
        %v1366 = vld [vmem:[%s7 + $0xa0] sm:$0xff]
        %v1367 = vld [vmem:[%s7 + $0xa8] sm:$0xff]
        %v1368 = vld [vmem:[%s7 + $0xb0] sm:$0xff]
        %v1369 = vld [vmem:[%s7 + $0xb8] sm:$0xff]
        %v1370 = vld [vmem:[%s7 + $0xc0] sm:$0xff]
        %v1371 = vld [vmem:[%s7 + $0xc8] sm:$0xff]
        %v1372 = vld [vmem:[%s7 + $0xd0] sm:$0xff]
        %v1373 = vld [vmem:[%s7 + $0xd8] sm:$0xff]
        %v1374 = vld [vmem:[%s7 + $0xe0] sm:$0xff]
        %v1375 = vld [vmem:[%s7 + $0xe8] sm:$0xff]
        %v1376 = vld [vmem:[%s7 + $0xf0] sm:$0xff]
        %v1377 = vld [vmem:[%s7 + $0xf8] sm:$0xff]
        %v1378 = vld [vmem:[%s7 + $0x100] sm:$0xff]
        %v1379 = vld [vmem:[%s7 + $0x108] sm:$0xff]
        %v1380 = vld [vmem:[%s7 + $0x110] sm:$0xff]
        %v1381 = vld [vmem:[%s7 + $0x118] sm:$0xff]
        %v1382 = vld [vmem:[%s8] sm:$0x1]
        %v1384 = vperm.slane %v1382, 0
        %v1386 = vsel %vm709, %v1335, 0
        %1388 = vmatpush.msra.mxu0 %v1361
        %1389 = vmatpush.msra.mxu0 %v1360
        %1390 = vmatpush.msra.mxu0 %v1359
        %1391 = vmatpush.msra.mxu0 %v1358
        %1392 = vmatpush.msra.mxu0 %v1357
        %1393 = vmatpush.msra.mxu0 %v1356
        %1394 = vmatpush.msra.mxu0 %v1355
        %1395 = vmatpush.msra.mxu0 %v1354
        %1396 = vmatpush.msra.mxu0 %v1353
        %1397 = vmatpush.msra.mxu0 %v1352
        %1398 = vmatpush.msra.mxu0 %v1351
        %1399 = vmatpush.msra.mxu0 %v1350
        %1400 = vmatpush.msra.mxu0 %v1349
        %1401 = vmatpush.msra.mxu0 %v1348
        %1402 = vmatpush.msra.mxu0 %v1347
        %1403 = vmatpush.msra.mxu0 %v1346
        %1404 = vmatmul.f32.gmra.mxu0 %v1339
        %v1405 = vpop.f32.mrf.mxu0
        %v1406 = vadd.f32 %v1384, %v1405
        %1407 = vdwg.mxu0
        %1408 = vmatpush.msra.mxu0 %v1377
        %1409 = vmatpush.msra.mxu0 %v1376
        %1410 = vmatpush.msra.mxu0 %v1375
        %1411 = vmatpush.msra.mxu0 %v1374
        %1412 = vmatpush.msra.mxu0 %v1373
        %1413 = vmatpush.msra.mxu0 %v1372
        %1414 = vmatpush.msra.mxu0 %v1371
        %1415 = vmatpush.msra.mxu0 %v1370
        %1416 = vmatpush.msra.mxu0 %v1369
        %1417 = vmatpush.msra.mxu0 %v1368
        %1418 = vmatpush.msra.mxu0 %v1367
        %1419 = vmatpush.msra.mxu0 %v1366
        %1420 = vmatpush.msra.mxu0 %v1365
        %1421 = vmatpush.msra.mxu0 %v1364
        %1422 = vmatpush.msra.mxu0 %v1363
        %1423 = vmatpush.msra.mxu0 %v1362
        %1424 = vmatmul.f32.gmra.mxu0 %v1345
        %v1425 = vpop.f32.mrf.mxu0
        %v1426 = vadd.f32 %v1406, %v1425
        %1427 = vdwg.mxu0
        %1428 = vmatpush.msra.mxu0 0.0
        %1429 = vmatpush.msra.mxu0 0.0
        %1430 = vmatpush.msra.mxu0 0.0
        %1431 = vmatpush.msra.mxu0 0.0
        %1432 = vmatpush.msra.mxu0 0.0
        %1433 = vmatpush.msra.mxu0 0.0
        %1434 = vmatpush.msra.mxu0 0.0
        %1435 = vmatpush.msra.mxu0 0.0
        %1436 = vmatpush.msra.mxu0 0.0
        %1437 = vmatpush.msra.mxu0 0.0
        %1438 = vmatpush.msra.mxu0 0.0
        %1439 = vmatpush.msra.mxu0 0.0
        %1440 = vmatpush.msra.mxu0 %v1381
        %1441 = vmatpush.msra.mxu0 %v1380
        %1442 = vmatpush.msra.mxu0 %v1379
        %1443 = vmatpush.msra.mxu0 %v1378
        %1444 = vmatmul.f32.gmra.mxu0 %v1386
        %v1445 = vpop.f32.mrf.mxu0
        %v1446 = vadd.f32 %v1426, %v1445
        %1447 = vdwg.mxu0
        %v1448 = vtanh.pop %v1446
        %v1449 = vld [vmem:[%s686] sm:$0x7]
        %v1450 = vld [vmem:[%s11] sm:$0x1]
        %v1451 = vld [vmem:[%s11 + $0x1] sm:$0x1]
        %v1452 = vld [vmem:[%s9] sm:$0xff]
        %v1453 = vld [vmem:[%s9 + $0x8] sm:$0xff]
        %v1454 = vperm.slane %v1450, 0
        %v1456 = vsel %vm1340, %v1448, 0
        %1458 = vmatpush.msra.mxu0 0.0
        %1459 = vmatpush.msra.mxu0 0.0
        %1460 = vmatpush.msra.mxu0 0.0
        %1461 = vmatpush.msra.mxu0 0.0
        %1462 = vmatpush.msra.mxu0 0.0
        %1463 = vmatpush.msra.mxu0 0.0
        %1464 = vmatpush.msra.mxu0 0.0
        %1465 = vmatpush.msra.mxu0 0.0
        %1466 = vmatpush.msra.mxu0 0.0
        %1467 = vmatpush.msra.mxu0 0.0
        %1468 = vmatpush.msra.mxu0 0.0
        %1469 = vmatpush.msra.mxu0 0.0
        %1470 = vmatpush.msra.mxu0 0.0
        %1471 = vmatpush.msra.mxu0 0.0
        %1472 = vmatpush.msra.mxu0 %v1453
        %1473 = vmatpush.msra.mxu0 %v1452
        %1474 = vmatmul.f32.gmra.mxu0 %v1456
        %v1475 = vpop.f32.mrf.mxu0
        %v1476 = vadd.f32 %v1454, %v1475
        %1477 = vdwg.mxu0
        %v1478 = vld [vmem:[%s12] sm:$0xff]
        %v1479 = vld [vmem:[%s12 + $0x8] sm:$0xff]
        %v1480 = vld [vmem:[%s12 + $0x10] sm:$0xff]
        %v1481 = vld [vmem:[%s12 + $0x18] sm:$0xff]
        %v1482 = vld [vmem:[%s14] sm:$0x1]
        %v1484 = vperm.slane %v1482, 0
        %v1487 = vsel %vm709, %v1449, 0
        %1489 = vmatpush.msra.mxu0 0.0
        %1490 = vmatpush.msra.mxu0 0.0
        %1491 = vmatpush.msra.mxu0 0.0
        %1492 = vmatpush.msra.mxu0 0.0
        %1493 = vmatpush.msra.mxu0 0.0
        %1494 = vmatpush.msra.mxu0 0.0
        %1495 = vmatpush.msra.mxu0 0.0
        %1496 = vmatpush.msra.mxu0 0.0
        %1497 = vmatpush.msra.mxu0 0.0
        %1498 = vmatpush.msra.mxu0 0.0
        %1499 = vmatpush.msra.mxu0 0.0
        %1500 = vmatpush.msra.mxu0 0.0
        %1501 = vmatpush.msra.mxu0 %v1481
        %1502 = vmatpush.msra.mxu0 %v1480
        %1503 = vmatpush.msra.mxu0 %v1479
        %1504 = vmatpush.msra.mxu0 %v1478
        %1505 = vmatmul.f32.gmra.mxu0 %v1487
        %v1506 = vpop.f32.mrf.mxu0
        %v1507 = vadd.f32 %v1484, %v1506
        %1508 = vdwg.mxu0
        %v1509 = vld [vmem:[%s10] sm:$0xff]
        %v1510 = vld [vmem:[%s10 + $0x8] sm:$0xff]
        %v1511 = vld [vmem:[%s13] sm:$0xff]
        %v1512 = vld [vmem:[%s13 + $0x8] sm:$0xff]
        %v1513 = vld [vmem:[%s15] sm:$0x1]
        %v1515 = vsel %vm1340, 0.0, 0
        %1517 = vmatpush.msra.mxu0 0.0
        %1518 = vmatpush.msra.mxu0 0.0
        %1519 = vmatpush.msra.mxu0 0.0
        %1520 = vmatpush.msra.mxu0 0.0
        %1521 = vmatpush.msra.mxu0 0.0
        %1522 = vmatpush.msra.mxu0 0.0
        %1523 = vmatpush.msra.mxu0 0.0
        %1524 = vmatpush.msra.mxu0 0.0
        %1525 = vmatpush.msra.mxu0 0.0
        %1526 = vmatpush.msra.mxu0 0.0
        %1527 = vmatpush.msra.mxu0 0.0
        %1528 = vmatpush.msra.mxu0 0.0
        %1529 = vmatpush.msra.mxu0 0.0
        %1530 = vmatpush.msra.mxu0 0.0
        %1531 = vmatpush.msra.mxu0 %v1510
        %1532 = vmatpush.msra.mxu0 %v1509
        %1533 = vmatmul.f32.gmra.mxu0 %v1515
        %v1534 = vpop.f32.mrf.mxu0
        %v1535 = vadd.f32 %v1451, %v1534
        %1536 = vdwg.mxu0
        %v1537 = vadd.f32 %v1476, %v1535
        %v1538 = vxor.u32 %v1537, 2147483648
        %v1539 = vmul.f32 %v1538, 1.442695
        %v1540 = vpow.pop %v1539
        %v1541 = vadd.f32 %v1540, 1.0
        %v1542 = vrcp.pop %v1541
        %v1543 = vmul.f32 %v1541, %v1542
        %v1544 = vsub.f32 1.0, %v1543
        %v1545 = vmul.f32 %v1542, %v1544
        %v1546 = vadd.f32 %v1542, %v1545
        %vm1547 = vweird.f32 %v1541
        %vm1548 = vweird.f32 %v1542
        %vm1549 = vmor %vm1547, %vm1548
        %v1550 = vsel %vm1549, %v1542, %v1546
        %v1551 = vand.u32 2147483647, %v1541
        %vm1552 = vcmp.eq.f32.partialorder %v1551, 8.507059e+37
        %v1553 = vand.u32 %v1541, 2147483648
        %v1554 = vor.u32 1.1754944e-38, %v1553
        %v1555 = vsel %vm1552, %v1554, %v1550
        %v1556 = vmul.f32 1.0, %v1555
        %1558 = vrot.lane.b32.xlu0 %v1535, 96
        %v1559 = vpop.permute.xlu0 %1558
        %v1561 = vmul.f32 %v1556, %v1559
        %1563 = vrot.lane.b32.xlu0 %v1561, 32
        %v1564 = vpop.permute.xlu0 %1563
        %v1566 = vadd.f32 %v1476, %v1564
        %v1567 = vtanh.pop %v1566
        %v1568 = vsub.f32 1.0, %v1556
        %1570 = vrot.lane.b32.xlu0 %v1567, 112
        %v1571 = vpop.permute.xlu0 %1570
        %v1573 = vmul.f32 %v1568, %v1571
        %v1574 = vmul.f32 %v1556, 0.0
        %v1575 = vadd.f32 %v1573, %v1574
        %1577 = vrot.lane.b32.xlu0 %v1575, 112
        %v1578 = vpop.permute.xlu0 %1577
        %v1579 = vsel %vm1340, %v1578, 0
        %1581 = vmatpush.msra.mxu0 0.0
        %1582 = vmatpush.msra.mxu0 0.0
        %1583 = vmatpush.msra.mxu0 0.0
        %1584 = vmatpush.msra.mxu0 0.0
        %1585 = vmatpush.msra.mxu0 0.0
        %1586 = vmatpush.msra.mxu0 0.0
        %1587 = vmatpush.msra.mxu0 0.0
        %1588 = vmatpush.msra.mxu0 0.0
        %1589 = vmatpush.msra.mxu0 0.0
        %1590 = vmatpush.msra.mxu0 0.0
        %1591 = vmatpush.msra.mxu0 0.0
        %1592 = vmatpush.msra.mxu0 0.0
        %1593 = vmatpush.msra.mxu0 0.0
        %1594 = vmatpush.msra.mxu0 0.0
        %1595 = vmatpush.msra.mxu0 %v1512
        %1596 = vmatpush.msra.mxu0 %v1511
        %1597 = vmatmul.f32.gmra.mxu0 %v1579
        %v1598 = vpop.f32.mrf.mxu0
        %v1599 = vadd.f32 0.0, %v1598
        %1600 = vdwg.mxu0
        %v1601 = vadd.f32 %v1507, %v1599
        %v1602 = vtanh.pop %v1601
        %v1603 = vmul.f32 %v1602, %v1513
        %vm1604 = vcmask 122880
        %v1605 = vsel %vm1604, %v1603, 0.0
        %1606 = vadd.xlane.f32.xlu0 %v1605
        %v1607 = vpop.xlane.xlu0 %1606
        %1608 = vmatpush.msra.mxu0 0.0
        %1609 = vmatpush.msra.mxu0 0.0
        %1610 = vmatpush.msra.mxu0 0.0
        %1611 = vmatpush.msra.mxu0 0.0
        %1612 = vmatpush.msra.mxu0 0.0
        %1613 = vmatpush.msra.mxu0 0.0
        %1614 = vmatpush.msra.mxu0 0.0
        %1615 = vmatpush.msra.mxu0 0.0
        %1616 = vmatpush.msra.mxu0 0.0
        %1617 = vmatpush.msra.mxu0 0.0
        %1618 = vmatpush.msra.mxu0 0.0
        %1619 = vmatpush.msra.mxu0 0.0
        %1620 = vmatpush.msra.mxu0 0.0
        %1621 = vmatpush.msra.mxu0 0.0
        %1622 = vmatpush.msra.mxu0 %v1510
        %1623 = vmatpush.msra.mxu0 %v1509
        %1624 = vmatmul.f32.gmra.mxu0 %v1579
        %v1625 = vpop.f32.mrf.mxu0
        %v1626 = vadd.f32 %v1451, %v1625
        %1627 = vdwg.mxu0
        %v1629 = vrot.slane %v1626, 7
        %v1631 = vadd.f32 %v1476, %v1629
        %v1632 = vxor.u32 %v1631, 2147483648
        %v1633 = vmul.f32 %v1632, 1.442695
        %v1634 = vpow.pop %v1633
        %v1635 = vadd.f32 %v1634, 1.0
        %v1636 = vrcp.pop %v1635
        %v1637 = vmul.f32 %v1635, %v1636
        %v1638 = vsub.f32 1.0, %v1637
        %v1639 = vmul.f32 %v1636, %v1638
        %v1640 = vadd.f32 %v1636, %v1639
        %vm1641 = vweird.f32 %v1635
        %vm1642 = vweird.f32 %v1636
        %vm1643 = vmor %vm1641, %vm1642
        %v1644 = vsel %vm1643, %v1636, %v1640
        %v1645 = vand.u32 2147483647, %v1635
        %vm1646 = vcmp.eq.f32.partialorder %v1645, 8.507059e+37
        %v1647 = vand.u32 %v1635, 2147483648
        %v1648 = vor.u32 1.1754944e-38, %v1647
        %v1649 = vsel %vm1646, %v1648, %v1644
        %v1650 = vmul.f32 1.0, %v1649
        %1651 = vrot.lane.b32.xlu0 %v1629, 96
        %v1652 = vpop.permute.xlu0 %1651
        %v1654 = vmul.f32 %v1650, %v1652
        %1656 = vrot.lane.b32.xlu0 %v1654, 32
        %v1657 = vpop.permute.xlu0 %1656
        %v1659 = vadd.f32 %v1476, %v1657
        %v1660 = vtanh.pop %v1659
        %v1661 = vsub.f32 1.0, %v1650
        %1663 = vrot.lane.b32.xlu0 %v1660, 112
        %v1664 = vpop.permute.xlu0 %1663
        %v1666 = vmul.f32 %v1661, %v1664
        %v1667 = vrot.slane %v1575, 7
        %v1669 = vmul.f32 %v1650, %v1667
        %v1670 = vadd.f32 %v1666, %v1669
        %v1672 = vrot.slane %v1670, 1
        %1673 = vrot.lane.b32.xlu0 %v1672, 112
        %v1674 = vpop.permute.xlu0 %1673
        %v1675 = vsel %vm1340, %v1674, 0
        %1677 = vmatpush.msra.mxu0 0.0
        %1678 = vmatpush.msra.mxu0 0.0
        %1679 = vmatpush.msra.mxu0 0.0
        %1680 = vmatpush.msra.mxu0 0.0
        %1681 = vmatpush.msra.mxu0 0.0
        %1682 = vmatpush.msra.mxu0 0.0
        %1683 = vmatpush.msra.mxu0 0.0
        %1684 = vmatpush.msra.mxu0 0.0
        %1685 = vmatpush.msra.mxu0 0.0
        %1686 = vmatpush.msra.mxu0 0.0
        %1687 = vmatpush.msra.mxu0 0.0
        %1688 = vmatpush.msra.mxu0 0.0
        %1689 = vmatpush.msra.mxu0 0.0
        %1690 = vmatpush.msra.mxu0 0.0
        %1691 = vmatpush.msra.mxu0 %v1512
        %1692 = vmatpush.msra.mxu0 %v1511
        %1693 = vmatmul.f32.gmra.mxu0 %v1675
        %v1694 = vpop.f32.mrf.mxu0
        %v1695 = vadd.f32 0.0, %v1694
        %1696 = vdwg.mxu0
        %v1698 = vrot.slane %v1695, 7
        %v1700 = vadd.f32 %v1507, %v1698
        %v1701 = vtanh.pop %v1700
        %v1703 = vperm.slane %v1513, 0
        %v1705 = vmul.f32 %v1701, %v1703
        %vm1706 = vcmask 123905
        %v1707 = vsel %vm1706, %v1705, 0.0
        %1708 = vadd.xlane.f32.xlu0 %v1707
        %v1709 = vpop.xlane.xlu0 %1708
        %1710 = vmatpush.msra.mxu0 0.0
        %1711 = vmatpush.msra.mxu0 0.0
        %1712 = vmatpush.msra.mxu0 0.0
        %1713 = vmatpush.msra.mxu0 0.0
        %1714 = vmatpush.msra.mxu0 0.0
        %1715 = vmatpush.msra.mxu0 0.0
        %1716 = vmatpush.msra.mxu0 0.0
        %1717 = vmatpush.msra.mxu0 0.0
        %1718 = vmatpush.msra.mxu0 0.0
        %1719 = vmatpush.msra.mxu0 0.0
        %1720 = vmatpush.msra.mxu0 0.0
        %1721 = vmatpush.msra.mxu0 0.0
        %1722 = vmatpush.msra.mxu0 0.0
        %1723 = vmatpush.msra.mxu0 0.0
        %1724 = vmatpush.msra.mxu0 %v1510
        %1725 = vmatpush.msra.mxu0 %v1509
        %1726 = vmatmul.f32.gmra.mxu0 %v1675
        %v1727 = vpop.f32.mrf.mxu0
        %v1728 = vadd.f32 %v1451, %v1727
        %1729 = vdwg.mxu0
        %v1731 = vrot.slane %v1728, 6
        %v1733 = vadd.f32 %v1476, %v1731
        %v1734 = vxor.u32 %v1733, 2147483648
        %v1735 = vmul.f32 %v1734, 1.442695
        %v1736 = vpow.pop %v1735
        %v1737 = vadd.f32 %v1736, 1.0
        %v1738 = vrcp.pop %v1737
        %v1739 = vmul.f32 %v1737, %v1738
        %v1740 = vsub.f32 1.0, %v1739
        %v1741 = vmul.f32 %v1738, %v1740
        %v1742 = vadd.f32 %v1738, %v1741
        %vm1743 = vweird.f32 %v1737
        %vm1744 = vweird.f32 %v1738
        %vm1745 = vmor %vm1743, %vm1744
        %v1746 = vsel %vm1745, %v1738, %v1742
        %v1747 = vand.u32 2147483647, %v1737
        %vm1748 = vcmp.eq.f32.partialorder %v1747, 8.507059e+37
        %v1749 = vand.u32 %v1737, 2147483648
        %v1750 = vor.u32 1.1754944e-38, %v1749
        %v1751 = vsel %vm1748, %v1750, %v1746
        %v1752 = vmul.f32 1.0, %v1751
        %1753 = vrot.lane.b32.xlu0 %v1731, 96
        %v1754 = vpop.permute.xlu0 %1753
        %v1756 = vmul.f32 %v1752, %v1754
        %1758 = vrot.lane.b32.xlu0 %v1756, 32
        %v1759 = vpop.permute.xlu0 %1758
        %v1761 = vadd.f32 %v1476, %v1759
        %v1762 = vtanh.pop %v1761
        %v1763 = vsub.f32 1.0, %v1752
        %1765 = vrot.lane.b32.xlu0 %v1762, 112
        %v1766 = vpop.permute.xlu0 %1765
        %v1768 = vmul.f32 %v1763, %v1766
        %v1769 = vrot.slane %v1670, 7
        %v1771 = vmul.f32 %v1752, %v1769
        %v1772 = vadd.f32 %v1768, %v1771
        %v1774 = vrot.slane %v1772, 2
        %1775 = vrot.lane.b32.xlu0 %v1774, 112
        %v1776 = vpop.permute.xlu0 %1775
        %v1777 = vsel %vm1340, %v1776, 0
        %1779 = vmatpush.msra.mxu0 0.0
        %1780 = vmatpush.msra.mxu0 0.0
        %1781 = vmatpush.msra.mxu0 0.0
        %1782 = vmatpush.msra.mxu0 0.0
        %1783 = vmatpush.msra.mxu0 0.0
        %1784 = vmatpush.msra.mxu0 0.0
        %1785 = vmatpush.msra.mxu0 0.0
        %1786 = vmatpush.msra.mxu0 0.0
        %1787 = vmatpush.msra.mxu0 0.0
        %1788 = vmatpush.msra.mxu0 0.0
        %1789 = vmatpush.msra.mxu0 0.0
        %1790 = vmatpush.msra.mxu0 0.0
        %1791 = vmatpush.msra.mxu0 0.0
        %1792 = vmatpush.msra.mxu0 0.0
        %1793 = vmatpush.msra.mxu0 %v1512
        %1794 = vmatpush.msra.mxu0 %v1511
        %1795 = vmatmul.f32.gmra.mxu0 %v1777
        %v1796 = vpop.f32.mrf.mxu0
        %v1797 = vadd.f32 0.0, %v1796
        %1798 = vdwg.mxu0
        %v1800 = vrot.slane %v1797, 6
        %v1802 = vadd.f32 %v1507, %v1800
        %v1803 = vtanh.pop %v1802
        %v1804 = vmul.f32 %v1803, %v1703
        %vm1805 = vcmask 124930
        %v1806 = vsel %vm1805, %v1804, 0.0
        %1807 = vadd.xlane.f32.xlu0 %v1806
        %v1808 = vpop.xlane.xlu0 %1807
        %v1810 = vrot.slane %v1709, 1
        %v1813 = vrot.slane %v1808, 2
        %vm1815 = vcmask 7168
        %v1816 = vsel %vm1815, %v1607, %v1810
        %vm1817 = vcmask 15360
        %v1818 = vsel %vm1817, %v1816, %v1813
        %vm1819 = vcmask 16384
        %v1820 = vsel %vm1819, %v1818, -inf
        %1821 = vmax.xlane.f32.xlu0 %v1820
        %v1822 = vpop.xlane.xlu0 %1821
        %v1823 = vsub.f32 %v1818, %v1822
        %v1824 = vmul.f32 %v1823, 1.442695
        %v1825 = vpow.pop %v1824
        %v1826 = vsel %vm1819, %v1825, 0.0
        %1827 = vadd.xlane.f32.xlu0 %v1826
        %v1828 = vpop.xlane.xlu0 %1827
        %v1829 = vrcp.pop %v1828
        %v1830 = vmul.f32 %v1828, %v1829
        %v1831 = vsub.f32 1.0, %v1830
        %v1832 = vmul.f32 %v1829, %v1831
        %v1833 = vadd.f32 %v1829, %v1832
        %vm1834 = vweird.f32 %v1828
        %vm1835 = vweird.f32 %v1829
        %vm1836 = vmor %vm1834, %vm1835
        %v1837 = vsel %vm1836, %v1829, %v1833
        %v1838 = vand.u32 2147483647, %v1828
        %vm1839 = vcmp.eq.f32.partialorder %v1838, 8.507059e+37
        %v1840 = vand.u32 %v1828, 2147483648
        %v1841 = vor.u32 1.1754944e-38, %v1840
        %v1842 = vsel %vm1839, %v1841, %v1837
        %v1843 = vmul.f32 %v1825, %v1842
        %1845 = vset.pattern.permute.xlu0 0
        %1846 = vperm.xlu0 %1845, %v1843
        %v1847 = vpop.permute.xlu0 %1846
        %v1849 = vmul.f32 %v1847, %v1575
        %v1850 = vadd.f32 %v1849, 0.0
        %1851 = vset.pattern.permute.xlu0 1
        %1852 = vperm.xlu0 %1851, %v1843
        %v1853 = vpop.permute.xlu0 %1852
        %v1856 = vmul.f32 %v1853, %v1674
        %1858 = vrot.lane.b32.xlu0 %v1856, 16
        %v1859 = vpop.permute.xlu0 %1858
        %v1861 = vadd.f32 %v1850, %v1859
        %1862 = vset.pattern.permute.xlu0 2
        %1863 = vperm.xlu0 %1862, %v1843
        %v1864 = vpop.permute.xlu0 %1863
        %v1867 = vmul.f32 %v1864, %v1776
        %1869 = vrot.lane.b32.xlu0 %v1867, 16
        %v1870 = vpop.permute.xlu0 %1869
        %v1872 = vadd.f32 %v1861, %v1870
        %v1873 = vld [vmem:[%s16] sm:$0xff]
        %v1874 = vld [vmem:[%s16 + $0x8] sm:$0xff]
        %v1875 = vld [vmem:[%s17] sm:$0x1]
        %1877 = vrot.lane.b32.xlu0 %v1872, 112
        %v1878 = vpop.permute.xlu0 %1877
        %v1879 = vsel %vm1340, %v1878, 0
        %1881 = vmatpush.msra.mxu0 0.0
        %1882 = vmatpush.msra.mxu0 0.0
        %1883 = vmatpush.msra.mxu0 0.0
        %1884 = vmatpush.msra.mxu0 0.0
        %1885 = vmatpush.msra.mxu0 0.0
        %1886 = vmatpush.msra.mxu0 0.0
        %1887 = vmatpush.msra.mxu0 0.0
        %1888 = vmatpush.msra.mxu0 0.0
        %1889 = vmatpush.msra.mxu0 0.0
        %1890 = vmatpush.msra.mxu0 0.0
        %1891 = vmatpush.msra.mxu0 0.0
        %1892 = vmatpush.msra.mxu0 0.0
        %1893 = vmatpush.msra.mxu0 0.0
        %1894 = vmatpush.msra.mxu0 0.0
        %1895 = vmatpush.msra.mxu0 %v1874
        %1896 = vmatpush.msra.mxu0 %v1873
        %1897 = vmatmul.f32.gmra.mxu0 %v1879
        %v1898 = vpop.f32.mrf.mxu0
        %v1899 = vadd.f32 %v1875, %v1898
        %1900 = vdwg.mxu0
        %vm1901 = vcmask 8192
        %v1902 = vsel %vm1901, %v1899, -inf
        %1903 = vmax.xlane.f32.xlu0 %v1902
        %v1904 = vpop.xlane.xlu0 %1903
        %v1905 = vsub.f32 %v1899, %v1904
        %v1906 = vmul.f32 %v1905, 1.442695
        %v1907 = vpow.pop %v1906
        %v1908 = vsel %vm1901, %v1907, 0.0
        %1909 = vadd.xlane.f32.xlu0 %v1908
        %v1910 = vpop.xlane.xlu0 %1909
        %v1911 = vlog2.pop %v1910
        %v1912 = vmul.f32 %v1911, 0.6931472
        %v1913 = vadd.f32 %v1904, %v1912
        %v1914 = vsub.f32 %v1899, %v1913
        %1915 = vst.msk [vmem:[%s656] sm:$0x1] %vm1901, %v1914
        %v1916 = vmul.f32 %v1914, 1.442695
        %v1917 = vpow.pop %v1916
        %1918 = vst.msk [vmem:[%s662] sm:$0x1] %vm1901, %v1917
        %s1919 = sand.u32 %s448, 1
        %s1920 = scalar_lea.sflag [#allocation5], %s1919
        %s1921 = sand.u32 %s448, 1
        %s1922 = scalar_lea.vmem [#allocation4], %s1921
        %s1923 = sand.u32 %s474, 1
        %s1924 = scalar_lea.sflag [#allocation7], %s1923
        %s1925 = sand.u32 %s474, 1
        %s1926 = scalar_lea.vmem [#allocation6], %s1925
        // Predicated region
        $region93: #{_lambda_.3} parent=91 // pred_check
          %p1927 = pneg %p458
        $region94: #{_lambda_.3} parent=91 // pred_check_branch
          %1929 = sbr.rel (%p1927) target = $region96
        $region95: #{_lambda_.3} parent=91 // pred_region
          %1931 = vsyncadd %s1920, 0
          %s1932 = scalar_lea.hbm %s18, %s37
          %s1934 = sshll.u32 %s1922, 4
          %s1935 = int_to_ptr.vmem [resolvable:$true] %s1934
          %s1936 = sshll.u32 %s1932, 4
          %s1937 = int_to_ptr.hbm [resolvable:$true] %s1936
          %1939 = dma.vmem_to_hbm [thread:$0]  %s1935, 16, %s1937, %s1920
        $region96: #{_lambda_.3} parent=91 // pred_fallthru
          _
        // Predicated region
        $region97: #{_lambda_.3} parent=91 // pred_check
          %p1940 = pneg %p484
        $region98: #{_lambda_.3} parent=91 // pred_check_branch
          %1942 = sbr.rel (%p1940) target = $region100
        $region99: #{_lambda_.3} parent=91 // pred_region
          %1944 = vsyncadd %s1924, 0
          %s1945 = scalar_lea.hbm %s19, %s37
          %s1947 = sshll.u32 %s1926, 4
          %s1948 = int_to_ptr.vmem [resolvable:$true] %s1947
          %s1949 = sshll.u32 %s1945, 4
          %s1950 = int_to_ptr.hbm [resolvable:$true] %s1949
          %1952 = dma.vmem_to_hbm [thread:$0]  %s1948, 16, %s1950, %s1924
        $region100: #{_lambda_.3} parent=91 // pred_fallthru
          _
      $region92: #{_lambda_.3} parent=5 // pred_fallthru
        _
      %p1953 = scmp.le.s32.totalorder 2, %s32
      // Predicated region
      $region101: #{_lambda_.3} parent=5 // pred_check
        %p1954 = pneg %p1953
      $region102: #{_lambda_.3} parent=5 // pred_check_branch
        %1956 = sbr.rel (%p1954) target = $region104
      $region103: #{_lambda_.3} parent=5 // pred_region
        %s1957 = ssub.s32 %s32, 2
        // Predicated region
        $region105: #{_lambda_.3} parent=103 // pred_check
          %p1958 = pneg %p464
        $region106: #{_lambda_.3} parent=103 // pred_check_branch
          %1960 = sbr.rel (%p1958) target = $region108
        $region107: #{_lambda_.3} parent=103 // pred_region
          %s1961 = sand.u32 %s449, 1
          %s1962 = scalar_lea.sflag [#allocation5], %s1961
          %s1963 = sand.u32 %s449, 1
          %s1964 = scalar_lea.vmem [#allocation4], %s1963
          %1966 = dma.done %s1962, 16
        $region108: #{_lambda_.3} parent=103 // pred_fallthru
          _
        // Predicated region
        $region109: #{_lambda_.3} parent=103 // pred_check
          %p1967 = pneg %p490
        $region110: #{_lambda_.3} parent=103 // pred_check_branch
          %1969 = sbr.rel (%p1967) target = $region112
        $region111: #{_lambda_.3} parent=103 // pred_region
          %s1970 = sand.u32 %s475, 1
          %s1971 = scalar_lea.sflag [#allocation7], %s1970
          %s1972 = sand.u32 %s475, 1
          %s1973 = scalar_lea.vmem [#allocation6], %s1972
          %1975 = dma.done %s1971, 16
        $region112: #{_lambda_.3} parent=103 // pred_fallthru
          _
      $region104: #{_lambda_.3} parent=5 // pred_fallthru
        _
    $region6: #{_lambda_.3} parent=1 // loop_footer
      %s36 = sadd.s32 1, %s32
    $region7: #{_lambda_.3} parent=1 // loop_footer_branch
      %31 = sbr.rel target = $region3
    $region8: #{_lambda_.3} parent=1 // loop_exit
      _
    %1976 = vsyncpa [#allocation5], 1
    %s1977 = scalar_lea.sflag [#allocation5], 1
    %1978 = vsyncpa %s1977, 1
    %1979 = vsyncpa [#allocation7], 1
    %s1980 = scalar_lea.sflag [#allocation7], 1
    %1981 = vsyncpa %s1980, 1

// kernel: _lambda_.2
$region0: #{_lambda_.2}
  #allocation0 [shape = 'u32[]', space=smem, size = 0x4, offset = 0x4, fixed_abs, tag = 'smem constant byte address 0x4 - core index']
  #allocation1 [shape = 'u32[72,128]{1,0:T(1,128)}', space=vmem, size = 0x9000, scoped, tag = 'internal scratch']
  #allocation2 [shape = 'f32[160,96]{1,0:T(8,128)}', space=vmem, size = 0x14000, scoped, tag = 'scratch operand']
  #allocation3 [shape = 'f32[160,96]{1,0:T(8,128)}', space=vmem, size = 0x14000, scoped, tag = 'scratch operand']
  %s0 = inlined_call_operand.vmem [shape: f32[160,32], index: 0, kind: input, shape index: {}]
  %s1 = inlined_call_operand.vmem [shape: f32[160,32], index: 1, kind: input, shape index: {}]
  %s2 = inlined_call_operand.vmem [shape: f32[32,96], index: 2, kind: input, shape index: {}]
  %s3 = inlined_call_operand.vmem [shape: f32[32,96], index: 3, kind: input, shape index: {}]
  %s4 = inlined_call_operand.vmem [shape: f32[2,96], index: 4, kind: input, shape index: {}]
  %s5 = inlined_call_operand.vmem [shape: f32[32,96], index: 5, kind: input, shape index: {}]
  %s6 = inlined_call_operand.vmem [shape: f32[32,96], index: 6, kind: input, shape index: {}]
  %s7 = inlined_call_operand.vmem [shape: f32[2,96], index: 7, kind: input, shape index: {}]
  %s8 = inlined_call_operand.vmem [shape: f32[20,8,32], index: 8, kind: output, shape index: {0}]
  %s9 = inlined_call_operand.vmem [shape: f32[8,32], index: 9, kind: output, shape index: {1}]
  %s10 = inlined_call_operand.vmem [shape: f32[20,8,32], index: 10, kind: output, shape index: {2}]
  %11 = xla_tuple %s8, %s9, %s10
  %s12 = sld [smem:[#allocation0]]
  $region58: #{_lambda_.2} parent=0
    _
  %s14 = ssub.s32 1, %s12
  %s15 = scalar_select 0, %s14, %s12
  // Predicated region
  $region2: #{_lambda_.2} parent=0 // pred_check
    _
  $region3: #{_lambda_.2} parent=0 // pred_check_branch
    %17 = sbr.rel (0) target = $region5
  $region4: #{_lambda_.2} parent=0 // pred_region
    _
  $region5: #{_lambda_.2} parent=0 // pred_fallthru
    _
  // Predicated region
  $region6: #{_lambda_.2} parent=0 // pred_check
    _
  $region7: #{_lambda_.2} parent=0 // pred_check_branch
    %19 = sbr.rel (0) target = $region9
  $region8: #{_lambda_.2} parent=0 // pred_region
    _
  $region9: #{_lambda_.2} parent=0 // pred_fallthru
    _
  // Predicated region
  $region10: #{_lambda_.2} parent=0 // pred_check
    _
  $region11: #{_lambda_.2} parent=0 // pred_check_branch
    %21 = sbr.rel (0) target = $region13
  $region12: #{_lambda_.2} parent=0 // pred_region
    _
  $region13: #{_lambda_.2} parent=0 // pred_fallthru
    _
  // Predicated region
  $region14: #{_lambda_.2} parent=0 // pred_check
    _
  $region15: #{_lambda_.2} parent=0 // pred_check_branch
    %23 = sbr.rel (0) target = $region17
  $region16: #{_lambda_.2} parent=0 // pred_region
    _
  $region17: #{_lambda_.2} parent=0 // pred_fallthru
    _
  // Predicated region
  $region18: #{_lambda_.2} parent=0 // pred_check
    _
  $region19: #{_lambda_.2} parent=0 // pred_check_branch
    %25 = sbr.rel (0) target = $region21
  $region20: #{_lambda_.2} parent=0 // pred_region
    _
  $region21: #{_lambda_.2} parent=0 // pred_fallthru
    _
  // Predicated region
  $region22: #{_lambda_.2} parent=0 // pred_check
    _
  $region23: #{_lambda_.2} parent=0 // pred_check_branch
    %27 = sbr.rel (0) target = $region25
  $region24: #{_lambda_.2} parent=0 // pred_region
    _
  $region25: #{_lambda_.2} parent=0 // pred_fallthru
    _
  // Predicated region
  $region26: #{_lambda_.2} parent=0 // pred_check
    _
  $region27: #{_lambda_.2} parent=0 // pred_check_branch
    %29 = sbr.rel (0) target = $region29
  $region28: #{_lambda_.2} parent=0 // pred_region
    _
  $region29: #{_lambda_.2} parent=0 // pred_fallthru
    _
  // Predicated region
  $region30: #{_lambda_.2} parent=0 // pred_check
    _
  $region31: #{_lambda_.2} parent=0 // pred_check_branch
    %31 = sbr.rel (0) target = $region33
  $region32: #{_lambda_.2} parent=0 // pred_region
    _
  $region33: #{_lambda_.2} parent=0 // pred_fallthru
    _
  %v32 = vld [vmem:[%s4] sm:$0x1]
  %v33 = vld [vmem:[%s4 + $0x1] sm:$0x1]
  %v34 = vlaneseq
  %v35 = vand.u32 %v34, 127
  %vm36 = vcmp.lt.s32.totalorder %v35, 64
  %v37 = vsel %vm36, %v33, 0.0
  %v38 = vadd.f32 %v32, %v37
  %v39 = vld [vmem:[%s7] sm:$0x1]
  %v40 = vld [vmem:[%s7 + $0x1] sm:$0x1]
  %v41 = vsel %vm36, %v40, 0.0
  %v42 = vadd.f32 %v39, %v41
  %v43 = vld [vmem:[%s0] sm:$0xff]
  %v44 = vld [vmem:[%s0 + $0x8] sm:$0xff]
  %v45 = vld [vmem:[%s0 + $0x10] sm:$0xff]
  %v46 = vld [vmem:[%s0 + $0x18] sm:$0xff]
  %v47 = vld [vmem:[%s0 + $0x20] sm:$0xff]
  %v48 = vld [vmem:[%s0 + $0x28] sm:$0xff]
  %v49 = vld [vmem:[%s0 + $0x30] sm:$0xff]
  %v50 = vld [vmem:[%s0 + $0x38] sm:$0xff]
  %v51 = vld [vmem:[%s0 + $0x40] sm:$0xff]
  %v52 = vld [vmem:[%s0 + $0x48] sm:$0xff]
  %v53 = vld [vmem:[%s0 + $0x50] sm:$0xff]
  %v54 = vld [vmem:[%s0 + $0x58] sm:$0xff]
  %v55 = vld [vmem:[%s0 + $0x60] sm:$0xff]
  %v56 = vld [vmem:[%s0 + $0x68] sm:$0xff]
  %v57 = vld [vmem:[%s0 + $0x70] sm:$0xff]
  %v58 = vld [vmem:[%s0 + $0x78] sm:$0xff]
  %v59 = vld [vmem:[%s0 + $0x80] sm:$0xff]
  %v60 = vld [vmem:[%s0 + $0x88] sm:$0xff]
  %v61 = vld [vmem:[%s0 + $0x90] sm:$0xff]
  %v62 = vld [vmem:[%s0 + $0x98] sm:$0xff]
  %v63 = vld [vmem:[%s2] sm:$0xff]
  %v64 = vld [vmem:[%s2 + $0x8] sm:$0xff]
  %v65 = vld [vmem:[%s2 + $0x10] sm:$0xff]
  %v66 = vld [vmem:[%s2 + $0x18] sm:$0xff]
  %v67 = vperm.slane %v38, 0
  %vm68 = vcmask 261120
  %v70 = vsel %vm68, %v43, 0
  %v73 = vsel %vm68, %v44, 0
  %v76 = vsel %vm68, %v45, 0
  %v79 = vsel %vm68, %v46, 0
  %v82 = vsel %vm68, %v47, 0
  %v85 = vsel %vm68, %v48, 0
  %v88 = vsel %vm68, %v49, 0
  %v91 = vsel %vm68, %v50, 0
  %v94 = vsel %vm68, %v51, 0
  %v97 = vsel %vm68, %v52, 0
  %v100 = vsel %vm68, %v53, 0
  %v103 = vsel %vm68, %v54, 0
  %v106 = vsel %vm68, %v55, 0
  %v109 = vsel %vm68, %v56, 0
  %v112 = vsel %vm68, %v57, 0
  %v115 = vsel %vm68, %v58, 0
  %v118 = vsel %vm68, %v59, 0
  %v121 = vsel %vm68, %v60, 0
  %v124 = vsel %vm68, %v61, 0
  %v127 = vsel %vm68, %v62, 0
  %129 = vmatpush.msra.mxu0 0.0
  %130 = vmatpush.msra.mxu0 0.0
  %131 = vmatpush.msra.mxu0 0.0
  %132 = vmatpush.msra.mxu0 0.0
  %133 = vmatpush.msra.mxu0 0.0
  %134 = vmatpush.msra.mxu0 0.0
  %135 = vmatpush.msra.mxu0 0.0
  %136 = vmatpush.msra.mxu0 0.0
  %137 = vmatpush.msra.mxu0 0.0
  %138 = vmatpush.msra.mxu0 0.0
  %139 = vmatpush.msra.mxu0 0.0
  %140 = vmatpush.msra.mxu0 0.0
  %141 = vmatpush.msra.mxu0 %v66
  %142 = vmatpush.msra.mxu0 %v65
  %143 = vmatpush.msra.mxu0 %v64
  %144 = vmatpush.msra.mxu0 %v63
  %145 = vmatmul.f32.gmra.mxu0 %v70
  %v146 = vpop.f32.mrf.mxu0
  %v147 = vadd.f32 %v67, %v146
  %148 = vmatmul.f32.gmra.mxu0 %v73
  %v149 = vpop.f32.mrf.mxu0
  %v150 = vadd.f32 %v67, %v149
  %151 = vmatmul.f32.gmra.mxu0 %v76
  %v152 = vpop.f32.mrf.mxu0
  %v153 = vadd.f32 %v67, %v152
  %154 = vmatmul.f32.gmra.mxu0 %v79
  %v155 = vpop.f32.mrf.mxu0
  %v156 = vadd.f32 %v67, %v155
  %157 = vmatmul.f32.gmra.mxu0 %v82
  %v158 = vpop.f32.mrf.mxu0
  %v159 = vadd.f32 %v67, %v158
  %160 = vmatmul.f32.gmra.mxu0 %v85
  %v161 = vpop.f32.mrf.mxu0
  %v162 = vadd.f32 %v67, %v161
  %163 = vmatmul.f32.gmra.mxu0 %v88
  %v164 = vpop.f32.mrf.mxu0
  %v165 = vadd.f32 %v67, %v164
  %166 = vmatmul.f32.gmra.mxu0 %v91
  %v167 = vpop.f32.mrf.mxu0
  %v168 = vadd.f32 %v67, %v167
  %169 = vmatmul.f32.gmra.mxu0 %v94
  %v170 = vpop.f32.mrf.mxu0
  %v171 = vadd.f32 %v67, %v170
  %172 = vmatmul.f32.gmra.mxu0 %v97
  %v173 = vpop.f32.mrf.mxu0
  %v174 = vadd.f32 %v67, %v173
  %175 = vmatmul.f32.gmra.mxu0 %v100
  %v176 = vpop.f32.mrf.mxu0
  %v177 = vadd.f32 %v67, %v176
  %178 = vmatmul.f32.gmra.mxu0 %v103
  %v179 = vpop.f32.mrf.mxu0
  %v180 = vadd.f32 %v67, %v179
  %181 = vmatmul.f32.gmra.mxu0 %v106
  %v182 = vpop.f32.mrf.mxu0
  %v183 = vadd.f32 %v67, %v182
  %184 = vmatmul.f32.gmra.mxu0 %v109
  %v185 = vpop.f32.mrf.mxu0
  %v186 = vadd.f32 %v67, %v185
  %187 = vmatmul.f32.gmra.mxu0 %v112
  %v188 = vpop.f32.mrf.mxu0
  %v189 = vadd.f32 %v67, %v188
  %190 = vmatmul.f32.gmra.mxu0 %v115
  %v191 = vpop.f32.mrf.mxu0
  %v192 = vadd.f32 %v67, %v191
  %193 = vmatmul.f32.gmra.mxu0 %v118
  %v194 = vpop.f32.mrf.mxu0
  %v195 = vadd.f32 %v67, %v194
  %196 = vmatmul.f32.gmra.mxu0 %v121
  %v197 = vpop.f32.mrf.mxu0
  %v198 = vadd.f32 %v67, %v197
  %199 = vmatmul.f32.gmra.mxu0 %v124
  %v200 = vpop.f32.mrf.mxu0
  %v201 = vadd.f32 %v67, %v200
  %202 = vmatmul.f32.gmra.mxu0 %v127
  %v203 = vpop.f32.mrf.mxu0
  %v204 = vadd.f32 %v67, %v203
  %205 = vdwg.mxu0
  %vm206 = vcmask 785408
  %207 = vst.msk [vmem:[#allocation2] sm:$0xff] %vm206, %v147
  %208 = vst.msk [vmem:[#allocation2 + $0x8] sm:$0xff] %vm206, %v150
  %209 = vst.msk [vmem:[#allocation2 + $0x10] sm:$0xff] %vm206, %v153
  %210 = vst.msk [vmem:[#allocation2 + $0x18] sm:$0xff] %vm206, %v156
  %211 = vst.msk [vmem:[#allocation2 + $0x20] sm:$0xff] %vm206, %v159
  %212 = vst.msk [vmem:[#allocation2 + $0x28] sm:$0xff] %vm206, %v162
  %213 = vst.msk [vmem:[#allocation2 + $0x30] sm:$0xff] %vm206, %v165
  %214 = vst.msk [vmem:[#allocation2 + $0x38] sm:$0xff] %vm206, %v168
  %215 = vst.msk [vmem:[#allocation2 + $0x40] sm:$0xff] %vm206, %v171
  %216 = vst.msk [vmem:[#allocation2 + $0x48] sm:$0xff] %vm206, %v174
  %217 = vst.msk [vmem:[#allocation2 + $0x50] sm:$0xff] %vm206, %v177
  %218 = vst.msk [vmem:[#allocation2 + $0x58] sm:$0xff] %vm206, %v180
  %219 = vst.msk [vmem:[#allocation2 + $0x60] sm:$0xff] %vm206, %v183
  %220 = vst.msk [vmem:[#allocation2 + $0x68] sm:$0xff] %vm206, %v186
  %221 = vst.msk [vmem:[#allocation2 + $0x70] sm:$0xff] %vm206, %v189
  %222 = vst.msk [vmem:[#allocation2 + $0x78] sm:$0xff] %vm206, %v192
  %223 = vst.msk [vmem:[#allocation2 + $0x80] sm:$0xff] %vm206, %v195
  %224 = vst.msk [vmem:[#allocation2 + $0x88] sm:$0xff] %vm206, %v198
  %225 = vst.msk [vmem:[#allocation2 + $0x90] sm:$0xff] %vm206, %v201
  %226 = vst.msk [vmem:[#allocation2 + $0x98] sm:$0xff] %vm206, %v204
  %v227 = vld [vmem:[%s1] sm:$0xff]
  %v228 = vld [vmem:[%s1 + $0x8] sm:$0xff]
  %v229 = vld [vmem:[%s1 + $0x10] sm:$0xff]
  %v230 = vld [vmem:[%s1 + $0x18] sm:$0xff]
  %v231 = vld [vmem:[%s1 + $0x20] sm:$0xff]
  %v232 = vld [vmem:[%s1 + $0x28] sm:$0xff]
  %v233 = vld [vmem:[%s1 + $0x30] sm:$0xff]
  %v234 = vld [vmem:[%s1 + $0x38] sm:$0xff]
  %v235 = vld [vmem:[%s1 + $0x40] sm:$0xff]
  %v236 = vld [vmem:[%s1 + $0x48] sm:$0xff]
  %v237 = vld [vmem:[%s1 + $0x50] sm:$0xff]
  %v238 = vld [vmem:[%s1 + $0x58] sm:$0xff]
  %v239 = vld [vmem:[%s1 + $0x60] sm:$0xff]
  %v240 = vld [vmem:[%s1 + $0x68] sm:$0xff]
  %v241 = vld [vmem:[%s1 + $0x70] sm:$0xff]
  %v242 = vld [vmem:[%s1 + $0x78] sm:$0xff]
  %v243 = vld [vmem:[%s1 + $0x80] sm:$0xff]
  %v244 = vld [vmem:[%s1 + $0x88] sm:$0xff]
  %v245 = vld [vmem:[%s1 + $0x90] sm:$0xff]
  %v246 = vld [vmem:[%s1 + $0x98] sm:$0xff]
  %v247 = vld [vmem:[%s5] sm:$0xff]
  %v248 = vld [vmem:[%s5 + $0x8] sm:$0xff]
  %v249 = vld [vmem:[%s5 + $0x10] sm:$0xff]
  %v250 = vld [vmem:[%s5 + $0x18] sm:$0xff]
  %v251 = vperm.slane %v42, 0
  %v253 = vsel %vm68, %v227, 0
  %v256 = vsel %vm68, %v228, 0
  %v259 = vsel %vm68, %v229, 0
  %v262 = vsel %vm68, %v230, 0
  %v265 = vsel %vm68, %v231, 0
  %v268 = vsel %vm68, %v232, 0
  %v271 = vsel %vm68, %v233, 0
  %v274 = vsel %vm68, %v234, 0
  %v277 = vsel %vm68, %v235, 0
  %v280 = vsel %vm68, %v236, 0
  %v283 = vsel %vm68, %v237, 0
  %v286 = vsel %vm68, %v238, 0
  %v289 = vsel %vm68, %v239, 0
  %v292 = vsel %vm68, %v240, 0
  %v295 = vsel %vm68, %v241, 0
  %v298 = vsel %vm68, %v242, 0
  %v301 = vsel %vm68, %v243, 0
  %v304 = vsel %vm68, %v244, 0
  %v307 = vsel %vm68, %v245, 0
  %v310 = vsel %vm68, %v246, 0
  %312 = vmatpush.msra.mxu0 0.0
  %313 = vmatpush.msra.mxu0 0.0
  %314 = vmatpush.msra.mxu0 0.0
  %315 = vmatpush.msra.mxu0 0.0
  %316 = vmatpush.msra.mxu0 0.0
  %317 = vmatpush.msra.mxu0 0.0
  %318 = vmatpush.msra.mxu0 0.0
  %319 = vmatpush.msra.mxu0 0.0
  %320 = vmatpush.msra.mxu0 0.0
  %321 = vmatpush.msra.mxu0 0.0
  %322 = vmatpush.msra.mxu0 0.0
  %323 = vmatpush.msra.mxu0 0.0
  %324 = vmatpush.msra.mxu0 %v250
  %325 = vmatpush.msra.mxu0 %v249
  %326 = vmatpush.msra.mxu0 %v248
  %327 = vmatpush.msra.mxu0 %v247
  %328 = vmatmul.f32.gmra.mxu0 %v253
  %v329 = vpop.f32.mrf.mxu0
  %v330 = vadd.f32 %v251, %v329
  %331 = vmatmul.f32.gmra.mxu0 %v256
  %v332 = vpop.f32.mrf.mxu0
  %v333 = vadd.f32 %v251, %v332
  %334 = vmatmul.f32.gmra.mxu0 %v259
  %v335 = vpop.f32.mrf.mxu0
  %v336 = vadd.f32 %v251, %v335
  %337 = vmatmul.f32.gmra.mxu0 %v262
  %v338 = vpop.f32.mrf.mxu0
  %v339 = vadd.f32 %v251, %v338
  %340 = vmatmul.f32.gmra.mxu0 %v265
  %v341 = vpop.f32.mrf.mxu0
  %v342 = vadd.f32 %v251, %v341
  %343 = vmatmul.f32.gmra.mxu0 %v268
  %v344 = vpop.f32.mrf.mxu0
  %v345 = vadd.f32 %v251, %v344
  %346 = vmatmul.f32.gmra.mxu0 %v271
  %v347 = vpop.f32.mrf.mxu0
  %v348 = vadd.f32 %v251, %v347
  %349 = vmatmul.f32.gmra.mxu0 %v274
  %v350 = vpop.f32.mrf.mxu0
  %v351 = vadd.f32 %v251, %v350
  %352 = vmatmul.f32.gmra.mxu0 %v277
  %v353 = vpop.f32.mrf.mxu0
  %v354 = vadd.f32 %v251, %v353
  %355 = vmatmul.f32.gmra.mxu0 %v280
  %v356 = vpop.f32.mrf.mxu0
  %v357 = vadd.f32 %v251, %v356
  %358 = vmatmul.f32.gmra.mxu0 %v283
  %v359 = vpop.f32.mrf.mxu0
  %v360 = vadd.f32 %v251, %v359
  %361 = vmatmul.f32.gmra.mxu0 %v286
  %v362 = vpop.f32.mrf.mxu0
  %v363 = vadd.f32 %v251, %v362
  %364 = vmatmul.f32.gmra.mxu0 %v289
  %v365 = vpop.f32.mrf.mxu0
  %v366 = vadd.f32 %v251, %v365
  %367 = vmatmul.f32.gmra.mxu0 %v292
  %v368 = vpop.f32.mrf.mxu0
  %v369 = vadd.f32 %v251, %v368
  %370 = vmatmul.f32.gmra.mxu0 %v295
  %v371 = vpop.f32.mrf.mxu0
  %v372 = vadd.f32 %v251, %v371
  %373 = vmatmul.f32.gmra.mxu0 %v298
  %v374 = vpop.f32.mrf.mxu0
  %v375 = vadd.f32 %v251, %v374
  %376 = vmatmul.f32.gmra.mxu0 %v301
  %v377 = vpop.f32.mrf.mxu0
  %v378 = vadd.f32 %v251, %v377
  %379 = vmatmul.f32.gmra.mxu0 %v304
  %v380 = vpop.f32.mrf.mxu0
  %v381 = vadd.f32 %v251, %v380
  %382 = vmatmul.f32.gmra.mxu0 %v307
  %v383 = vpop.f32.mrf.mxu0
  %v384 = vadd.f32 %v251, %v383
  %385 = vmatmul.f32.gmra.mxu0 %v310
  %v386 = vpop.f32.mrf.mxu0
  %v387 = vadd.f32 %v251, %v386
  %388 = vdwg.mxu0
  %389 = vst.msk [vmem:[#allocation3] sm:$0xff] %vm206, %v330
  %390 = vst.msk [vmem:[#allocation3 + $0x8] sm:$0xff] %vm206, %v333
  %391 = vst.msk [vmem:[#allocation3 + $0x10] sm:$0xff] %vm206, %v336
  %392 = vst.msk [vmem:[#allocation3 + $0x18] sm:$0xff] %vm206, %v339
  %393 = vst.msk [vmem:[#allocation3 + $0x20] sm:$0xff] %vm206, %v342
  %394 = vst.msk [vmem:[#allocation3 + $0x28] sm:$0xff] %vm206, %v345
  %395 = vst.msk [vmem:[#allocation3 + $0x30] sm:$0xff] %vm206, %v348
  %396 = vst.msk [vmem:[#allocation3 + $0x38] sm:$0xff] %vm206, %v351
  %397 = vst.msk [vmem:[#allocation3 + $0x40] sm:$0xff] %vm206, %v354
  %398 = vst.msk [vmem:[#allocation3 + $0x48] sm:$0xff] %vm206, %v357
  %399 = vst.msk [vmem:[#allocation3 + $0x50] sm:$0xff] %vm206, %v360
  %400 = vst.msk [vmem:[#allocation3 + $0x58] sm:$0xff] %vm206, %v363
  %401 = vst.msk [vmem:[#allocation3 + $0x60] sm:$0xff] %vm206, %v366
  %402 = vst.msk [vmem:[#allocation3 + $0x68] sm:$0xff] %vm206, %v369
  %403 = vst.msk [vmem:[#allocation3 + $0x70] sm:$0xff] %vm206, %v372
  %404 = vst.msk [vmem:[#allocation3 + $0x78] sm:$0xff] %vm206, %v375
  %405 = vst.msk [vmem:[#allocation3 + $0x80] sm:$0xff] %vm206, %v378
  %406 = vst.msk [vmem:[#allocation3 + $0x88] sm:$0xff] %vm206, %v381
  %407 = vst.msk [vmem:[#allocation3 + $0x90] sm:$0xff] %vm206, %v384
  %408 = vst.msk [vmem:[#allocation3 + $0x98] sm:$0xff] %vm206, %v387
  %v409 = vld [vmem:[%s3] sm:$0xff]
  %v410 = vld [vmem:[%s3 + $0x8] sm:$0xff]
  %v411 = vld [vmem:[%s3 + $0x10] sm:$0xff]
  %v412 = vld [vmem:[%s3 + $0x18] sm:$0xff]
  %v413 = vld [vmem:[%s6] sm:$0xff]
  %v414 = vld [vmem:[%s6 + $0x8] sm:$0xff]
  %v415 = vld [vmem:[%s6 + $0x10] sm:$0xff]
  %v416 = vld [vmem:[%s6 + $0x18] sm:$0xff]
  %v417 = vld [vmem:[#allocation2] sm:$0xff]
  %v418 = vld [vmem:[#allocation3] sm:$0xff]
  %v420 = vsel %vm68, 0.0, 0
  %422 = vmatpush.msra.mxu0 0.0
  %423 = vmatpush.msra.mxu0 0.0
  %424 = vmatpush.msra.mxu0 0.0
  %425 = vmatpush.msra.mxu0 0.0
  %426 = vmatpush.msra.mxu0 0.0
  %427 = vmatpush.msra.mxu0 0.0
  %428 = vmatpush.msra.mxu0 0.0
  %429 = vmatpush.msra.mxu0 0.0
  %430 = vmatpush.msra.mxu0 0.0
  %431 = vmatpush.msra.mxu0 0.0
  %432 = vmatpush.msra.mxu0 0.0
  %433 = vmatpush.msra.mxu0 0.0
  %434 = vmatpush.msra.mxu0 %v412
  %435 = vmatpush.msra.mxu0 %v411
  %436 = vmatpush.msra.mxu0 %v410
  %437 = vmatpush.msra.mxu0 %v409
  %438 = vmatmul.f32.gmra.mxu0 %v420
  %v439 = vpop.f32.mrf.mxu0
  %v440 = vadd.f32 0.0, %v439
  %441 = vdwg.mxu0
  %v442 = vadd.f32 %v417, %v440
  %v443 = vxor.u32 %v442, 2147483648
  %v444 = vmul.f32 %v443, 1.442695
  %v445 = vpow.pop %v444
  %v446 = vadd.f32 %v445, 1.0
  %v447 = vrcp.pop %v446
  %v448 = vmul.f32 %v446, %v447
  %v449 = vsub.f32 1.0, %v448
  %v450 = vmul.f32 %v447, %v449
  %v451 = vadd.f32 %v447, %v450
  %vm452 = vweird.f32 %v446
  %vm453 = vweird.f32 %v447
  %vm454 = vmor %vm452, %vm453
  %v455 = vsel %vm454, %v447, %v451
  %v456 = vand.u32 2147483647, %v446
  %vm457 = vcmp.eq.f32.partialorder %v456, 8.507059e+37
  %v458 = vand.u32 %v446, 2147483648
  %v459 = vor.u32 1.1754944e-38, %v458
  %v460 = vsel %vm457, %v459, %v455
  %v461 = vmul.f32 1.0, %v460
  %v462 = vperm.slane %v33, 0
  %v463 = vadd.f32 %v440, %v462
  %465 = vrot.lane.b32.xlu0 %v463, 64
  %v466 = vpop.permute.xlu0 %465
  %v468 = vmul.f32 %v461, %v466
  %470 = vrot.lane.b32.xlu0 %v468, 64
  %v471 = vpop.permute.xlu0 %470
  %v473 = vadd.f32 %v417, %v471
  %v474 = vtanh.pop %v473
  %v475 = vsub.f32 1.0, %v461
  %477 = vrot.lane.b32.xlu0 %v474, 96
  %v478 = vpop.permute.xlu0 %477
  %v480 = vmul.f32 %v475, %v478
  %v481 = vmul.f32 %v461, 0.0
  %v482 = vadd.f32 %v480, %v481
  %483 = vmatpush.msra.mxu0 0.0
  %484 = vmatpush.msra.mxu0 0.0
  %485 = vmatpush.msra.mxu0 0.0
  %486 = vmatpush.msra.mxu0 0.0
  %487 = vmatpush.msra.mxu0 0.0
  %488 = vmatpush.msra.mxu0 0.0
  %489 = vmatpush.msra.mxu0 0.0
  %490 = vmatpush.msra.mxu0 0.0
  %491 = vmatpush.msra.mxu0 0.0
  %492 = vmatpush.msra.mxu0 0.0
  %493 = vmatpush.msra.mxu0 0.0
  %494 = vmatpush.msra.mxu0 0.0
  %495 = vmatpush.msra.mxu0 %v416
  %496 = vmatpush.msra.mxu0 %v415
  %497 = vmatpush.msra.mxu0 %v414
  %498 = vmatpush.msra.mxu0 %v413
  %499 = vmatmul.f32.gmra.mxu0 %v420
  %v500 = vpop.f32.mrf.mxu0
  %v501 = vadd.f32 0.0, %v500
  %502 = vdwg.mxu0
  %v503 = vadd.f32 %v418, %v501
  %v504 = vxor.u32 %v503, 2147483648
  %v505 = vmul.f32 %v504, 1.442695
  %v506 = vpow.pop %v505
  %v507 = vadd.f32 %v506, 1.0
  %v508 = vrcp.pop %v507
  %v509 = vmul.f32 %v507, %v508
  %v510 = vsub.f32 1.0, %v509
  %v511 = vmul.f32 %v508, %v510
  %v512 = vadd.f32 %v508, %v511
  %vm513 = vweird.f32 %v507
  %vm514 = vweird.f32 %v508
  %vm515 = vmor %vm513, %vm514
  %v516 = vsel %vm515, %v508, %v512
  %v517 = vand.u32 2147483647, %v507
  %vm518 = vcmp.eq.f32.partialorder %v517, 8.507059e+37
  %v519 = vand.u32 %v507, 2147483648
  %v520 = vor.u32 1.1754944e-38, %v519
  %v521 = vsel %vm518, %v520, %v516
  %v522 = vmul.f32 1.0, %v521
  %v523 = vperm.slane %v40, 0
  %v524 = vadd.f32 %v501, %v523
  %526 = vrot.lane.b32.xlu0 %v524, 64
  %v527 = vpop.permute.xlu0 %526
  %v529 = vmul.f32 %v522, %v527
  %531 = vrot.lane.b32.xlu0 %v529, 64
  %v532 = vpop.permute.xlu0 %531
  %v534 = vadd.f32 %v418, %v532
  %v535 = vtanh.pop %v534
  %v536 = vsub.f32 1.0, %v522
  %538 = vrot.lane.b32.xlu0 %v535, 96
  %v539 = vpop.permute.xlu0 %538
  %v541 = vmul.f32 %v536, %v539
  %v542 = vmul.f32 %v522, 0.0
  %v543 = vadd.f32 %v541, %v542
  %545 = vrot.lane.b32.xlu0 %v482, 96
  %v546 = vpop.permute.xlu0 %545
  %548 = vst.msk [vmem:[%s8] sm:$0xff] %vm68, %v546
  %550 = vrot.lane.b32.xlu0 %v543, 96
  %v551 = vpop.permute.xlu0 %550
  %553 = vst.msk [vmem:[%s10] sm:$0xff] %vm68, %v551
  %v554 = vld [vmem:[#allocation2 + $0x8] sm:$0xff]
  %v555 = vld [vmem:[#allocation3 + $0x8] sm:$0xff]
  %v556 = vsel %vm68, %v546, 0
  %558 = vmatpush.msra.mxu0 0.0
  %559 = vmatpush.msra.mxu0 0.0
  %560 = vmatpush.msra.mxu0 0.0
  %561 = vmatpush.msra.mxu0 0.0
  %562 = vmatpush.msra.mxu0 0.0
  %563 = vmatpush.msra.mxu0 0.0
  %564 = vmatpush.msra.mxu0 0.0
  %565 = vmatpush.msra.mxu0 0.0
  %566 = vmatpush.msra.mxu0 0.0
  %567 = vmatpush.msra.mxu0 0.0
  %568 = vmatpush.msra.mxu0 0.0
  %569 = vmatpush.msra.mxu0 0.0
  %570 = vmatpush.msra.mxu0 %v412
  %571 = vmatpush.msra.mxu0 %v411
  %572 = vmatpush.msra.mxu0 %v410
  %573 = vmatpush.msra.mxu0 %v409
  %574 = vmatmul.f32.gmra.mxu0 %v556
  %v575 = vpop.f32.mrf.mxu0
  %v576 = vadd.f32 0.0, %v575
  %577 = vdwg.mxu0
  %v578 = vadd.f32 %v554, %v576
  %v579 = vxor.u32 %v578, 2147483648
  %v580 = vmul.f32 %v579, 1.442695
  %v581 = vpow.pop %v580
  %v582 = vadd.f32 %v581, 1.0
  %v583 = vrcp.pop %v582
  %v584 = vmul.f32 %v582, %v583
  %v585 = vsub.f32 1.0, %v584
  %v586 = vmul.f32 %v583, %v585
  %v587 = vadd.f32 %v583, %v586
  %vm588 = vweird.f32 %v582
  %vm589 = vweird.f32 %v583
  %vm590 = vmor %vm588, %vm589
  %v591 = vsel %vm590, %v583, %v587
  %v592 = vand.u32 2147483647, %v582
  %vm593 = vcmp.eq.f32.partialorder %v592, 8.507059e+37
  %v594 = vand.u32 %v582, 2147483648
  %v595 = vor.u32 1.1754944e-38, %v594
  %v596 = vsel %vm593, %v595, %v591
  %v597 = vmul.f32 1.0, %v596
  %v598 = vadd.f32 %v576, %v462
  %600 = vrot.lane.b32.xlu0 %v598, 64
  %v601 = vpop.permute.xlu0 %600
  %v603 = vmul.f32 %v597, %v601
  %605 = vrot.lane.b32.xlu0 %v603, 64
  %v606 = vpop.permute.xlu0 %605
  %v608 = vadd.f32 %v554, %v606
  %v609 = vtanh.pop %v608
  %v610 = vsub.f32 1.0, %v597
  %612 = vrot.lane.b32.xlu0 %v609, 96
  %v613 = vpop.permute.xlu0 %612
  %v615 = vmul.f32 %v610, %v613
  %v616 = vmul.f32 %v597, %v482
  %v617 = vadd.f32 %v615, %v616
  %v618 = vsel %vm68, %v551, 0
  %620 = vmatpush.msra.mxu0 0.0
  %621 = vmatpush.msra.mxu0 0.0
  %622 = vmatpush.msra.mxu0 0.0
  %623 = vmatpush.msra.mxu0 0.0
  %624 = vmatpush.msra.mxu0 0.0
  %625 = vmatpush.msra.mxu0 0.0
  %626 = vmatpush.msra.mxu0 0.0
  %627 = vmatpush.msra.mxu0 0.0
  %628 = vmatpush.msra.mxu0 0.0
  %629 = vmatpush.msra.mxu0 0.0
  %630 = vmatpush.msra.mxu0 0.0
  %631 = vmatpush.msra.mxu0 0.0
  %632 = vmatpush.msra.mxu0 %v416
  %633 = vmatpush.msra.mxu0 %v415
  %634 = vmatpush.msra.mxu0 %v414
  %635 = vmatpush.msra.mxu0 %v413
  %636 = vmatmul.f32.gmra.mxu0 %v618
  %v637 = vpop.f32.mrf.mxu0
  %v638 = vadd.f32 0.0, %v637
  %639 = vdwg.mxu0
  %v640 = vadd.f32 %v555, %v638
  %v641 = vxor.u32 %v640, 2147483648
  %v642 = vmul.f32 %v641, 1.442695
  %v643 = vpow.pop %v642
  %v644 = vadd.f32 %v643, 1.0
  %v645 = vrcp.pop %v644
  %v646 = vmul.f32 %v644, %v645
  %v647 = vsub.f32 1.0, %v646
  %v648 = vmul.f32 %v645, %v647
  %v649 = vadd.f32 %v645, %v648
  %vm650 = vweird.f32 %v644
  %vm651 = vweird.f32 %v645
  %vm652 = vmor %vm650, %vm651
  %v653 = vsel %vm652, %v645, %v649
  %v654 = vand.u32 2147483647, %v644
  %vm655 = vcmp.eq.f32.partialorder %v654, 8.507059e+37
  %v656 = vand.u32 %v644, 2147483648
  %v657 = vor.u32 1.1754944e-38, %v656
  %v658 = vsel %vm655, %v657, %v653
  %v659 = vmul.f32 1.0, %v658
  %v660 = vadd.f32 %v638, %v523
  %662 = vrot.lane.b32.xlu0 %v660, 64
  %v663 = vpop.permute.xlu0 %662
  %v665 = vmul.f32 %v659, %v663
  %667 = vrot.lane.b32.xlu0 %v665, 64
  %v668 = vpop.permute.xlu0 %667
  %v670 = vadd.f32 %v555, %v668
  %v671 = vtanh.pop %v670
  %v672 = vsub.f32 1.0, %v659
  %674 = vrot.lane.b32.xlu0 %v671, 96
  %v675 = vpop.permute.xlu0 %674
  %v677 = vmul.f32 %v672, %v675
  %v678 = vmul.f32 %v659, %v543
  %v679 = vadd.f32 %v677, %v678
  %681 = vrot.lane.b32.xlu0 %v617, 96
  %v682 = vpop.permute.xlu0 %681
  %s684 = scalar_lea.vmem %s8, 8
  %685 = vst.msk [vmem:[%s684] sm:$0xff] %vm68, %v682
  %687 = vrot.lane.b32.xlu0 %v679, 96
  %v688 = vpop.permute.xlu0 %687
  %s690 = scalar_lea.vmem %s10, 8
  %691 = vst.msk [vmem:[%s690] sm:$0xff] %vm68, %v688
  %v692 = vld [vmem:[#allocation2 + $0x10] sm:$0xff]
  %v693 = vld [vmem:[#allocation3 + $0x10] sm:$0xff]
  %v694 = vsel %vm68, %v682, 0
  %696 = vmatpush.msra.mxu0 0.0
  %697 = vmatpush.msra.mxu0 0.0
  %698 = vmatpush.msra.mxu0 0.0
  %699 = vmatpush.msra.mxu0 0.0
  %700 = vmatpush.msra.mxu0 0.0
  %701 = vmatpush.msra.mxu0 0.0
  %702 = vmatpush.msra.mxu0 0.0
  %703 = vmatpush.msra.mxu0 0.0
  %704 = vmatpush.msra.mxu0 0.0
  %705 = vmatpush.msra.mxu0 0.0
  %706 = vmatpush.msra.mxu0 0.0
  %707 = vmatpush.msra.mxu0 0.0
  %708 = vmatpush.msra.mxu0 %v412
  %709 = vmatpush.msra.mxu0 %v411
  %710 = vmatpush.msra.mxu0 %v410
  %711 = vmatpush.msra.mxu0 %v409
  %712 = vmatmul.f32.gmra.mxu0 %v694
  %v713 = vpop.f32.mrf.mxu0
  %v714 = vadd.f32 0.0, %v713
  %715 = vdwg.mxu0
  %v716 = vadd.f32 %v692, %v714
  %v717 = vxor.u32 %v716, 2147483648
  %v718 = vmul.f32 %v717, 1.442695
  %v719 = vpow.pop %v718
  %v720 = vadd.f32 %v719, 1.0
  %v721 = vrcp.pop %v720
  %v722 = vmul.f32 %v720, %v721
  %v723 = vsub.f32 1.0, %v722
  %v724 = vmul.f32 %v721, %v723
  %v725 = vadd.f32 %v721, %v724
  %vm726 = vweird.f32 %v720
  %vm727 = vweird.f32 %v721
  %vm728 = vmor %vm726, %vm727
  %v729 = vsel %vm728, %v721, %v725
  %v730 = vand.u32 2147483647, %v720
  %vm731 = vcmp.eq.f32.partialorder %v730, 8.507059e+37
  %v732 = vand.u32 %v720, 2147483648
  %v733 = vor.u32 1.1754944e-38, %v732
  %v734 = vsel %vm731, %v733, %v729
  %v735 = vmul.f32 1.0, %v734
  %v736 = vadd.f32 %v714, %v462
  %738 = vrot.lane.b32.xlu0 %v736, 64
  %v739 = vpop.permute.xlu0 %738
  %v741 = vmul.f32 %v735, %v739
  %743 = vrot.lane.b32.xlu0 %v741, 64
  %v744 = vpop.permute.xlu0 %743
  %v746 = vadd.f32 %v692, %v744
  %v747 = vtanh.pop %v746
  %v748 = vsub.f32 1.0, %v735
  %750 = vrot.lane.b32.xlu0 %v747, 96
  %v751 = vpop.permute.xlu0 %750
  %v753 = vmul.f32 %v748, %v751
  %v754 = vmul.f32 %v735, %v617
  %v755 = vadd.f32 %v753, %v754
  %v756 = vsel %vm68, %v688, 0
  %758 = vmatpush.msra.mxu0 0.0
  %759 = vmatpush.msra.mxu0 0.0
  %760 = vmatpush.msra.mxu0 0.0
  %761 = vmatpush.msra.mxu0 0.0
  %762 = vmatpush.msra.mxu0 0.0
  %763 = vmatpush.msra.mxu0 0.0
  %764 = vmatpush.msra.mxu0 0.0
  %765 = vmatpush.msra.mxu0 0.0
  %766 = vmatpush.msra.mxu0 0.0
  %767 = vmatpush.msra.mxu0 0.0
  %768 = vmatpush.msra.mxu0 0.0
  %769 = vmatpush.msra.mxu0 0.0
  %770 = vmatpush.msra.mxu0 %v416
  %771 = vmatpush.msra.mxu0 %v415
  %772 = vmatpush.msra.mxu0 %v414
  %773 = vmatpush.msra.mxu0 %v413
  %774 = vmatmul.f32.gmra.mxu0 %v756
  %v775 = vpop.f32.mrf.mxu0
  %v776 = vadd.f32 0.0, %v775
  %777 = vdwg.mxu0
  %v778 = vadd.f32 %v693, %v776
  %v779 = vxor.u32 %v778, 2147483648
  %v780 = vmul.f32 %v779, 1.442695
  %v781 = vpow.pop %v780
  %v782 = vadd.f32 %v781, 1.0
  %v783 = vrcp.pop %v782
  %v784 = vmul.f32 %v782, %v783
  %v785 = vsub.f32 1.0, %v784
  %v786 = vmul.f32 %v783, %v785
  %v787 = vadd.f32 %v783, %v786
  %vm788 = vweird.f32 %v782
  %vm789 = vweird.f32 %v783
  %vm790 = vmor %vm788, %vm789
  %v791 = vsel %vm790, %v783, %v787
  %v792 = vand.u32 2147483647, %v782
  %vm793 = vcmp.eq.f32.partialorder %v792, 8.507059e+37
  %v794 = vand.u32 %v782, 2147483648
  %v795 = vor.u32 1.1754944e-38, %v794
  %v796 = vsel %vm793, %v795, %v791
  %v797 = vmul.f32 1.0, %v796
  %v798 = vadd.f32 %v776, %v523
  %800 = vrot.lane.b32.xlu0 %v798, 64
  %v801 = vpop.permute.xlu0 %800
  %v803 = vmul.f32 %v797, %v801
  %805 = vrot.lane.b32.xlu0 %v803, 64
  %v806 = vpop.permute.xlu0 %805
  %v808 = vadd.f32 %v693, %v806
  %v809 = vtanh.pop %v808
  %v810 = vsub.f32 1.0, %v797
  %812 = vrot.lane.b32.xlu0 %v809, 96
  %v813 = vpop.permute.xlu0 %812
  %v815 = vmul.f32 %v810, %v813
  %v816 = vmul.f32 %v797, %v679
  %v817 = vadd.f32 %v815, %v816
  %819 = vrot.lane.b32.xlu0 %v755, 96
  %v820 = vpop.permute.xlu0 %819
  %s822 = scalar_lea.vmem %s8, 16
  %823 = vst.msk [vmem:[%s822] sm:$0xff] %vm68, %v820
  %825 = vrot.lane.b32.xlu0 %v817, 96
  %v826 = vpop.permute.xlu0 %825
  %s828 = scalar_lea.vmem %s10, 16
  %829 = vst.msk [vmem:[%s828] sm:$0xff] %vm68, %v826
  %v830 = vld [vmem:[#allocation2 + $0x18] sm:$0xff]
  %v831 = vld [vmem:[#allocation3 + $0x18] sm:$0xff]
  %v832 = vsel %vm68, %v820, 0
  %834 = vmatpush.msra.mxu0 0.0
  %835 = vmatpush.msra.mxu0 0.0
  %836 = vmatpush.msra.mxu0 0.0
  %837 = vmatpush.msra.mxu0 0.0
  %838 = vmatpush.msra.mxu0 0.0
  %839 = vmatpush.msra.mxu0 0.0
  %840 = vmatpush.msra.mxu0 0.0
  %841 = vmatpush.msra.mxu0 0.0
  %842 = vmatpush.msra.mxu0 0.0
  %843 = vmatpush.msra.mxu0 0.0
  %844 = vmatpush.msra.mxu0 0.0
  %845 = vmatpush.msra.mxu0 0.0
  %846 = vmatpush.msra.mxu0 %v412
  %847 = vmatpush.msra.mxu0 %v411
  %848 = vmatpush.msra.mxu0 %v410
  %849 = vmatpush.msra.mxu0 %v409
  %850 = vmatmul.f32.gmra.mxu0 %v832
  %v851 = vpop.f32.mrf.mxu0
  %v852 = vadd.f32 0.0, %v851
  %853 = vdwg.mxu0
  %v854 = vadd.f32 %v830, %v852
  %v855 = vxor.u32 %v854, 2147483648
  %v856 = vmul.f32 %v855, 1.442695
  %v857 = vpow.pop %v856
  %v858 = vadd.f32 %v857, 1.0
  %v859 = vrcp.pop %v858
  %v860 = vmul.f32 %v858, %v859
  %v861 = vsub.f32 1.0, %v860
  %v862 = vmul.f32 %v859, %v861
  %v863 = vadd.f32 %v859, %v862
  %vm864 = vweird.f32 %v858
  %vm865 = vweird.f32 %v859
  %vm866 = vmor %vm864, %vm865
  %v867 = vsel %vm866, %v859, %v863
  %v868 = vand.u32 2147483647, %v858
  %vm869 = vcmp.eq.f32.partialorder %v868, 8.507059e+37
  %v870 = vand.u32 %v858, 2147483648
  %v871 = vor.u32 1.1754944e-38, %v870
  %v872 = vsel %vm869, %v871, %v867
  %v873 = vmul.f32 1.0, %v872
  %v874 = vadd.f32 %v852, %v462
  %876 = vrot.lane.b32.xlu0 %v874, 64
  %v877 = vpop.permute.xlu0 %876
  %v879 = vmul.f32 %v873, %v877
  %881 = vrot.lane.b32.xlu0 %v879, 64
  %v882 = vpop.permute.xlu0 %881
  %v884 = vadd.f32 %v830, %v882
  %v885 = vtanh.pop %v884
  %v886 = vsub.f32 1.0, %v873
  %888 = vrot.lane.b32.xlu0 %v885, 96
  %v889 = vpop.permute.xlu0 %888
  %v891 = vmul.f32 %v886, %v889
  %v892 = vmul.f32 %v873, %v755
  %v893 = vadd.f32 %v891, %v892
  %v894 = vsel %vm68, %v826, 0
  %896 = vmatpush.msra.mxu0 0.0
  %897 = vmatpush.msra.mxu0 0.0
  %898 = vmatpush.msra.mxu0 0.0
  %899 = vmatpush.msra.mxu0 0.0
  %900 = vmatpush.msra.mxu0 0.0
  %901 = vmatpush.msra.mxu0 0.0
  %902 = vmatpush.msra.mxu0 0.0
  %903 = vmatpush.msra.mxu0 0.0
  %904 = vmatpush.msra.mxu0 0.0
  %905 = vmatpush.msra.mxu0 0.0
  %906 = vmatpush.msra.mxu0 0.0
  %907 = vmatpush.msra.mxu0 0.0
  %908 = vmatpush.msra.mxu0 %v416
  %909 = vmatpush.msra.mxu0 %v415
  %910 = vmatpush.msra.mxu0 %v414
  %911 = vmatpush.msra.mxu0 %v413
  %912 = vmatmul.f32.gmra.mxu0 %v894
  %v913 = vpop.f32.mrf.mxu0
  %v914 = vadd.f32 0.0, %v913
  %915 = vdwg.mxu0
  %v916 = vadd.f32 %v831, %v914
  %v917 = vxor.u32 %v916, 2147483648
  %v918 = vmul.f32 %v917, 1.442695
  %v919 = vpow.pop %v918
  %v920 = vadd.f32 %v919, 1.0
  %v921 = vrcp.pop %v920
  %v922 = vmul.f32 %v920, %v921
  %v923 = vsub.f32 1.0, %v922
  %v924 = vmul.f32 %v921, %v923
  %v925 = vadd.f32 %v921, %v924
  %vm926 = vweird.f32 %v920
  %vm927 = vweird.f32 %v921
  %vm928 = vmor %vm926, %vm927
  %v929 = vsel %vm928, %v921, %v925
  %v930 = vand.u32 2147483647, %v920
  %vm931 = vcmp.eq.f32.partialorder %v930, 8.507059e+37
  %v932 = vand.u32 %v920, 2147483648
  %v933 = vor.u32 1.1754944e-38, %v932
  %v934 = vsel %vm931, %v933, %v929
  %v935 = vmul.f32 1.0, %v934
  %v936 = vadd.f32 %v914, %v523
  %938 = vrot.lane.b32.xlu0 %v936, 64
  %v939 = vpop.permute.xlu0 %938
  %v941 = vmul.f32 %v935, %v939
  %943 = vrot.lane.b32.xlu0 %v941, 64
  %v944 = vpop.permute.xlu0 %943
  %v946 = vadd.f32 %v831, %v944
  %v947 = vtanh.pop %v946
  %v948 = vsub.f32 1.0, %v935
  %950 = vrot.lane.b32.xlu0 %v947, 96
  %v951 = vpop.permute.xlu0 %950
  %v953 = vmul.f32 %v948, %v951
  %v954 = vmul.f32 %v935, %v817
  %v955 = vadd.f32 %v953, %v954
  %957 = vrot.lane.b32.xlu0 %v893, 96
  %v958 = vpop.permute.xlu0 %957
  %s960 = scalar_lea.vmem %s8, 24
  %961 = vst.msk [vmem:[%s960] sm:$0xff] %vm68, %v958
  %963 = vrot.lane.b32.xlu0 %v955, 96
  %v964 = vpop.permute.xlu0 %963
  %s966 = scalar_lea.vmem %s10, 24
  %967 = vst.msk [vmem:[%s966] sm:$0xff] %vm68, %v964
  %v968 = vld [vmem:[#allocation2 + $0x20] sm:$0xff]
  %v969 = vld [vmem:[#allocation3 + $0x20] sm:$0xff]
  %v970 = vsel %vm68, %v958, 0
  %972 = vmatpush.msra.mxu0 0.0
  %973 = vmatpush.msra.mxu0 0.0
  %974 = vmatpush.msra.mxu0 0.0
  %975 = vmatpush.msra.mxu0 0.0
  %976 = vmatpush.msra.mxu0 0.0
  %977 = vmatpush.msra.mxu0 0.0
  %978 = vmatpush.msra.mxu0 0.0
  %979 = vmatpush.msra.mxu0 0.0
  %980 = vmatpush.msra.mxu0 0.0
  %981 = vmatpush.msra.mxu0 0.0
  %982 = vmatpush.msra.mxu0 0.0
  %983 = vmatpush.msra.mxu0 0.0
  %984 = vmatpush.msra.mxu0 %v412
  %985 = vmatpush.msra.mxu0 %v411
  %986 = vmatpush.msra.mxu0 %v410
  %987 = vmatpush.msra.mxu0 %v409
  %988 = vmatmul.f32.gmra.mxu0 %v970
  %v989 = vpop.f32.mrf.mxu0
  %v990 = vadd.f32 0.0, %v989
  %991 = vdwg.mxu0
  %v992 = vadd.f32 %v968, %v990
  %v993 = vxor.u32 %v992, 2147483648
  %v994 = vmul.f32 %v993, 1.442695
  %v995 = vpow.pop %v994
  %v996 = vadd.f32 %v995, 1.0
  %v997 = vrcp.pop %v996
  %v998 = vmul.f32 %v996, %v997
  %v999 = vsub.f32 1.0, %v998
  %v1000 = vmul.f32 %v997, %v999
  %v1001 = vadd.f32 %v997, %v1000
  %vm1002 = vweird.f32 %v996
  %vm1003 = vweird.f32 %v997
  %vm1004 = vmor %vm1002, %vm1003
  %v1005 = vsel %vm1004, %v997, %v1001
  %v1006 = vand.u32 2147483647, %v996
  %vm1007 = vcmp.eq.f32.partialorder %v1006, 8.507059e+37
  %v1008 = vand.u32 %v996, 2147483648
  %v1009 = vor.u32 1.1754944e-38, %v1008
  %v1010 = vsel %vm1007, %v1009, %v1005
  %v1011 = vmul.f32 1.0, %v1010
  %v1012 = vadd.f32 %v990, %v462
  %1014 = vrot.lane.b32.xlu0 %v1012, 64
  %v1015 = vpop.permute.xlu0 %1014
  %v1017 = vmul.f32 %v1011, %v1015
  %1019 = vrot.lane.b32.xlu0 %v1017, 64
  %v1020 = vpop.permute.xlu0 %1019
  %v1022 = vadd.f32 %v968, %v1020
  %v1023 = vtanh.pop %v1022
  %v1024 = vsub.f32 1.0, %v1011
  %1026 = vrot.lane.b32.xlu0 %v1023, 96
  %v1027 = vpop.permute.xlu0 %1026
  %v1029 = vmul.f32 %v1024, %v1027
  %v1030 = vmul.f32 %v1011, %v893
  %v1031 = vadd.f32 %v1029, %v1030
  %v1032 = vsel %vm68, %v964, 0
  %1034 = vmatpush.msra.mxu0 0.0
  %1035 = vmatpush.msra.mxu0 0.0
  %1036 = vmatpush.msra.mxu0 0.0
  %1037 = vmatpush.msra.mxu0 0.0
  %1038 = vmatpush.msra.mxu0 0.0
  %1039 = vmatpush.msra.mxu0 0.0
  %1040 = vmatpush.msra.mxu0 0.0
  %1041 = vmatpush.msra.mxu0 0.0
  %1042 = vmatpush.msra.mxu0 0.0
  %1043 = vmatpush.msra.mxu0 0.0
  %1044 = vmatpush.msra.mxu0 0.0
  %1045 = vmatpush.msra.mxu0 0.0
  %1046 = vmatpush.msra.mxu0 %v416
  %1047 = vmatpush.msra.mxu0 %v415
  %1048 = vmatpush.msra.mxu0 %v414
  %1049 = vmatpush.msra.mxu0 %v413
  %1050 = vmatmul.f32.gmra.mxu0 %v1032
  %v1051 = vpop.f32.mrf.mxu0
  %v1052 = vadd.f32 0.0, %v1051
  %1053 = vdwg.mxu0
  %v1054 = vadd.f32 %v969, %v1052
  %v1055 = vxor.u32 %v1054, 2147483648
  %v1056 = vmul.f32 %v1055, 1.442695
  %v1057 = vpow.pop %v1056
  %v1058 = vadd.f32 %v1057, 1.0
  %v1059 = vrcp.pop %v1058
  %v1060 = vmul.f32 %v1058, %v1059
  %v1061 = vsub.f32 1.0, %v1060
  %v1062 = vmul.f32 %v1059, %v1061
  %v1063 = vadd.f32 %v1059, %v1062
  %vm1064 = vweird.f32 %v1058
  %vm1065 = vweird.f32 %v1059
  %vm1066 = vmor %vm1064, %vm1065
  %v1067 = vsel %vm1066, %v1059, %v1063
  %v1068 = vand.u32 2147483647, %v1058
  %vm1069 = vcmp.eq.f32.partialorder %v1068, 8.507059e+37
  %v1070 = vand.u32 %v1058, 2147483648
  %v1071 = vor.u32 1.1754944e-38, %v1070
  %v1072 = vsel %vm1069, %v1071, %v1067
  %v1073 = vmul.f32 1.0, %v1072
  %v1074 = vadd.f32 %v1052, %v523
  %1076 = vrot.lane.b32.xlu0 %v1074, 64
  %v1077 = vpop.permute.xlu0 %1076
  %v1079 = vmul.f32 %v1073, %v1077
  %1081 = vrot.lane.b32.xlu0 %v1079, 64
  %v1082 = vpop.permute.xlu0 %1081
  %v1084 = vadd.f32 %v969, %v1082
  %v1085 = vtanh.pop %v1084
  %v1086 = vsub.f32 1.0, %v1073
  %1088 = vrot.lane.b32.xlu0 %v1085, 96
  %v1089 = vpop.permute.xlu0 %1088
  %v1091 = vmul.f32 %v1086, %v1089
  %v1092 = vmul.f32 %v1073, %v955
  %v1093 = vadd.f32 %v1091, %v1092
  %1095 = vrot.lane.b32.xlu0 %v1031, 96
  %v1096 = vpop.permute.xlu0 %1095
  %s1098 = scalar_lea.vmem %s8, 32
  %1099 = vst.msk [vmem:[%s1098] sm:$0xff] %vm68, %v1096
  %1101 = vrot.lane.b32.xlu0 %v1093, 96
  %v1102 = vpop.permute.xlu0 %1101
  %s1104 = scalar_lea.vmem %s10, 32
  %1105 = vst.msk [vmem:[%s1104] sm:$0xff] %vm68, %v1102
  %v1106 = vld [vmem:[#allocation2 + $0x28] sm:$0xff]
  %v1107 = vld [vmem:[#allocation3 + $0x28] sm:$0xff]
  %v1108 = vsel %vm68, %v1096, 0
  %1110 = vmatpush.msra.mxu0 0.0
  %1111 = vmatpush.msra.mxu0 0.0
  %1112 = vmatpush.msra.mxu0 0.0
  %1113 = vmatpush.msra.mxu0 0.0
  %1114 = vmatpush.msra.mxu0 0.0
  %1115 = vmatpush.msra.mxu0 0.0
  %1116 = vmatpush.msra.mxu0 0.0
  %1117 = vmatpush.msra.mxu0 0.0
  %1118 = vmatpush.msra.mxu0 0.0
  %1119 = vmatpush.msra.mxu0 0.0
  %1120 = vmatpush.msra.mxu0 0.0
  %1121 = vmatpush.msra.mxu0 0.0
  %1122 = vmatpush.msra.mxu0 %v412
  %1123 = vmatpush.msra.mxu0 %v411
  %1124 = vmatpush.msra.mxu0 %v410
  %1125 = vmatpush.msra.mxu0 %v409
  %1126 = vmatmul.f32.gmra.mxu0 %v1108
  %v1127 = vpop.f32.mrf.mxu0
  %v1128 = vadd.f32 0.0, %v1127
  %1129 = vdwg.mxu0
  %v1130 = vadd.f32 %v1106, %v1128
  %v1131 = vxor.u32 %v1130, 2147483648
  %v1132 = vmul.f32 %v1131, 1.442695
  %v1133 = vpow.pop %v1132
  %v1134 = vadd.f32 %v1133, 1.0
  %v1135 = vrcp.pop %v1134
  %v1136 = vmul.f32 %v1134, %v1135
  %v1137 = vsub.f32 1.0, %v1136
  %v1138 = vmul.f32 %v1135, %v1137
  %v1139 = vadd.f32 %v1135, %v1138
  %vm1140 = vweird.f32 %v1134
  %vm1141 = vweird.f32 %v1135
  %vm1142 = vmor %vm1140, %vm1141
  %v1143 = vsel %vm1142, %v1135, %v1139
  %v1144 = vand.u32 2147483647, %v1134
  %vm1145 = vcmp.eq.f32.partialorder %v1144, 8.507059e+37
  %v1146 = vand.u32 %v1134, 2147483648
  %v1147 = vor.u32 1.1754944e-38, %v1146
  %v1148 = vsel %vm1145, %v1147, %v1143
  %v1149 = vmul.f32 1.0, %v1148
  %v1150 = vadd.f32 %v1128, %v462
  %1152 = vrot.lane.b32.xlu0 %v1150, 64
  %v1153 = vpop.permute.xlu0 %1152
  %v1155 = vmul.f32 %v1149, %v1153
  %1157 = vrot.lane.b32.xlu0 %v1155, 64
  %v1158 = vpop.permute.xlu0 %1157
  %v1160 = vadd.f32 %v1106, %v1158
  %v1161 = vtanh.pop %v1160
  %v1162 = vsub.f32 1.0, %v1149
  %1164 = vrot.lane.b32.xlu0 %v1161, 96
  %v1165 = vpop.permute.xlu0 %1164
  %v1167 = vmul.f32 %v1162, %v1165
  %v1168 = vmul.f32 %v1149, %v1031
  %v1169 = vadd.f32 %v1167, %v1168
  %v1170 = vsel %vm68, %v1102, 0
  %1172 = vmatpush.msra.mxu0 0.0
  %1173 = vmatpush.msra.mxu0 0.0
  %1174 = vmatpush.msra.mxu0 0.0
  %1175 = vmatpush.msra.mxu0 0.0
  %1176 = vmatpush.msra.mxu0 0.0
  %1177 = vmatpush.msra.mxu0 0.0
  %1178 = vmatpush.msra.mxu0 0.0
  %1179 = vmatpush.msra.mxu0 0.0
  %1180 = vmatpush.msra.mxu0 0.0
  %1181 = vmatpush.msra.mxu0 0.0
  %1182 = vmatpush.msra.mxu0 0.0
  %1183 = vmatpush.msra.mxu0 0.0
  %1184 = vmatpush.msra.mxu0 %v416
  %1185 = vmatpush.msra.mxu0 %v415
  %1186 = vmatpush.msra.mxu0 %v414
  %1187 = vmatpush.msra.mxu0 %v413
  %1188 = vmatmul.f32.gmra.mxu0 %v1170
  %v1189 = vpop.f32.mrf.mxu0
  %v1190 = vadd.f32 0.0, %v1189
  %1191 = vdwg.mxu0
  %v1192 = vadd.f32 %v1107, %v1190
  %v1193 = vxor.u32 %v1192, 2147483648
  %v1194 = vmul.f32 %v1193, 1.442695
  %v1195 = vpow.pop %v1194
  %v1196 = vadd.f32 %v1195, 1.0
  %v1197 = vrcp.pop %v1196
  %v1198 = vmul.f32 %v1196, %v1197
  %v1199 = vsub.f32 1.0, %v1198
  %v1200 = vmul.f32 %v1197, %v1199
  %v1201 = vadd.f32 %v1197, %v1200
  %vm1202 = vweird.f32 %v1196
  %vm1203 = vweird.f32 %v1197
  %vm1204 = vmor %vm1202, %vm1203
  %v1205 = vsel %vm1204, %v1197, %v1201
  %v1206 = vand.u32 2147483647, %v1196
  %vm1207 = vcmp.eq.f32.partialorder %v1206, 8.507059e+37
  %v1208 = vand.u32 %v1196, 2147483648
  %v1209 = vor.u32 1.1754944e-38, %v1208
  %v1210 = vsel %vm1207, %v1209, %v1205
  %v1211 = vmul.f32 1.0, %v1210
  %v1212 = vadd.f32 %v1190, %v523
  %1214 = vrot.lane.b32.xlu0 %v1212, 64
  %v1215 = vpop.permute.xlu0 %1214
  %v1217 = vmul.f32 %v1211, %v1215
  %1219 = vrot.lane.b32.xlu0 %v1217, 64
  %v1220 = vpop.permute.xlu0 %1219
  %v1222 = vadd.f32 %v1107, %v1220
  %v1223 = vtanh.pop %v1222
  %v1224 = vsub.f32 1.0, %v1211
  %1226 = vrot.lane.b32.xlu0 %v1223, 96
  %v1227 = vpop.permute.xlu0 %1226
  %v1229 = vmul.f32 %v1224, %v1227
  %v1230 = vmul.f32 %v1211, %v1093
  %v1231 = vadd.f32 %v1229, %v1230
  %1233 = vrot.lane.b32.xlu0 %v1169, 96
  %v1234 = vpop.permute.xlu0 %1233
  %s1236 = scalar_lea.vmem %s8, 40
  %1237 = vst.msk [vmem:[%s1236] sm:$0xff] %vm68, %v1234
  %1239 = vrot.lane.b32.xlu0 %v1231, 96
  %v1240 = vpop.permute.xlu0 %1239
  %s1242 = scalar_lea.vmem %s10, 40
  %1243 = vst.msk [vmem:[%s1242] sm:$0xff] %vm68, %v1240
  %v1244 = vld [vmem:[#allocation2 + $0x30] sm:$0xff]
  %v1245 = vld [vmem:[#allocation3 + $0x30] sm:$0xff]
  %v1246 = vsel %vm68, %v1234, 0
  %1248 = vmatpush.msra.mxu0 0.0
  %1249 = vmatpush.msra.mxu0 0.0
  %1250 = vmatpush.msra.mxu0 0.0
  %1251 = vmatpush.msra.mxu0 0.0
  %1252 = vmatpush.msra.mxu0 0.0
  %1253 = vmatpush.msra.mxu0 0.0
  %1254 = vmatpush.msra.mxu0 0.0
  %1255 = vmatpush.msra.mxu0 0.0
  %1256 = vmatpush.msra.mxu0 0.0
  %1257 = vmatpush.msra.mxu0 0.0
  %1258 = vmatpush.msra.mxu0 0.0
  %1259 = vmatpush.msra.mxu0 0.0
  %1260 = vmatpush.msra.mxu0 %v412
  %1261 = vmatpush.msra.mxu0 %v411
  %1262 = vmatpush.msra.mxu0 %v410
  %1263 = vmatpush.msra.mxu0 %v409
  %1264 = vmatmul.f32.gmra.mxu0 %v1246
  %v1265 = vpop.f32.mrf.mxu0
  %v1266 = vadd.f32 0.0, %v1265
  %1267 = vdwg.mxu0
  %v1268 = vadd.f32 %v1244, %v1266
  %v1269 = vxor.u32 %v1268, 2147483648
  %v1270 = vmul.f32 %v1269, 1.442695
  %v1271 = vpow.pop %v1270
  %v1272 = vadd.f32 %v1271, 1.0
  %v1273 = vrcp.pop %v1272
  %v1274 = vmul.f32 %v1272, %v1273
  %v1275 = vsub.f32 1.0, %v1274
  %v1276 = vmul.f32 %v1273, %v1275
  %v1277 = vadd.f32 %v1273, %v1276
  %vm1278 = vweird.f32 %v1272
  %vm1279 = vweird.f32 %v1273
  %vm1280 = vmor %vm1278, %vm1279
  %v1281 = vsel %vm1280, %v1273, %v1277
  %v1282 = vand.u32 2147483647, %v1272
  %vm1283 = vcmp.eq.f32.partialorder %v1282, 8.507059e+37
  %v1284 = vand.u32 %v1272, 2147483648
  %v1285 = vor.u32 1.1754944e-38, %v1284
  %v1286 = vsel %vm1283, %v1285, %v1281
  %v1287 = vmul.f32 1.0, %v1286
  %v1288 = vadd.f32 %v1266, %v462
  %1290 = vrot.lane.b32.xlu0 %v1288, 64
  %v1291 = vpop.permute.xlu0 %1290
  %v1293 = vmul.f32 %v1287, %v1291
  %1295 = vrot.lane.b32.xlu0 %v1293, 64
  %v1296 = vpop.permute.xlu0 %1295
  %v1298 = vadd.f32 %v1244, %v1296
  %v1299 = vtanh.pop %v1298
  %v1300 = vsub.f32 1.0, %v1287
  %1302 = vrot.lane.b32.xlu0 %v1299, 96
  %v1303 = vpop.permute.xlu0 %1302
  %v1305 = vmul.f32 %v1300, %v1303
  %v1306 = vmul.f32 %v1287, %v1169
  %v1307 = vadd.f32 %v1305, %v1306
  %v1308 = vsel %vm68, %v1240, 0
  %1310 = vmatpush.msra.mxu0 0.0
  %1311 = vmatpush.msra.mxu0 0.0
  %1312 = vmatpush.msra.mxu0 0.0
  %1313 = vmatpush.msra.mxu0 0.0
  %1314 = vmatpush.msra.mxu0 0.0
  %1315 = vmatpush.msra.mxu0 0.0
  %1316 = vmatpush.msra.mxu0 0.0
  %1317 = vmatpush.msra.mxu0 0.0
  %1318 = vmatpush.msra.mxu0 0.0
  %1319 = vmatpush.msra.mxu0 0.0
  %1320 = vmatpush.msra.mxu0 0.0
  %1321 = vmatpush.msra.mxu0 0.0
  %1322 = vmatpush.msra.mxu0 %v416
  %1323 = vmatpush.msra.mxu0 %v415
  %1324 = vmatpush.msra.mxu0 %v414
  %1325 = vmatpush.msra.mxu0 %v413
  %1326 = vmatmul.f32.gmra.mxu0 %v1308
  %v1327 = vpop.f32.mrf.mxu0
  %v1328 = vadd.f32 0.0, %v1327
  %1329 = vdwg.mxu0
  %v1330 = vadd.f32 %v1245, %v1328
  %v1331 = vxor.u32 %v1330, 2147483648
  %v1332 = vmul.f32 %v1331, 1.442695
  %v1333 = vpow.pop %v1332
  %v1334 = vadd.f32 %v1333, 1.0
  %v1335 = vrcp.pop %v1334
  %v1336 = vmul.f32 %v1334, %v1335
  %v1337 = vsub.f32 1.0, %v1336
  %v1338 = vmul.f32 %v1335, %v1337
  %v1339 = vadd.f32 %v1335, %v1338
  %vm1340 = vweird.f32 %v1334
  %vm1341 = vweird.f32 %v1335
  %vm1342 = vmor %vm1340, %vm1341
  %v1343 = vsel %vm1342, %v1335, %v1339
  %v1344 = vand.u32 2147483647, %v1334
  %vm1345 = vcmp.eq.f32.partialorder %v1344, 8.507059e+37
  %v1346 = vand.u32 %v1334, 2147483648
  %v1347 = vor.u32 1.1754944e-38, %v1346
  %v1348 = vsel %vm1345, %v1347, %v1343
  %v1349 = vmul.f32 1.0, %v1348
  %v1350 = vadd.f32 %v1328, %v523
  %1352 = vrot.lane.b32.xlu0 %v1350, 64
  %v1353 = vpop.permute.xlu0 %1352
  %v1355 = vmul.f32 %v1349, %v1353
  %1357 = vrot.lane.b32.xlu0 %v1355, 64
  %v1358 = vpop.permute.xlu0 %1357
  %v1360 = vadd.f32 %v1245, %v1358
  %v1361 = vtanh.pop %v1360
  %v1362 = vsub.f32 1.0, %v1349
  %1364 = vrot.lane.b32.xlu0 %v1361, 96
  %v1365 = vpop.permute.xlu0 %1364
  %v1367 = vmul.f32 %v1362, %v1365
  %v1368 = vmul.f32 %v1349, %v1231
  %v1369 = vadd.f32 %v1367, %v1368
  %1371 = vrot.lane.b32.xlu0 %v1307, 96
  %v1372 = vpop.permute.xlu0 %1371
  %s1374 = scalar_lea.vmem %s8, 48
  %1375 = vst.msk [vmem:[%s1374] sm:$0xff] %vm68, %v1372
  %1377 = vrot.lane.b32.xlu0 %v1369, 96
  %v1378 = vpop.permute.xlu0 %1377
  %s1380 = scalar_lea.vmem %s10, 48
  %1381 = vst.msk [vmem:[%s1380] sm:$0xff] %vm68, %v1378
  %v1382 = vld [vmem:[#allocation2 + $0x38] sm:$0xff]
  %v1383 = vld [vmem:[#allocation3 + $0x38] sm:$0xff]
  %v1384 = vsel %vm68, %v1372, 0
  %1386 = vmatpush.msra.mxu0 0.0
  %1387 = vmatpush.msra.mxu0 0.0
  %1388 = vmatpush.msra.mxu0 0.0
  %1389 = vmatpush.msra.mxu0 0.0
  %1390 = vmatpush.msra.mxu0 0.0
  %1391 = vmatpush.msra.mxu0 0.0
  %1392 = vmatpush.msra.mxu0 0.0
  %1393 = vmatpush.msra.mxu0 0.0
  %1394 = vmatpush.msra.mxu0 0.0
  %1395 = vmatpush.msra.mxu0 0.0
  %1396 = vmatpush.msra.mxu0 0.0
  %1397 = vmatpush.msra.mxu0 0.0
  %1398 = vmatpush.msra.mxu0 %v412
  %1399 = vmatpush.msra.mxu0 %v411
  %1400 = vmatpush.msra.mxu0 %v410
  %1401 = vmatpush.msra.mxu0 %v409
  %1402 = vmatmul.f32.gmra.mxu0 %v1384
  %v1403 = vpop.f32.mrf.mxu0
  %v1404 = vadd.f32 0.0, %v1403
  %1405 = vdwg.mxu0
  %v1406 = vadd.f32 %v1382, %v1404
  %v1407 = vxor.u32 %v1406, 2147483648
  %v1408 = vmul.f32 %v1407, 1.442695
  %v1409 = vpow.pop %v1408
  %v1410 = vadd.f32 %v1409, 1.0
  %v1411 = vrcp.pop %v1410
  %v1412 = vmul.f32 %v1410, %v1411
  %v1413 = vsub.f32 1.0, %v1412
  %v1414 = vmul.f32 %v1411, %v1413
  %v1415 = vadd.f32 %v1411, %v1414
  %vm1416 = vweird.f32 %v1410
  %vm1417 = vweird.f32 %v1411
  %vm1418 = vmor %vm1416, %vm1417
  %v1419 = vsel %vm1418, %v1411, %v1415
  %v1420 = vand.u32 2147483647, %v1410
  %vm1421 = vcmp.eq.f32.partialorder %v1420, 8.507059e+37
  %v1422 = vand.u32 %v1410, 2147483648
  %v1423 = vor.u32 1.1754944e-38, %v1422
  %v1424 = vsel %vm1421, %v1423, %v1419
  %v1425 = vmul.f32 1.0, %v1424
  %v1426 = vadd.f32 %v1404, %v462
  %1428 = vrot.lane.b32.xlu0 %v1426, 64
  %v1429 = vpop.permute.xlu0 %1428
  %v1431 = vmul.f32 %v1425, %v1429
  %1433 = vrot.lane.b32.xlu0 %v1431, 64
  %v1434 = vpop.permute.xlu0 %1433
  %v1436 = vadd.f32 %v1382, %v1434
  %v1437 = vtanh.pop %v1436
  %v1438 = vsub.f32 1.0, %v1425
  %1440 = vrot.lane.b32.xlu0 %v1437, 96
  %v1441 = vpop.permute.xlu0 %1440
  %v1443 = vmul.f32 %v1438, %v1441
  %v1444 = vmul.f32 %v1425, %v1307
  %v1445 = vadd.f32 %v1443, %v1444
  %v1446 = vsel %vm68, %v1378, 0
  %1448 = vmatpush.msra.mxu0 0.0
  %1449 = vmatpush.msra.mxu0 0.0
  %1450 = vmatpush.msra.mxu0 0.0
  %1451 = vmatpush.msra.mxu0 0.0
  %1452 = vmatpush.msra.mxu0 0.0
  %1453 = vmatpush.msra.mxu0 0.0
  %1454 = vmatpush.msra.mxu0 0.0
  %1455 = vmatpush.msra.mxu0 0.0
  %1456 = vmatpush.msra.mxu0 0.0
  %1457 = vmatpush.msra.mxu0 0.0
  %1458 = vmatpush.msra.mxu0 0.0
  %1459 = vmatpush.msra.mxu0 0.0
  %1460 = vmatpush.msra.mxu0 %v416
  %1461 = vmatpush.msra.mxu0 %v415
  %1462 = vmatpush.msra.mxu0 %v414
  %1463 = vmatpush.msra.mxu0 %v413
  %1464 = vmatmul.f32.gmra.mxu0 %v1446
  %v1465 = vpop.f32.mrf.mxu0
  %v1466 = vadd.f32 0.0, %v1465
  %1467 = vdwg.mxu0
  %v1468 = vadd.f32 %v1383, %v1466
  %v1469 = vxor.u32 %v1468, 2147483648
  %v1470 = vmul.f32 %v1469, 1.442695
  %v1471 = vpow.pop %v1470
  %v1472 = vadd.f32 %v1471, 1.0
  %v1473 = vrcp.pop %v1472
  %v1474 = vmul.f32 %v1472, %v1473
  %v1475 = vsub.f32 1.0, %v1474
  %v1476 = vmul.f32 %v1473, %v1475
  %v1477 = vadd.f32 %v1473, %v1476
  %vm1478 = vweird.f32 %v1472
  %vm1479 = vweird.f32 %v1473
  %vm1480 = vmor %vm1478, %vm1479
  %v1481 = vsel %vm1480, %v1473, %v1477
  %v1482 = vand.u32 2147483647, %v1472
  %vm1483 = vcmp.eq.f32.partialorder %v1482, 8.507059e+37
  %v1484 = vand.u32 %v1472, 2147483648
  %v1485 = vor.u32 1.1754944e-38, %v1484
  %v1486 = vsel %vm1483, %v1485, %v1481
  %v1487 = vmul.f32 1.0, %v1486
  %v1488 = vadd.f32 %v1466, %v523
  %1490 = vrot.lane.b32.xlu0 %v1488, 64
  %v1491 = vpop.permute.xlu0 %1490
  %v1493 = vmul.f32 %v1487, %v1491
  %1495 = vrot.lane.b32.xlu0 %v1493, 64
  %v1496 = vpop.permute.xlu0 %1495
  %v1498 = vadd.f32 %v1383, %v1496
  %v1499 = vtanh.pop %v1498
  %v1500 = vsub.f32 1.0, %v1487
  %1502 = vrot.lane.b32.xlu0 %v1499, 96
  %v1503 = vpop.permute.xlu0 %1502
  %v1505 = vmul.f32 %v1500, %v1503
  %v1506 = vmul.f32 %v1487, %v1369
  %v1507 = vadd.f32 %v1505, %v1506
  %1509 = vrot.lane.b32.xlu0 %v1445, 96
  %v1510 = vpop.permute.xlu0 %1509
  %s1512 = scalar_lea.vmem %s8, 56
  %1513 = vst.msk [vmem:[%s1512] sm:$0xff] %vm68, %v1510
  %1515 = vrot.lane.b32.xlu0 %v1507, 96
  %v1516 = vpop.permute.xlu0 %1515
  %s1518 = scalar_lea.vmem %s10, 56
  %1519 = vst.msk [vmem:[%s1518] sm:$0xff] %vm68, %v1516
  %v1520 = vld [vmem:[#allocation2 + $0x40] sm:$0xff]
  %v1521 = vld [vmem:[#allocation3 + $0x40] sm:$0xff]
  %v1522 = vsel %vm68, %v1510, 0
  %1524 = vmatpush.msra.mxu0 0.0
  %1525 = vmatpush.msra.mxu0 0.0
  %1526 = vmatpush.msra.mxu0 0.0
  %1527 = vmatpush.msra.mxu0 0.0
  %1528 = vmatpush.msra.mxu0 0.0
  %1529 = vmatpush.msra.mxu0 0.0
  %1530 = vmatpush.msra.mxu0 0.0
  %1531 = vmatpush.msra.mxu0 0.0
  %1532 = vmatpush.msra.mxu0 0.0
  %1533 = vmatpush.msra.mxu0 0.0
  %1534 = vmatpush.msra.mxu0 0.0
  %1535 = vmatpush.msra.mxu0 0.0
  %1536 = vmatpush.msra.mxu0 %v412
  %1537 = vmatpush.msra.mxu0 %v411
  %1538 = vmatpush.msra.mxu0 %v410
  %1539 = vmatpush.msra.mxu0 %v409
  %1540 = vmatmul.f32.gmra.mxu0 %v1522
  %v1541 = vpop.f32.mrf.mxu0
  %v1542 = vadd.f32 0.0, %v1541
  %1543 = vdwg.mxu0
  %v1544 = vadd.f32 %v1520, %v1542
  %v1545 = vxor.u32 %v1544, 2147483648
  %v1546 = vmul.f32 %v1545, 1.442695
  %v1547 = vpow.pop %v1546
  %v1548 = vadd.f32 %v1547, 1.0
  %v1549 = vrcp.pop %v1548
  %v1550 = vmul.f32 %v1548, %v1549
  %v1551 = vsub.f32 1.0, %v1550
  %v1552 = vmul.f32 %v1549, %v1551
  %v1553 = vadd.f32 %v1549, %v1552
  %vm1554 = vweird.f32 %v1548
  %vm1555 = vweird.f32 %v1549
  %vm1556 = vmor %vm1554, %vm1555
  %v1557 = vsel %vm1556, %v1549, %v1553
  %v1558 = vand.u32 2147483647, %v1548
  %vm1559 = vcmp.eq.f32.partialorder %v1558, 8.507059e+37
  %v1560 = vand.u32 %v1548, 2147483648
  %v1561 = vor.u32 1.1754944e-38, %v1560
  %v1562 = vsel %vm1559, %v1561, %v1557
  %v1563 = vmul.f32 1.0, %v1562
  %v1564 = vadd.f32 %v1542, %v462
  %1566 = vrot.lane.b32.xlu0 %v1564, 64
  %v1567 = vpop.permute.xlu0 %1566
  %v1569 = vmul.f32 %v1563, %v1567
  %1571 = vrot.lane.b32.xlu0 %v1569, 64
  %v1572 = vpop.permute.xlu0 %1571
  %v1574 = vadd.f32 %v1520, %v1572
  %v1575 = vtanh.pop %v1574
  %v1576 = vsub.f32 1.0, %v1563
  %1578 = vrot.lane.b32.xlu0 %v1575, 96
  %v1579 = vpop.permute.xlu0 %1578
  %v1581 = vmul.f32 %v1576, %v1579
  %v1582 = vmul.f32 %v1563, %v1445
  %v1583 = vadd.f32 %v1581, %v1582
  %v1584 = vsel %vm68, %v1516, 0
  %1586 = vmatpush.msra.mxu0 0.0
  %1587 = vmatpush.msra.mxu0 0.0
  %1588 = vmatpush.msra.mxu0 0.0
  %1589 = vmatpush.msra.mxu0 0.0
  %1590 = vmatpush.msra.mxu0 0.0
  %1591 = vmatpush.msra.mxu0 0.0
  %1592 = vmatpush.msra.mxu0 0.0
  %1593 = vmatpush.msra.mxu0 0.0
  %1594 = vmatpush.msra.mxu0 0.0
  %1595 = vmatpush.msra.mxu0 0.0
  %1596 = vmatpush.msra.mxu0 0.0
  %1597 = vmatpush.msra.mxu0 0.0
  %1598 = vmatpush.msra.mxu0 %v416
  %1599 = vmatpush.msra.mxu0 %v415
  %1600 = vmatpush.msra.mxu0 %v414
  %1601 = vmatpush.msra.mxu0 %v413
  %1602 = vmatmul.f32.gmra.mxu0 %v1584
  %v1603 = vpop.f32.mrf.mxu0
  %v1604 = vadd.f32 0.0, %v1603
  %1605 = vdwg.mxu0
  %v1606 = vadd.f32 %v1521, %v1604
  %v1607 = vxor.u32 %v1606, 2147483648
  %v1608 = vmul.f32 %v1607, 1.442695
  %v1609 = vpow.pop %v1608
  %v1610 = vadd.f32 %v1609, 1.0
  %v1611 = vrcp.pop %v1610
  %v1612 = vmul.f32 %v1610, %v1611
  %v1613 = vsub.f32 1.0, %v1612
  %v1614 = vmul.f32 %v1611, %v1613
  %v1615 = vadd.f32 %v1611, %v1614
  %vm1616 = vweird.f32 %v1610
  %vm1617 = vweird.f32 %v1611
  %vm1618 = vmor %vm1616, %vm1617
  %v1619 = vsel %vm1618, %v1611, %v1615
  %v1620 = vand.u32 2147483647, %v1610
  %vm1621 = vcmp.eq.f32.partialorder %v1620, 8.507059e+37
  %v1622 = vand.u32 %v1610, 2147483648
  %v1623 = vor.u32 1.1754944e-38, %v1622
  %v1624 = vsel %vm1621, %v1623, %v1619
  %v1625 = vmul.f32 1.0, %v1624
  %v1626 = vadd.f32 %v1604, %v523
  %1628 = vrot.lane.b32.xlu0 %v1626, 64
  %v1629 = vpop.permute.xlu0 %1628
  %v1631 = vmul.f32 %v1625, %v1629
  %1633 = vrot.lane.b32.xlu0 %v1631, 64
  %v1634 = vpop.permute.xlu0 %1633
  %v1636 = vadd.f32 %v1521, %v1634
  %v1637 = vtanh.pop %v1636
  %v1638 = vsub.f32 1.0, %v1625
  %1640 = vrot.lane.b32.xlu0 %v1637, 96
  %v1641 = vpop.permute.xlu0 %1640
  %v1643 = vmul.f32 %v1638, %v1641
  %v1644 = vmul.f32 %v1625, %v1507
  %v1645 = vadd.f32 %v1643, %v1644
  %1647 = vrot.lane.b32.xlu0 %v1583, 96
  %v1648 = vpop.permute.xlu0 %1647
  %s1650 = scalar_lea.vmem %s8, 64
  %1651 = vst.msk [vmem:[%s1650] sm:$0xff] %vm68, %v1648
  %1653 = vrot.lane.b32.xlu0 %v1645, 96
  %v1654 = vpop.permute.xlu0 %1653
  %s1656 = scalar_lea.vmem %s10, 64
  %1657 = vst.msk [vmem:[%s1656] sm:$0xff] %vm68, %v1654
  %v1658 = vld [vmem:[#allocation2 + $0x48] sm:$0xff]
  %v1659 = vld [vmem:[#allocation3 + $0x48] sm:$0xff]
  %v1660 = vsel %vm68, %v1648, 0
  %1662 = vmatpush.msra.mxu0 0.0
  %1663 = vmatpush.msra.mxu0 0.0
  %1664 = vmatpush.msra.mxu0 0.0
  %1665 = vmatpush.msra.mxu0 0.0
  %1666 = vmatpush.msra.mxu0 0.0
  %1667 = vmatpush.msra.mxu0 0.0
  %1668 = vmatpush.msra.mxu0 0.0
  %1669 = vmatpush.msra.mxu0 0.0
  %1670 = vmatpush.msra.mxu0 0.0
  %1671 = vmatpush.msra.mxu0 0.0
  %1672 = vmatpush.msra.mxu0 0.0
  %1673 = vmatpush.msra.mxu0 0.0
  %1674 = vmatpush.msra.mxu0 %v412
  %1675 = vmatpush.msra.mxu0 %v411
  %1676 = vmatpush.msra.mxu0 %v410
  %1677 = vmatpush.msra.mxu0 %v409
  %1678 = vmatmul.f32.gmra.mxu0 %v1660
  %v1679 = vpop.f32.mrf.mxu0
  %v1680 = vadd.f32 0.0, %v1679
  %1681 = vdwg.mxu0
  %v1682 = vadd.f32 %v1658, %v1680
  %v1683 = vxor.u32 %v1682, 2147483648
  %v1684 = vmul.f32 %v1683, 1.442695
  %v1685 = vpow.pop %v1684
  %v1686 = vadd.f32 %v1685, 1.0
  %v1687 = vrcp.pop %v1686
  %v1688 = vmul.f32 %v1686, %v1687
  %v1689 = vsub.f32 1.0, %v1688
  %v1690 = vmul.f32 %v1687, %v1689
  %v1691 = vadd.f32 %v1687, %v1690
  %vm1692 = vweird.f32 %v1686
  %vm1693 = vweird.f32 %v1687
  %vm1694 = vmor %vm1692, %vm1693
  %v1695 = vsel %vm1694, %v1687, %v1691
  %v1696 = vand.u32 2147483647, %v1686
  %vm1697 = vcmp.eq.f32.partialorder %v1696, 8.507059e+37
  %v1698 = vand.u32 %v1686, 2147483648
  %v1699 = vor.u32 1.1754944e-38, %v1698
  %v1700 = vsel %vm1697, %v1699, %v1695
  %v1701 = vmul.f32 1.0, %v1700
  %v1702 = vadd.f32 %v1680, %v462
  %1704 = vrot.lane.b32.xlu0 %v1702, 64
  %v1705 = vpop.permute.xlu0 %1704
  %v1707 = vmul.f32 %v1701, %v1705
  %1709 = vrot.lane.b32.xlu0 %v1707, 64
  %v1710 = vpop.permute.xlu0 %1709
  %v1712 = vadd.f32 %v1658, %v1710
  %v1713 = vtanh.pop %v1712
  %v1714 = vsub.f32 1.0, %v1701
  %1716 = vrot.lane.b32.xlu0 %v1713, 96
  %v1717 = vpop.permute.xlu0 %1716
  %v1719 = vmul.f32 %v1714, %v1717
  %v1720 = vmul.f32 %v1701, %v1583
  %v1721 = vadd.f32 %v1719, %v1720
  %v1722 = vsel %vm68, %v1654, 0
  %1724 = vmatpush.msra.mxu0 0.0
  %1725 = vmatpush.msra.mxu0 0.0
  %1726 = vmatpush.msra.mxu0 0.0
  %1727 = vmatpush.msra.mxu0 0.0
  %1728 = vmatpush.msra.mxu0 0.0
  %1729 = vmatpush.msra.mxu0 0.0
  %1730 = vmatpush.msra.mxu0 0.0
  %1731 = vmatpush.msra.mxu0 0.0
  %1732 = vmatpush.msra.mxu0 0.0
  %1733 = vmatpush.msra.mxu0 0.0
  %1734 = vmatpush.msra.mxu0 0.0
  %1735 = vmatpush.msra.mxu0 0.0
  %1736 = vmatpush.msra.mxu0 %v416
  %1737 = vmatpush.msra.mxu0 %v415
  %1738 = vmatpush.msra.mxu0 %v414
  %1739 = vmatpush.msra.mxu0 %v413
  %1740 = vmatmul.f32.gmra.mxu0 %v1722
  %v1741 = vpop.f32.mrf.mxu0
  %v1742 = vadd.f32 0.0, %v1741
  %1743 = vdwg.mxu0
  %v1744 = vadd.f32 %v1659, %v1742
  %v1745 = vxor.u32 %v1744, 2147483648
  %v1746 = vmul.f32 %v1745, 1.442695
  %v1747 = vpow.pop %v1746
  %v1748 = vadd.f32 %v1747, 1.0
  %v1749 = vrcp.pop %v1748
  %v1750 = vmul.f32 %v1748, %v1749
  %v1751 = vsub.f32 1.0, %v1750
  %v1752 = vmul.f32 %v1749, %v1751
  %v1753 = vadd.f32 %v1749, %v1752
  %vm1754 = vweird.f32 %v1748
  %vm1755 = vweird.f32 %v1749
  %vm1756 = vmor %vm1754, %vm1755
  %v1757 = vsel %vm1756, %v1749, %v1753
  %v1758 = vand.u32 2147483647, %v1748
  %vm1759 = vcmp.eq.f32.partialorder %v1758, 8.507059e+37
  %v1760 = vand.u32 %v1748, 2147483648
  %v1761 = vor.u32 1.1754944e-38, %v1760
  %v1762 = vsel %vm1759, %v1761, %v1757
  %v1763 = vmul.f32 1.0, %v1762
  %v1764 = vadd.f32 %v1742, %v523
  %1766 = vrot.lane.b32.xlu0 %v1764, 64
  %v1767 = vpop.permute.xlu0 %1766
  %v1769 = vmul.f32 %v1763, %v1767
  %1771 = vrot.lane.b32.xlu0 %v1769, 64
  %v1772 = vpop.permute.xlu0 %1771
  %v1774 = vadd.f32 %v1659, %v1772
  %v1775 = vtanh.pop %v1774
  %v1776 = vsub.f32 1.0, %v1763
  %1778 = vrot.lane.b32.xlu0 %v1775, 96
  %v1779 = vpop.permute.xlu0 %1778
  %v1781 = vmul.f32 %v1776, %v1779
  %v1782 = vmul.f32 %v1763, %v1645
  %v1783 = vadd.f32 %v1781, %v1782
  %1785 = vrot.lane.b32.xlu0 %v1721, 96
  %v1786 = vpop.permute.xlu0 %1785
  %s1788 = scalar_lea.vmem %s8, 72
  %1789 = vst.msk [vmem:[%s1788] sm:$0xff] %vm68, %v1786
  %1791 = vrot.lane.b32.xlu0 %v1783, 96
  %v1792 = vpop.permute.xlu0 %1791
  %s1794 = scalar_lea.vmem %s10, 72
  %1795 = vst.msk [vmem:[%s1794] sm:$0xff] %vm68, %v1792
  %v1796 = vld [vmem:[#allocation2 + $0x50] sm:$0xff]
  %v1797 = vld [vmem:[#allocation3 + $0x50] sm:$0xff]
  %v1798 = vsel %vm68, %v1786, 0
  %1800 = vmatpush.msra.mxu0 0.0
  %1801 = vmatpush.msra.mxu0 0.0
  %1802 = vmatpush.msra.mxu0 0.0
  %1803 = vmatpush.msra.mxu0 0.0
  %1804 = vmatpush.msra.mxu0 0.0
  %1805 = vmatpush.msra.mxu0 0.0
  %1806 = vmatpush.msra.mxu0 0.0
  %1807 = vmatpush.msra.mxu0 0.0
  %1808 = vmatpush.msra.mxu0 0.0
  %1809 = vmatpush.msra.mxu0 0.0
  %1810 = vmatpush.msra.mxu0 0.0
  %1811 = vmatpush.msra.mxu0 0.0
  %1812 = vmatpush.msra.mxu0 %v412
  %1813 = vmatpush.msra.mxu0 %v411
  %1814 = vmatpush.msra.mxu0 %v410
  %1815 = vmatpush.msra.mxu0 %v409
  %1816 = vmatmul.f32.gmra.mxu0 %v1798
  %v1817 = vpop.f32.mrf.mxu0
  %v1818 = vadd.f32 0.0, %v1817
  %1819 = vdwg.mxu0
  %v1820 = vadd.f32 %v1796, %v1818
  %v1821 = vxor.u32 %v1820, 2147483648
  %v1822 = vmul.f32 %v1821, 1.442695
  %v1823 = vpow.pop %v1822
  %v1824 = vadd.f32 %v1823, 1.0
  %v1825 = vrcp.pop %v1824
  %v1826 = vmul.f32 %v1824, %v1825
  %v1827 = vsub.f32 1.0, %v1826
  %v1828 = vmul.f32 %v1825, %v1827
  %v1829 = vadd.f32 %v1825, %v1828
  %vm1830 = vweird.f32 %v1824
  %vm1831 = vweird.f32 %v1825
  %vm1832 = vmor %vm1830, %vm1831
  %v1833 = vsel %vm1832, %v1825, %v1829
  %v1834 = vand.u32 2147483647, %v1824
  %vm1835 = vcmp.eq.f32.partialorder %v1834, 8.507059e+37
  %v1836 = vand.u32 %v1824, 2147483648
  %v1837 = vor.u32 1.1754944e-38, %v1836
  %v1838 = vsel %vm1835, %v1837, %v1833
  %v1839 = vmul.f32 1.0, %v1838
  %v1840 = vadd.f32 %v1818, %v462
  %1842 = vrot.lane.b32.xlu0 %v1840, 64
  %v1843 = vpop.permute.xlu0 %1842
  %v1845 = vmul.f32 %v1839, %v1843
  %1847 = vrot.lane.b32.xlu0 %v1845, 64
  %v1848 = vpop.permute.xlu0 %1847
  %v1850 = vadd.f32 %v1796, %v1848
  %v1851 = vtanh.pop %v1850
  %v1852 = vsub.f32 1.0, %v1839
  %1854 = vrot.lane.b32.xlu0 %v1851, 96
  %v1855 = vpop.permute.xlu0 %1854
  %v1857 = vmul.f32 %v1852, %v1855
  %v1858 = vmul.f32 %v1839, %v1721
  %v1859 = vadd.f32 %v1857, %v1858
  %v1860 = vsel %vm68, %v1792, 0
  %1862 = vmatpush.msra.mxu0 0.0
  %1863 = vmatpush.msra.mxu0 0.0
  %1864 = vmatpush.msra.mxu0 0.0
  %1865 = vmatpush.msra.mxu0 0.0
  %1866 = vmatpush.msra.mxu0 0.0
  %1867 = vmatpush.msra.mxu0 0.0
  %1868 = vmatpush.msra.mxu0 0.0
  %1869 = vmatpush.msra.mxu0 0.0
  %1870 = vmatpush.msra.mxu0 0.0
  %1871 = vmatpush.msra.mxu0 0.0
  %1872 = vmatpush.msra.mxu0 0.0
  %1873 = vmatpush.msra.mxu0 0.0
  %1874 = vmatpush.msra.mxu0 %v416
  %1875 = vmatpush.msra.mxu0 %v415
  %1876 = vmatpush.msra.mxu0 %v414
  %1877 = vmatpush.msra.mxu0 %v413
  %1878 = vmatmul.f32.gmra.mxu0 %v1860
  %v1879 = vpop.f32.mrf.mxu0
  %v1880 = vadd.f32 0.0, %v1879
  %1881 = vdwg.mxu0
  %v1882 = vadd.f32 %v1797, %v1880
  %v1883 = vxor.u32 %v1882, 2147483648
  %v1884 = vmul.f32 %v1883, 1.442695
  %v1885 = vpow.pop %v1884
  %v1886 = vadd.f32 %v1885, 1.0
  %v1887 = vrcp.pop %v1886
  %v1888 = vmul.f32 %v1886, %v1887
  %v1889 = vsub.f32 1.0, %v1888
  %v1890 = vmul.f32 %v1887, %v1889
  %v1891 = vadd.f32 %v1887, %v1890
  %vm1892 = vweird.f32 %v1886
  %vm1893 = vweird.f32 %v1887
  %vm1894 = vmor %vm1892, %vm1893
  %v1895 = vsel %vm1894, %v1887, %v1891
  %v1896 = vand.u32 2147483647, %v1886
  %vm1897 = vcmp.eq.f32.partialorder %v1896, 8.507059e+37
  %v1898 = vand.u32 %v1886, 2147483648
  %v1899 = vor.u32 1.1754944e-38, %v1898
  %v1900 = vsel %vm1897, %v1899, %v1895
  %v1901 = vmul.f32 1.0, %v1900
  %v1902 = vadd.f32 %v1880, %v523
  %1904 = vrot.lane.b32.xlu0 %v1902, 64
  %v1905 = vpop.permute.xlu0 %1904
  %v1907 = vmul.f32 %v1901, %v1905
  %1909 = vrot.lane.b32.xlu0 %v1907, 64
  %v1910 = vpop.permute.xlu0 %1909
  %v1912 = vadd.f32 %v1797, %v1910
  %v1913 = vtanh.pop %v1912
  %v1914 = vsub.f32 1.0, %v1901
  %1916 = vrot.lane.b32.xlu0 %v1913, 96
  %v1917 = vpop.permute.xlu0 %1916
  %v1919 = vmul.f32 %v1914, %v1917
  %v1920 = vmul.f32 %v1901, %v1783
  %v1921 = vadd.f32 %v1919, %v1920
  %1923 = vrot.lane.b32.xlu0 %v1859, 96
  %v1924 = vpop.permute.xlu0 %1923
  %s1926 = scalar_lea.vmem %s8, 80
  %1927 = vst.msk [vmem:[%s1926] sm:$0xff] %vm68, %v1924
  %1929 = vrot.lane.b32.xlu0 %v1921, 96
  %v1930 = vpop.permute.xlu0 %1929
  %s1932 = scalar_lea.vmem %s10, 80
  %1933 = vst.msk [vmem:[%s1932] sm:$0xff] %vm68, %v1930
  %v1934 = vld [vmem:[#allocation2 + $0x58] sm:$0xff]
  %v1935 = vld [vmem:[#allocation3 + $0x58] sm:$0xff]
  %v1936 = vsel %vm68, %v1924, 0
  %1938 = vmatpush.msra.mxu0 0.0
  %1939 = vmatpush.msra.mxu0 0.0
  %1940 = vmatpush.msra.mxu0 0.0
  %1941 = vmatpush.msra.mxu0 0.0
  %1942 = vmatpush.msra.mxu0 0.0
  %1943 = vmatpush.msra.mxu0 0.0
  %1944 = vmatpush.msra.mxu0 0.0
  %1945 = vmatpush.msra.mxu0 0.0
  %1946 = vmatpush.msra.mxu0 0.0
  %1947 = vmatpush.msra.mxu0 0.0
  %1948 = vmatpush.msra.mxu0 0.0
  %1949 = vmatpush.msra.mxu0 0.0
  %1950 = vmatpush.msra.mxu0 %v412
  %1951 = vmatpush.msra.mxu0 %v411
  %1952 = vmatpush.msra.mxu0 %v410
  %1953 = vmatpush.msra.mxu0 %v409
  %1954 = vmatmul.f32.gmra.mxu0 %v1936
  %v1955 = vpop.f32.mrf.mxu0
  %v1956 = vadd.f32 0.0, %v1955
  %1957 = vdwg.mxu0
  %v1958 = vadd.f32 %v1934, %v1956
  %v1959 = vxor.u32 %v1958, 2147483648
  %v1960 = vmul.f32 %v1959, 1.442695
  %v1961 = vpow.pop %v1960
  %v1962 = vadd.f32 %v1961, 1.0
  %v1963 = vrcp.pop %v1962
  %v1964 = vmul.f32 %v1962, %v1963
  %v1965 = vsub.f32 1.0, %v1964
  %v1966 = vmul.f32 %v1963, %v1965
  %v1967 = vadd.f32 %v1963, %v1966
  %vm1968 = vweird.f32 %v1962
  %vm1969 = vweird.f32 %v1963
  %vm1970 = vmor %vm1968, %vm1969
  %v1971 = vsel %vm1970, %v1963, %v1967
  %v1972 = vand.u32 2147483647, %v1962
  %vm1973 = vcmp.eq.f32.partialorder %v1972, 8.507059e+37
  %v1974 = vand.u32 %v1962, 2147483648
  %v1975 = vor.u32 1.1754944e-38, %v1974
  %v1976 = vsel %vm1973, %v1975, %v1971
  %v1977 = vmul.f32 1.0, %v1976
  %v1978 = vadd.f32 %v1956, %v462
  %1980 = vrot.lane.b32.xlu0 %v1978, 64
  %v1981 = vpop.permute.xlu0 %1980
  %v1983 = vmul.f32 %v1977, %v1981
  %1985 = vrot.lane.b32.xlu0 %v1983, 64
  %v1986 = vpop.permute.xlu0 %1985
  %v1988 = vadd.f32 %v1934, %v1986
  %v1989 = vtanh.pop %v1988
  %v1990 = vsub.f32 1.0, %v1977
  %1992 = vrot.lane.b32.xlu0 %v1989, 96
  %v1993 = vpop.permute.xlu0 %1992
  %v1995 = vmul.f32 %v1990, %v1993
  %v1996 = vmul.f32 %v1977, %v1859
  %v1997 = vadd.f32 %v1995, %v1996
  %v1998 = vsel %vm68, %v1930, 0
  %2000 = vmatpush.msra.mxu0 0.0
  %2001 = vmatpush.msra.mxu0 0.0
  %2002 = vmatpush.msra.mxu0 0.0
  %2003 = vmatpush.msra.mxu0 0.0
  %2004 = vmatpush.msra.mxu0 0.0
  %2005 = vmatpush.msra.mxu0 0.0
  %2006 = vmatpush.msra.mxu0 0.0
  %2007 = vmatpush.msra.mxu0 0.0
  %2008 = vmatpush.msra.mxu0 0.0
  %2009 = vmatpush.msra.mxu0 0.0
  %2010 = vmatpush.msra.mxu0 0.0
  %2011 = vmatpush.msra.mxu0 0.0
  %2012 = vmatpush.msra.mxu0 %v416
  %2013 = vmatpush.msra.mxu0 %v415
  %2014 = vmatpush.msra.mxu0 %v414
  %2015 = vmatpush.msra.mxu0 %v413
  %2016 = vmatmul.f32.gmra.mxu0 %v1998
  %v2017 = vpop.f32.mrf.mxu0
  %v2018 = vadd.f32 0.0, %v2017
  %2019 = vdwg.mxu0
  %v2020 = vadd.f32 %v1935, %v2018
  %v2021 = vxor.u32 %v2020, 2147483648
  %v2022 = vmul.f32 %v2021, 1.442695
  %v2023 = vpow.pop %v2022
  %v2024 = vadd.f32 %v2023, 1.0
  %v2025 = vrcp.pop %v2024
  %v2026 = vmul.f32 %v2024, %v2025
  %v2027 = vsub.f32 1.0, %v2026
  %v2028 = vmul.f32 %v2025, %v2027
  %v2029 = vadd.f32 %v2025, %v2028
  %vm2030 = vweird.f32 %v2024
  %vm2031 = vweird.f32 %v2025
  %vm2032 = vmor %vm2030, %vm2031
  %v2033 = vsel %vm2032, %v2025, %v2029
  %v2034 = vand.u32 2147483647, %v2024
  %vm2035 = vcmp.eq.f32.partialorder %v2034, 8.507059e+37
  %v2036 = vand.u32 %v2024, 2147483648
  %v2037 = vor.u32 1.1754944e-38, %v2036
  %v2038 = vsel %vm2035, %v2037, %v2033
  %v2039 = vmul.f32 1.0, %v2038
  %v2040 = vadd.f32 %v2018, %v523
  %2042 = vrot.lane.b32.xlu0 %v2040, 64
  %v2043 = vpop.permute.xlu0 %2042
  %v2045 = vmul.f32 %v2039, %v2043
  %2047 = vrot.lane.b32.xlu0 %v2045, 64
  %v2048 = vpop.permute.xlu0 %2047
  %v2050 = vadd.f32 %v1935, %v2048
  %v2051 = vtanh.pop %v2050
  %v2052 = vsub.f32 1.0, %v2039
  %2054 = vrot.lane.b32.xlu0 %v2051, 96
  %v2055 = vpop.permute.xlu0 %2054
  %v2057 = vmul.f32 %v2052, %v2055
  %v2058 = vmul.f32 %v2039, %v1921
  %v2059 = vadd.f32 %v2057, %v2058
  %2061 = vrot.lane.b32.xlu0 %v1997, 96
  %v2062 = vpop.permute.xlu0 %2061
  %s2064 = scalar_lea.vmem %s8, 88
  %2065 = vst.msk [vmem:[%s2064] sm:$0xff] %vm68, %v2062
  %2067 = vrot.lane.b32.xlu0 %v2059, 96
  %v2068 = vpop.permute.xlu0 %2067
  %s2070 = scalar_lea.vmem %s10, 88
  %2071 = vst.msk [vmem:[%s2070] sm:$0xff] %vm68, %v2068
  %v2072 = vld [vmem:[#allocation2 + $0x60] sm:$0xff]
  %v2073 = vld [vmem:[#allocation3 + $0x60] sm:$0xff]
  %v2074 = vsel %vm68, %v2062, 0
  %2076 = vmatpush.msra.mxu0 0.0
  %2077 = vmatpush.msra.mxu0 0.0
  %2078 = vmatpush.msra.mxu0 0.0
  %2079 = vmatpush.msra.mxu0 0.0
  %2080 = vmatpush.msra.mxu0 0.0
  %2081 = vmatpush.msra.mxu0 0.0
  %2082 = vmatpush.msra.mxu0 0.0
  %2083 = vmatpush.msra.mxu0 0.0
  %2084 = vmatpush.msra.mxu0 0.0
  %2085 = vmatpush.msra.mxu0 0.0
  %2086 = vmatpush.msra.mxu0 0.0
  %2087 = vmatpush.msra.mxu0 0.0
  %2088 = vmatpush.msra.mxu0 %v412
  %2089 = vmatpush.msra.mxu0 %v411
  %2090 = vmatpush.msra.mxu0 %v410
  %2091 = vmatpush.msra.mxu0 %v409
  %2092 = vmatmul.f32.gmra.mxu0 %v2074
  %v2093 = vpop.f32.mrf.mxu0
  %v2094 = vadd.f32 0.0, %v2093
  %2095 = vdwg.mxu0
  %v2096 = vadd.f32 %v2072, %v2094
  %v2097 = vxor.u32 %v2096, 2147483648
  %v2098 = vmul.f32 %v2097, 1.442695
  %v2099 = vpow.pop %v2098
  %v2100 = vadd.f32 %v2099, 1.0
  %v2101 = vrcp.pop %v2100
  %v2102 = vmul.f32 %v2100, %v2101
  %v2103 = vsub.f32 1.0, %v2102
  %v2104 = vmul.f32 %v2101, %v2103
  %v2105 = vadd.f32 %v2101, %v2104
  %vm2106 = vweird.f32 %v2100
  %vm2107 = vweird.f32 %v2101
  %vm2108 = vmor %vm2106, %vm2107
  %v2109 = vsel %vm2108, %v2101, %v2105
  %v2110 = vand.u32 2147483647, %v2100
  %vm2111 = vcmp.eq.f32.partialorder %v2110, 8.507059e+37
  %v2112 = vand.u32 %v2100, 2147483648
  %v2113 = vor.u32 1.1754944e-38, %v2112
  %v2114 = vsel %vm2111, %v2113, %v2109
  %v2115 = vmul.f32 1.0, %v2114
  %v2116 = vadd.f32 %v2094, %v462
  %2118 = vrot.lane.b32.xlu0 %v2116, 64
  %v2119 = vpop.permute.xlu0 %2118
  %v2121 = vmul.f32 %v2115, %v2119
  %2123 = vrot.lane.b32.xlu0 %v2121, 64
  %v2124 = vpop.permute.xlu0 %2123
  %v2126 = vadd.f32 %v2072, %v2124
  %v2127 = vtanh.pop %v2126
  %v2128 = vsub.f32 1.0, %v2115
  %2130 = vrot.lane.b32.xlu0 %v2127, 96
  %v2131 = vpop.permute.xlu0 %2130
  %v2133 = vmul.f32 %v2128, %v2131
  %v2134 = vmul.f32 %v2115, %v1997
  %v2135 = vadd.f32 %v2133, %v2134
  %v2136 = vsel %vm68, %v2068, 0
  %2138 = vmatpush.msra.mxu0 0.0
  %2139 = vmatpush.msra.mxu0 0.0
  %2140 = vmatpush.msra.mxu0 0.0
  %2141 = vmatpush.msra.mxu0 0.0
  %2142 = vmatpush.msra.mxu0 0.0
  %2143 = vmatpush.msra.mxu0 0.0
  %2144 = vmatpush.msra.mxu0 0.0
  %2145 = vmatpush.msra.mxu0 0.0
  %2146 = vmatpush.msra.mxu0 0.0
  %2147 = vmatpush.msra.mxu0 0.0
  %2148 = vmatpush.msra.mxu0 0.0
  %2149 = vmatpush.msra.mxu0 0.0
  %2150 = vmatpush.msra.mxu0 %v416
  %2151 = vmatpush.msra.mxu0 %v415
  %2152 = vmatpush.msra.mxu0 %v414
  %2153 = vmatpush.msra.mxu0 %v413
  %2154 = vmatmul.f32.gmra.mxu0 %v2136
  %v2155 = vpop.f32.mrf.mxu0
  %v2156 = vadd.f32 0.0, %v2155
  %2157 = vdwg.mxu0
  %v2158 = vadd.f32 %v2073, %v2156
  %v2159 = vxor.u32 %v2158, 2147483648
  %v2160 = vmul.f32 %v2159, 1.442695
  %v2161 = vpow.pop %v2160
  %v2162 = vadd.f32 %v2161, 1.0
  %v2163 = vrcp.pop %v2162
  %v2164 = vmul.f32 %v2162, %v2163
  %v2165 = vsub.f32 1.0, %v2164
  %v2166 = vmul.f32 %v2163, %v2165
  %v2167 = vadd.f32 %v2163, %v2166
  %vm2168 = vweird.f32 %v2162
  %vm2169 = vweird.f32 %v2163
  %vm2170 = vmor %vm2168, %vm2169
  %v2171 = vsel %vm2170, %v2163, %v2167
  %v2172 = vand.u32 2147483647, %v2162
  %vm2173 = vcmp.eq.f32.partialorder %v2172, 8.507059e+37
  %v2174 = vand.u32 %v2162, 2147483648
  %v2175 = vor.u32 1.1754944e-38, %v2174
  %v2176 = vsel %vm2173, %v2175, %v2171
  %v2177 = vmul.f32 1.0, %v2176
  %v2178 = vadd.f32 %v2156, %v523
  %2180 = vrot.lane.b32.xlu0 %v2178, 64
  %v2181 = vpop.permute.xlu0 %2180
  %v2183 = vmul.f32 %v2177, %v2181
  %2185 = vrot.lane.b32.xlu0 %v2183, 64
  %v2186 = vpop.permute.xlu0 %2185
  %v2188 = vadd.f32 %v2073, %v2186
  %v2189 = vtanh.pop %v2188
  %v2190 = vsub.f32 1.0, %v2177
  %2192 = vrot.lane.b32.xlu0 %v2189, 96
  %v2193 = vpop.permute.xlu0 %2192
  %v2195 = vmul.f32 %v2190, %v2193
  %v2196 = vmul.f32 %v2177, %v2059
  %v2197 = vadd.f32 %v2195, %v2196
  %2199 = vrot.lane.b32.xlu0 %v2135, 96
  %v2200 = vpop.permute.xlu0 %2199
  %s2202 = scalar_lea.vmem %s8, 96
  %2203 = vst.msk [vmem:[%s2202] sm:$0xff] %vm68, %v2200
  %2205 = vrot.lane.b32.xlu0 %v2197, 96
  %v2206 = vpop.permute.xlu0 %2205
  %s2208 = scalar_lea.vmem %s10, 96
  %2209 = vst.msk [vmem:[%s2208] sm:$0xff] %vm68, %v2206
  %v2210 = vld [vmem:[#allocation2 + $0x68] sm:$0xff]
  %v2211 = vld [vmem:[#allocation3 + $0x68] sm:$0xff]
  %v2212 = vsel %vm68, %v2200, 0
  %2214 = vmatpush.msra.mxu0 0.0
  %2215 = vmatpush.msra.mxu0 0.0
  %2216 = vmatpush.msra.mxu0 0.0
  %2217 = vmatpush.msra.mxu0 0.0
  %2218 = vmatpush.msra.mxu0 0.0
  %2219 = vmatpush.msra.mxu0 0.0
  %2220 = vmatpush.msra.mxu0 0.0
  %2221 = vmatpush.msra.mxu0 0.0
  %2222 = vmatpush.msra.mxu0 0.0
  %2223 = vmatpush.msra.mxu0 0.0
  %2224 = vmatpush.msra.mxu0 0.0
  %2225 = vmatpush.msra.mxu0 0.0
  %2226 = vmatpush.msra.mxu0 %v412
  %2227 = vmatpush.msra.mxu0 %v411
  %2228 = vmatpush.msra.mxu0 %v410
  %2229 = vmatpush.msra.mxu0 %v409
  %2230 = vmatmul.f32.gmra.mxu0 %v2212
  %v2231 = vpop.f32.mrf.mxu0
  %v2232 = vadd.f32 0.0, %v2231
  %2233 = vdwg.mxu0
  %v2234 = vadd.f32 %v2210, %v2232
  %v2235 = vxor.u32 %v2234, 2147483648
  %v2236 = vmul.f32 %v2235, 1.442695
  %v2237 = vpow.pop %v2236
  %v2238 = vadd.f32 %v2237, 1.0
  %v2239 = vrcp.pop %v2238
  %v2240 = vmul.f32 %v2238, %v2239
  %v2241 = vsub.f32 1.0, %v2240
  %v2242 = vmul.f32 %v2239, %v2241
  %v2243 = vadd.f32 %v2239, %v2242
  %vm2244 = vweird.f32 %v2238
  %vm2245 = vweird.f32 %v2239
  %vm2246 = vmor %vm2244, %vm2245
  %v2247 = vsel %vm2246, %v2239, %v2243
  %v2248 = vand.u32 2147483647, %v2238
  %vm2249 = vcmp.eq.f32.partialorder %v2248, 8.507059e+37
  %v2250 = vand.u32 %v2238, 2147483648
  %v2251 = vor.u32 1.1754944e-38, %v2250
  %v2252 = vsel %vm2249, %v2251, %v2247
  %v2253 = vmul.f32 1.0, %v2252
  %v2254 = vadd.f32 %v2232, %v462
  %2256 = vrot.lane.b32.xlu0 %v2254, 64
  %v2257 = vpop.permute.xlu0 %2256
  %v2259 = vmul.f32 %v2253, %v2257
  %2261 = vrot.lane.b32.xlu0 %v2259, 64
  %v2262 = vpop.permute.xlu0 %2261
  %v2264 = vadd.f32 %v2210, %v2262
  %v2265 = vtanh.pop %v2264
  %v2266 = vsub.f32 1.0, %v2253
  %2268 = vrot.lane.b32.xlu0 %v2265, 96
  %v2269 = vpop.permute.xlu0 %2268
  %v2271 = vmul.f32 %v2266, %v2269
  %v2272 = vmul.f32 %v2253, %v2135
  %v2273 = vadd.f32 %v2271, %v2272
  %v2274 = vsel %vm68, %v2206, 0
  %2276 = vmatpush.msra.mxu0 0.0
  %2277 = vmatpush.msra.mxu0 0.0
  %2278 = vmatpush.msra.mxu0 0.0
  %2279 = vmatpush.msra.mxu0 0.0
  %2280 = vmatpush.msra.mxu0 0.0
  %2281 = vmatpush.msra.mxu0 0.0
  %2282 = vmatpush.msra.mxu0 0.0
  %2283 = vmatpush.msra.mxu0 0.0
  %2284 = vmatpush.msra.mxu0 0.0
  %2285 = vmatpush.msra.mxu0 0.0
  %2286 = vmatpush.msra.mxu0 0.0
  %2287 = vmatpush.msra.mxu0 0.0
  %2288 = vmatpush.msra.mxu0 %v416
  %2289 = vmatpush.msra.mxu0 %v415
  %2290 = vmatpush.msra.mxu0 %v414
  %2291 = vmatpush.msra.mxu0 %v413
  %2292 = vmatmul.f32.gmra.mxu0 %v2274
  %v2293 = vpop.f32.mrf.mxu0
  %v2294 = vadd.f32 0.0, %v2293
  %2295 = vdwg.mxu0
  %v2296 = vadd.f32 %v2211, %v2294
  %v2297 = vxor.u32 %v2296, 2147483648
  %v2298 = vmul.f32 %v2297, 1.442695
  %v2299 = vpow.pop %v2298
  %v2300 = vadd.f32 %v2299, 1.0
  %v2301 = vrcp.pop %v2300
  %v2302 = vmul.f32 %v2300, %v2301
  %v2303 = vsub.f32 1.0, %v2302
  %v2304 = vmul.f32 %v2301, %v2303
  %v2305 = vadd.f32 %v2301, %v2304
  %vm2306 = vweird.f32 %v2300
  %vm2307 = vweird.f32 %v2301
  %vm2308 = vmor %vm2306, %vm2307
  %v2309 = vsel %vm2308, %v2301, %v2305
  %v2310 = vand.u32 2147483647, %v2300
  %vm2311 = vcmp.eq.f32.partialorder %v2310, 8.507059e+37
  %v2312 = vand.u32 %v2300, 2147483648
  %v2313 = vor.u32 1.1754944e-38, %v2312
  %v2314 = vsel %vm2311, %v2313, %v2309
  %v2315 = vmul.f32 1.0, %v2314
  %v2316 = vadd.f32 %v2294, %v523
  %2318 = vrot.lane.b32.xlu0 %v2316, 64
  %v2319 = vpop.permute.xlu0 %2318
  %v2321 = vmul.f32 %v2315, %v2319
  %2323 = vrot.lane.b32.xlu0 %v2321, 64
  %v2324 = vpop.permute.xlu0 %2323
  %v2326 = vadd.f32 %v2211, %v2324
  %v2327 = vtanh.pop %v2326
  %v2328 = vsub.f32 1.0, %v2315
  %2330 = vrot.lane.b32.xlu0 %v2327, 96
  %v2331 = vpop.permute.xlu0 %2330
  %v2333 = vmul.f32 %v2328, %v2331
  %v2334 = vmul.f32 %v2315, %v2197
  %v2335 = vadd.f32 %v2333, %v2334
  %2337 = vrot.lane.b32.xlu0 %v2273, 96
  %v2338 = vpop.permute.xlu0 %2337
  %s2340 = scalar_lea.vmem %s8, 104
  %2341 = vst.msk [vmem:[%s2340] sm:$0xff] %vm68, %v2338
  %2343 = vrot.lane.b32.xlu0 %v2335, 96
  %v2344 = vpop.permute.xlu0 %2343
  %s2346 = scalar_lea.vmem %s10, 104
  %2347 = vst.msk [vmem:[%s2346] sm:$0xff] %vm68, %v2344
  %v2348 = vld [vmem:[#allocation2 + $0x70] sm:$0xff]
  %v2349 = vld [vmem:[#allocation3 + $0x70] sm:$0xff]
  %v2350 = vsel %vm68, %v2338, 0
  %2352 = vmatpush.msra.mxu0 0.0
  %2353 = vmatpush.msra.mxu0 0.0
  %2354 = vmatpush.msra.mxu0 0.0
  %2355 = vmatpush.msra.mxu0 0.0
  %2356 = vmatpush.msra.mxu0 0.0
  %2357 = vmatpush.msra.mxu0 0.0
  %2358 = vmatpush.msra.mxu0 0.0
  %2359 = vmatpush.msra.mxu0 0.0
  %2360 = vmatpush.msra.mxu0 0.0
  %2361 = vmatpush.msra.mxu0 0.0
  %2362 = vmatpush.msra.mxu0 0.0
  %2363 = vmatpush.msra.mxu0 0.0
  %2364 = vmatpush.msra.mxu0 %v412
  %2365 = vmatpush.msra.mxu0 %v411
  %2366 = vmatpush.msra.mxu0 %v410
  %2367 = vmatpush.msra.mxu0 %v409
  %2368 = vmatmul.f32.gmra.mxu0 %v2350
  %v2369 = vpop.f32.mrf.mxu0
  %v2370 = vadd.f32 0.0, %v2369
  %2371 = vdwg.mxu0
  %v2372 = vadd.f32 %v2348, %v2370
  %v2373 = vxor.u32 %v2372, 2147483648
  %v2374 = vmul.f32 %v2373, 1.442695
  %v2375 = vpow.pop %v2374
  %v2376 = vadd.f32 %v2375, 1.0
  %v2377 = vrcp.pop %v2376
  %v2378 = vmul.f32 %v2376, %v2377
  %v2379 = vsub.f32 1.0, %v2378
  %v2380 = vmul.f32 %v2377, %v2379
  %v2381 = vadd.f32 %v2377, %v2380
  %vm2382 = vweird.f32 %v2376
  %vm2383 = vweird.f32 %v2377
  %vm2384 = vmor %vm2382, %vm2383
  %v2385 = vsel %vm2384, %v2377, %v2381
  %v2386 = vand.u32 2147483647, %v2376
  %vm2387 = vcmp.eq.f32.partialorder %v2386, 8.507059e+37
  %v2388 = vand.u32 %v2376, 2147483648
  %v2389 = vor.u32 1.1754944e-38, %v2388
  %v2390 = vsel %vm2387, %v2389, %v2385
  %v2391 = vmul.f32 1.0, %v2390
  %v2392 = vadd.f32 %v2370, %v462
  %2394 = vrot.lane.b32.xlu0 %v2392, 64
  %v2395 = vpop.permute.xlu0 %2394
  %v2397 = vmul.f32 %v2391, %v2395
  %2399 = vrot.lane.b32.xlu0 %v2397, 64
  %v2400 = vpop.permute.xlu0 %2399
  %v2402 = vadd.f32 %v2348, %v2400
  %v2403 = vtanh.pop %v2402
  %v2404 = vsub.f32 1.0, %v2391
  %2406 = vrot.lane.b32.xlu0 %v2403, 96
  %v2407 = vpop.permute.xlu0 %2406
  %v2409 = vmul.f32 %v2404, %v2407
  %v2410 = vmul.f32 %v2391, %v2273
  %v2411 = vadd.f32 %v2409, %v2410
  %v2412 = vsel %vm68, %v2344, 0
  %2414 = vmatpush.msra.mxu0 0.0
  %2415 = vmatpush.msra.mxu0 0.0
  %2416 = vmatpush.msra.mxu0 0.0
  %2417 = vmatpush.msra.mxu0 0.0
  %2418 = vmatpush.msra.mxu0 0.0
  %2419 = vmatpush.msra.mxu0 0.0
  %2420 = vmatpush.msra.mxu0 0.0
  %2421 = vmatpush.msra.mxu0 0.0
  %2422 = vmatpush.msra.mxu0 0.0
  %2423 = vmatpush.msra.mxu0 0.0
  %2424 = vmatpush.msra.mxu0 0.0
  %2425 = vmatpush.msra.mxu0 0.0
  %2426 = vmatpush.msra.mxu0 %v416
  %2427 = vmatpush.msra.mxu0 %v415
  %2428 = vmatpush.msra.mxu0 %v414
  %2429 = vmatpush.msra.mxu0 %v413
  %2430 = vmatmul.f32.gmra.mxu0 %v2412
  %v2431 = vpop.f32.mrf.mxu0
  %v2432 = vadd.f32 0.0, %v2431
  %2433 = vdwg.mxu0
  %v2434 = vadd.f32 %v2349, %v2432
  %v2435 = vxor.u32 %v2434, 2147483648
  %v2436 = vmul.f32 %v2435, 1.442695
  %v2437 = vpow.pop %v2436
  %v2438 = vadd.f32 %v2437, 1.0
  %v2439 = vrcp.pop %v2438
  %v2440 = vmul.f32 %v2438, %v2439
  %v2441 = vsub.f32 1.0, %v2440
  %v2442 = vmul.f32 %v2439, %v2441
  %v2443 = vadd.f32 %v2439, %v2442
  %vm2444 = vweird.f32 %v2438
  %vm2445 = vweird.f32 %v2439
  %vm2446 = vmor %vm2444, %vm2445
  %v2447 = vsel %vm2446, %v2439, %v2443
  %v2448 = vand.u32 2147483647, %v2438
  %vm2449 = vcmp.eq.f32.partialorder %v2448, 8.507059e+37
  %v2450 = vand.u32 %v2438, 2147483648
  %v2451 = vor.u32 1.1754944e-38, %v2450
  %v2452 = vsel %vm2449, %v2451, %v2447
  %v2453 = vmul.f32 1.0, %v2452
  %v2454 = vadd.f32 %v2432, %v523
  %2456 = vrot.lane.b32.xlu0 %v2454, 64
  %v2457 = vpop.permute.xlu0 %2456
  %v2459 = vmul.f32 %v2453, %v2457
  %2461 = vrot.lane.b32.xlu0 %v2459, 64
  %v2462 = vpop.permute.xlu0 %2461
  %v2464 = vadd.f32 %v2349, %v2462
  %v2465 = vtanh.pop %v2464
  %v2466 = vsub.f32 1.0, %v2453
  %2468 = vrot.lane.b32.xlu0 %v2465, 96
  %v2469 = vpop.permute.xlu0 %2468
  %v2471 = vmul.f32 %v2466, %v2469
  %v2472 = vmul.f32 %v2453, %v2335
  %v2473 = vadd.f32 %v2471, %v2472
  %2475 = vrot.lane.b32.xlu0 %v2411, 96
  %v2476 = vpop.permute.xlu0 %2475
  %s2478 = scalar_lea.vmem %s8, 112
  %2479 = vst.msk [vmem:[%s2478] sm:$0xff] %vm68, %v2476
  %2481 = vrot.lane.b32.xlu0 %v2473, 96
  %v2482 = vpop.permute.xlu0 %2481
  %s2484 = scalar_lea.vmem %s10, 112
  %2485 = vst.msk [vmem:[%s2484] sm:$0xff] %vm68, %v2482
  %v2486 = vld [vmem:[#allocation2 + $0x78] sm:$0xff]
  %v2487 = vld [vmem:[#allocation3 + $0x78] sm:$0xff]
  %v2488 = vsel %vm68, %v2476, 0
  %2490 = vmatpush.msra.mxu0 0.0
  %2491 = vmatpush.msra.mxu0 0.0
  %2492 = vmatpush.msra.mxu0 0.0
  %2493 = vmatpush.msra.mxu0 0.0
  %2494 = vmatpush.msra.mxu0 0.0
  %2495 = vmatpush.msra.mxu0 0.0
  %2496 = vmatpush.msra.mxu0 0.0
  %2497 = vmatpush.msra.mxu0 0.0
  %2498 = vmatpush.msra.mxu0 0.0
  %2499 = vmatpush.msra.mxu0 0.0
  %2500 = vmatpush.msra.mxu0 0.0
  %2501 = vmatpush.msra.mxu0 0.0
  %2502 = vmatpush.msra.mxu0 %v412
  %2503 = vmatpush.msra.mxu0 %v411
  %2504 = vmatpush.msra.mxu0 %v410
  %2505 = vmatpush.msra.mxu0 %v409
  %2506 = vmatmul.f32.gmra.mxu0 %v2488
  %v2507 = vpop.f32.mrf.mxu0
  %v2508 = vadd.f32 0.0, %v2507
  %2509 = vdwg.mxu0
  %v2510 = vadd.f32 %v2486, %v2508
  %v2511 = vxor.u32 %v2510, 2147483648
  %v2512 = vmul.f32 %v2511, 1.442695
  %v2513 = vpow.pop %v2512
  %v2514 = vadd.f32 %v2513, 1.0
  %v2515 = vrcp.pop %v2514
  %v2516 = vmul.f32 %v2514, %v2515
  %v2517 = vsub.f32 1.0, %v2516
  %v2518 = vmul.f32 %v2515, %v2517
  %v2519 = vadd.f32 %v2515, %v2518
  %vm2520 = vweird.f32 %v2514
  %vm2521 = vweird.f32 %v2515
  %vm2522 = vmor %vm2520, %vm2521
  %v2523 = vsel %vm2522, %v2515, %v2519
  %v2524 = vand.u32 2147483647, %v2514
  %vm2525 = vcmp.eq.f32.partialorder %v2524, 8.507059e+37
  %v2526 = vand.u32 %v2514, 2147483648
  %v2527 = vor.u32 1.1754944e-38, %v2526
  %v2528 = vsel %vm2525, %v2527, %v2523
  %v2529 = vmul.f32 1.0, %v2528
  %v2530 = vadd.f32 %v2508, %v462
  %2532 = vrot.lane.b32.xlu0 %v2530, 64
  %v2533 = vpop.permute.xlu0 %2532
  %v2535 = vmul.f32 %v2529, %v2533
  %2537 = vrot.lane.b32.xlu0 %v2535, 64
  %v2538 = vpop.permute.xlu0 %2537
  %v2540 = vadd.f32 %v2486, %v2538
  %v2541 = vtanh.pop %v2540
  %v2542 = vsub.f32 1.0, %v2529
  %2544 = vrot.lane.b32.xlu0 %v2541, 96
  %v2545 = vpop.permute.xlu0 %2544
  %v2547 = vmul.f32 %v2542, %v2545
  %v2548 = vmul.f32 %v2529, %v2411
  %v2549 = vadd.f32 %v2547, %v2548
  %v2550 = vsel %vm68, %v2482, 0
  %2552 = vmatpush.msra.mxu0 0.0
  %2553 = vmatpush.msra.mxu0 0.0
  %2554 = vmatpush.msra.mxu0 0.0
  %2555 = vmatpush.msra.mxu0 0.0
  %2556 = vmatpush.msra.mxu0 0.0
  %2557 = vmatpush.msra.mxu0 0.0
  %2558 = vmatpush.msra.mxu0 0.0
  %2559 = vmatpush.msra.mxu0 0.0
  %2560 = vmatpush.msra.mxu0 0.0
  %2561 = vmatpush.msra.mxu0 0.0
  %2562 = vmatpush.msra.mxu0 0.0
  %2563 = vmatpush.msra.mxu0 0.0
  %2564 = vmatpush.msra.mxu0 %v416
  %2565 = vmatpush.msra.mxu0 %v415
  %2566 = vmatpush.msra.mxu0 %v414
  %2567 = vmatpush.msra.mxu0 %v413
  %2568 = vmatmul.f32.gmra.mxu0 %v2550
  %v2569 = vpop.f32.mrf.mxu0
  %v2570 = vadd.f32 0.0, %v2569
  %2571 = vdwg.mxu0
  %v2572 = vadd.f32 %v2487, %v2570
  %v2573 = vxor.u32 %v2572, 2147483648
  %v2574 = vmul.f32 %v2573, 1.442695
  %v2575 = vpow.pop %v2574
  %v2576 = vadd.f32 %v2575, 1.0
  %v2577 = vrcp.pop %v2576
  %v2578 = vmul.f32 %v2576, %v2577
  %v2579 = vsub.f32 1.0, %v2578
  %v2580 = vmul.f32 %v2577, %v2579
  %v2581 = vadd.f32 %v2577, %v2580
  %vm2582 = vweird.f32 %v2576
  %vm2583 = vweird.f32 %v2577
  %vm2584 = vmor %vm2582, %vm2583
  %v2585 = vsel %vm2584, %v2577, %v2581
  %v2586 = vand.u32 2147483647, %v2576
  %vm2587 = vcmp.eq.f32.partialorder %v2586, 8.507059e+37
  %v2588 = vand.u32 %v2576, 2147483648
  %v2589 = vor.u32 1.1754944e-38, %v2588
  %v2590 = vsel %vm2587, %v2589, %v2585
  %v2591 = vmul.f32 1.0, %v2590
  %v2592 = vadd.f32 %v2570, %v523
  %2594 = vrot.lane.b32.xlu0 %v2592, 64
  %v2595 = vpop.permute.xlu0 %2594
  %v2597 = vmul.f32 %v2591, %v2595
  %2599 = vrot.lane.b32.xlu0 %v2597, 64
  %v2600 = vpop.permute.xlu0 %2599
  %v2602 = vadd.f32 %v2487, %v2600
  %v2603 = vtanh.pop %v2602
  %v2604 = vsub.f32 1.0, %v2591
  %2606 = vrot.lane.b32.xlu0 %v2603, 96
  %v2607 = vpop.permute.xlu0 %2606
  %v2609 = vmul.f32 %v2604, %v2607
  %v2610 = vmul.f32 %v2591, %v2473
  %v2611 = vadd.f32 %v2609, %v2610
  %2613 = vrot.lane.b32.xlu0 %v2549, 96
  %v2614 = vpop.permute.xlu0 %2613
  %s2616 = scalar_lea.vmem %s8, 120
  %2617 = vst.msk [vmem:[%s2616] sm:$0xff] %vm68, %v2614
  %2619 = vrot.lane.b32.xlu0 %v2611, 96
  %v2620 = vpop.permute.xlu0 %2619
  %s2622 = scalar_lea.vmem %s10, 120
  %2623 = vst.msk [vmem:[%s2622] sm:$0xff] %vm68, %v2620
  %v2624 = vld [vmem:[#allocation2 + $0x80] sm:$0xff]
  %v2625 = vld [vmem:[#allocation3 + $0x80] sm:$0xff]
  %v2626 = vsel %vm68, %v2614, 0
  %2628 = vmatpush.msra.mxu0 0.0
  %2629 = vmatpush.msra.mxu0 0.0
  %2630 = vmatpush.msra.mxu0 0.0
  %2631 = vmatpush.msra.mxu0 0.0
  %2632 = vmatpush.msra.mxu0 0.0
  %2633 = vmatpush.msra.mxu0 0.0
  %2634 = vmatpush.msra.mxu0 0.0
  %2635 = vmatpush.msra.mxu0 0.0
  %2636 = vmatpush.msra.mxu0 0.0
  %2637 = vmatpush.msra.mxu0 0.0
  %2638 = vmatpush.msra.mxu0 0.0
  %2639 = vmatpush.msra.mxu0 0.0
  %2640 = vmatpush.msra.mxu0 %v412
  %2641 = vmatpush.msra.mxu0 %v411
  %2642 = vmatpush.msra.mxu0 %v410
  %2643 = vmatpush.msra.mxu0 %v409
  %2644 = vmatmul.f32.gmra.mxu0 %v2626
  %v2645 = vpop.f32.mrf.mxu0
  %v2646 = vadd.f32 0.0, %v2645
  %2647 = vdwg.mxu0
  %v2648 = vadd.f32 %v2624, %v2646
  %v2649 = vxor.u32 %v2648, 2147483648
  %v2650 = vmul.f32 %v2649, 1.442695
  %v2651 = vpow.pop %v2650
  %v2652 = vadd.f32 %v2651, 1.0
  %v2653 = vrcp.pop %v2652
  %v2654 = vmul.f32 %v2652, %v2653
  %v2655 = vsub.f32 1.0, %v2654
  %v2656 = vmul.f32 %v2653, %v2655
  %v2657 = vadd.f32 %v2653, %v2656
  %vm2658 = vweird.f32 %v2652
  %vm2659 = vweird.f32 %v2653
  %vm2660 = vmor %vm2658, %vm2659
  %v2661 = vsel %vm2660, %v2653, %v2657
  %v2662 = vand.u32 2147483647, %v2652
  %vm2663 = vcmp.eq.f32.partialorder %v2662, 8.507059e+37
  %v2664 = vand.u32 %v2652, 2147483648
  %v2665 = vor.u32 1.1754944e-38, %v2664
  %v2666 = vsel %vm2663, %v2665, %v2661
  %v2667 = vmul.f32 1.0, %v2666
  %v2668 = vadd.f32 %v2646, %v462
  %2670 = vrot.lane.b32.xlu0 %v2668, 64
  %v2671 = vpop.permute.xlu0 %2670
  %v2673 = vmul.f32 %v2667, %v2671
  %2675 = vrot.lane.b32.xlu0 %v2673, 64
  %v2676 = vpop.permute.xlu0 %2675
  %v2678 = vadd.f32 %v2624, %v2676
  %v2679 = vtanh.pop %v2678
  %v2680 = vsub.f32 1.0, %v2667
  %2682 = vrot.lane.b32.xlu0 %v2679, 96
  %v2683 = vpop.permute.xlu0 %2682
  %v2685 = vmul.f32 %v2680, %v2683
  %v2686 = vmul.f32 %v2667, %v2549
  %v2687 = vadd.f32 %v2685, %v2686
  %v2688 = vsel %vm68, %v2620, 0
  %2690 = vmatpush.msra.mxu0 0.0
  %2691 = vmatpush.msra.mxu0 0.0
  %2692 = vmatpush.msra.mxu0 0.0
  %2693 = vmatpush.msra.mxu0 0.0
  %2694 = vmatpush.msra.mxu0 0.0
  %2695 = vmatpush.msra.mxu0 0.0
  %2696 = vmatpush.msra.mxu0 0.0
  %2697 = vmatpush.msra.mxu0 0.0
  %2698 = vmatpush.msra.mxu0 0.0
  %2699 = vmatpush.msra.mxu0 0.0
  %2700 = vmatpush.msra.mxu0 0.0
  %2701 = vmatpush.msra.mxu0 0.0
  %2702 = vmatpush.msra.mxu0 %v416
  %2703 = vmatpush.msra.mxu0 %v415
  %2704 = vmatpush.msra.mxu0 %v414
  %2705 = vmatpush.msra.mxu0 %v413
  %2706 = vmatmul.f32.gmra.mxu0 %v2688
  %v2707 = vpop.f32.mrf.mxu0
  %v2708 = vadd.f32 0.0, %v2707
  %2709 = vdwg.mxu0
  %v2710 = vadd.f32 %v2625, %v2708
  %v2711 = vxor.u32 %v2710, 2147483648
  %v2712 = vmul.f32 %v2711, 1.442695
  %v2713 = vpow.pop %v2712
  %v2714 = vadd.f32 %v2713, 1.0
  %v2715 = vrcp.pop %v2714
  %v2716 = vmul.f32 %v2714, %v2715
  %v2717 = vsub.f32 1.0, %v2716
  %v2718 = vmul.f32 %v2715, %v2717
  %v2719 = vadd.f32 %v2715, %v2718
  %vm2720 = vweird.f32 %v2714
  %vm2721 = vweird.f32 %v2715
  %vm2722 = vmor %vm2720, %vm2721
  %v2723 = vsel %vm2722, %v2715, %v2719
  %v2724 = vand.u32 2147483647, %v2714
  %vm2725 = vcmp.eq.f32.partialorder %v2724, 8.507059e+37
  %v2726 = vand.u32 %v2714, 2147483648
  %v2727 = vor.u32 1.1754944e-38, %v2726
  %v2728 = vsel %vm2725, %v2727, %v2723
  %v2729 = vmul.f32 1.0, %v2728
  %v2730 = vadd.f32 %v2708, %v523
  %2732 = vrot.lane.b32.xlu0 %v2730, 64
  %v2733 = vpop.permute.xlu0 %2732
  %v2735 = vmul.f32 %v2729, %v2733
  %2737 = vrot.lane.b32.xlu0 %v2735, 64
  %v2738 = vpop.permute.xlu0 %2737
  %v2740 = vadd.f32 %v2625, %v2738
  %v2741 = vtanh.pop %v2740
  %v2742 = vsub.f32 1.0, %v2729
  %2744 = vrot.lane.b32.xlu0 %v2741, 96
  %v2745 = vpop.permute.xlu0 %2744
  %v2747 = vmul.f32 %v2742, %v2745
  %v2748 = vmul.f32 %v2729, %v2611
  %v2749 = vadd.f32 %v2747, %v2748
  %2751 = vrot.lane.b32.xlu0 %v2687, 96
  %v2752 = vpop.permute.xlu0 %2751
  %s2754 = scalar_lea.vmem %s8, 128
  %2755 = vst.msk [vmem:[%s2754] sm:$0xff] %vm68, %v2752
  %2757 = vrot.lane.b32.xlu0 %v2749, 96
  %v2758 = vpop.permute.xlu0 %2757
  %s2760 = scalar_lea.vmem %s10, 128
  %2761 = vst.msk [vmem:[%s2760] sm:$0xff] %vm68, %v2758
  %v2762 = vld [vmem:[#allocation2 + $0x88] sm:$0xff]
  %v2763 = vld [vmem:[#allocation3 + $0x88] sm:$0xff]
  %v2764 = vsel %vm68, %v2752, 0
  %2766 = vmatpush.msra.mxu0 0.0
  %2767 = vmatpush.msra.mxu0 0.0
  %2768 = vmatpush.msra.mxu0 0.0
  %2769 = vmatpush.msra.mxu0 0.0
  %2770 = vmatpush.msra.mxu0 0.0
  %2771 = vmatpush.msra.mxu0 0.0
  %2772 = vmatpush.msra.mxu0 0.0
  %2773 = vmatpush.msra.mxu0 0.0
  %2774 = vmatpush.msra.mxu0 0.0
  %2775 = vmatpush.msra.mxu0 0.0
  %2776 = vmatpush.msra.mxu0 0.0
  %2777 = vmatpush.msra.mxu0 0.0
  %2778 = vmatpush.msra.mxu0 %v412
  %2779 = vmatpush.msra.mxu0 %v411
  %2780 = vmatpush.msra.mxu0 %v410
  %2781 = vmatpush.msra.mxu0 %v409
  %2782 = vmatmul.f32.gmra.mxu0 %v2764
  %v2783 = vpop.f32.mrf.mxu0
  %v2784 = vadd.f32 0.0, %v2783
  %2785 = vdwg.mxu0
  %v2786 = vadd.f32 %v2762, %v2784
  %v2787 = vxor.u32 %v2786, 2147483648
  %v2788 = vmul.f32 %v2787, 1.442695
  %v2789 = vpow.pop %v2788
  %v2790 = vadd.f32 %v2789, 1.0
  %v2791 = vrcp.pop %v2790
  %v2792 = vmul.f32 %v2790, %v2791
  %v2793 = vsub.f32 1.0, %v2792
  %v2794 = vmul.f32 %v2791, %v2793
  %v2795 = vadd.f32 %v2791, %v2794
  %vm2796 = vweird.f32 %v2790
  %vm2797 = vweird.f32 %v2791
  %vm2798 = vmor %vm2796, %vm2797
  %v2799 = vsel %vm2798, %v2791, %v2795
  %v2800 = vand.u32 2147483647, %v2790
  %vm2801 = vcmp.eq.f32.partialorder %v2800, 8.507059e+37
  %v2802 = vand.u32 %v2790, 2147483648
  %v2803 = vor.u32 1.1754944e-38, %v2802
  %v2804 = vsel %vm2801, %v2803, %v2799
  %v2805 = vmul.f32 1.0, %v2804
  %v2806 = vadd.f32 %v2784, %v462
  %2808 = vrot.lane.b32.xlu0 %v2806, 64
  %v2809 = vpop.permute.xlu0 %2808
  %v2811 = vmul.f32 %v2805, %v2809
  %2813 = vrot.lane.b32.xlu0 %v2811, 64
  %v2814 = vpop.permute.xlu0 %2813
  %v2816 = vadd.f32 %v2762, %v2814
  %v2817 = vtanh.pop %v2816
  %v2818 = vsub.f32 1.0, %v2805
  %2820 = vrot.lane.b32.xlu0 %v2817, 96
  %v2821 = vpop.permute.xlu0 %2820
  %v2823 = vmul.f32 %v2818, %v2821
  %v2824 = vmul.f32 %v2805, %v2687
  %v2825 = vadd.f32 %v2823, %v2824
  %v2826 = vsel %vm68, %v2758, 0
  %2828 = vmatpush.msra.mxu0 0.0
  %2829 = vmatpush.msra.mxu0 0.0
  %2830 = vmatpush.msra.mxu0 0.0
  %2831 = vmatpush.msra.mxu0 0.0
  %2832 = vmatpush.msra.mxu0 0.0
  %2833 = vmatpush.msra.mxu0 0.0
  %2834 = vmatpush.msra.mxu0 0.0
  %2835 = vmatpush.msra.mxu0 0.0
  %2836 = vmatpush.msra.mxu0 0.0
  %2837 = vmatpush.msra.mxu0 0.0
  %2838 = vmatpush.msra.mxu0 0.0
  %2839 = vmatpush.msra.mxu0 0.0
  %2840 = vmatpush.msra.mxu0 %v416
  %2841 = vmatpush.msra.mxu0 %v415
  %2842 = vmatpush.msra.mxu0 %v414
  %2843 = vmatpush.msra.mxu0 %v413
  %2844 = vmatmul.f32.gmra.mxu0 %v2826
  %v2845 = vpop.f32.mrf.mxu0
  %v2846 = vadd.f32 0.0, %v2845
  %2847 = vdwg.mxu0
  %v2848 = vadd.f32 %v2763, %v2846
  %v2849 = vxor.u32 %v2848, 2147483648
  %v2850 = vmul.f32 %v2849, 1.442695
  %v2851 = vpow.pop %v2850
  %v2852 = vadd.f32 %v2851, 1.0
  %v2853 = vrcp.pop %v2852
  %v2854 = vmul.f32 %v2852, %v2853
  %v2855 = vsub.f32 1.0, %v2854
  %v2856 = vmul.f32 %v2853, %v2855
  %v2857 = vadd.f32 %v2853, %v2856
  %vm2858 = vweird.f32 %v2852
  %vm2859 = vweird.f32 %v2853
  %vm2860 = vmor %vm2858, %vm2859
  %v2861 = vsel %vm2860, %v2853, %v2857
  %v2862 = vand.u32 2147483647, %v2852
  %vm2863 = vcmp.eq.f32.partialorder %v2862, 8.507059e+37
  %v2864 = vand.u32 %v2852, 2147483648
  %v2865 = vor.u32 1.1754944e-38, %v2864
  %v2866 = vsel %vm2863, %v2865, %v2861
  %v2867 = vmul.f32 1.0, %v2866
  %v2868 = vadd.f32 %v2846, %v523
  %2870 = vrot.lane.b32.xlu0 %v2868, 64
  %v2871 = vpop.permute.xlu0 %2870
  %v2873 = vmul.f32 %v2867, %v2871
  %2875 = vrot.lane.b32.xlu0 %v2873, 64
  %v2876 = vpop.permute.xlu0 %2875
  %v2878 = vadd.f32 %v2763, %v2876
  %v2879 = vtanh.pop %v2878
  %v2880 = vsub.f32 1.0, %v2867
  %2882 = vrot.lane.b32.xlu0 %v2879, 96
  %v2883 = vpop.permute.xlu0 %2882
  %v2885 = vmul.f32 %v2880, %v2883
  %v2886 = vmul.f32 %v2867, %v2749
  %v2887 = vadd.f32 %v2885, %v2886
  %2889 = vrot.lane.b32.xlu0 %v2825, 96
  %v2890 = vpop.permute.xlu0 %2889
  %s2892 = scalar_lea.vmem %s8, 136
  %2893 = vst.msk [vmem:[%s2892] sm:$0xff] %vm68, %v2890
  %2895 = vrot.lane.b32.xlu0 %v2887, 96
  %v2896 = vpop.permute.xlu0 %2895
  %s2898 = scalar_lea.vmem %s10, 136
  %2899 = vst.msk [vmem:[%s2898] sm:$0xff] %vm68, %v2896
  %v2900 = vld [vmem:[#allocation2 + $0x90] sm:$0xff]
  %v2901 = vld [vmem:[#allocation3 + $0x90] sm:$0xff]
  %v2902 = vsel %vm68, %v2890, 0
  %2904 = vmatpush.msra.mxu0 0.0
  %2905 = vmatpush.msra.mxu0 0.0
  %2906 = vmatpush.msra.mxu0 0.0
  %2907 = vmatpush.msra.mxu0 0.0
  %2908 = vmatpush.msra.mxu0 0.0
  %2909 = vmatpush.msra.mxu0 0.0
  %2910 = vmatpush.msra.mxu0 0.0
  %2911 = vmatpush.msra.mxu0 0.0
  %2912 = vmatpush.msra.mxu0 0.0
  %2913 = vmatpush.msra.mxu0 0.0
  %2914 = vmatpush.msra.mxu0 0.0
  %2915 = vmatpush.msra.mxu0 0.0
  %2916 = vmatpush.msra.mxu0 %v412
  %2917 = vmatpush.msra.mxu0 %v411
  %2918 = vmatpush.msra.mxu0 %v410
  %2919 = vmatpush.msra.mxu0 %v409
  %2920 = vmatmul.f32.gmra.mxu0 %v2902
  %v2921 = vpop.f32.mrf.mxu0
  %v2922 = vadd.f32 0.0, %v2921
  %2923 = vdwg.mxu0
  %v2924 = vadd.f32 %v2900, %v2922
  %v2925 = vxor.u32 %v2924, 2147483648
  %v2926 = vmul.f32 %v2925, 1.442695
  %v2927 = vpow.pop %v2926
  %v2928 = vadd.f32 %v2927, 1.0
  %v2929 = vrcp.pop %v2928
  %v2930 = vmul.f32 %v2928, %v2929
  %v2931 = vsub.f32 1.0, %v2930
  %v2932 = vmul.f32 %v2929, %v2931
  %v2933 = vadd.f32 %v2929, %v2932
  %vm2934 = vweird.f32 %v2928
  %vm2935 = vweird.f32 %v2929
  %vm2936 = vmor %vm2934, %vm2935
  %v2937 = vsel %vm2936, %v2929, %v2933
  %v2938 = vand.u32 2147483647, %v2928
  %vm2939 = vcmp.eq.f32.partialorder %v2938, 8.507059e+37
  %v2940 = vand.u32 %v2928, 2147483648
  %v2941 = vor.u32 1.1754944e-38, %v2940
  %v2942 = vsel %vm2939, %v2941, %v2937
  %v2943 = vmul.f32 1.0, %v2942
  %v2944 = vadd.f32 %v2922, %v462
  %2946 = vrot.lane.b32.xlu0 %v2944, 64
  %v2947 = vpop.permute.xlu0 %2946
  %v2949 = vmul.f32 %v2943, %v2947
  %2951 = vrot.lane.b32.xlu0 %v2949, 64
  %v2952 = vpop.permute.xlu0 %2951
  %v2954 = vadd.f32 %v2900, %v2952
  %v2955 = vtanh.pop %v2954
  %v2956 = vsub.f32 1.0, %v2943
  %2958 = vrot.lane.b32.xlu0 %v2955, 96
  %v2959 = vpop.permute.xlu0 %2958
  %v2961 = vmul.f32 %v2956, %v2959
  %v2962 = vmul.f32 %v2943, %v2825
  %v2963 = vadd.f32 %v2961, %v2962
  %v2964 = vsel %vm68, %v2896, 0
  %2966 = vmatpush.msra.mxu0 0.0
  %2967 = vmatpush.msra.mxu0 0.0
  %2968 = vmatpush.msra.mxu0 0.0
  %2969 = vmatpush.msra.mxu0 0.0
  %2970 = vmatpush.msra.mxu0 0.0
  %2971 = vmatpush.msra.mxu0 0.0
  %2972 = vmatpush.msra.mxu0 0.0
  %2973 = vmatpush.msra.mxu0 0.0
  %2974 = vmatpush.msra.mxu0 0.0
  %2975 = vmatpush.msra.mxu0 0.0
  %2976 = vmatpush.msra.mxu0 0.0
  %2977 = vmatpush.msra.mxu0 0.0
  %2978 = vmatpush.msra.mxu0 %v416
  %2979 = vmatpush.msra.mxu0 %v415
  %2980 = vmatpush.msra.mxu0 %v414
  %2981 = vmatpush.msra.mxu0 %v413
  %2982 = vmatmul.f32.gmra.mxu0 %v2964
  %v2983 = vpop.f32.mrf.mxu0
  %v2984 = vadd.f32 0.0, %v2983
  %2985 = vdwg.mxu0
  %v2986 = vadd.f32 %v2901, %v2984
  %v2987 = vxor.u32 %v2986, 2147483648
  %v2988 = vmul.f32 %v2987, 1.442695
  %v2989 = vpow.pop %v2988
  %v2990 = vadd.f32 %v2989, 1.0
  %v2991 = vrcp.pop %v2990
  %v2992 = vmul.f32 %v2990, %v2991
  %v2993 = vsub.f32 1.0, %v2992
  %v2994 = vmul.f32 %v2991, %v2993
  %v2995 = vadd.f32 %v2991, %v2994
  %vm2996 = vweird.f32 %v2990
  %vm2997 = vweird.f32 %v2991
  %vm2998 = vmor %vm2996, %vm2997
  %v2999 = vsel %vm2998, %v2991, %v2995
  %v3000 = vand.u32 2147483647, %v2990
  %vm3001 = vcmp.eq.f32.partialorder %v3000, 8.507059e+37
  %v3002 = vand.u32 %v2990, 2147483648
  %v3003 = vor.u32 1.1754944e-38, %v3002
  %v3004 = vsel %vm3001, %v3003, %v2999
  %v3005 = vmul.f32 1.0, %v3004
  %v3006 = vadd.f32 %v2984, %v523
  %3008 = vrot.lane.b32.xlu0 %v3006, 64
  %v3009 = vpop.permute.xlu0 %3008
  %v3011 = vmul.f32 %v3005, %v3009
  %3013 = vrot.lane.b32.xlu0 %v3011, 64
  %v3014 = vpop.permute.xlu0 %3013
  %v3016 = vadd.f32 %v2901, %v3014
  %v3017 = vtanh.pop %v3016
  %v3018 = vsub.f32 1.0, %v3005
  %3020 = vrot.lane.b32.xlu0 %v3017, 96
  %v3021 = vpop.permute.xlu0 %3020
  %v3023 = vmul.f32 %v3018, %v3021
  %v3024 = vmul.f32 %v3005, %v2887
  %v3025 = vadd.f32 %v3023, %v3024
  %3027 = vrot.lane.b32.xlu0 %v2963, 96
  %v3028 = vpop.permute.xlu0 %3027
  %s3030 = scalar_lea.vmem %s8, 144
  %3031 = vst.msk [vmem:[%s3030] sm:$0xff] %vm68, %v3028
  %3033 = vrot.lane.b32.xlu0 %v3025, 96
  %v3034 = vpop.permute.xlu0 %3033
  %s3036 = scalar_lea.vmem %s10, 144
  %3037 = vst.msk [vmem:[%s3036] sm:$0xff] %vm68, %v3034
  %v3038 = vld [vmem:[#allocation2 + $0x98] sm:$0xff]
  %v3039 = vld [vmem:[#allocation3 + $0x98] sm:$0xff]
  %v3040 = vsel %vm68, %v3028, 0
  %3042 = vmatpush.msra.mxu0 0.0
  %3043 = vmatpush.msra.mxu0 0.0
  %3044 = vmatpush.msra.mxu0 0.0
  %3045 = vmatpush.msra.mxu0 0.0
  %3046 = vmatpush.msra.mxu0 0.0
  %3047 = vmatpush.msra.mxu0 0.0
  %3048 = vmatpush.msra.mxu0 0.0
  %3049 = vmatpush.msra.mxu0 0.0
  %3050 = vmatpush.msra.mxu0 0.0
  %3051 = vmatpush.msra.mxu0 0.0
  %3052 = vmatpush.msra.mxu0 0.0
  %3053 = vmatpush.msra.mxu0 0.0
  %3054 = vmatpush.msra.mxu0 %v412
  %3055 = vmatpush.msra.mxu0 %v411
  %3056 = vmatpush.msra.mxu0 %v410
  %3057 = vmatpush.msra.mxu0 %v409
  %3058 = vmatmul.f32.gmra.mxu0 %v3040
  %v3059 = vpop.f32.mrf.mxu0
  %v3060 = vadd.f32 0.0, %v3059
  %3061 = vdwg.mxu0
  %v3062 = vadd.f32 %v3038, %v3060
  %v3063 = vxor.u32 %v3062, 2147483648
  %v3064 = vmul.f32 %v3063, 1.442695
  %v3065 = vpow.pop %v3064
  %v3066 = vadd.f32 %v3065, 1.0
  %v3067 = vrcp.pop %v3066
  %v3068 = vmul.f32 %v3066, %v3067
  %v3069 = vsub.f32 1.0, %v3068
  %v3070 = vmul.f32 %v3067, %v3069
  %v3071 = vadd.f32 %v3067, %v3070
  %vm3072 = vweird.f32 %v3066
  %vm3073 = vweird.f32 %v3067
  %vm3074 = vmor %vm3072, %vm3073
  %v3075 = vsel %vm3074, %v3067, %v3071
  %v3076 = vand.u32 2147483647, %v3066
  %vm3077 = vcmp.eq.f32.partialorder %v3076, 8.507059e+37
  %v3078 = vand.u32 %v3066, 2147483648
  %v3079 = vor.u32 1.1754944e-38, %v3078
  %v3080 = vsel %vm3077, %v3079, %v3075
  %v3081 = vmul.f32 1.0, %v3080
  %v3082 = vadd.f32 %v3060, %v462
  %3084 = vrot.lane.b32.xlu0 %v3082, 64
  %v3085 = vpop.permute.xlu0 %3084
  %v3087 = vmul.f32 %v3081, %v3085
  %3089 = vrot.lane.b32.xlu0 %v3087, 64
  %v3090 = vpop.permute.xlu0 %3089
  %v3092 = vadd.f32 %v3038, %v3090
  %v3093 = vtanh.pop %v3092
  %v3094 = vsub.f32 1.0, %v3081
  %3096 = vrot.lane.b32.xlu0 %v3093, 96
  %v3097 = vpop.permute.xlu0 %3096
  %v3099 = vmul.f32 %v3094, %v3097
  %v3100 = vmul.f32 %v3081, %v2963
  %v3101 = vadd.f32 %v3099, %v3100
  %v3102 = vsel %vm68, %v3034, 0
  %3104 = vmatpush.msra.mxu0 0.0
  %3105 = vmatpush.msra.mxu0 0.0
  %3106 = vmatpush.msra.mxu0 0.0
  %3107 = vmatpush.msra.mxu0 0.0
  %3108 = vmatpush.msra.mxu0 0.0
  %3109 = vmatpush.msra.mxu0 0.0
  %3110 = vmatpush.msra.mxu0 0.0
  %3111 = vmatpush.msra.mxu0 0.0
  %3112 = vmatpush.msra.mxu0 0.0
  %3113 = vmatpush.msra.mxu0 0.0
  %3114 = vmatpush.msra.mxu0 0.0
  %3115 = vmatpush.msra.mxu0 0.0
  %3116 = vmatpush.msra.mxu0 %v416
  %3117 = vmatpush.msra.mxu0 %v415
  %3118 = vmatpush.msra.mxu0 %v414
  %3119 = vmatpush.msra.mxu0 %v413
  %3120 = vmatmul.f32.gmra.mxu0 %v3102
  %v3121 = vpop.f32.mrf.mxu0
  %v3122 = vadd.f32 0.0, %v3121
  %3123 = vdwg.mxu0
  %v3124 = vadd.f32 %v3039, %v3122
  %v3125 = vxor.u32 %v3124, 2147483648
  %v3126 = vmul.f32 %v3125, 1.442695
  %v3127 = vpow.pop %v3126
  %v3128 = vadd.f32 %v3127, 1.0
  %v3129 = vrcp.pop %v3128
  %v3130 = vmul.f32 %v3128, %v3129
  %v3131 = vsub.f32 1.0, %v3130
  %v3132 = vmul.f32 %v3129, %v3131
  %v3133 = vadd.f32 %v3129, %v3132
  %vm3134 = vweird.f32 %v3128
  %vm3135 = vweird.f32 %v3129
  %vm3136 = vmor %vm3134, %vm3135
  %v3137 = vsel %vm3136, %v3129, %v3133
  %v3138 = vand.u32 2147483647, %v3128
  %vm3139 = vcmp.eq.f32.partialorder %v3138, 8.507059e+37
  %v3140 = vand.u32 %v3128, 2147483648
  %v3141 = vor.u32 1.1754944e-38, %v3140
  %v3142 = vsel %vm3139, %v3141, %v3137
  %v3143 = vmul.f32 1.0, %v3142
  %v3144 = vadd.f32 %v3122, %v523
  %3146 = vrot.lane.b32.xlu0 %v3144, 64
  %v3147 = vpop.permute.xlu0 %3146
  %v3149 = vmul.f32 %v3143, %v3147
  %3151 = vrot.lane.b32.xlu0 %v3149, 64
  %v3152 = vpop.permute.xlu0 %3151
  %v3154 = vadd.f32 %v3039, %v3152
  %v3155 = vtanh.pop %v3154
  %v3156 = vsub.f32 1.0, %v3143
  %3158 = vrot.lane.b32.xlu0 %v3155, 96
  %v3159 = vpop.permute.xlu0 %3158
  %v3161 = vmul.f32 %v3156, %v3159
  %v3162 = vmul.f32 %v3143, %v3025
  %v3163 = vadd.f32 %v3161, %v3162
  %3165 = vrot.lane.b32.xlu0 %v3101, 96
  %v3166 = vpop.permute.xlu0 %3165
  %s3168 = scalar_lea.vmem %s8, 152
  %3169 = vst.msk [vmem:[%s3168] sm:$0xff] %vm68, %v3166
  %3171 = vrot.lane.b32.xlu0 %v3163, 96
  %v3172 = vpop.permute.xlu0 %3171
  %s3174 = scalar_lea.vmem %s10, 152
  %3175 = vst.msk [vmem:[%s3174] sm:$0xff] %vm68, %v3172
  %3176 = vst.msk [vmem:[%s9] sm:$0xff] %vm68, %v3166
  // Predicated region
  $region34: #{_lambda_.2} parent=0 // pred_check
    _
  $region35: #{_lambda_.2} parent=0 // pred_check_branch
    %3178 = sbr.rel (0) target = $region37
  $region36: #{_lambda_.2} parent=0 // pred_region
    _
  $region37: #{_lambda_.2} parent=0 // pred_fallthru
    _
  // Predicated region
  $region38: #{_lambda_.2} parent=0 // pred_check
    _
  $region39: #{_lambda_.2} parent=0 // pred_check_branch
    %3180 = sbr.rel (0) target = $region41
  $region40: #{_lambda_.2} parent=0 // pred_region
    _
  $region41: #{_lambda_.2} parent=0 // pred_fallthru
    _
  // Predicated region
  $region42: #{_lambda_.2} parent=0 // pred_check
    _
  $region43: #{_lambda_.2} parent=0 // pred_check_branch
    %3182 = sbr.rel (0) target = $region45
  $region44: #{_lambda_.2} parent=0 // pred_region
    _
  $region45: #{_lambda_.2} parent=0 // pred_fallthru
    _
  // Predicated region
  $region46: #{_lambda_.2} parent=0 // pred_check
    _
  $region47: #{_lambda_.2} parent=0 // pred_check_branch
    %3184 = sbr.rel (0) target = $region49
  $region48: #{_lambda_.2} parent=0 // pred_region
    _
  $region49: #{_lambda_.2} parent=0 // pred_fallthru
    _
  // Predicated region
  $region50: #{_lambda_.2} parent=0 // pred_check
    _
  $region51: #{_lambda_.2} parent=0 // pred_check_branch
    %3186 = sbr.rel (0) target = $region53
  $region52: #{_lambda_.2} parent=0 // pred_region
    _
  $region53: #{_lambda_.2} parent=0 // pred_fallthru
    _
  // Predicated region
  $region54: #{_lambda_.2} parent=0 // pred_check
    _
  $region55: #{_lambda_.2} parent=0 // pred_check_branch
    %3188 = sbr.rel (0) target = $region57
  $region56: #{_lambda_.2} parent=0 // pred_region
    _
  $region57: #{_lambda_.2} parent=0 // pred_fallthru
    _

</llo_original>
